<compile_context>
chip_gen: v7x
topology: tpu7x:2x2x1
jax: 0.10.0
libtpu: 0.0.40
codegen_flags: <defaults>
</compile_context>

<pallas_src>
import functools

import jax
import jax.numpy as jnp
import numpy as np
from jax.experimental import pallas as pl
from jax.experimental.pallas import tpu as pltpu

CP = 128                      # padded channel width (full vreg lane width)
COMPUTE_DTYPE = jnp.bfloat16  # MXU operand dtype; accumulation is f32


def _round_up(x, m):
    return ((x + m - 1) // m) * m


# --------------------------------------------------------------------------
# Fused decoder kernel (one grid step == one full image, all layers)
# --------------------------------------------------------------------------
def _decoder_kernel(p1_ref, w1_ref, b1_ref,
                    w2_ref, b2_ref, w3_ref, b3_ref, w4_ref, b4_ref,
                    w5_ref, b5_ref,
                    o_ref, ext_ref, *, W, Wp, B8, M, E):
    # Zero-pad guards (y = -1 row + left pad of row 0, and y = H row + read
    # slack for the (+1,+1) tap).  Aligned, lane-dense, tiny bf16 stores.
    ext_ref[0:B8, :] = jnp.zeros((B8, CP), jnp.bfloat16)
    ext_ref[B8 + M:E, :] = jnp.zeros((E - B8 - M, CP), jnp.bfloat16)

    # Pitched layout: flat index m = y*Wp + x, x == W is the baked-in zero
    # column (it doubles as the right pad of row y and the left pad of row
    # y+1).  `valid` re-zeroes that column whenever an activation is stored.
    col = jax.lax.broadcasted_iota(jnp.int32, (M, CP), 0) % Wp
    valid = col < W

    def store_act(act_f32):
        # Single f32 select + single bf16 cast per layer (aligned store: B8 is
        # a multiple of 8).
        ext_ref[B8:B8 + M, :] = jnp.where(valid, act_f32, 0.0).astype(jnp.bfloat16)

    def conv3x3_relu(w_ref, b_ref):
        # 3x3 conv (pad=1) as 9 shifted-slice MXU matmuls over the bf16
        # VMEM-resident activation (in-kernel im2col); bias folded into the
        # accumulator init; taps need no edge masking thanks to the pitched
        # layout.
        # TODO(synk): on v6e/v7x, K-group the taps (stage a (M, 384) bf16
        # operand per dy row, 3 dots of K=384) if a bundle dump shows the
        # VALU/vld slots binding; kept at K=128 per tap here (v5e-optimal).
        acc = jnp.broadcast_to(b_ref[...], (M, CP))          # f32
        k = 0
        for dy in (-1, 0, 1):
            for dx in (-1, 0, 1):
                s = B8 + dy * Wp + dx                        # static offset
                acc = acc + jnp.dot(ext_ref[s:s + M, :], w_ref[k],
                                    preferred_element_type=jnp.float32)
                k += 1
        return jnp.maximum(acc, 0.0)                         # f32 epilogue

    # ---- layer 1: 7x7 conv (host-side im2col) as a single matmul ----
    act = jnp.maximum(
        jnp.dot(p1_ref[0], w1_ref[...], preferred_element_type=jnp.float32)
        + b1_ref[...], 0.0)                                  # (M, CP) f32
    store_act(act)

    # ---- layers 2-4: 3x3 convs + folded BN + ReLU, fully VMEM resident ----
    store_act(conv3x3_relu(w2_ref, b2_ref))
    store_act(conv3x3_relu(w3_ref, b3_ref))
    act = conv3x3_relu(w4_ref, b4_ref)       # o1; only feeds the 1x1 conv

    # ---- o2: 1x1 conv + bias, no ReLU; 128-lane-dense bf16 output ----
    out = jnp.dot(act.astype(COMPUTE_DTYPE), w5_ref[...],
                  preferred_element_type=jnp.float32) + b5_ref[...]
    o_ref[0] = out.astype(o_ref.dtype)


def _const_index_map(ndim):
    return lambda n: (0,) * ndim


def _fused_decoder(patches, kparams, H, W):
    N, M, K1P = patches.shape
    Wp = W + 1
    assert M == H * Wp
    B8 = _round_up(Wp + 1, 8)                       # aligned interior base
    E = _round_up(B8 + (H + 1) * Wp + 1, 8)         # covers the (+1,+1) tap
    (w1, b1), (w2, b2), (w3, b3), (w4, b4), (w5, b5) = kparams

    def full_spec(arr):
        return pl.BlockSpec(arr.shape, _const_index_map(arr.ndim))

    weight_args = (w1, b1, w2, b2, w3, b3, w4, b4, w5, b5)
    return pl.pallas_call(
        functools.partial(_decoder_kernel, W=W, Wp=Wp, B8=B8, M=M, E=E),
        out_shape=jax.ShapeDtypeStruct((N, M, CP), jnp.bfloat16),
        grid=(N,),
        in_specs=[pl.BlockSpec((1, M, K1P), lambda n: (n, 0, 0))]
                 + [full_spec(a) for a in weight_args],
        out_specs=pl.BlockSpec((1, M, CP), lambda n: (n, 0, 0)),
        scratch_shapes=[pltpu.VMEM((E, CP), jnp.bfloat16)],
        compiler_params=pltpu.CompilerParams(
            dimension_semantics=("parallel",)),     # 2 blocks -> both v7x TCs
    )(patches, *weight_args)


# --------------------------------------------------------------------------
# Host-side glue
# --------------------------------------------------------------------------
def _im2col_pitched(x_nhwc, kh, kw, pad, Wp):
    N, H, W, C = x_nhwc.shape
    xp = jnp.pad(x_nhwc, ((0, 0), (pad, pad), (pad, pad), (0, 0)))
    cols = [xp[:, ih:ih + H, iw:iw + W, :]
            for ih in range(kh) for iw in range(kw)]
    patches = jnp.concatenate(cols, axis=-1)            # (N, H, W, kh*kw*C)
    patches = jnp.pad(patches, ((0, 0), (0, 0), (0, Wp - W), (0, 0)))
    return patches.reshape(N, H * Wp, kh * kw * C)      # pitched rows


def decoder_forward(memory_nchw, kparams, n_obj_classes):
    N, C, H, W = memory_nchw.shape
    Wp = W + 1
    # TODO(synk): at production sizes, move the 7x7 im2col into the kernel to
    # avoid the 49x-inflated input HBM traffic; kept host-side for tiny H,W.
    x = jnp.transpose(memory_nchw, (0, 2, 3, 1)).astype(COMPUTE_DTYPE)  # NHWC
    patches = _im2col_pitched(x, 7, 7, 3, Wp)           # (N, H*Wp, 49*C) bf16
    K1 = patches.shape[-1]
    K1P = _round_up(K1, CP)
    patches = jnp.pad(patches, ((0, 0), (0, 0), (0, K1P - K1)))
    out = _fused_decoder(patches, kparams, H, W)        # (N, H*Wp, CP) bf16
    out = out[:, :, :n_obj_classes].reshape(N, H, Wp, n_obj_classes)
    out = out[:, :, :W, :].astype(jnp.float32)          # drop the pad column
    return jnp.transpose(out, (0, 3, 1, 2))             # NHWC -> NCHW


# --------------------------------------------------------------------------
# Parameter construction (deterministic, synthetic) + kernel-format packing
# --------------------------------------------------------------------------
def _conv_w(key, kh, kw, cin, cout):
    fan_in = kh * kw * cin
    return jax.random.normal(key, (kh, kw, cin, cout), jnp.float32) / np.sqrt(fan_in)


def _bn_params(key, c):
    k1, k2, k3 = jax.random.split(key, 3)
    gamma = 1.0 + 0.1 * jax.random.normal(k1, (c,), jnp.float32)
    beta = 0.1 * jax.random.normal(k2, (c,), jnp.float32)
    mean = 0.1 * jax.random.normal(k3, (c,), jnp.float32)
    var = jnp.ones((c,), jnp.float32)
    return gamma, beta, mean, var


def _fold_bn(w_hwio, gamma, beta, mean, var, eps=1e-5):
    scale = gamma / jnp.sqrt(var + eps)
    return w_hwio * scale, beta - mean * scale


def build_params(key, feat_dim, n_obj_classes):
    ks = jax.random.split(key, 10)
    params = {}
    cfgs = [("l1", 7, feat_dim, 128),   # Conv 7x7 + BN + ReLU
            ("l2", 3, 128, 64),         # Conv 3x3 + BN + ReLU
            ("l3", 3, 64, 48),          # Conv 3x3 + BN + ReLU
            ("o1", 3, 48, 48)]          # Conv 3x3 + BN + ReLU
    idx = 0
    for name, k, cin, cout in cfgs:
        w = _conv_w(ks[idx], k, k, cin, cout); idx += 1
        gamma, beta, mean, var = _bn_params(ks[idx], cout); idx += 1
        params[name] = _fold_bn(w, gamma, beta, mean, var)
    w5 = _conv_w(ks[idx], 1, 1, 48, n_obj_classes); idx += 1
    b5 = 0.1 * jax.random.normal(ks[idx], (n_obj_classes,), jnp.float32)
    params["o2"] = (w5, b5)
    return params


def prepare_kernel_params(params, feat_dim):
    """BN-folded weights -> padded, bf16, kernel-layout tensors."""
    def pad_w(w):
        kh, kw, cin, cout = w.shape
        return jnp.pad(w, ((0, 0), (0, 0), (0, CP - cin), (0, CP - cout)))

    def pad_b(b):
        return jnp.pad(b, (0, CP - b.shape[0])).reshape(1, CP).astype(jnp.float32)

    kparams = []
    # Layer 1 (7x7): im2col weight matrix, K padded to a multiple of 128.
    w, b = params["l1"]
    K1 = 7 * 7 * feat_dim
    K1P = _round_up(K1, CP)
    wm = w.reshape(K1, w.shape[-1])
    wm = jnp.pad(wm, ((0, K1P - K1), (0, CP - w.shape[-1])))
    kparams.append((wm.astype(COMPUTE_DTYPE), pad_b(b)))
    # Layers 2-4 (3x3): tap-major (9, CP, CP), channels zero-padded to 128.
    for name in ("l2", "l3", "o1"):
        w, b = params[name]
        kparams.append((pad_w(w).reshape(9, CP, CP).astype(COMPUTE_DTYPE),
                        pad_b(b)))
    # o2 (1x1): plain (CP, CP) matrix + bias.
    w, b = params["o2"]
    kparams.append((pad_w(w).reshape(CP, CP).astype(COMPUTE_DTYPE), pad_b(b)))
    return kparams


# --------------------------------------------------------------------------
# Pure-JAX reference (same bf16-operand / f32-accumulate numerics)
# --------------------------------------------------------------------------
_LAYER_SPECS = [("l1", 3, True), ("l2", 1, True), ("l3", 1, True),
                ("o1", 1, True), ("o2", 0, False)]


def _ref_conv(x_nchw, w_hwio, bias, pad, relu):
    xb = x_nchw.astype(COMPUTE_DTYPE)
    wb = jnp.transpose(w_hwio, (3, 2, 0, 1)).astype(COMPUTE_DTYPE)
    y = jax.lax.conv_general_dilated(
        xb, wb, window_strides=(1, 1),
        padding=((pad, pad), (pad, pad)),
        dimension_numbers=("NCHW", "OIHW", "NCHW"),
        preferred_element_type=jnp.float32)
    y = y + bias.reshape(1, -1, 1, 1).astype(jnp.float32)
    if relu:
        y = jnp.maximum(y, 0.0)
    return y


def decoder_reference(memory_nchw, params):
    x = memory_nchw
    for name, pad, relu in _LAYER_SPECS:
        w, b = params[name]
        x = _ref_conv(x, w, b, pad, relu)
    return x


if __name__ == "__main__":
    key = jax.random.PRNGKey(0)
    feat_dim, n_obj_classes = 4, 6
    N, H, W = 2, 16, 16

    kmem, kpar = jax.random.split(key)
    memory = jax.random.normal(kmem, (N, feat_dim, H, W), jnp.float32)  # NCHW
    params = build_params(kpar, feat_dim, n_obj_classes)
    kparams = prepare_kernel_params(params, feat_dim)

    fwd = jax.jit(lambda m: decoder_forward(m, kparams, n_obj_classes))
    out = jax.block_until_ready(fwd(memory))
    assert out.shape == (N, n_obj_classes, H, W), out.shape

    ref = jax.block_until_ready(decoder_reference(memory, params))
    # bf16 MXU operands + bf16 output store => tolerance at bf16 noise level.
    np.testing.assert_allclose(np.asarray(out), np.asarray(ref),
                               rtol=2e-2, atol=2e-2)
    print("KERNEL_OK")
</pallas_src>

<mosaic_0001>
module attributes {stable_mosaic.version = 11 : i64} {
  func.func @_decoder_kernel(%arg0: i32, %arg1: memref<1x272x256xbf16, #tpu.memory_space<vmem>>, %arg2: memref<256x128xbf16, #tpu.memory_space<vmem>>, %arg3: memref<1x128xf32, #tpu.memory_space<vmem>>, %arg4: memref<9x128x128xbf16, #tpu.memory_space<vmem>>, %arg5: memref<1x128xf32, #tpu.memory_space<vmem>>, %arg6: memref<9x128x128xbf16, #tpu.memory_space<vmem>>, %arg7: memref<1x128xf32, #tpu.memory_space<vmem>>, %arg8: memref<9x128x128xbf16, #tpu.memory_space<vmem>>, %arg9: memref<1x128xf32, #tpu.memory_space<vmem>>, %arg10: memref<128x128xbf16, #tpu.memory_space<vmem>>, %arg11: memref<1x128xf32, #tpu.memory_space<vmem>>, %arg12: memref<1x272x128xbf16, #tpu.memory_space<vmem>>, %arg13: memref<320x128xbf16, #tpu.memory_space<vmem>>) attributes {dimension_semantics = [#tpu.dimension_semantics<parallel>], iteration_bounds = array<i64: 2>, scalar_prefetch = 0 : i64, scratch_operands = 1 : i64, tpu.core_type = #tpu.core_type<tc>, window_params = [{transform_indices = @transform_0, window_bounds = array<i64: 1, 272, 256>}, {pipeline_mode = #tpu.pipeline_mode<synchronous>, transform_indices = @transform_1, window_bounds = array<i64: 256, 128>}, {pipeline_mode = #tpu.pipeline_mode<synchronous>, transform_indices = @transform_2, window_bounds = array<i64: 1, 128>}, {pipeline_mode = #tpu.pipeline_mode<synchronous>, transform_indices = @transform_3, window_bounds = array<i64: 9, 128, 128>}, {pipeline_mode = #tpu.pipeline_mode<synchronous>, transform_indices = @transform_4, window_bounds = array<i64: 1, 128>}, {pipeline_mode = #tpu.pipeline_mode<synchronous>, transform_indices = @transform_5, window_bounds = array<i64: 9, 128, 128>}, {pipeline_mode = #tpu.pipeline_mode<synchronous>, transform_indices = @transform_6, window_bounds = array<i64: 1, 128>}, {pipeline_mode = #tpu.pipeline_mode<synchronous>, transform_indices = @transform_7, window_bounds = array<i64: 9, 128, 128>}, {pipeline_mode = #tpu.pipeline_mode<synchronous>, transform_indices = @transform_8, window_bounds = array<i64: 1, 128>}, {pipeline_mode = #tpu.pipeline_mode<synchronous>, transform_indices = @transform_9, window_bounds = array<i64: 128, 128>}, {pipeline_mode = #tpu.pipeline_mode<synchronous>, transform_indices = @transform_10, window_bounds = array<i64: 1, 128>}, {transform_indices = @transform_11, window_bounds = array<i64: 1, 272, 128>}]} {
    %cst = arith.constant 0.000000e+00 : bf16
    %0 = vector.broadcast %cst : bf16 to vector<24x128xbf16>
    %c0 = arith.constant 0 : index
    %c0_0 = arith.constant 0 : index
    %1 = vector.load %arg13[%c0, %c0_0] : memref<320x128xbf16, #tpu.memory_space<vmem>>, vector<24x128xbf16>
    tpu.vector_store %arg13[%c0, %c0_0], %0 {strides = array<i32>} : memref<320x128xbf16, #tpu.memory_space<vmem>>, vector<24x128xbf16>,
    %cst_1 = arith.constant 0.000000e+00 : bf16
    %2 = vector.broadcast %cst_1 : bf16 to vector<24x128xbf16>
    %c296 = arith.constant 296 : index
    %c0_2 = arith.constant 0 : index
    %3 = vector.load %arg13[%c296, %c0_2] : memref<320x128xbf16, #tpu.memory_space<vmem>>, vector<24x128xbf16>
    tpu.vector_store %arg13[%c296, %c0_2], %2 {strides = array<i32>} : memref<320x128xbf16, #tpu.memory_space<vmem>>, vector<24x128xbf16>,
    %4 = tpu.iota {dimensions = array<i32: 0>} : vector<272x128xi32>
    %c17_i32 = arith.constant 17 : i32
    %c0_i32 = arith.constant 0 : i32
    %5 = arith.cmpi eq, %c17_i32, %c0_i32 : i32
    %c1_i32 = arith.constant 1 : i32
    %6 = arith.select %5, %c1_i32, %c17_i32 : i32
    %7 = vector.broadcast %6 : i32 to vector<272x128xi32>
    %8 = arith.remsi %4, %7 : vector<272x128xi32>
    %c0_i32_3 = arith.constant 0 : i32
    %9 = vector.broadcast %c0_i32_3 : i32 to vector<272x128xi32>
    %10 = arith.cmpi ne, %8, %9 : vector<272x128xi32>
    %c0_i32_4 = arith.constant 0 : i32
    %11 = vector.broadcast %c0_i32_4 : i32 to vector<272x128xi32>
    %12 = arith.cmpi slt, %8, %11 : vector<272x128xi32>
    %c0_i32_5 = arith.constant 0 : i32
    %13 = arith.cmpi slt, %6, %c0_i32_5 : i32
    %14 = vector.broadcast %13 : i1 to vector<272x128xi1>
    %15 = vector.broadcast %14 : vector<272x128xi1> to vector<272x128xi1>
    %16 = arith.xori %12, %15 : vector<272x128xi1>
    %17 = arith.andi %16, %10 : vector<272x128xi1>
    %18 = vector.broadcast %6 : i32 to vector<272x128xi32>
    %19 = arith.addi %8, %18 : vector<272x128xi32>
    %20 = arith.select %17, %19, %8 : vector<272x128xi1>, vector<272x128xi32>
    %c16_i32 = arith.constant 16 : i32
    %21 = vector.broadcast %c16_i32 : i32 to vector<272x128xi32>
    %22 = arith.cmpi slt, %20, %21 : vector<272x128xi32>
    %c0_6 = arith.constant 0 : index
    %c0_7 = arith.constant 0 : index
    %c0_8 = arith.constant 0 : index
    %23 = vector.load %arg1[%c0_6, %c0_7, %c0_8] : memref<1x272x256xbf16, #tpu.memory_space<vmem>>, vector<1x272x256xbf16>
    %24 = vector.shape_cast %23 : vector<1x272x256xbf16> to vector<272x256xbf16>
    %c0_9 = arith.constant 0 : index
    %c0_10 = arith.constant 0 : index
    %25 = vector.load %arg2[%c0_9, %c0_10] : memref<256x128xbf16, #tpu.memory_space<vmem>>, vector<256x128xbf16>
    %cst_11 = arith.constant dense<0.000000e+00> : vector<272x128xf32>
    %26 = tpu.matmul %24, %25, %cst_11 {dimension_numbers = #tpu.dot_dimension_numbers<[1], [0], [0], [1], [0, 0, 1, 1], [], []>} : vector<272x256xbf16>, vector<256x128xbf16>, vector<272x128xf32> -> vector<272x128xf32>
    %c0_12 = arith.constant 0 : index
    %c0_13 = arith.constant 0 : index
    %27 = vector.load %arg3[%c0_12, %c0_13] : memref<1x128xf32, #tpu.memory_space<vmem>>, vector<1x128xf32>
    %28 = vector.broadcast %27 : vector<1x128xf32> to vector<272x128xf32>
    %29 = arith.addf %26, %28 : vector<272x128xf32>
    %cst_14 = arith.constant 0.000000e+00 : f32
    %30 = vector.broadcast %cst_14 : f32 to vector<272x128xf32>
    %31 = arith.maximumf %29, %30 : vector<272x128xf32>
    %cst_15 = arith.constant 0.000000e+00 : f32
    %32 = vector.broadcast %cst_15 : f32 to vector<272x128xf32>
    %33 = arith.select %22, %31, %32 : vector<272x128xi1>, vector<272x128xf32>
    %34 = arith.truncf %33 : vector<272x128xf32> to vector<272x128xbf16>
    %c24 = arith.constant 24 : index
    %c0_16 = arith.constant 0 : index
    %35 = vector.load %arg13[%c24, %c0_16] : memref<320x128xbf16, #tpu.memory_space<vmem>>, vector<272x128xbf16>
    tpu.vector_store %arg13[%c24, %c0_16], %34 {strides = array<i32>} : memref<320x128xbf16, #tpu.memory_space<vmem>>, vector<272x128xbf16>,
    %c0_17 = arith.constant 0 : index
    %c0_18 = arith.constant 0 : index
    %36 = vector.load %arg5[%c0_17, %c0_18] : memref<1x128xf32, #tpu.memory_space<vmem>>, vector<1x128xf32>
    %37 = vector.shape_cast %36 : vector<1x128xf32> to vector<1x128xf32>
    %38 = vector.broadcast %37 : vector<1x128xf32> to vector<272x128xf32>
    %c6 = arith.constant 6 : index
    %c0_19 = arith.constant 0 : index
    %39 = vector.load %arg13[%c6, %c0_19] : memref<320x128xbf16, #tpu.memory_space<vmem>>, vector<272x128xbf16>
    %c0_20 = arith.constant 0 : index
    %c0_21 = arith.constant 0 : index
    %c0_22 = arith.constant 0 : index
    %40 = vector.load %arg4[%c0_20, %c0_21, %c0_22] : memref<9x128x128xbf16, #tpu.memory_space<vmem>>, vector<1x128x128xbf16>
    %41 = vector.shape_cast %40 : vector<1x128x128xbf16> to vector<128x128xbf16>
    %cst_23 = arith.constant dense<0.000000e+00> : vector<272x128xf32>
    %42 = tpu.matmul %39, %41, %cst_23 {dimension_numbers = #tpu.dot_dimension_numbers<[1], [0], [0], [1], [0, 0, 1, 1], [], []>} : vector<272x128xbf16>, vector<128x128xbf16>, vector<272x128xf32> -> vector<272x128xf32>
    %43 = arith.addf %38, %42 : vector<272x128xf32>
    %c7 = arith.constant 7 : index
    %c0_24 = arith.constant 0 : index
    %44 = vector.load %arg13[%c7, %c0_24] : memref<320x128xbf16, #tpu.memory_space<vmem>>, vector<272x128xbf16>
    %c1 = arith.constant 1 : index
    %c0_25 = arith.constant 0 : index
    %c0_26 = arith.constant 0 : index
    %45 = vector.load %arg4[%c1, %c0_25, %c0_26] : memref<9x128x128xbf16, #tpu.memory_space<vmem>>, vector<1x128x128xbf16>
    %46 = vector.shape_cast %45 : vector<1x128x128xbf16> to vector<128x128xbf16>
    %cst_27 = arith.constant dense<0.000000e+00> : vector<272x128xf32>
    %47 = tpu.matmul %44, %46, %cst_27 {dimension_numbers = #tpu.dot_dimension_numbers<[1], [0], [0], [1], [0, 0, 1, 1], [], []>} : vector<272x128xbf16>, vector<128x128xbf16>, vector<272x128xf32> -> vector<272x128xf32>
    %48 = arith.addf %43, %47 : vector<272x128xf32>
    %c8 = arith.constant 8 : index
    %c0_28 = arith.constant 0 : index
    %49 = vector.load %arg13[%c8, %c0_28] : memref<320x128xbf16, #tpu.memory_space<vmem>>, vector<272x128xbf16>
    %c2 = arith.constant 2 : index
    %c0_29 = arith.constant 0 : index
    %c0_30 = arith.constant 0 : index
    %50 = vector.load %arg4[%c2, %c0_29, %c0_30] : memref<9x128x128xbf16, #tpu.memory_space<vmem>>, vector<1x128x128xbf16>
    %51 = vector.shape_cast %50 : vector<1x128x128xbf16> to vector<128x128xbf16>
    %cst_31 = arith.constant dense<0.000000e+00> : vector<272x128xf32>
    %52 = tpu.matmul %49, %51, %cst_31 {dimension_numbers = #tpu.dot_dimension_numbers<[1], [0], [0], [1], [0, 0, 1, 1], [], []>} : vector<272x128xbf16>, vector<128x128xbf16>, vector<272x128xf32> -> vector<272x128xf32>
    %53 = arith.addf %48, %52 : vector<272x128xf32>
    %c23 = arith.constant 23 : index
    %c0_32 = arith.constant 0 : index
    %54 = vector.load %arg13[%c23, %c0_32] : memref<320x128xbf16, #tpu.memory_space<vmem>>, vector<272x128xbf16>
    %c3 = arith.constant 3 : index
    %c0_33 = arith.constant 0 : index
    %c0_34 = arith.constant 0 : index
    %55 = vector.load %arg4[%c3, %c0_33, %c0_34] : memref<9x128x128xbf16, #tpu.memory_space<vmem>>, vector<1x128x128xbf16>
    %56 = vector.shape_cast %55 : vector<1x128x128xbf16> to vector<128x128xbf16>
    %cst_35 = arith.constant dense<0.000000e+00> : vector<272x128xf32>
    %57 = tpu.matmul %54, %56, %cst_35 {dimension_numbers = #tpu.dot_dimension_numbers<[1], [0], [0], [1], [0, 0, 1, 1], [], []>} : vector<272x128xbf16>, vector<128x128xbf16>, vector<272x128xf32> -> vector<272x128xf32>
    %58 = arith.addf %53, %57 : vector<272x128xf32>
    %c24_36 = arith.constant 24 : index
    %c0_37 = arith.constant 0 : index
    %59 = vector.load %arg13[%c24_36, %c0_37] : memref<320x128xbf16, #tpu.memory_space<vmem>>, vector<272x128xbf16>
    %c4 = arith.constant 4 : index
    %c0_38 = arith.constant 0 : index
    %c0_39 = arith.constant 0 : index
    %60 = vector.load %arg4[%c4, %c0_38, %c0_39] : memref<9x128x128xbf16, #tpu.memory_space<vmem>>, vector<1x128x128xbf16>
    %61 = vector.shape_cast %60 : vector<1x128x128xbf16> to vector<128x128xbf16>
    %cst_40 = arith.constant dense<0.000000e+00> : vector<272x128xf32>
    %62 = tpu.matmul %59, %61, %cst_40 {dimension_numbers = #tpu.dot_dimension_numbers<[1], [0], [0], [1], [0, 0, 1, 1], [], []>} : vector<272x128xbf16>, vector<128x128xbf16>, vector<272x128xf32> -> vector<272x128xf32>
    %63 = arith.addf %58, %62 : vector<272x128xf32>
    %c25 = arith.constant 25 : index
    %c0_41 = arith.constant 0 : index
    %64 = vector.load %arg13[%c25, %c0_41] : memref<320x128xbf16, #tpu.memory_space<vmem>>, vector<272x128xbf16>
    %c5 = arith.constant 5 : index
    %c0_42 = arith.constant 0 : index
    %c0_43 = arith.constant 0 : index
    %65 = vector.load %arg4[%c5, %c0_42, %c0_43] : memref<9x128x128xbf16, #tpu.memory_space<vmem>>, vector<1x128x128xbf16>
    %66 = vector.shape_cast %65 : vector<1x128x128xbf16> to vector<128x128xbf16>
    %cst_44 = arith.constant dense<0.000000e+00> : vector<272x128xf32>
    %67 = tpu.matmul %64, %66, %cst_44 {dimension_numbers = #tpu.dot_dimension_numbers<[1], [0], [0], [1], [0, 0, 1, 1], [], []>} : vector<272x128xbf16>, vector<128x128xbf16>, vector<272x128xf32> -> vector<272x128xf32>
    %68 = arith.addf %63, %67 : vector<272x128xf32>
    %c40 = arith.constant 40 : index
    %c0_45 = arith.constant 0 : index
    %69 = vector.load %arg13[%c40, %c0_45] : memref<320x128xbf16, #tpu.memory_space<vmem>>, vector<272x128xbf16>
    %c6_46 = arith.constant 6 : index
    %c0_47 = arith.constant 0 : index
    %c0_48 = arith.constant 0 : index
    %70 = vector.load %arg4[%c6_46, %c0_47, %c0_48] : memref<9x128x128xbf16, #tpu.memory_space<vmem>>, vector<1x128x128xbf16>
    %71 = vector.shape_cast %70 : vector<1x128x128xbf16> to vector<128x128xbf16>
    %cst_49 = arith.constant dense<0.000000e+00> : vector<272x128xf32>
    %72 = tpu.matmul %69, %71, %cst_49 {dimension_numbers = #tpu.dot_dimension_numbers<[1], [0], [0], [1], [0, 0, 1, 1], [], []>} : vector<272x128xbf16>, vector<128x128xbf16>, vector<272x128xf32> -> vector<272x128xf32>
    %73 = arith.addf %68, %72 : vector<272x128xf32>
    %c41 = arith.constant 41 : index
    %c0_50 = arith.constant 0 : index
    %74 = vector.load %arg13[%c41, %c0_50] : memref<320x128xbf16, #tpu.memory_space<vmem>>, vector<272x128xbf16>
    %c7_51 = arith.constant 7 : index
    %c0_52 = arith.constant 0 : index
    %c0_53 = arith.constant 0 : index
    %75 = vector.load %arg4[%c7_51, %c0_52, %c0_53] : memref<9x128x128xbf16, #tpu.memory_space<vmem>>, vector<1x128x128xbf16>
    %76 = vector.shape_cast %75 : vector<1x128x128xbf16> to vector<128x128xbf16>
    %cst_54 = arith.constant dense<0.000000e+00> : vector<272x128xf32>
    %77 = tpu.matmul %74, %76, %cst_54 {dimension_numbers = #tpu.dot_dimension_numbers<[1], [0], [0], [1], [0, 0, 1, 1], [], []>} : vector<272x128xbf16>, vector<128x128xbf16>, vector<272x128xf32> -> vector<272x128xf32>
    %78 = arith.addf %73, %77 : vector<272x128xf32>
    %c42 = arith.constant 42 : index
    %c0_55 = arith.constant 0 : index
    %79 = vector.load %arg13[%c42, %c0_55] : memref<320x128xbf16, #tpu.memory_space<vmem>>, vector<272x128xbf16>
    %c8_56 = arith.constant 8 : index
    %c0_57 = arith.constant 0 : index
    %c0_58 = arith.constant 0 : index
    %80 = vector.load %arg4[%c8_56, %c0_57, %c0_58] : memref<9x128x128xbf16, #tpu.memory_space<vmem>>, vector<1x128x128xbf16>
    %81 = vector.shape_cast %80 : vector<1x128x128xbf16> to vector<128x128xbf16>
    %cst_59 = arith.constant dense<0.000000e+00> : vector<272x128xf32>
    %82 = tpu.matmul %79, %81, %cst_59 {dimension_numbers = #tpu.dot_dimension_numbers<[1], [0], [0], [1], [0, 0, 1, 1], [], []>} : vector<272x128xbf16>, vector<128x128xbf16>, vector<272x128xf32> -> vector<272x128xf32>
    %83 = arith.addf %78, %82 : vector<272x128xf32>
    %cst_60 = arith.constant 0.000000e+00 : f32
    %84 = vector.broadcast %cst_60 : f32 to vector<272x128xf32>
    %85 = arith.maximumf %83, %84 : vector<272x128xf32>
    %cst_61 = arith.constant 0.000000e+00 : f32
    %86 = vector.broadcast %cst_61 : f32 to vector<272x128xf32>
    %87 = arith.select %22, %85, %86 : vector<272x128xi1>, vector<272x128xf32>
    %88 = arith.truncf %87 : vector<272x128xf32> to vector<272x128xbf16>
    %c24_62 = arith.constant 24 : index
    %c0_63 = arith.constant 0 : index
    %89 = vector.load %arg13[%c24_62, %c0_63] : memref<320x128xbf16, #tpu.memory_space<vmem>>, vector<272x128xbf16>
    tpu.vector_store %arg13[%c24_62, %c0_63], %88 {strides = array<i32>} : memref<320x128xbf16, #tpu.memory_space<vmem>>, vector<272x128xbf16>,
    %c0_64 = arith.constant 0 : index
    %c0_65 = arith.constant 0 : index
    %90 = vector.load %arg7[%c0_64, %c0_65] : memref<1x128xf32, #tpu.memory_space<vmem>>, vector<1x128xf32>
    %91 = vector.shape_cast %90 : vector<1x128xf32> to vector<1x128xf32>
    %92 = vector.broadcast %91 : vector<1x128xf32> to vector<272x128xf32>
    %c6_66 = arith.constant 6 : index
    %c0_67 = arith.constant 0 : index
    %93 = vector.load %arg13[%c6_66, %c0_67] : memref<320x128xbf16, #tpu.memory_space<vmem>>, vector<272x128xbf16>
    %c0_68 = arith.constant 0 : index
    %c0_69 = arith.constant 0 : index
    %c0_70 = arith.constant 0 : index
    %94 = vector.load %arg6[%c0_68, %c0_69, %c0_70] : memref<9x128x128xbf16, #tpu.memory_space<vmem>>, vector<1x128x128xbf16>
    %95 = vector.shape_cast %94 : vector<1x128x128xbf16> to vector<128x128xbf16>
    %cst_71 = arith.constant dense<0.000000e+00> : vector<272x128xf32>
    %96 = tpu.matmul %93, %95, %cst_71 {dimension_numbers = #tpu.dot_dimension_numbers<[1], [0], [0], [1], [0, 0, 1, 1], [], []>} : vector<272x128xbf16>, vector<128x128xbf16>, vector<272x128xf32> -> vector<272x128xf32>
    %97 = arith.addf %92, %96 : vector<272x128xf32>
    %c7_72 = arith.constant 7 : index
    %c0_73 = arith.constant 0 : index
    %98 = vector.load %arg13[%c7_72, %c0_73] : memref<320x128xbf16, #tpu.memory_space<vmem>>, vector<272x128xbf16>
    %c1_74 = arith.constant 1 : index
    %c0_75 = arith.constant 0 : index
    %c0_76 = arith.constant 0 : index
    %99 = vector.load %arg6[%c1_74, %c0_75, %c0_76] : memref<9x128x128xbf16, #tpu.memory_space<vmem>>, vector<1x128x128xbf16>
    %100 = vector.shape_cast %99 : vector<1x128x128xbf16> to vector<128x128xbf16>
    %cst_77 = arith.constant dense<0.000000e+00> : vector<272x128xf32>
    %101 = tpu.matmul %98, %100, %cst_77 {dimension_numbers = #tpu.dot_dimension_numbers<[1], [0], [0], [1], [0, 0, 1, 1], [], []>} : vector<272x128xbf16>, vector<128x128xbf16>, vector<272x128xf32> -> vector<272x128xf32>
    %102 = arith.addf %97, %101 : vector<272x128xf32>
    %c8_78 = arith.constant 8 : index
    %c0_79 = arith.constant 0 : index
    %103 = vector.load %arg13[%c8_78, %c0_79] : memref<320x128xbf16, #tpu.memory_space<vmem>>, vector<272x128xbf16>
    %c2_80 = arith.constant 2 : index
    %c0_81 = arith.constant 0 : index
    %c0_82 = arith.constant 0 : index
    %104 = vector.load %arg6[%c2_80, %c0_81, %c0_82] : memref<9x128x128xbf16, #tpu.memory_space<vmem>>, vector<1x128x128xbf16>
    %105 = vector.shape_cast %104 : vector<1x128x128xbf16> to vector<128x128xbf16>
    %cst_83 = arith.constant dense<0.000000e+00> : vector<272x128xf32>
    %106 = tpu.matmul %103, %105, %cst_83 {dimension_numbers = #tpu.dot_dimension_numbers<[1], [0], [0], [1], [0, 0, 1, 1], [], []>} : vector<272x128xbf16>, vector<128x128xbf16>, vector<272x128xf32> -> vector<272x128xf32>
    %107 = arith.addf %102, %106 : vector<272x128xf32>
    %c23_84 = arith.constant 23 : index
    %c0_85 = arith.constant 0 : index
    %108 = vector.load %arg13[%c23_84, %c0_85] : memref<320x128xbf16, #tpu.memory_space<vmem>>, vector<272x128xbf16>
    %c3_86 = arith.constant 3 : index
    %c0_87 = arith.constant 0 : index
    %c0_88 = arith.constant 0 : index
    %109 = vector.load %arg6[%c3_86, %c0_87, %c0_88] : memref<9x128x128xbf16, #tpu.memory_space<vmem>>, vector<1x128x128xbf16>
    %110 = vector.shape_cast %109 : vector<1x128x128xbf16> to vector<128x128xbf16>
    %cst_89 = arith.constant dense<0.000000e+00> : vector<272x128xf32>
    %111 = tpu.matmul %108, %110, %cst_89 {dimension_numbers = #tpu.dot_dimension_numbers<[1], [0], [0], [1], [0, 0, 1, 1], [], []>} : vector<272x128xbf16>, vector<128x128xbf16>, vector<272x128xf32> -> vector<272x128xf32>
    %112 = arith.addf %107, %111 : vector<272x128xf32>
    %c24_90 = arith.constant 24 : index
    %c0_91 = arith.constant 0 : index
    %113 = vector.load %arg13[%c24_90, %c0_91] : memref<320x128xbf16, #tpu.memory_space<vmem>>, vector<272x128xbf16>
    %c4_92 = arith.constant 4 : index
    %c0_93 = arith.constant 0 : index
    %c0_94 = arith.constant 0 : index
    %114 = vector.load %arg6[%c4_92, %c0_93, %c0_94] : memref<9x128x128xbf16, #tpu.memory_space<vmem>>, vector<1x128x128xbf16>
    %115 = vector.shape_cast %114 : vector<1x128x128xbf16> to vector<128x128xbf16>
    %cst_95 = arith.constant dense<0.000000e+00> : vector<272x128xf32>
    %116 = tpu.matmul %113, %115, %cst_95 {dimension_numbers = #tpu.dot_dimension_numbers<[1], [0], [0], [1], [0, 0, 1, 1], [], []>} : vector<272x128xbf16>, vector<128x128xbf16>, vector<272x128xf32> -> vector<272x128xf32>
    %117 = arith.addf %112, %116 : vector<272x128xf32>
    %c25_96 = arith.constant 25 : index
    %c0_97 = arith.constant 0 : index
    %118 = vector.load %arg13[%c25_96, %c0_97] : memref<320x128xbf16, #tpu.memory_space<vmem>>, vector<272x128xbf16>
    %c5_98 = arith.constant 5 : index
    %c0_99 = arith.constant 0 : index
    %c0_100 = arith.constant 0 : index
    %119 = vector.load %arg6[%c5_98, %c0_99, %c0_100] : memref<9x128x128xbf16, #tpu.memory_space<vmem>>, vector<1x128x128xbf16>
    %120 = vector.shape_cast %119 : vector<1x128x128xbf16> to vector<128x128xbf16>
    %cst_101 = arith.constant dense<0.000000e+00> : vector<272x128xf32>
    %121 = tpu.matmul %118, %120, %cst_101 {dimension_numbers = #tpu.dot_dimension_numbers<[1], [0], [0], [1], [0, 0, 1, 1], [], []>} : vector<272x128xbf16>, vector<128x128xbf16>, vector<272x128xf32> -> vector<272x128xf32>
    %122 = arith.addf %117, %121 : vector<272x128xf32>
    %c40_102 = arith.constant 40 : index
    %c0_103 = arith.constant 0 : index
    %123 = vector.load %arg13[%c40_102, %c0_103] : memref<320x128xbf16, #tpu.memory_space<vmem>>, vector<272x128xbf16>
    %c6_104 = arith.constant 6 : index
    %c0_105 = arith.constant 0 : index
    %c0_106 = arith.constant 0 : index
    %124 = vector.load %arg6[%c6_104, %c0_105, %c0_106] : memref<9x128x128xbf16, #tpu.memory_space<vmem>>, vector<1x128x128xbf16>
    %125 = vector.shape_cast %124 : vector<1x128x128xbf16> to vector<128x128xbf16>
    %cst_107 = arith.constant dense<0.000000e+00> : vector<272x128xf32>
    %126 = tpu.matmul %123, %125, %cst_107 {dimension_numbers = #tpu.dot_dimension_numbers<[1], [0], [0], [1], [0, 0, 1, 1], [], []>} : vector<272x128xbf16>, vector<128x128xbf16>, vector<272x128xf32> -> vector<272x128xf32>
    %127 = arith.addf %122, %126 : vector<272x128xf32>
    %c41_108 = arith.constant 41 : index
    %c0_109 = arith.constant 0 : index
    %128 = vector.load %arg13[%c41_108, %c0_109] : memref<320x128xbf16, #tpu.memory_space<vmem>>, vector<272x128xbf16>
    %c7_110 = arith.constant 7 : index
    %c0_111 = arith.constant 0 : index
    %c0_112 = arith.constant 0 : index
    %129 = vector.load %arg6[%c7_110, %c0_111, %c0_112] : memref<9x128x128xbf16, #tpu.memory_space<vmem>>, vector<1x128x128xbf16>
    %130 = vector.shape_cast %129 : vector<1x128x128xbf16> to vector<128x128xbf16>
    %cst_113 = arith.constant dense<0.000000e+00> : vector<272x128xf32>
    %131 = tpu.matmul %128, %130, %cst_113 {dimension_numbers = #tpu.dot_dimension_numbers<[1], [0], [0], [1], [0, 0, 1, 1], [], []>} : vector<272x128xbf16>, vector<128x128xbf16>, vector<272x128xf32> -> vector<272x128xf32>
    %132 = arith.addf %127, %131 : vector<272x128xf32>
    %c42_114 = arith.constant 42 : index
    %c0_115 = arith.constant 0 : index
    %133 = vector.load %arg13[%c42_114, %c0_115] : memref<320x128xbf16, #tpu.memory_space<vmem>>, vector<272x128xbf16>
    %c8_116 = arith.constant 8 : index
    %c0_117 = arith.constant 0 : index
    %c0_118 = arith.constant 0 : index
    %134 = vector.load %arg6[%c8_116, %c0_117, %c0_118] : memref<9x128x128xbf16, #tpu.memory_space<vmem>>, vector<1x128x128xbf16>
    %135 = vector.shape_cast %134 : vector<1x128x128xbf16> to vector<128x128xbf16>
    %cst_119 = arith.constant dense<0.000000e+00> : vector<272x128xf32>
    %136 = tpu.matmul %133, %135, %cst_119 {dimension_numbers = #tpu.dot_dimension_numbers<[1], [0], [0], [1], [0, 0, 1, 1], [], []>} : vector<272x128xbf16>, vector<128x128xbf16>, vector<272x128xf32> -> vector<272x128xf32>
    %137 = arith.addf %132, %136 : vector<272x128xf32>
    %cst_120 = arith.constant 0.000000e+00 : f32
    %138 = vector.broadcast %cst_120 : f32 to vector<272x128xf32>
    %139 = arith.maximumf %137, %138 : vector<272x128xf32>
    %cst_121 = arith.constant 0.000000e+00 : f32
    %140 = vector.broadcast %cst_121 : f32 to vector<272x128xf32>
    %141 = arith.select %22, %139, %140 : vector<272x128xi1>, vector<272x128xf32>
    %142 = arith.truncf %141 : vector<272x128xf32> to vector<272x128xbf16>
    %c24_122 = arith.constant 24 : index
    %c0_123 = arith.constant 0 : index
    %143 = vector.load %arg13[%c24_122, %c0_123] : memref<320x128xbf16, #tpu.memory_space<vmem>>, vector<272x128xbf16>
    tpu.vector_store %arg13[%c24_122, %c0_123], %142 {strides = array<i32>} : memref<320x128xbf16, #tpu.memory_space<vmem>>, vector<272x128xbf16>,
    %c0_124 = arith.constant 0 : index
    %c0_125 = arith.constant 0 : index
    %144 = vector.load %arg9[%c0_124, %c0_125] : memref<1x128xf32, #tpu.memory_space<vmem>>, vector<1x128xf32>
    %145 = vector.shape_cast %144 : vector<1x128xf32> to vector<1x128xf32>
    %146 = vector.broadcast %145 : vector<1x128xf32> to vector<272x128xf32>
    %c6_126 = arith.constant 6 : index
    %c0_127 = arith.constant 0 : index
    %147 = vector.load %arg13[%c6_126, %c0_127] : memref<320x128xbf16, #tpu.memory_space<vmem>>, vector<272x128xbf16>
    %c0_128 = arith.constant 0 : index
    %c0_129 = arith.constant 0 : index
    %c0_130 = arith.constant 0 : index
    %148 = vector.load %arg8[%c0_128, %c0_129, %c0_130] : memref<9x128x128xbf16, #tpu.memory_space<vmem>>, vector<1x128x128xbf16>
    %149 = vector.shape_cast %148 : vector<1x128x128xbf16> to vector<128x128xbf16>
    %cst_131 = arith.constant dense<0.000000e+00> : vector<272x128xf32>
    %150 = tpu.matmul %147, %149, %cst_131 {dimension_numbers = #tpu.dot_dimension_numbers<[1], [0], [0], [1], [0, 0, 1, 1], [], []>} : vector<272x128xbf16>, vector<128x128xbf16>, vector<272x128xf32> -> vector<272x128xf32>
    %151 = arith.addf %146, %150 : vector<272x128xf32>
    %c7_132 = arith.constant 7 : index
    %c0_133 = arith.constant 0 : index
    %152 = vector.load %arg13[%c7_132, %c0_133] : memref<320x128xbf16, #tpu.memory_space<vmem>>, vector<272x128xbf16>
    %c1_134 = arith.constant 1 : index
    %c0_135 = arith.constant 0 : index
    %c0_136 = arith.constant 0 : index
    %153 = vector.load %arg8[%c1_134, %c0_135, %c0_136] : memref<9x128x128xbf16, #tpu.memory_space<vmem>>, vector<1x128x128xbf16>
    %154 = vector.shape_cast %153 : vector<1x128x128xbf16> to vector<128x128xbf16>
    %cst_137 = arith.constant dense<0.000000e+00> : vector<272x128xf32>
    %155 = tpu.matmul %152, %154, %cst_137 {dimension_numbers = #tpu.dot_dimension_numbers<[1], [0], [0], [1], [0, 0, 1, 1], [], []>} : vector<272x128xbf16>, vector<128x128xbf16>, vector<272x128xf32> -> vector<272x128xf32>
    %156 = arith.addf %151, %155 : vector<272x128xf32>
    %c8_138 = arith.constant 8 : index
    %c0_139 = arith.constant 0 : index
    %157 = vector.load %arg13[%c8_138, %c0_139] : memref<320x128xbf16, #tpu.memory_space<vmem>>, vector<272x128xbf16>
    %c2_140 = arith.constant 2 : index
    %c0_141 = arith.constant 0 : index
    %c0_142 = arith.constant 0 : index
    %158 = vector.load %arg8[%c2_140, %c0_141, %c0_142] : memref<9x128x128xbf16, #tpu.memory_space<vmem>>, vector<1x128x128xbf16>
    %159 = vector.shape_cast %158 : vector<1x128x128xbf16> to vector<128x128xbf16>
    %cst_143 = arith.constant dense<0.000000e+00> : vector<272x128xf32>
    %160 = tpu.matmul %157, %159, %cst_143 {dimension_numbers = #tpu.dot_dimension_numbers<[1], [0], [0], [1], [0, 0, 1, 1], [], []>} : vector<272x128xbf16>, vector<128x128xbf16>, vector<272x128xf32> -> vector<272x128xf32>
    %161 = arith.addf %156, %160 : vector<272x128xf32>
    %c23_144 = arith.constant 23 : index
    %c0_145 = arith.constant 0 : index
    %162 = vector.load %arg13[%c23_144, %c0_145] : memref<320x128xbf16, #tpu.memory_space<vmem>>, vector<272x128xbf16>
    %c3_146 = arith.constant 3 : index
    %c0_147 = arith.constant 0 : index
    %c0_148 = arith.constant 0 : index
    %163 = vector.load %arg8[%c3_146, %c0_147, %c0_148] : memref<9x128x128xbf16, #tpu.memory_space<vmem>>, vector<1x128x128xbf16>
    %164 = vector.shape_cast %163 : vector<1x128x128xbf16> to vector<128x128xbf16>
    %cst_149 = arith.constant dense<0.000000e+00> : vector<272x128xf32>
    %165 = tpu.matmul %162, %164, %cst_149 {dimension_numbers = #tpu.dot_dimension_numbers<[1], [0], [0], [1], [0, 0, 1, 1], [], []>} : vector<272x128xbf16>, vector<128x128xbf16>, vector<272x128xf32> -> vector<272x128xf32>
    %166 = arith.addf %161, %165 : vector<272x128xf32>
    %c24_150 = arith.constant 24 : index
    %c0_151 = arith.constant 0 : index
    %167 = vector.load %arg13[%c24_150, %c0_151] : memref<320x128xbf16, #tpu.memory_space<vmem>>, vector<272x128xbf16>
    %c4_152 = arith.constant 4 : index
    %c0_153 = arith.constant 0 : index
    %c0_154 = arith.constant 0 : index
    %168 = vector.load %arg8[%c4_152, %c0_153, %c0_154] : memref<9x128x128xbf16, #tpu.memory_space<vmem>>, vector<1x128x128xbf16>
    %169 = vector.shape_cast %168 : vector<1x128x128xbf16> to vector<128x128xbf16>
    %cst_155 = arith.constant dense<0.000000e+00> : vector<272x128xf32>
    %170 = tpu.matmul %167, %169, %cst_155 {dimension_numbers = #tpu.dot_dimension_numbers<[1], [0], [0], [1], [0, 0, 1, 1], [], []>} : vector<272x128xbf16>, vector<128x128xbf16>, vector<272x128xf32> -> vector<272x128xf32>
    %171 = arith.addf %166, %170 : vector<272x128xf32>
    %c25_156 = arith.constant 25 : index
    %c0_157 = arith.constant 0 : index
    %172 = vector.load %arg13[%c25_156, %c0_157] : memref<320x128xbf16, #tpu.memory_space<vmem>>, vector<272x128xbf16>
    %c5_158 = arith.constant 5 : index
    %c0_159 = arith.constant 0 : index
    %c0_160 = arith.constant 0 : index
    %173 = vector.load %arg8[%c5_158, %c0_159, %c0_160] : memref<9x128x128xbf16, #tpu.memory_space<vmem>>, vector<1x128x128xbf16>
    %174 = vector.shape_cast %173 : vector<1x128x128xbf16> to vector<128x128xbf16>
    %cst_161 = arith.constant dense<0.000000e+00> : vector<272x128xf32>
    %175 = tpu.matmul %172, %174, %cst_161 {dimension_numbers = #tpu.dot_dimension_numbers<[1], [0], [0], [1], [0, 0, 1, 1], [], []>} : vector<272x128xbf16>, vector<128x128xbf16>, vector<272x128xf32> -> vector<272x128xf32>
    %176 = arith.addf %171, %175 : vector<272x128xf32>
    %c40_162 = arith.constant 40 : index
    %c0_163 = arith.constant 0 : index
    %177 = vector.load %arg13[%c40_162, %c0_163] : memref<320x128xbf16, #tpu.memory_space<vmem>>, vector<272x128xbf16>
    %c6_164 = arith.constant 6 : index
    %c0_165 = arith.constant 0 : index
    %c0_166 = arith.constant 0 : index
    %178 = vector.load %arg8[%c6_164, %c0_165, %c0_166] : memref<9x128x128xbf16, #tpu.memory_space<vmem>>, vector<1x128x128xbf16>
    %179 = vector.shape_cast %178 : vector<1x128x128xbf16> to vector<128x128xbf16>
    %cst_167 = arith.constant dense<0.000000e+00> : vector<272x128xf32>
    %180 = tpu.matmul %177, %179, %cst_167 {dimension_numbers = #tpu.dot_dimension_numbers<[1], [0], [0], [1], [0, 0, 1, 1], [], []>} : vector<272x128xbf16>, vector<128x128xbf16>, vector<272x128xf32> -> vector<272x128xf32>
    %181 = arith.addf %176, %180 : vector<272x128xf32>
    %c41_168 = arith.constant 41 : index
    %c0_169 = arith.constant 0 : index
    %182 = vector.load %arg13[%c41_168, %c0_169] : memref<320x128xbf16, #tpu.memory_space<vmem>>, vector<272x128xbf16>
    %c7_170 = arith.constant 7 : index
    %c0_171 = arith.constant 0 : index
    %c0_172 = arith.constant 0 : index
    %183 = vector.load %arg8[%c7_170, %c0_171, %c0_172] : memref<9x128x128xbf16, #tpu.memory_space<vmem>>, vector<1x128x128xbf16>
    %184 = vector.shape_cast %183 : vector<1x128x128xbf16> to vector<128x128xbf16>
    %cst_173 = arith.constant dense<0.000000e+00> : vector<272x128xf32>
    %185 = tpu.matmul %182, %184, %cst_173 {dimension_numbers = #tpu.dot_dimension_numbers<[1], [0], [0], [1], [0, 0, 1, 1], [], []>} : vector<272x128xbf16>, vector<128x128xbf16>, vector<272x128xf32> -> vector<272x128xf32>
    %186 = arith.addf %181, %185 : vector<272x128xf32>
    %c42_174 = arith.constant 42 : index
    %c0_175 = arith.constant 0 : index
    %187 = vector.load %arg13[%c42_174, %c0_175] : memref<320x128xbf16, #tpu.memory_space<vmem>>, vector<272x128xbf16>
    %c8_176 = arith.constant 8 : index
    %c0_177 = arith.constant 0 : index
    %c0_178 = arith.constant 0 : index
    %188 = vector.load %arg8[%c8_176, %c0_177, %c0_178] : memref<9x128x128xbf16, #tpu.memory_space<vmem>>, vector<1x128x128xbf16>
    %189 = vector.shape_cast %188 : vector<1x128x128xbf16> to vector<128x128xbf16>
    %cst_179 = arith.constant dense<0.000000e+00> : vector<272x128xf32>
    %190 = tpu.matmul %187, %189, %cst_179 {dimension_numbers = #tpu.dot_dimension_numbers<[1], [0], [0], [1], [0, 0, 1, 1], [], []>} : vector<272x128xbf16>, vector<128x128xbf16>, vector<272x128xf32> -> vector<272x128xf32>
    %191 = arith.addf %186, %190 : vector<272x128xf32>
    %cst_180 = arith.constant 0.000000e+00 : f32
    %192 = vector.broadcast %cst_180 : f32 to vector<272x128xf32>
    %193 = arith.maximumf %191, %192 : vector<272x128xf32>
    %194 = arith.truncf %193 : vector<272x128xf32> to vector<272x128xbf16>
    %c0_181 = arith.constant 0 : index
    %c0_182 = arith.constant 0 : index
    %195 = vector.load %arg10[%c0_181, %c0_182] : memref<128x128xbf16, #tpu.memory_space<vmem>>, vector<128x128xbf16>
    %cst_183 = arith.constant dense<0.000000e+00> : vector<272x128xf32>
    %196 = tpu.matmul %194, %195, %cst_183 {dimension_numbers = #tpu.dot_dimension_numbers<[1], [0], [0], [1], [0, 0, 1, 1], [], []>} : vector<272x128xbf16>, vector<128x128xbf16>, vector<272x128xf32> -> vector<272x128xf32>
    %c0_184 = arith.constant 0 : index
    %c0_185 = arith.constant 0 : index
    %197 = vector.load %arg11[%c0_184, %c0_185] : memref<1x128xf32, #tpu.memory_space<vmem>>, vector<1x128xf32>
    %198 = vector.broadcast %197 : vector<1x128xf32> to vector<272x128xf32>
    %199 = arith.addf %196, %198 : vector<272x128xf32>
    %200 = arith.truncf %199 : vector<272x128xf32> to vector<272x128xbf16>
    %c0_186 = arith.constant 0 : index
    %c0_187 = arith.constant 0 : index
    %c0_188 = arith.constant 0 : index
    %201 = vector.load %arg12[%c0_186, %c0_187, %c0_188] : memref<1x272x128xbf16, #tpu.memory_space<vmem>>, vector<1x272x128xbf16>
    %202 = vector.shape_cast %201 : vector<1x272x128xbf16> to vector<272x128xbf16>
    %203 = vector.shape_cast %200 : vector<272x128xbf16> to vector<1x272x128xbf16>
    tpu.vector_store %arg12[%c0_186, %c0_187, %c0_188], %203 {strides = array<i32>} : memref<1x272x128xbf16, #tpu.memory_space<vmem>>, vector<1x272x128xbf16>,
    return
  }
  func.func @transform_0(%arg0: i32) -> (i32, i32, i32) {
    %c0_i32 = arith.constant 0 : i32
    %c0_i32_0 = arith.constant 0 : i32
    %c0_i32_1 = arith.constant 0 : i32
    return %arg0, %c0_i32, %c0_i32_0 : i32, i32, i32
  }
  func.func @transform_1(%arg0: i32) -> (i32, i32) {
    %c0_i32 = arith.constant 0 : i32
    %c0_i32_0 = arith.constant 0 : i32
    %c0_i32_1 = arith.constant 0 : i32
    return %c0_i32, %c0_i32_0 : i32, i32
  }
  func.func @transform_2(%arg0: i32) -> (i32, i32) {
    %c0_i32 = arith.constant 0 : i32
    %c0_i32_0 = arith.constant 0 : i32
    %c0_i32_1 = arith.constant 0 : i32
    return %c0_i32, %c0_i32_0 : i32, i32
  }
  func.func @transform_3(%arg0: i32) -> (i32, i32, i32) {
    %c0_i32 = arith.constant 0 : i32
    %c0_i32_0 = arith.constant 0 : i32
    %c0_i32_1 = arith.constant 0 : i32
    %c0_i32_2 = arith.constant 0 : i32
    return %c0_i32, %c0_i32_0, %c0_i32_1 : i32, i32, i32
  }
  func.func @transform_4(%arg0: i32) -> (i32, i32) {
    %c0_i32 = arith.constant 0 : i32
    %c0_i32_0 = arith.constant 0 : i32
    %c0_i32_1 = arith.constant 0 : i32
    return %c0_i32, %c0_i32_0 : i32, i32
  }
  func.func @transform_5(%arg0: i32) -> (i32, i32, i32) {
    %c0_i32 = arith.constant 0 : i32
    %c0_i32_0 = arith.constant 0 : i32
    %c0_i32_1 = arith.constant 0 : i32
    %c0_i32_2 = arith.constant 0 : i32
    return %c0_i32, %c0_i32_0, %c0_i32_1 : i32, i32, i32
  }
  func.func @transform_6(%arg0: i32) -> (i32, i32) {
    %c0_i32 = arith.constant 0 : i32
    %c0_i32_0 = arith.constant 0 : i32
    %c0_i32_1 = arith.constant 0 : i32
    return %c0_i32, %c0_i32_0 : i32, i32
  }
  func.func @transform_7(%arg0: i32) -> (i32, i32, i32) {
    %c0_i32 = arith.constant 0 : i32
    %c0_i32_0 = arith.constant 0 : i32
    %c0_i32_1 = arith.constant 0 : i32
    %c0_i32_2 = arith.constant 0 : i32
    return %c0_i32, %c0_i32_0, %c0_i32_1 : i32, i32, i32
  }
  func.func @transform_8(%arg0: i32) -> (i32, i32) {
    %c0_i32 = arith.constant 0 : i32
    %c0_i32_0 = arith.constant 0 : i32
    %c0_i32_1 = arith.constant 0 : i32
    return %c0_i32, %c0_i32_0 : i32, i32
  }
  func.func @transform_9(%arg0: i32) -> (i32, i32) {
    %c0_i32 = arith.constant 0 : i32
    %c0_i32_0 = arith.constant 0 : i32
    %c0_i32_1 = arith.constant 0 : i32
    return %c0_i32, %c0_i32_0 : i32, i32
  }
  func.func @transform_10(%arg0: i32) -> (i32, i32) {
    %c0_i32 = arith.constant 0 : i32
    %c0_i32_0 = arith.constant 0 : i32
    %c0_i32_1 = arith.constant 0 : i32
    return %c0_i32, %c0_i32_0 : i32, i32
  }
  func.func @transform_11(%arg0: i32) -> (i32, i32, i32) {
    %c0_i32 = arith.constant 0 : i32
    %c0_i32_0 = arith.constant 0 : i32
    %c0_i32_1 = arith.constant 0 : i32
    return %arg0, %c0_i32, %c0_i32_0 : i32, i32, i32
  }
}

</mosaic_0001>

<llo_original>
// kernel: _lambda_.1
$region0: #{_lambda_.1}
  #allocation0 [shape = 'u32[]', space=smem, size = 0x4, offset = 0x4, fixed_abs, tag = 'smem constant byte address 0x4 - core index']
  #allocation1 [shape = 'u32[144,128]{1,0:T(1,128)}', space=vmem, size = 0x12000, scoped, tag = 'internal scratch']
  #allocation2 [shape = 'bf16[320,128]{1,0:T(16,128)(2,1)}', space=vmem, size = 0x14000, scoped, tag = 'scratch operand']
  %s0 = inlined_call_operand.vmem [shape: bf16[2,272,256], index: 0, kind: input, shape index: {}]
  %s1 = inlined_call_operand.vmem [shape: bf16[256,128], index: 1, kind: input, shape index: {}]
  %s2 = inlined_call_operand.vmem [shape: f32[1,128], index: 2, kind: input, shape index: {}]
  %s3 = inlined_call_operand.vmem [shape: bf16[9,128,128], index: 3, kind: input, shape index: {}]
  %s4 = inlined_call_operand.vmem [shape: f32[1,128], index: 4, kind: input, shape index: {}]
  %s5 = inlined_call_operand.vmem [shape: bf16[9,128,128], index: 5, kind: input, shape index: {}]
  %s6 = inlined_call_operand.vmem [shape: f32[1,128], index: 6, kind: input, shape index: {}]
  %s7 = inlined_call_operand.vmem [shape: bf16[9,128,128], index: 7, kind: input, shape index: {}]
  %s8 = inlined_call_operand.vmem [shape: f32[1,128], index: 8, kind: input, shape index: {}]
  %s9 = inlined_call_operand.vmem [shape: bf16[128,128], index: 9, kind: input, shape index: {}]
  %s10 = inlined_call_operand.vmem [shape: f32[1,128], index: 10, kind: input, shape index: {}]
  %s11 = inlined_call_operand.vmem [shape: bf16[2,272,128], index: 11, kind: output, shape index: {}]
  %s12 = sld [smem:[#allocation0]]
  $region77: #{_lambda_.1} parent=0
    _
  %s14 = ssub.s32 1, %s12
  %s15 = scalar_select 0, %s14, %s12
  loop: start=0, step=1, limit=4
  $region2: #{_lambda_.1} parent=0 // loop_pre_header
    _
  $region3: #{_lambda_.1} parent=0 // loop_header
    %s17 = sphi 0, %s21
    %p18 = scmp.ge.s32.totalorder %s17, 4
    %s27 = sphi 0, %s29
    %s30 = sphi 0, %s27
    %s31 = sphi 0, %s30
    %s47 = sphi 0, %s31
    %s51 = sphi 0, %s51
    %s53 = sphi 0, %s51
    %s54 = sphi 0, %s53
    %s68 = sphi 0, %s54
    %s72 = sphi 0, %s72
    %s74 = sphi 0, %s72
    %s75 = sphi 0, %s74
    %s89 = sphi 0, %s75
    %s93 = sphi 0, %s93
    %s95 = sphi 0, %s93
    %s96 = sphi 0, %s95
    %s110 = sphi 0, %s96
    %s114 = sphi 0, %s114
    %s116 = sphi 0, %s114
    %s117 = sphi 0, %s116
    %s131 = sphi 0, %s117
    %s135 = sphi 0, %s135
    %s137 = sphi 0, %s135
    %s138 = sphi 0, %s137
    %s152 = sphi 0, %s138
    %s156 = sphi 0, %s156
    %s158 = sphi 0, %s156
    %s159 = sphi 0, %s158
    %s173 = sphi 0, %s159
    %s177 = sphi 0, %s177
    %s179 = sphi 0, %s177
    %s180 = sphi 0, %s179
    %s194 = sphi 0, %s180
    %s198 = sphi 0, %s198
    %s200 = sphi 0, %s198
    %s201 = sphi 0, %s200
    %s215 = sphi 0, %s201
    %s219 = sphi 0, %s219
    %s221 = sphi 0, %s219
    %s222 = sphi 0, %s221
    %s236 = sphi 0, %s222
    %s240 = sphi 0, %s240
    %s242 = sphi 0, %s240
    %s243 = sphi 0, %s242
    %s257 = sphi 0, %s243
    %s263 = sphi 0, %s265
    %s266 = sphi 0, %s263
    %s267 = sphi 0, %s266
    %s283 = sphi 0, %s267
  $region4: #{_lambda_.1} parent=0 // loop_header_branch
    %20 = sbr.rel (%p18) target = $region8
  $region5: #{_lambda_.1} parent=0 // loop_body
    %s22 = ssub.s32 %s17, 1
    %s23 = ssub.s32 %s17, 2
    %s24 = sadd.s32 %s17, 1
    %s25 = ssub.s32 %s17, %s24
    %p26 = scmp.eq.s32.totalorder %s25, 0
    %s28 = sadd.s32 %s27, 1
    %s29 = scalar_select %p26, %s27, %s28
    %p32 = pneg %p26
    %p33 = scmp.eq.s32.totalorder %s17, 1
    %p34 = por %p32, %p33
    %p35 = scmp.ne.s32.totalorder %s27, %s30
    %p36 = scmp.eq.s32.totalorder %s17, 0
    %p37 = por %p35, %p36
    %p38 = scmp.ne.s32.totalorder %s27, %s30
    %p39 = scmp.eq.s32.totalorder %s22, 1
    %p40 = por %p38, %p39
    %p41 = scmp.ne.s32.totalorder %s30, %s31
    %p42 = scmp.eq.s32.totalorder %s22, 0
    %p43 = por %p41, %p42
    %p44 = scmp.ne.s32.totalorder %s30, %s31
    %p45 = scmp.eq.s32.totalorder %s23, 1
    %p46 = por %p44, %p45
    %p48 = scmp.ne.s32.totalorder %s31, %s47
    %p49 = scmp.eq.s32.totalorder %s23, 0
    %p50 = por %p48, %p49
    %s52 = sadd.s32 %s51, 1
    %p55 = scmp.eq.s32.totalorder %s17, 1
    %p56 = scmp.ne.s32.totalorder %s51, %s53
    %p57 = scmp.eq.s32.totalorder %s17, 0
    %p58 = por %p56, %p57
    %p59 = scmp.ne.s32.totalorder %s51, %s53
    %p60 = scmp.eq.s32.totalorder %s22, 1
    %p61 = por %p59, %p60
    %p62 = scmp.ne.s32.totalorder %s53, %s54
    %p63 = scmp.eq.s32.totalorder %s22, 0
    %p64 = por %p62, %p63
    %p65 = scmp.ne.s32.totalorder %s53, %s54
    %p66 = scmp.eq.s32.totalorder %s23, 1
    %p67 = por %p65, %p66
    %p69 = scmp.ne.s32.totalorder %s54, %s68
    %p70 = scmp.eq.s32.totalorder %s23, 0
    %p71 = por %p69, %p70
    %s73 = sadd.s32 %s72, 1
    %p76 = scmp.eq.s32.totalorder %s17, 1
    %p77 = scmp.ne.s32.totalorder %s72, %s74
    %p78 = scmp.eq.s32.totalorder %s17, 0
    %p79 = por %p77, %p78
    %p80 = scmp.ne.s32.totalorder %s72, %s74
    %p81 = scmp.eq.s32.totalorder %s22, 1
    %p82 = por %p80, %p81
    %p83 = scmp.ne.s32.totalorder %s74, %s75
    %p84 = scmp.eq.s32.totalorder %s22, 0
    %p85 = por %p83, %p84
    %p86 = scmp.ne.s32.totalorder %s74, %s75
    %p87 = scmp.eq.s32.totalorder %s23, 1
    %p88 = por %p86, %p87
    %p90 = scmp.ne.s32.totalorder %s75, %s89
    %p91 = scmp.eq.s32.totalorder %s23, 0
    %p92 = por %p90, %p91
    %s94 = sadd.s32 %s93, 1
    %p97 = scmp.eq.s32.totalorder %s17, 1
    %p98 = scmp.ne.s32.totalorder %s93, %s95
    %p99 = scmp.eq.s32.totalorder %s17, 0
    %p100 = por %p98, %p99
    %p101 = scmp.ne.s32.totalorder %s93, %s95
    %p102 = scmp.eq.s32.totalorder %s22, 1
    %p103 = por %p101, %p102
    %p104 = scmp.ne.s32.totalorder %s95, %s96
    %p105 = scmp.eq.s32.totalorder %s22, 0
    %p106 = por %p104, %p105
    %p107 = scmp.ne.s32.totalorder %s95, %s96
    %p108 = scmp.eq.s32.totalorder %s23, 1
    %p109 = por %p107, %p108
    %p111 = scmp.ne.s32.totalorder %s96, %s110
    %p112 = scmp.eq.s32.totalorder %s23, 0
    %p113 = por %p111, %p112
    %s115 = sadd.s32 %s114, 1
    %p118 = scmp.eq.s32.totalorder %s17, 1
    %p119 = scmp.ne.s32.totalorder %s114, %s116
    %p120 = scmp.eq.s32.totalorder %s17, 0
    %p121 = por %p119, %p120
    %p122 = scmp.ne.s32.totalorder %s114, %s116
    %p123 = scmp.eq.s32.totalorder %s22, 1
    %p124 = por %p122, %p123
    %p125 = scmp.ne.s32.totalorder %s116, %s117
    %p126 = scmp.eq.s32.totalorder %s22, 0
    %p127 = por %p125, %p126
    %p128 = scmp.ne.s32.totalorder %s116, %s117
    %p129 = scmp.eq.s32.totalorder %s23, 1
    %p130 = por %p128, %p129
    %p132 = scmp.ne.s32.totalorder %s117, %s131
    %p133 = scmp.eq.s32.totalorder %s23, 0
    %p134 = por %p132, %p133
    %s136 = sadd.s32 %s135, 1
    %p139 = scmp.eq.s32.totalorder %s17, 1
    %p140 = scmp.ne.s32.totalorder %s135, %s137
    %p141 = scmp.eq.s32.totalorder %s17, 0
    %p142 = por %p140, %p141
    %p143 = scmp.ne.s32.totalorder %s135, %s137
    %p144 = scmp.eq.s32.totalorder %s22, 1
    %p145 = por %p143, %p144
    %p146 = scmp.ne.s32.totalorder %s137, %s138
    %p147 = scmp.eq.s32.totalorder %s22, 0
    %p148 = por %p146, %p147
    %p149 = scmp.ne.s32.totalorder %s137, %s138
    %p150 = scmp.eq.s32.totalorder %s23, 1
    %p151 = por %p149, %p150
    %p153 = scmp.ne.s32.totalorder %s138, %s152
    %p154 = scmp.eq.s32.totalorder %s23, 0
    %p155 = por %p153, %p154
    %s157 = sadd.s32 %s156, 1
    %p160 = scmp.eq.s32.totalorder %s17, 1
    %p161 = scmp.ne.s32.totalorder %s156, %s158
    %p162 = scmp.eq.s32.totalorder %s17, 0
    %p163 = por %p161, %p162
    %p164 = scmp.ne.s32.totalorder %s156, %s158
    %p165 = scmp.eq.s32.totalorder %s22, 1
    %p166 = por %p164, %p165
    %p167 = scmp.ne.s32.totalorder %s158, %s159
    %p168 = scmp.eq.s32.totalorder %s22, 0
    %p169 = por %p167, %p168
    %p170 = scmp.ne.s32.totalorder %s158, %s159
    %p171 = scmp.eq.s32.totalorder %s23, 1
    %p172 = por %p170, %p171
    %p174 = scmp.ne.s32.totalorder %s159, %s173
    %p175 = scmp.eq.s32.totalorder %s23, 0
    %p176 = por %p174, %p175
    %s178 = sadd.s32 %s177, 1
    %p181 = scmp.eq.s32.totalorder %s17, 1
    %p182 = scmp.ne.s32.totalorder %s177, %s179
    %p183 = scmp.eq.s32.totalorder %s17, 0
    %p184 = por %p182, %p183
    %p185 = scmp.ne.s32.totalorder %s177, %s179
    %p186 = scmp.eq.s32.totalorder %s22, 1
    %p187 = por %p185, %p186
    %p188 = scmp.ne.s32.totalorder %s179, %s180
    %p189 = scmp.eq.s32.totalorder %s22, 0
    %p190 = por %p188, %p189
    %p191 = scmp.ne.s32.totalorder %s179, %s180
    %p192 = scmp.eq.s32.totalorder %s23, 1
    %p193 = por %p191, %p192
    %p195 = scmp.ne.s32.totalorder %s180, %s194
    %p196 = scmp.eq.s32.totalorder %s23, 0
    %p197 = por %p195, %p196
    %s199 = sadd.s32 %s198, 1
    %p202 = scmp.eq.s32.totalorder %s17, 1
    %p203 = scmp.ne.s32.totalorder %s198, %s200
    %p204 = scmp.eq.s32.totalorder %s17, 0
    %p205 = por %p203, %p204
    %p206 = scmp.ne.s32.totalorder %s198, %s200
    %p207 = scmp.eq.s32.totalorder %s22, 1
    %p208 = por %p206, %p207
    %p209 = scmp.ne.s32.totalorder %s200, %s201
    %p210 = scmp.eq.s32.totalorder %s22, 0
    %p211 = por %p209, %p210
    %p212 = scmp.ne.s32.totalorder %s200, %s201
    %p213 = scmp.eq.s32.totalorder %s23, 1
    %p214 = por %p212, %p213
    %p216 = scmp.ne.s32.totalorder %s201, %s215
    %p217 = scmp.eq.s32.totalorder %s23, 0
    %p218 = por %p216, %p217
    %s220 = sadd.s32 %s219, 1
    %p223 = scmp.eq.s32.totalorder %s17, 1
    %p224 = scmp.ne.s32.totalorder %s219, %s221
    %p225 = scmp.eq.s32.totalorder %s17, 0
    %p226 = por %p224, %p225
    %p227 = scmp.ne.s32.totalorder %s219, %s221
    %p228 = scmp.eq.s32.totalorder %s22, 1
    %p229 = por %p227, %p228
    %p230 = scmp.ne.s32.totalorder %s221, %s222
    %p231 = scmp.eq.s32.totalorder %s22, 0
    %p232 = por %p230, %p231
    %p233 = scmp.ne.s32.totalorder %s221, %s222
    %p234 = scmp.eq.s32.totalorder %s23, 1
    %p235 = por %p233, %p234
    %p237 = scmp.ne.s32.totalorder %s222, %s236
    %p238 = scmp.eq.s32.totalorder %s23, 0
    %p239 = por %p237, %p238
    %s241 = sadd.s32 %s240, 1
    %p244 = scmp.eq.s32.totalorder %s17, 1
    %p245 = scmp.ne.s32.totalorder %s240, %s242
    %p246 = scmp.eq.s32.totalorder %s17, 0
    %p247 = por %p245, %p246
    %p248 = scmp.ne.s32.totalorder %s240, %s242
    %p249 = scmp.eq.s32.totalorder %s22, 1
    %p250 = por %p248, %p249
    %p251 = scmp.ne.s32.totalorder %s242, %s243
    %p252 = scmp.eq.s32.totalorder %s22, 0
    %p253 = por %p251, %p252
    %p254 = scmp.ne.s32.totalorder %s242, %s243
    %p255 = scmp.eq.s32.totalorder %s23, 1
    %p256 = por %p254, %p255
    %p258 = scmp.ne.s32.totalorder %s243, %s257
    %p259 = scmp.eq.s32.totalorder %s23, 0
    %p260 = por %p258, %p259
    %s261 = ssub.s32 %s17, %s24
    %p262 = scmp.eq.s32.totalorder %s261, 0
    %s264 = sadd.s32 %s263, 1
    %s265 = scalar_select %p262, %s263, %s264
    %p268 = pneg %p262
    %p269 = scmp.eq.s32.totalorder %s17, 1
    %p270 = por %p268, %p269
    %p271 = scmp.ne.s32.totalorder %s263, %s266
    %p272 = scmp.eq.s32.totalorder %s17, 0
    %p273 = por %p271, %p272
    %p274 = scmp.ne.s32.totalorder %s263, %s266
    %p275 = scmp.eq.s32.totalorder %s22, 1
    %p276 = por %p274, %p275
    %p277 = scmp.ne.s32.totalorder %s266, %s267
    %p278 = scmp.eq.s32.totalorder %s22, 0
    %p279 = por %p277, %p278
    %p280 = scmp.ne.s32.totalorder %s266, %s267
    %p281 = scmp.eq.s32.totalorder %s23, 1
    %p282 = por %p280, %p281
    %p284 = scmp.ne.s32.totalorder %s267, %s283
    %p285 = scmp.eq.s32.totalorder %s23, 0
    %p286 = por %p284, %p285
    %p287 = scmp.le.s32.totalorder 1, %s17
    %p288 = scmp.lt.s32.totalorder %s17, 3
    %p289 = pnand %p287, %p288
    %p290 = pneg %p289
    // Predicated region
    $region9: #{_lambda_.1} parent=5 // pred_check
      _
    $region10: #{_lambda_.1} parent=5 // pred_check_branch
      %292 = sbr.rel (%p289) target = $region12
    $region11: #{_lambda_.1} parent=5 // pred_region
      %s293 = ssub.s32 %s17, 1
      // Predicated region
      $region13: #{_lambda_.1} parent=11 // pred_check
        %p294 = pneg %p64
      $region14: #{_lambda_.1} parent=11 // pred_check_branch
        %296 = sbr.rel (%p294) target = $region16
      $region15: #{_lambda_.1} parent=11 // pred_region
        _
      $region16: #{_lambda_.1} parent=11 // pred_fallthru
        _
      // Predicated region
      $region17: #{_lambda_.1} parent=11 // pred_check
        %p297 = pneg %p85
      $region18: #{_lambda_.1} parent=11 // pred_check_branch
        %299 = sbr.rel (%p297) target = $region20
      $region19: #{_lambda_.1} parent=11 // pred_region
        _
      $region20: #{_lambda_.1} parent=11 // pred_fallthru
        _
      // Predicated region
      $region21: #{_lambda_.1} parent=11 // pred_check
        %p300 = pneg %p106
      $region22: #{_lambda_.1} parent=11 // pred_check_branch
        %302 = sbr.rel (%p300) target = $region24
      $region23: #{_lambda_.1} parent=11 // pred_region
        _
      $region24: #{_lambda_.1} parent=11 // pred_fallthru
        _
      // Predicated region
      $region25: #{_lambda_.1} parent=11 // pred_check
        %p303 = pneg %p127
      $region26: #{_lambda_.1} parent=11 // pred_check_branch
        %305 = sbr.rel (%p303) target = $region28
      $region27: #{_lambda_.1} parent=11 // pred_region
        _
      $region28: #{_lambda_.1} parent=11 // pred_fallthru
        _
      // Predicated region
      $region29: #{_lambda_.1} parent=11 // pred_check
        %p306 = pneg %p148
      $region30: #{_lambda_.1} parent=11 // pred_check_branch
        %308 = sbr.rel (%p306) target = $region32
      $region31: #{_lambda_.1} parent=11 // pred_region
        _
      $region32: #{_lambda_.1} parent=11 // pred_fallthru
        _
      // Predicated region
      $region33: #{_lambda_.1} parent=11 // pred_check
        %p309 = pneg %p169
      $region34: #{_lambda_.1} parent=11 // pred_check_branch
        %311 = sbr.rel (%p309) target = $region36
      $region35: #{_lambda_.1} parent=11 // pred_region
        _
      $region36: #{_lambda_.1} parent=11 // pred_fallthru
        _
      // Predicated region
      $region37: #{_lambda_.1} parent=11 // pred_check
        %p312 = pneg %p190
      $region38: #{_lambda_.1} parent=11 // pred_check_branch
        %314 = sbr.rel (%p312) target = $region40
      $region39: #{_lambda_.1} parent=11 // pred_region
        _
      $region40: #{_lambda_.1} parent=11 // pred_fallthru
        _
      // Predicated region
      $region41: #{_lambda_.1} parent=11 // pred_check
        %p315 = pneg %p211
      $region42: #{_lambda_.1} parent=11 // pred_check_branch
        %317 = sbr.rel (%p315) target = $region44
      $region43: #{_lambda_.1} parent=11 // pred_region
        _
      $region44: #{_lambda_.1} parent=11 // pred_fallthru
        _
      // Predicated region
      $region45: #{_lambda_.1} parent=11 // pred_check
        %p318 = pneg %p232
      $region46: #{_lambda_.1} parent=11 // pred_check_branch
        %320 = sbr.rel (%p318) target = $region48
      $region47: #{_lambda_.1} parent=11 // pred_region
        _
      $region48: #{_lambda_.1} parent=11 // pred_fallthru
        _
      // Predicated region
      $region49: #{_lambda_.1} parent=11 // pred_check
        %p321 = pneg %p253
      $region50: #{_lambda_.1} parent=11 // pred_check_branch
        %323 = sbr.rel (%p321) target = $region52
      $region51: #{_lambda_.1} parent=11 // pred_region
        _
      $region52: #{_lambda_.1} parent=11 // pred_fallthru
        _
    $region12: #{_lambda_.1} parent=5 // pred_fallthru
      _
    %p324 = scmp.lt.s32.totalorder %s17, 2
    // Predicated region
    $region53: #{_lambda_.1} parent=5 // pred_check
      %p325 = pneg %p324
    $region54: #{_lambda_.1} parent=5 // pred_check_branch
      %327 = sbr.rel (%p325) target = $region56
    $region55: #{_lambda_.1} parent=5 // pred_region
      // Predicated region
      $region57: #{_lambda_.1} parent=55 // pred_check
        %p328 = pneg %p37
      $region58: #{_lambda_.1} parent=55 // pred_check_branch
        %330 = sbr.rel (%p328) target = $region60
      $region59: #{_lambda_.1} parent=55 // pred_region
        %p331 = scmp.lt.s32.totalorder %s17, 1
        %s332 = scalar_select %p331, %s17, 1
        %s333 = smul.addr %s332, 68
        %s334 = smul.addr %s333, 4
        %s335 = scalar_lea.vmem %s0, %s334
      $region60: #{_lambda_.1} parent=55 // pred_fallthru
        _
    $region56: #{_lambda_.1} parent=5 // pred_fallthru
      _
    %p336 = scmp.le.s32.totalorder 1, %s17
    %p337 = scmp.lt.s32.totalorder %s17, 3
    %p338 = pnand %p336, %p337
    %p339 = pneg %p338
    // Predicated region
    $region61: #{_lambda_.1} parent=5 // pred_check
      _
    $region62: #{_lambda_.1} parent=5 // pred_check_branch
      %341 = sbr.rel (%p338) target = $region64
    $region63: #{_lambda_.1} parent=5 // pred_region
      %s342 = ssub.s32 %s17, 1
      %p343 = scmp.lt.s32.totalorder %s22, 1
      %s344 = scalar_select %p343, %s22, 1
      %s345 = smul.addr %s344, 68
      %s346 = smul.addr %s345, 4
      %s347 = scalar_lea.vmem %s0, %s346
      %p348 = pneg %p43
      %p349 = pneg %p40
      %p350 = pneg %p64
      %p351 = pneg %p61
      %p352 = pneg %p85
      %p353 = pneg %p82
      %p354 = pneg %p106
      %p355 = pneg %p103
      %p356 = pneg %p127
      %p357 = pneg %p124
      %p358 = pneg %p148
      %p359 = pneg %p145
      %p360 = pneg %p169
      %p361 = pneg %p166
      %p362 = pneg %p190
      %p363 = pneg %p187
      %p364 = pneg %p211
      %p365 = pneg %p208
      %p366 = pneg %p232
      %p367 = pneg %p229
      %p368 = pneg %p253
      %p369 = pneg %p250
      %p370 = pneg %p279
      %p371 = pneg %p276
      %p372 = scmp.lt.s32.totalorder %s22, 1
      %s373 = scalar_select %p372, %s22, 1
      %s374 = smul.addr %s373, 34
      %s375 = smul.addr %s374, 4
      %s376 = scalar_lea.vmem %s11, %s375
      %p377 = scmp.lt.s32.totalorder %s22, 1
      %s378 = scalar_select %p377, %s22, 1
      %s379 = smul.addr %s378, 68
      %s380 = smul.addr %s379, 4
      %s381 = scalar_lea.vmem %s0, %s380
      %p382 = scmp.lt.s32.totalorder %s22, 1
      %s383 = scalar_select %p382, %s22, 1
      %s384 = smul.addr %s383, 34
      %s385 = smul.addr %s384, 4
      %s386 = scalar_lea.vmem %s11, %s385
      %388 = vst [vmem:[#allocation2] sm:$0xff] 0
      %389 = vst [vmem:[#allocation2 + $0x8] sm:$0xf] 0
      %390 = vst [vmem:[#allocation2 + $0x90] sm:$0xf0] 0
      %391 = vst [vmem:[#allocation2 + $0x98] sm:$0xff] 0
      %v392 = vlaneseq
      %v393 = vshrl.u32 %v392, 7
      %v394 = vadd.s32 %v393, 8
      %v395 = vadd.s32 %v393, 16
      %v396 = vadd.s32 %v393, 24
      %v397 = vadd.s32 %v393, 32
      %v398 = vadd.s32 %v393, 40
      %v399 = vadd.s32 %v393, 48
      %v400 = vadd.s32 %v393, 56
      %v401 = vadd.s32 %v393, 64
      %v402 = vadd.s32 %v393, 72
      %v403 = vadd.s32 %v393, 80
      %v404 = vadd.s32 %v393, 88
      %v405 = vadd.s32 %v393, 96
      %v406 = vadd.s32 %v393, 104
      %v407 = vadd.s32 %v393, 112
      %v408 = vadd.s32 %v393, 120
      %v409 = vadd.s32 %v393, 128
      %v410 = vadd.s32 %v393, 136
      %v411 = vadd.s32 %v393, 144
      %v412 = vadd.s32 %v393, 152
      %v413 = vadd.s32 %v393, 160
      %v414 = vadd.s32 %v393, 168
      %v415 = vadd.s32 %v393, 176
      %v416 = vadd.s32 %v393, 184
      %v417 = vadd.s32 %v393, 192
      %v418 = vadd.s32 %v393, 200
      %v419 = vadd.s32 %v393, 208
      %v420 = vadd.s32 %v393, 216
      %v421 = vadd.s32 %v393, 224
      %v422 = vadd.s32 %v393, 232
      %v423 = vadd.s32 %v393, 240
      %v424 = vadd.s32 %v393, 248
      %v425 = vadd.s32 %v393, 256
      %v426 = vadd.s32 %v393, 264
      %vm427 = vcmp.lt.s32.totalorder %v393, 0
      %v428 = vsub.s32 0, %v393
      %v429 = vsel %vm427, %v428, %v393
      %v430 = vmul.u32.u64.compose %v429, 4042322161
      %v431 = vextract.low.u32 %v430
      %v432 = vextract.high.u32 %v430
      %v433 = vshrl.u32 %v432, 4
      %v434 = vmul.u32 %v433, 17
      %v435 = vsub.s32 %v429, %v434
      %v436 = vsub.s32 0, %v435
      %v437 = vsel %vm427, %v436, %v435
      %vm438 = vcmp.lt.s32.totalorder %v394, 0
      %v439 = vsub.s32 0, %v394
      %v440 = vsel %vm438, %v439, %v394
      %v441 = vmul.u32.u64.compose %v440, 4042322161
      %v442 = vextract.low.u32 %v441
      %v443 = vextract.high.u32 %v441
      %v444 = vshrl.u32 %v443, 4
      %v445 = vmul.u32 %v444, 17
      %v446 = vsub.s32 %v440, %v445
      %v447 = vsub.s32 0, %v446
      %v448 = vsel %vm438, %v447, %v446
      %vm449 = vcmp.lt.s32.totalorder %v395, 0
      %v450 = vsub.s32 0, %v395
      %v451 = vsel %vm449, %v450, %v395
      %v452 = vmul.u32.u64.compose %v451, 4042322161
      %v453 = vextract.low.u32 %v452
      %v454 = vextract.high.u32 %v452
      %v455 = vshrl.u32 %v454, 4
      %v456 = vmul.u32 %v455, 17
      %v457 = vsub.s32 %v451, %v456
      %v458 = vsub.s32 0, %v457
      %v459 = vsel %vm449, %v458, %v457
      %vm460 = vcmp.lt.s32.totalorder %v396, 0
      %v461 = vsub.s32 0, %v396
      %v462 = vsel %vm460, %v461, %v396
      %v463 = vmul.u32.u64.compose %v462, 4042322161
      %v464 = vextract.low.u32 %v463
      %v465 = vextract.high.u32 %v463
      %v466 = vshrl.u32 %v465, 4
      %v467 = vmul.u32 %v466, 17
      %v468 = vsub.s32 %v462, %v467
      %v469 = vsub.s32 0, %v468
      %v470 = vsel %vm460, %v469, %v468
      %vm471 = vcmp.lt.s32.totalorder %v397, 0
      %v472 = vsub.s32 0, %v397
      %v473 = vsel %vm471, %v472, %v397
      %v474 = vmul.u32.u64.compose %v473, 4042322161
      %v475 = vextract.low.u32 %v474
      %v476 = vextract.high.u32 %v474
      %v477 = vshrl.u32 %v476, 4
      %v478 = vmul.u32 %v477, 17
      %v479 = vsub.s32 %v473, %v478
      %v480 = vsub.s32 0, %v479
      %v481 = vsel %vm471, %v480, %v479
      %vm482 = vcmp.lt.s32.totalorder %v398, 0
      %v483 = vsub.s32 0, %v398
      %v484 = vsel %vm482, %v483, %v398
      %v485 = vmul.u32.u64.compose %v484, 4042322161
      %v486 = vextract.low.u32 %v485
      %v487 = vextract.high.u32 %v485
      %v488 = vshrl.u32 %v487, 4
      %v489 = vmul.u32 %v488, 17
      %v490 = vsub.s32 %v484, %v489
      %v491 = vsub.s32 0, %v490
      %v492 = vsel %vm482, %v491, %v490
      %vm493 = vcmp.lt.s32.totalorder %v399, 0
      %v494 = vsub.s32 0, %v399
      %v495 = vsel %vm493, %v494, %v399
      %v496 = vmul.u32.u64.compose %v495, 4042322161
      %v497 = vextract.low.u32 %v496
      %v498 = vextract.high.u32 %v496
      %v499 = vshrl.u32 %v498, 4
      %v500 = vmul.u32 %v499, 17
      %v501 = vsub.s32 %v495, %v500
      %v502 = vsub.s32 0, %v501
      %v503 = vsel %vm493, %v502, %v501
      %vm504 = vcmp.lt.s32.totalorder %v400, 0
      %v505 = vsub.s32 0, %v400
      %v506 = vsel %vm504, %v505, %v400
      %v507 = vmul.u32.u64.compose %v506, 4042322161
      %v508 = vextract.low.u32 %v507
      %v509 = vextract.high.u32 %v507
      %v510 = vshrl.u32 %v509, 4
      %v511 = vmul.u32 %v510, 17
      %v512 = vsub.s32 %v506, %v511
      %v513 = vsub.s32 0, %v512
      %v514 = vsel %vm504, %v513, %v512
      %vm515 = vcmp.lt.s32.totalorder %v401, 0
      %v516 = vsub.s32 0, %v401
      %v517 = vsel %vm515, %v516, %v401
      %v518 = vmul.u32.u64.compose %v517, 4042322161
      %v519 = vextract.low.u32 %v518
      %v520 = vextract.high.u32 %v518
      %v521 = vshrl.u32 %v520, 4
      %v522 = vmul.u32 %v521, 17
      %v523 = vsub.s32 %v517, %v522
      %v524 = vsub.s32 0, %v523
      %v525 = vsel %vm515, %v524, %v523
      %vm526 = vcmp.lt.s32.totalorder %v402, 0
      %v527 = vsub.s32 0, %v402
      %v528 = vsel %vm526, %v527, %v402
      %v529 = vmul.u32.u64.compose %v528, 4042322161
      %v530 = vextract.low.u32 %v529
      %v531 = vextract.high.u32 %v529
      %v532 = vshrl.u32 %v531, 4
      %v533 = vmul.u32 %v532, 17
      %v534 = vsub.s32 %v528, %v533
      %v535 = vsub.s32 0, %v534
      %v536 = vsel %vm526, %v535, %v534
      %vm537 = vcmp.lt.s32.totalorder %v403, 0
      %v538 = vsub.s32 0, %v403
      %v539 = vsel %vm537, %v538, %v403
      %v540 = vmul.u32.u64.compose %v539, 4042322161
      %v541 = vextract.low.u32 %v540
      %v542 = vextract.high.u32 %v540
      %v543 = vshrl.u32 %v542, 4
      %v544 = vmul.u32 %v543, 17
      %v545 = vsub.s32 %v539, %v544
      %v546 = vsub.s32 0, %v545
      %v547 = vsel %vm537, %v546, %v545
      %vm548 = vcmp.lt.s32.totalorder %v404, 0
      %v549 = vsub.s32 0, %v404
      %v550 = vsel %vm548, %v549, %v404
      %v551 = vmul.u32.u64.compose %v550, 4042322161
      %v552 = vextract.low.u32 %v551
      %v553 = vextract.high.u32 %v551
      %v554 = vshrl.u32 %v553, 4
      %v555 = vmul.u32 %v554, 17
      %v556 = vsub.s32 %v550, %v555
      %v557 = vsub.s32 0, %v556
      %v558 = vsel %vm548, %v557, %v556
      %vm559 = vcmp.lt.s32.totalorder %v405, 0
      %v560 = vsub.s32 0, %v405
      %v561 = vsel %vm559, %v560, %v405
      %v562 = vmul.u32.u64.compose %v561, 4042322161
      %v563 = vextract.low.u32 %v562
      %v564 = vextract.high.u32 %v562
      %v565 = vshrl.u32 %v564, 4
      %v566 = vmul.u32 %v565, 17
      %v567 = vsub.s32 %v561, %v566
      %v568 = vsub.s32 0, %v567
      %v569 = vsel %vm559, %v568, %v567
      %vm570 = vcmp.lt.s32.totalorder %v406, 0
      %v571 = vsub.s32 0, %v406
      %v572 = vsel %vm570, %v571, %v406
      %v573 = vmul.u32.u64.compose %v572, 4042322161
      %v574 = vextract.low.u32 %v573
      %v575 = vextract.high.u32 %v573
      %v576 = vshrl.u32 %v575, 4
      %v577 = vmul.u32 %v576, 17
      %v578 = vsub.s32 %v572, %v577
      %v579 = vsub.s32 0, %v578
      %v580 = vsel %vm570, %v579, %v578
      %vm581 = vcmp.lt.s32.totalorder %v407, 0
      %v582 = vsub.s32 0, %v407
      %v583 = vsel %vm581, %v582, %v407
      %v584 = vmul.u32.u64.compose %v583, 4042322161
      %v585 = vextract.low.u32 %v584
      %v586 = vextract.high.u32 %v584
      %v587 = vshrl.u32 %v586, 4
      %v588 = vmul.u32 %v587, 17
      %v589 = vsub.s32 %v583, %v588
      %v590 = vsub.s32 0, %v589
      %v591 = vsel %vm581, %v590, %v589
      %vm592 = vcmp.lt.s32.totalorder %v408, 0
      %v593 = vsub.s32 0, %v408
      %v594 = vsel %vm592, %v593, %v408
      %v595 = vmul.u32.u64.compose %v594, 4042322161
      %v596 = vextract.low.u32 %v595
      %v597 = vextract.high.u32 %v595
      %v598 = vshrl.u32 %v597, 4
      %v599 = vmul.u32 %v598, 17
      %v600 = vsub.s32 %v594, %v599
      %v601 = vsub.s32 0, %v600
      %v602 = vsel %vm592, %v601, %v600
      %vm603 = vcmp.lt.s32.totalorder %v409, 0
      %v604 = vsub.s32 0, %v409
      %v605 = vsel %vm603, %v604, %v409
      %v606 = vmul.u32.u64.compose %v605, 4042322161
      %v607 = vextract.low.u32 %v606
      %v608 = vextract.high.u32 %v606
      %v609 = vshrl.u32 %v608, 4
      %v610 = vmul.u32 %v609, 17
      %v611 = vsub.s32 %v605, %v610
      %v612 = vsub.s32 0, %v611
      %v613 = vsel %vm603, %v612, %v611
      %vm614 = vcmp.lt.s32.totalorder %v410, 0
      %v615 = vsub.s32 0, %v410
      %v616 = vsel %vm614, %v615, %v410
      %v617 = vmul.u32.u64.compose %v616, 4042322161
      %v618 = vextract.low.u32 %v617
      %v619 = vextract.high.u32 %v617
      %v620 = vshrl.u32 %v619, 4
      %v621 = vmul.u32 %v620, 17
      %v622 = vsub.s32 %v616, %v621
      %v623 = vsub.s32 0, %v622
      %v624 = vsel %vm614, %v623, %v622
      %vm625 = vcmp.lt.s32.totalorder %v411, 0
      %v626 = vsub.s32 0, %v411
      %v627 = vsel %vm625, %v626, %v411
      %v628 = vmul.u32.u64.compose %v627, 4042322161
      %v629 = vextract.low.u32 %v628
      %v630 = vextract.high.u32 %v628
      %v631 = vshrl.u32 %v630, 4
      %v632 = vmul.u32 %v631, 17
      %v633 = vsub.s32 %v627, %v632
      %v634 = vsub.s32 0, %v633
      %v635 = vsel %vm625, %v634, %v633
      %vm636 = vcmp.lt.s32.totalorder %v412, 0
      %v637 = vsub.s32 0, %v412
      %v638 = vsel %vm636, %v637, %v412
      %v639 = vmul.u32.u64.compose %v638, 4042322161
      %v640 = vextract.low.u32 %v639
      %v641 = vextract.high.u32 %v639
      %v642 = vshrl.u32 %v641, 4
      %v643 = vmul.u32 %v642, 17
      %v644 = vsub.s32 %v638, %v643
      %v645 = vsub.s32 0, %v644
      %v646 = vsel %vm636, %v645, %v644
      %vm647 = vcmp.lt.s32.totalorder %v413, 0
      %v648 = vsub.s32 0, %v413
      %v649 = vsel %vm647, %v648, %v413
      %v650 = vmul.u32.u64.compose %v649, 4042322161
      %v651 = vextract.low.u32 %v650
      %v652 = vextract.high.u32 %v650
      %v653 = vshrl.u32 %v652, 4
      %v654 = vmul.u32 %v653, 17
      %v655 = vsub.s32 %v649, %v654
      %v656 = vsub.s32 0, %v655
      %v657 = vsel %vm647, %v656, %v655
      %vm658 = vcmp.lt.s32.totalorder %v414, 0
      %v659 = vsub.s32 0, %v414
      %v660 = vsel %vm658, %v659, %v414
      %v661 = vmul.u32.u64.compose %v660, 4042322161
      %v662 = vextract.low.u32 %v661
      %v663 = vextract.high.u32 %v661
      %v664 = vshrl.u32 %v663, 4
      %v665 = vmul.u32 %v664, 17
      %v666 = vsub.s32 %v660, %v665
      %v667 = vsub.s32 0, %v666
      %v668 = vsel %vm658, %v667, %v666
      %vm669 = vcmp.lt.s32.totalorder %v415, 0
      %v670 = vsub.s32 0, %v415
      %v671 = vsel %vm669, %v670, %v415
      %v672 = vmul.u32.u64.compose %v671, 4042322161
      %v673 = vextract.low.u32 %v672
      %v674 = vextract.high.u32 %v672
      %v675 = vshrl.u32 %v674, 4
      %v676 = vmul.u32 %v675, 17
      %v677 = vsub.s32 %v671, %v676
      %v678 = vsub.s32 0, %v677
      %v679 = vsel %vm669, %v678, %v677
      %vm680 = vcmp.lt.s32.totalorder %v416, 0
      %v681 = vsub.s32 0, %v416
      %v682 = vsel %vm680, %v681, %v416
      %v683 = vmul.u32.u64.compose %v682, 4042322161
      %v684 = vextract.low.u32 %v683
      %v685 = vextract.high.u32 %v683
      %v686 = vshrl.u32 %v685, 4
      %v687 = vmul.u32 %v686, 17
      %v688 = vsub.s32 %v682, %v687
      %v689 = vsub.s32 0, %v688
      %v690 = vsel %vm680, %v689, %v688
      %vm691 = vcmp.lt.s32.totalorder %v417, 0
      %v692 = vsub.s32 0, %v417
      %v693 = vsel %vm691, %v692, %v417
      %v694 = vmul.u32.u64.compose %v693, 4042322161
      %v695 = vextract.low.u32 %v694
      %v696 = vextract.high.u32 %v694
      %v697 = vshrl.u32 %v696, 4
      %v698 = vmul.u32 %v697, 17
      %v699 = vsub.s32 %v693, %v698
      %v700 = vsub.s32 0, %v699
      %v701 = vsel %vm691, %v700, %v699
      %vm702 = vcmp.lt.s32.totalorder %v418, 0
      %v703 = vsub.s32 0, %v418
      %v704 = vsel %vm702, %v703, %v418
      %v705 = vmul.u32.u64.compose %v704, 4042322161
      %v706 = vextract.low.u32 %v705
      %v707 = vextract.high.u32 %v705
      %v708 = vshrl.u32 %v707, 4
      %v709 = vmul.u32 %v708, 17
      %v710 = vsub.s32 %v704, %v709
      %v711 = vsub.s32 0, %v710
      %v712 = vsel %vm702, %v711, %v710
      %vm713 = vcmp.lt.s32.totalorder %v419, 0
      %v714 = vsub.s32 0, %v419
      %v715 = vsel %vm713, %v714, %v419
      %v716 = vmul.u32.u64.compose %v715, 4042322161
      %v717 = vextract.low.u32 %v716
      %v718 = vextract.high.u32 %v716
      %v719 = vshrl.u32 %v718, 4
      %v720 = vmul.u32 %v719, 17
      %v721 = vsub.s32 %v715, %v720
      %v722 = vsub.s32 0, %v721
      %v723 = vsel %vm713, %v722, %v721
      %vm724 = vcmp.lt.s32.totalorder %v420, 0
      %v725 = vsub.s32 0, %v420
      %v726 = vsel %vm724, %v725, %v420
      %v727 = vmul.u32.u64.compose %v726, 4042322161
      %v728 = vextract.low.u32 %v727
      %v729 = vextract.high.u32 %v727
      %v730 = vshrl.u32 %v729, 4
      %v731 = vmul.u32 %v730, 17
      %v732 = vsub.s32 %v726, %v731
      %v733 = vsub.s32 0, %v732
      %v734 = vsel %vm724, %v733, %v732
      %vm735 = vcmp.lt.s32.totalorder %v421, 0
      %v736 = vsub.s32 0, %v421
      %v737 = vsel %vm735, %v736, %v421
      %v738 = vmul.u32.u64.compose %v737, 4042322161
      %v739 = vextract.low.u32 %v738
      %v740 = vextract.high.u32 %v738
      %v741 = vshrl.u32 %v740, 4
      %v742 = vmul.u32 %v741, 17
      %v743 = vsub.s32 %v737, %v742
      %v744 = vsub.s32 0, %v743
      %v745 = vsel %vm735, %v744, %v743
      %vm746 = vcmp.lt.s32.totalorder %v422, 0
      %v747 = vsub.s32 0, %v422
      %v748 = vsel %vm746, %v747, %v422
      %v749 = vmul.u32.u64.compose %v748, 4042322161
      %v750 = vextract.low.u32 %v749
      %v751 = vextract.high.u32 %v749
      %v752 = vshrl.u32 %v751, 4
      %v753 = vmul.u32 %v752, 17
      %v754 = vsub.s32 %v748, %v753
      %v755 = vsub.s32 0, %v754
      %v756 = vsel %vm746, %v755, %v754
      %vm757 = vcmp.lt.s32.totalorder %v423, 0
      %v758 = vsub.s32 0, %v423
      %v759 = vsel %vm757, %v758, %v423
      %v760 = vmul.u32.u64.compose %v759, 4042322161
      %v761 = vextract.low.u32 %v760
      %v762 = vextract.high.u32 %v760
      %v763 = vshrl.u32 %v762, 4
      %v764 = vmul.u32 %v763, 17
      %v765 = vsub.s32 %v759, %v764
      %v766 = vsub.s32 0, %v765
      %v767 = vsel %vm757, %v766, %v765
      %vm768 = vcmp.lt.s32.totalorder %v424, 0
      %v769 = vsub.s32 0, %v424
      %v770 = vsel %vm768, %v769, %v424
      %v771 = vmul.u32.u64.compose %v770, 4042322161
      %v772 = vextract.low.u32 %v771
      %v773 = vextract.high.u32 %v771
      %v774 = vshrl.u32 %v773, 4
      %v775 = vmul.u32 %v774, 17
      %v776 = vsub.s32 %v770, %v775
      %v777 = vsub.s32 0, %v776
      %v778 = vsel %vm768, %v777, %v776
      %vm779 = vcmp.lt.s32.totalorder %v425, 0
      %v780 = vsub.s32 0, %v425
      %v781 = vsel %vm779, %v780, %v425
      %v782 = vmul.u32.u64.compose %v781, 4042322161
      %v783 = vextract.low.u32 %v782
      %v784 = vextract.high.u32 %v782
      %v785 = vshrl.u32 %v784, 4
      %v786 = vmul.u32 %v785, 17
      %v787 = vsub.s32 %v781, %v786
      %v788 = vsub.s32 0, %v787
      %v789 = vsel %vm779, %v788, %v787
      %vm790 = vcmp.lt.s32.totalorder %v426, 0
      %v791 = vsub.s32 0, %v426
      %v792 = vsel %vm790, %v791, %v426
      %v793 = vmul.u32.u64.compose %v792, 4042322161
      %v794 = vextract.low.u32 %v793
      %v795 = vextract.high.u32 %v793
      %v796 = vshrl.u32 %v795, 4
      %v797 = vmul.u32 %v796, 17
      %v798 = vsub.s32 %v792, %v797
      %v799 = vsub.s32 0, %v798
      %v800 = vsel %vm790, %v799, %v798
      %vm801 = vcmp.ne.s32.totalorder %v437, 0
      %vm802 = vcmp.ne.s32.totalorder %v448, 0
      %vm803 = vcmp.ne.s32.totalorder %v459, 0
      %vm804 = vcmp.ne.s32.totalorder %v470, 0
      %vm805 = vcmp.ne.s32.totalorder %v481, 0
      %vm806 = vcmp.ne.s32.totalorder %v492, 0
      %vm807 = vcmp.ne.s32.totalorder %v503, 0
      %vm808 = vcmp.ne.s32.totalorder %v514, 0
      %vm809 = vcmp.ne.s32.totalorder %v525, 0
      %vm810 = vcmp.ne.s32.totalorder %v536, 0
      %vm811 = vcmp.ne.s32.totalorder %v547, 0
      %vm812 = vcmp.ne.s32.totalorder %v558, 0
      %vm813 = vcmp.ne.s32.totalorder %v569, 0
      %vm814 = vcmp.ne.s32.totalorder %v580, 0
      %vm815 = vcmp.ne.s32.totalorder %v591, 0
      %vm816 = vcmp.ne.s32.totalorder %v602, 0
      %vm817 = vcmp.ne.s32.totalorder %v613, 0
      %vm818 = vcmp.ne.s32.totalorder %v624, 0
      %vm819 = vcmp.ne.s32.totalorder %v635, 0
      %vm820 = vcmp.ne.s32.totalorder %v646, 0
      %vm821 = vcmp.ne.s32.totalorder %v657, 0
      %vm822 = vcmp.ne.s32.totalorder %v668, 0
      %vm823 = vcmp.ne.s32.totalorder %v679, 0
      %vm824 = vcmp.ne.s32.totalorder %v690, 0
      %vm825 = vcmp.ne.s32.totalorder %v701, 0
      %vm826 = vcmp.ne.s32.totalorder %v712, 0
      %vm827 = vcmp.ne.s32.totalorder %v723, 0
      %vm828 = vcmp.ne.s32.totalorder %v734, 0
      %vm829 = vcmp.ne.s32.totalorder %v745, 0
      %vm830 = vcmp.ne.s32.totalorder %v756, 0
      %vm831 = vcmp.ne.s32.totalorder %v767, 0
      %vm832 = vcmp.ne.s32.totalorder %v778, 0
      %vm833 = vcmp.ne.s32.totalorder %v789, 0
      %vm834 = vcmp.ne.s32.totalorder %v800, 0
      %vm835 = vcmp.lt.s32.totalorder %v437, 0
      %vm836 = vcmp.lt.s32.totalorder %v448, 0
      %vm837 = vcmp.lt.s32.totalorder %v459, 0
      %vm838 = vcmp.lt.s32.totalorder %v470, 0
      %vm839 = vcmp.lt.s32.totalorder %v481, 0
      %vm840 = vcmp.lt.s32.totalorder %v492, 0
      %vm841 = vcmp.lt.s32.totalorder %v503, 0
      %vm842 = vcmp.lt.s32.totalorder %v514, 0
      %vm843 = vcmp.lt.s32.totalorder %v525, 0
      %vm844 = vcmp.lt.s32.totalorder %v536, 0
      %vm845 = vcmp.lt.s32.totalorder %v547, 0
      %vm846 = vcmp.lt.s32.totalorder %v558, 0
      %vm847 = vcmp.lt.s32.totalorder %v569, 0
      %vm848 = vcmp.lt.s32.totalorder %v580, 0
      %vm849 = vcmp.lt.s32.totalorder %v591, 0
      %vm850 = vcmp.lt.s32.totalorder %v602, 0
      %vm851 = vcmp.lt.s32.totalorder %v613, 0
      %vm852 = vcmp.lt.s32.totalorder %v624, 0
      %vm853 = vcmp.lt.s32.totalorder %v635, 0
      %vm854 = vcmp.lt.s32.totalorder %v646, 0
      %vm855 = vcmp.lt.s32.totalorder %v657, 0
      %vm856 = vcmp.lt.s32.totalorder %v668, 0
      %vm857 = vcmp.lt.s32.totalorder %v679, 0
      %vm858 = vcmp.lt.s32.totalorder %v690, 0
      %vm859 = vcmp.lt.s32.totalorder %v701, 0
      %vm860 = vcmp.lt.s32.totalorder %v712, 0
      %vm861 = vcmp.lt.s32.totalorder %v723, 0
      %vm862 = vcmp.lt.s32.totalorder %v734, 0
      %vm863 = vcmp.lt.s32.totalorder %v745, 0
      %vm864 = vcmp.lt.s32.totalorder %v756, 0
      %vm865 = vcmp.lt.s32.totalorder %v767, 0
      %vm866 = vcmp.lt.s32.totalorder %v778, 0
      %vm867 = vcmp.lt.s32.totalorder %v789, 0
      %vm868 = vcmp.lt.s32.totalorder %v800, 0
      %vm869 = vmand %vm835, %vm801
      %vm870 = vmand %vm836, %vm802
      %vm871 = vmand %vm837, %vm803
      %vm872 = vmand %vm838, %vm804
      %vm873 = vmand %vm839, %vm805
      %vm874 = vmand %vm840, %vm806
      %vm875 = vmand %vm841, %vm807
      %vm876 = vmand %vm842, %vm808
      %vm877 = vmand %vm843, %vm809
      %vm878 = vmand %vm844, %vm810
      %vm879 = vmand %vm845, %vm811
      %vm880 = vmand %vm846, %vm812
      %vm881 = vmand %vm847, %vm813
      %vm882 = vmand %vm848, %vm814
      %vm883 = vmand %vm849, %vm815
      %vm884 = vmand %vm850, %vm816
      %vm885 = vmand %vm851, %vm817
      %vm886 = vmand %vm852, %vm818
      %vm887 = vmand %vm853, %vm819
      %vm888 = vmand %vm854, %vm820
      %vm889 = vmand %vm855, %vm821
      %vm890 = vmand %vm856, %vm822
      %vm891 = vmand %vm857, %vm823
      %vm892 = vmand %vm858, %vm824
      %vm893 = vmand %vm859, %vm825
      %vm894 = vmand %vm860, %vm826
      %vm895 = vmand %vm861, %vm827
      %vm896 = vmand %vm862, %vm828
      %vm897 = vmand %vm863, %vm829
      %vm898 = vmand %vm864, %vm830
      %vm899 = vmand %vm865, %vm831
      %vm900 = vmand %vm866, %vm832
      %vm901 = vmand %vm867, %vm833
      %vm902 = vmand %vm868, %vm834
      %v903 = vadd.s32 %v437, 17
      %v904 = vadd.s32 %v448, 17
      %v905 = vadd.s32 %v459, 17
      %v906 = vadd.s32 %v470, 17
      %v907 = vadd.s32 %v481, 17
      %v908 = vadd.s32 %v492, 17
      %v909 = vadd.s32 %v503, 17
      %v910 = vadd.s32 %v514, 17
      %v911 = vadd.s32 %v525, 17
      %v912 = vadd.s32 %v536, 17
      %v913 = vadd.s32 %v547, 17
      %v914 = vadd.s32 %v558, 17
      %v915 = vadd.s32 %v569, 17
      %v916 = vadd.s32 %v580, 17
      %v917 = vadd.s32 %v591, 17
      %v918 = vadd.s32 %v602, 17
      %v919 = vadd.s32 %v613, 17
      %v920 = vadd.s32 %v624, 17
      %v921 = vadd.s32 %v635, 17
      %v922 = vadd.s32 %v646, 17
      %v923 = vadd.s32 %v657, 17
      %v924 = vadd.s32 %v668, 17
      %v925 = vadd.s32 %v679, 17
      %v926 = vadd.s32 %v690, 17
      %v927 = vadd.s32 %v701, 17
      %v928 = vadd.s32 %v712, 17
      %v929 = vadd.s32 %v723, 17
      %v930 = vadd.s32 %v734, 17
      %v931 = vadd.s32 %v745, 17
      %v932 = vadd.s32 %v756, 17
      %v933 = vadd.s32 %v767, 17
      %v934 = vadd.s32 %v778, 17
      %v935 = vadd.s32 %v789, 17
      %v936 = vadd.s32 %v800, 17
      %v937 = vsel %vm869, %v903, %v437
      %v938 = vsel %vm870, %v904, %v448
      %v939 = vsel %vm871, %v905, %v459
      %v940 = vsel %vm872, %v906, %v470
      %v941 = vsel %vm873, %v907, %v481
      %v942 = vsel %vm874, %v908, %v492
      %v943 = vsel %vm875, %v909, %v503
      %v944 = vsel %vm876, %v910, %v514
      %v945 = vsel %vm877, %v911, %v525
      %v946 = vsel %vm878, %v912, %v536
      %v947 = vsel %vm879, %v913, %v547
      %v948 = vsel %vm880, %v914, %v558
      %v949 = vsel %vm881, %v915, %v569
      %v950 = vsel %vm882, %v916, %v580
      %v951 = vsel %vm883, %v917, %v591
      %v952 = vsel %vm884, %v918, %v602
      %v953 = vsel %vm885, %v919, %v613
      %v954 = vsel %vm886, %v920, %v624
      %v955 = vsel %vm887, %v921, %v635
      %v956 = vsel %vm888, %v922, %v646
      %v957 = vsel %vm889, %v923, %v657
      %v958 = vsel %vm890, %v924, %v668
      %v959 = vsel %vm891, %v925, %v679
      %v960 = vsel %vm892, %v926, %v690
      %v961 = vsel %vm893, %v927, %v701
      %v962 = vsel %vm894, %v928, %v712
      %v963 = vsel %vm895, %v929, %v723
      %v964 = vsel %vm896, %v930, %v734
      %v965 = vsel %vm897, %v931, %v745
      %v966 = vsel %vm898, %v932, %v756
      %v967 = vsel %vm899, %v933, %v767
      %v968 = vsel %vm900, %v934, %v778
      %v969 = vsel %vm901, %v935, %v789
      %v970 = vsel %vm902, %v936, %v800
      %vm971 = vcmp.lt.s32.totalorder %v937, 16
      %vm972 = vcmp.lt.s32.totalorder %v938, 16
      %vm973 = vcmp.lt.s32.totalorder %v939, 16
      %vm974 = vcmp.lt.s32.totalorder %v940, 16
      %vm975 = vcmp.lt.s32.totalorder %v941, 16
      %vm976 = vcmp.lt.s32.totalorder %v942, 16
      %vm977 = vcmp.lt.s32.totalorder %v943, 16
      %vm978 = vcmp.lt.s32.totalorder %v944, 16
      %vm979 = vcmp.lt.s32.totalorder %v945, 16
      %vm980 = vcmp.lt.s32.totalorder %v946, 16
      %vm981 = vcmp.lt.s32.totalorder %v947, 16
      %vm982 = vcmp.lt.s32.totalorder %v948, 16
      %vm983 = vcmp.lt.s32.totalorder %v949, 16
      %vm984 = vcmp.lt.s32.totalorder %v950, 16
      %vm985 = vcmp.lt.s32.totalorder %v951, 16
      %vm986 = vcmp.lt.s32.totalorder %v952, 16
      %vm987 = vcmp.lt.s32.totalorder %v953, 16
      %vm988 = vcmp.lt.s32.totalorder %v954, 16
      %vm989 = vcmp.lt.s32.totalorder %v955, 16
      %vm990 = vcmp.lt.s32.totalorder %v956, 16
      %vm991 = vcmp.lt.s32.totalorder %v957, 16
      %vm992 = vcmp.lt.s32.totalorder %v958, 16
      %vm993 = vcmp.lt.s32.totalorder %v959, 16
      %vm994 = vcmp.lt.s32.totalorder %v960, 16
      %vm995 = vcmp.lt.s32.totalorder %v961, 16
      %vm996 = vcmp.lt.s32.totalorder %v962, 16
      %vm997 = vcmp.lt.s32.totalorder %v963, 16
      %vm998 = vcmp.lt.s32.totalorder %v964, 16
      %vm999 = vcmp.lt.s32.totalorder %v965, 16
      %vm1000 = vcmp.lt.s32.totalorder %v966, 16
      %vm1001 = vcmp.lt.s32.totalorder %v967, 16
      %vm1002 = vcmp.lt.s32.totalorder %v968, 16
      %vm1003 = vcmp.lt.s32.totalorder %v969, 16
      %vm1004 = vcmp.lt.s32.totalorder %v970, 16
      %v1005 = vld [vmem:[%s381] sm:$0xff]
      %v1006 = vld [vmem:[%s381 + $0x8] sm:$0xff]
      %v1007 = vld [vmem:[%s381 + $0x10] sm:$0xff]
      %v1008 = vld [vmem:[%s381 + $0x18] sm:$0xff]
      %v1009 = vld [vmem:[%s381 + $0x20] sm:$0xff]
      %v1010 = vld [vmem:[%s381 + $0x28] sm:$0xff]
      %v1011 = vld [vmem:[%s381 + $0x30] sm:$0xff]
      %v1012 = vld [vmem:[%s381 + $0x38] sm:$0xff]
      %v1013 = vld [vmem:[%s381 + $0x40] sm:$0xff]
      %v1014 = vld [vmem:[%s381 + $0x48] sm:$0xff]
      %v1015 = vld [vmem:[%s381 + $0x50] sm:$0xff]
      %v1016 = vld [vmem:[%s381 + $0x58] sm:$0xff]
      %v1017 = vld [vmem:[%s381 + $0x60] sm:$0xff]
      %v1018 = vld [vmem:[%s381 + $0x68] sm:$0xff]
      %v1019 = vld [vmem:[%s381 + $0x70] sm:$0xff]
      %v1020 = vld [vmem:[%s381 + $0x78] sm:$0xff]
      %v1021 = vld [vmem:[%s381 + $0x80] sm:$0xff]
      %v1022 = vld [vmem:[%s381 + $0x88] sm:$0xff]
      %v1023 = vld [vmem:[%s381 + $0x90] sm:$0xff]
      %v1024 = vld [vmem:[%s381 + $0x98] sm:$0xff]
      %v1025 = vld [vmem:[%s381 + $0xa0] sm:$0xff]
      %v1026 = vld [vmem:[%s381 + $0xa8] sm:$0xff]
      %v1027 = vld [vmem:[%s381 + $0xb0] sm:$0xff]
      %v1028 = vld [vmem:[%s381 + $0xb8] sm:$0xff]
      %v1029 = vld [vmem:[%s381 + $0xc0] sm:$0xff]
      %v1030 = vld [vmem:[%s381 + $0xc8] sm:$0xff]
      %v1031 = vld [vmem:[%s381 + $0xd0] sm:$0xff]
      %v1032 = vld [vmem:[%s381 + $0xd8] sm:$0xff]
      %v1033 = vld [vmem:[%s381 + $0xe0] sm:$0xff]
      %v1034 = vld [vmem:[%s381 + $0xe8] sm:$0xff]
      %v1035 = vld [vmem:[%s381 + $0xf0] sm:$0xff]
      %v1036 = vld [vmem:[%s381 + $0xf8] sm:$0xff]
      %v1037 = vld [vmem:[%s381 + $0x100] sm:$0xff]
      %v1038 = vld [vmem:[%s381 + $0x108] sm:$0xff]
      %v1039 = vld [vmem:[%s1] sm:$0xf]
      %v1040 = vld [vmem:[%s1 + $0x4] sm:$0xf]
      %v1041 = vld [vmem:[%s1 + $0x8] sm:$0xf]
      %v1042 = vld [vmem:[%s1 + $0xc] sm:$0xf]
      %v1043 = vld [vmem:[%s1 + $0x10] sm:$0xf]
      %v1044 = vld [vmem:[%s1 + $0x14] sm:$0xf]
      %v1045 = vld [vmem:[%s1 + $0x18] sm:$0xf]
      %v1046 = vld [vmem:[%s1 + $0x1c] sm:$0xf]
      %v1047 = vld [vmem:[%s1 + $0x20] sm:$0xf]
      %v1048 = vld [vmem:[%s1 + $0x24] sm:$0xf]
      %v1049 = vld [vmem:[%s1 + $0x28] sm:$0xf]
      %v1050 = vld [vmem:[%s1 + $0x2c] sm:$0xf]
      %v1051 = vld [vmem:[%s1 + $0x30] sm:$0xf]
      %v1052 = vld [vmem:[%s1 + $0x34] sm:$0xf]
      %v1053 = vld [vmem:[%s1 + $0x38] sm:$0xf]
      %v1054 = vld [vmem:[%s1 + $0x3c] sm:$0xf]
      %v1055 = vld [vmem:[%s1 + $0x40] sm:$0xf]
      %v1056 = vld [vmem:[%s1 + $0x44] sm:$0xf]
      %v1057 = vld [vmem:[%s1 + $0x48] sm:$0xf]
      %v1058 = vld [vmem:[%s1 + $0x4c] sm:$0xf]
      %v1059 = vld [vmem:[%s1 + $0x50] sm:$0xf]
      %v1060 = vld [vmem:[%s1 + $0x54] sm:$0xf]
      %v1061 = vld [vmem:[%s1 + $0x58] sm:$0xf]
      %v1062 = vld [vmem:[%s1 + $0x5c] sm:$0xf]
      %v1063 = vld [vmem:[%s1 + $0x60] sm:$0xf]
      %v1064 = vld [vmem:[%s1 + $0x64] sm:$0xf]
      %v1065 = vld [vmem:[%s1 + $0x68] sm:$0xf]
      %v1066 = vld [vmem:[%s1 + $0x6c] sm:$0xf]
      %v1067 = vld [vmem:[%s1 + $0x70] sm:$0xf]
      %v1068 = vld [vmem:[%s1 + $0x74] sm:$0xf]
      %v1069 = vld [vmem:[%s1 + $0x78] sm:$0xf]
      %v1070 = vld [vmem:[%s1 + $0x7c] sm:$0xf]
      %v1071 = vld [vmem:[%s2] sm:$0x1]
      %v1073 = vlaneseq
      %v1074 = vshrl.u32 %v1073, 7
      %v1075 = vsub.s32 0, %v1074
      %v1076 = vrot.slane %v1071, %v1075
      %v1112 = vunpack.c.l.b16 %v1005
      %v1113 = vunpack.c.h.b16 %v1005
      %v1114 = vunpack.c.l.b16 %v1006
      %v1115 = vunpack.c.h.b16 %v1006
      %v1116 = vunpack.c.l.b16 %v1007
      %v1117 = vunpack.c.h.b16 %v1007
      %v1118 = vunpack.c.l.b16 %v1008
      %v1119 = vunpack.c.h.b16 %v1008
      %v1120 = vunpack.c.l.b16 %v1009
      %v1121 = vunpack.c.h.b16 %v1009
      %v1122 = vunpack.c.l.b16 %v1010
      %v1123 = vunpack.c.h.b16 %v1010
      %v1124 = vunpack.c.l.b16 %v1011
      %v1125 = vunpack.c.h.b16 %v1011
      %v1126 = vunpack.c.l.b16 %v1012
      %v1127 = vunpack.c.h.b16 %v1012
      %v1128 = vunpack.c.l.b16 %v1013
      %v1129 = vunpack.c.h.b16 %v1013
      %v1130 = vunpack.c.l.b16 %v1014
      %v1131 = vunpack.c.h.b16 %v1014
      %v1132 = vunpack.c.l.b16 %v1015
      %v1133 = vunpack.c.h.b16 %v1015
      %v1134 = vunpack.c.l.b16 %v1016
      %v1135 = vunpack.c.h.b16 %v1016
      %v1136 = vunpack.c.l.b16 %v1017
      %v1137 = vunpack.c.h.b16 %v1017
      %v1138 = vunpack.c.l.b16 %v1018
      %v1139 = vunpack.c.h.b16 %v1018
      %v1140 = vunpack.c.l.b16 %v1019
      %v1141 = vunpack.c.h.b16 %v1019
      %v1142 = vunpack.c.l.b16 %v1020
      %v1143 = vunpack.c.h.b16 %v1020
      %v1144 = vunpack.c.l.b16 %v1021
      %v1145 = vunpack.c.h.b16 %v1021
      %v1146 = vunpack.c.l.b16 %v1022
      %v1147 = vunpack.c.h.b16 %v1022
      %v1148 = vunpack.c.l.b16 %v1023
      %v1149 = vunpack.c.h.b16 %v1023
      %v1150 = vunpack.c.l.b16 %v1024
      %v1151 = vunpack.c.h.b16 %v1024
      %v1152 = vunpack.c.l.b16 %v1025
      %v1153 = vunpack.c.h.b16 %v1025
      %v1154 = vunpack.c.l.b16 %v1026
      %v1155 = vunpack.c.h.b16 %v1026
      %v1156 = vunpack.c.l.b16 %v1027
      %v1157 = vunpack.c.h.b16 %v1027
      %v1158 = vunpack.c.l.b16 %v1028
      %v1159 = vunpack.c.h.b16 %v1028
      %v1160 = vunpack.c.l.b16 %v1029
      %v1161 = vunpack.c.h.b16 %v1029
      %v1162 = vunpack.c.l.b16 %v1030
      %v1163 = vunpack.c.h.b16 %v1030
      %v1164 = vunpack.c.l.b16 %v1031
      %v1165 = vunpack.c.h.b16 %v1031
      %v1166 = vunpack.c.l.b16 %v1032
      %v1167 = vunpack.c.h.b16 %v1032
      %v1168 = vunpack.c.l.b16 %v1033
      %v1169 = vunpack.c.h.b16 %v1033
      %v1170 = vunpack.c.l.b16 %v1034
      %v1171 = vunpack.c.h.b16 %v1034
      %v1172 = vunpack.c.l.b16 %v1035
      %v1173 = vunpack.c.h.b16 %v1035
      %v1174 = vunpack.c.l.b16 %v1036
      %v1175 = vunpack.c.h.b16 %v1036
      %v1176 = vunpack.c.l.b16 %v1037
      %v1177 = vunpack.c.h.b16 %v1037
      %v1178 = vunpack.c.l.b16 %v1038
      %v1179 = vunpack.c.h.b16 %v1038
      %v1180 = vpack.c.b16 %v1114, %v1112
      %v1181 = vpack.c.b16 %v1115, %v1113
      %v1182 = vpack.c.b16 %v1118, %v1116
      %v1183 = vpack.c.b16 %v1119, %v1117
      %v1184 = vpack.c.b16 %v1122, %v1120
      %v1185 = vpack.c.b16 %v1123, %v1121
      %v1186 = vpack.c.b16 %v1126, %v1124
      %v1187 = vpack.c.b16 %v1127, %v1125
      %v1188 = vpack.c.b16 %v1130, %v1128
      %v1189 = vpack.c.b16 %v1131, %v1129
      %v1190 = vpack.c.b16 %v1134, %v1132
      %v1191 = vpack.c.b16 %v1135, %v1133
      %v1192 = vpack.c.b16 %v1138, %v1136
      %v1193 = vpack.c.b16 %v1139, %v1137
      %v1194 = vpack.c.b16 %v1142, %v1140
      %v1195 = vpack.c.b16 %v1143, %v1141
      %v1196 = vpack.c.b16 %v1146, %v1144
      %v1197 = vpack.c.b16 %v1147, %v1145
      %v1198 = vpack.c.b16 %v1150, %v1148
      %v1199 = vpack.c.b16 %v1151, %v1149
      %v1200 = vpack.c.b16 %v1154, %v1152
      %v1201 = vpack.c.b16 %v1155, %v1153
      %v1202 = vpack.c.b16 %v1158, %v1156
      %v1203 = vpack.c.b16 %v1159, %v1157
      %v1204 = vpack.c.b16 %v1162, %v1160
      %v1205 = vpack.c.b16 %v1163, %v1161
      %v1206 = vpack.c.b16 %v1166, %v1164
      %v1207 = vpack.c.b16 %v1167, %v1165
      %v1208 = vpack.c.b16 %v1170, %v1168
      %v1209 = vpack.c.b16 %v1171, %v1169
      %v1210 = vpack.c.b16 %v1174, %v1172
      %v1211 = vpack.c.b16 %v1175, %v1173
      %v1212 = vpack.c.b16 %v1178, %v1176
      %v1213 = vpack.c.b16 %v1179, %v1177
      %v1280 = vunpack.c.l.b16 %v1039
      %v1281 = vunpack.c.l.b16 %v1040
      %v1282 = vunpack.c.l.b16 %v1041
      %v1283 = vunpack.c.l.b16 %v1042
      %v1284 = vunpack.c.l.b16 %v1043
      %v1285 = vunpack.c.l.b16 %v1044
      %v1286 = vunpack.c.l.b16 %v1045
      %v1287 = vunpack.c.l.b16 %v1046
      %v1288 = vunpack.c.l.b16 %v1047
      %v1289 = vunpack.c.l.b16 %v1048
      %v1290 = vunpack.c.l.b16 %v1049
      %v1291 = vunpack.c.l.b16 %v1050
      %v1292 = vunpack.c.l.b16 %v1051
      %v1293 = vunpack.c.l.b16 %v1052
      %v1294 = vunpack.c.l.b16 %v1053
      %v1295 = vunpack.c.l.b16 %v1054
      %v1296 = vunpack.c.l.b16 %v1055
      %v1297 = vunpack.c.l.b16 %v1056
      %v1298 = vunpack.c.l.b16 %v1057
      %v1299 = vunpack.c.l.b16 %v1058
      %v1300 = vunpack.c.l.b16 %v1059
      %v1301 = vunpack.c.l.b16 %v1060
      %v1302 = vunpack.c.l.b16 %v1061
      %v1303 = vunpack.c.l.b16 %v1062
      %v1304 = vunpack.c.l.b16 %v1063
      %v1305 = vunpack.c.l.b16 %v1064
      %v1306 = vunpack.c.l.b16 %v1065
      %v1307 = vunpack.c.l.b16 %v1066
      %v1308 = vunpack.c.l.b16 %v1067
      %v1309 = vunpack.c.l.b16 %v1068
      %v1310 = vunpack.c.l.b16 %v1069
      %v1311 = vunpack.c.l.b16 %v1070
      %v1312 = vpack.c.b16 %v1281, %v1280
      %v1313 = vpack.c.b16 %v1283, %v1282
      %v1314 = vpack.c.b16 %v1285, %v1284
      %v1315 = vpack.c.b16 %v1287, %v1286
      %v1316 = vpack.c.b16 %v1289, %v1288
      %v1317 = vpack.c.b16 %v1291, %v1290
      %v1318 = vpack.c.b16 %v1293, %v1292
      %v1319 = vpack.c.b16 %v1295, %v1294
      %v1320 = vpack.c.b16 %v1297, %v1296
      %v1321 = vpack.c.b16 %v1299, %v1298
      %v1322 = vpack.c.b16 %v1301, %v1300
      %v1323 = vpack.c.b16 %v1303, %v1302
      %v1324 = vpack.c.b16 %v1305, %v1304
      %v1325 = vpack.c.b16 %v1307, %v1306
      %v1326 = vpack.c.b16 %v1309, %v1308
      %v1327 = vpack.c.b16 %v1311, %v1310
      %1344 = vmatprep.subr.bf16.mxu0 0
      %1345 = vmatpush1.bf16.msra.mxu0 %v1312
      %1346 = vmatprep.subr.bf16.mxu0 0
      %1347 = vmatpush1.bf16.msra.mxu0 %v1313
      %1348 = vmatprep.subr.bf16.mxu0 0
      %1349 = vmatpush1.bf16.msra.mxu0 %v1314
      %1350 = vmatprep.subr.bf16.mxu0 0
      %1351 = vmatpush1.bf16.msra.mxu0 %v1315
      %1352 = vmatprep.subr.bf16.mxu0 0
      %1353 = vmatpush1.bf16.msra.mxu0 %v1316
      %1354 = vmatprep.subr.bf16.mxu0 0
      %1355 = vmatpush1.bf16.msra.mxu0 %v1317
      %1356 = vmatprep.subr.bf16.mxu0 0
      %1357 = vmatpush1.bf16.msra.mxu0 %v1318
      %1358 = vmatprep.subr.bf16.mxu0 0
      %1359 = vmatpush1.bf16.msra.mxu0 %v1319
      %1360 = vmatprep.subr.bf16.mxu0 0
      %1361 = vmatpush1.bf16.msra.mxu0 %v1320
      %1362 = vmatprep.subr.bf16.mxu0 0
      %1363 = vmatpush1.bf16.msra.mxu0 %v1321
      %1364 = vmatprep.subr.bf16.mxu0 0
      %1365 = vmatpush1.bf16.msra.mxu0 %v1322
      %1366 = vmatprep.subr.bf16.mxu0 0
      %1367 = vmatpush1.bf16.msra.mxu0 %v1323
      %1368 = vmatprep.subr.bf16.mxu0 0
      %1369 = vmatpush1.bf16.msra.mxu0 %v1324
      %1370 = vmatprep.subr.bf16.mxu0 0
      %1371 = vmatpush1.bf16.msra.mxu0 %v1325
      %1372 = vmatprep.subr.bf16.mxu0 0
      %1373 = vmatpush1.bf16.msra.mxu0 %v1326
      %1374 = vmatprep.subr.bf16.mxu0 0
      %1375 = vmatpush1.bf16.msra.mxu0 %v1327
      %1376 = vmatprep.mubr.bf16.mxu0 %v1181
      %1377 = vmatmul.mubr.bf16.gmra.mrb[0].mxu0 %v1180
      %v1378 = vpop.f32.mrb[0].mxu0
      %v1379 = vadd.f32 %v1076, %v1378
      %v1380 = vpop.f32.mrb[0].mxu0
      %v1381 = vpop.f32.mrb[0].mxu0
      %v1382 = vadd.f32 %v1076, %v1381
      %v1383 = vpop.f32.mrb[0].mxu0
      %1384 = vmatprep.mubr.bf16.mxu0 %v1183
      %1385 = vmatmul.mubr.bf16.gmra.mrb[0].mxu0 %v1182
      %v1386 = vpop.f32.mrb[0].mxu0
      %v1387 = vadd.f32 %v1076, %v1386
      %v1388 = vpop.f32.mrb[0].mxu0
      %v1389 = vpop.f32.mrb[0].mxu0
      %v1390 = vadd.f32 %v1076, %v1389
      %v1391 = vpop.f32.mrb[0].mxu0
      %1392 = vmatprep.mubr.bf16.mxu0 %v1185
      %1393 = vmatmul.mubr.bf16.gmra.mrb[0].mxu0 %v1184
      %v1394 = vpop.f32.mrb[0].mxu0
      %v1395 = vadd.f32 %v1076, %v1394
      %v1396 = vpop.f32.mrb[0].mxu0
      %v1397 = vpop.f32.mrb[0].mxu0
      %v1398 = vadd.f32 %v1076, %v1397
      %v1399 = vpop.f32.mrb[0].mxu0
      %1400 = vmatprep.mubr.bf16.mxu0 %v1187
      %1401 = vmatmul.mubr.bf16.gmra.mrb[0].mxu0 %v1186
      %v1402 = vpop.f32.mrb[0].mxu0
      %v1403 = vadd.f32 %v1076, %v1402
      %v1404 = vpop.f32.mrb[0].mxu0
      %v1405 = vpop.f32.mrb[0].mxu0
      %v1406 = vadd.f32 %v1076, %v1405
      %v1407 = vpop.f32.mrb[0].mxu0
      %1408 = vmatprep.mubr.bf16.mxu0 %v1189
      %1409 = vmatmul.mubr.bf16.gmra.mrb[0].mxu0 %v1188
      %v1410 = vpop.f32.mrb[0].mxu0
      %v1411 = vadd.f32 %v1076, %v1410
      %v1412 = vpop.f32.mrb[0].mxu0
      %v1413 = vpop.f32.mrb[0].mxu0
      %v1414 = vadd.f32 %v1076, %v1413
      %v1415 = vpop.f32.mrb[0].mxu0
      %1416 = vmatprep.mubr.bf16.mxu0 %v1191
      %1417 = vmatmul.mubr.bf16.gmra.mrb[0].mxu0 %v1190
      %v1418 = vpop.f32.mrb[0].mxu0
      %v1419 = vadd.f32 %v1076, %v1418
      %v1420 = vpop.f32.mrb[0].mxu0
      %v1421 = vpop.f32.mrb[0].mxu0
      %v1422 = vadd.f32 %v1076, %v1421
      %v1423 = vpop.f32.mrb[0].mxu0
      %1424 = vmatprep.mubr.bf16.mxu0 %v1193
      %1425 = vmatmul.mubr.bf16.gmra.mrb[0].mxu0 %v1192
      %v1426 = vpop.f32.mrb[0].mxu0
      %v1427 = vadd.f32 %v1076, %v1426
      %v1428 = vpop.f32.mrb[0].mxu0
      %v1429 = vpop.f32.mrb[0].mxu0
      %v1430 = vadd.f32 %v1076, %v1429
      %v1431 = vpop.f32.mrb[0].mxu0
      %1432 = vmatprep.mubr.bf16.mxu0 %v1195
      %1433 = vmatmul.mubr.bf16.gmra.mrb[0].mxu0 %v1194
      %v1434 = vpop.f32.mrb[0].mxu0
      %v1435 = vadd.f32 %v1076, %v1434
      %v1436 = vpop.f32.mrb[0].mxu0
      %v1437 = vpop.f32.mrb[0].mxu0
      %v1438 = vadd.f32 %v1076, %v1437
      %v1439 = vpop.f32.mrb[0].mxu0
      %1440 = vmatprep.mubr.bf16.mxu0 %v1197
      %1441 = vmatmul.mubr.bf16.gmra.mrb[0].mxu0 %v1196
      %v1442 = vpop.f32.mrb[0].mxu0
      %v1443 = vadd.f32 %v1076, %v1442
      %v1444 = vpop.f32.mrb[0].mxu0
      %v1445 = vpop.f32.mrb[0].mxu0
      %v1446 = vadd.f32 %v1076, %v1445
      %v1447 = vpop.f32.mrb[0].mxu0
      %1448 = vmatprep.mubr.bf16.mxu0 %v1199
      %1449 = vmatmul.mubr.bf16.gmra.mrb[0].mxu0 %v1198
      %v1450 = vpop.f32.mrb[0].mxu0
      %v1451 = vadd.f32 %v1076, %v1450
      %v1452 = vpop.f32.mrb[0].mxu0
      %v1453 = vpop.f32.mrb[0].mxu0
      %v1454 = vadd.f32 %v1076, %v1453
      %v1455 = vpop.f32.mrb[0].mxu0
      %1456 = vmatprep.mubr.bf16.mxu0 %v1201
      %1457 = vmatmul.mubr.bf16.gmra.mrb[0].mxu0 %v1200
      %v1458 = vpop.f32.mrb[0].mxu0
      %v1459 = vadd.f32 %v1076, %v1458
      %v1460 = vpop.f32.mrb[0].mxu0
      %v1461 = vpop.f32.mrb[0].mxu0
      %v1462 = vadd.f32 %v1076, %v1461
      %v1463 = vpop.f32.mrb[0].mxu0
      %1464 = vmatprep.mubr.bf16.mxu0 %v1203
      %1465 = vmatmul.mubr.bf16.gmra.mrb[0].mxu0 %v1202
      %v1466 = vpop.f32.mrb[0].mxu0
      %v1467 = vadd.f32 %v1076, %v1466
      %v1468 = vpop.f32.mrb[0].mxu0
      %v1469 = vpop.f32.mrb[0].mxu0
      %v1470 = vadd.f32 %v1076, %v1469
      %v1471 = vpop.f32.mrb[0].mxu0
      %1472 = vmatprep.mubr.bf16.mxu0 %v1205
      %1473 = vmatmul.mubr.bf16.gmra.mrb[0].mxu0 %v1204
      %v1474 = vpop.f32.mrb[0].mxu0
      %v1475 = vadd.f32 %v1076, %v1474
      %v1476 = vpop.f32.mrb[0].mxu0
      %v1477 = vpop.f32.mrb[0].mxu0
      %v1478 = vadd.f32 %v1076, %v1477
      %v1479 = vpop.f32.mrb[0].mxu0
      %1480 = vmatprep.mubr.bf16.mxu0 %v1207
      %1481 = vmatmul.mubr.bf16.gmra.mrb[0].mxu0 %v1206
      %v1482 = vpop.f32.mrb[0].mxu0
      %v1483 = vadd.f32 %v1076, %v1482
      %v1484 = vpop.f32.mrb[0].mxu0
      %v1485 = vpop.f32.mrb[0].mxu0
      %v1486 = vadd.f32 %v1076, %v1485
      %v1487 = vpop.f32.mrb[0].mxu0
      %1488 = vmatprep.mubr.bf16.mxu0 %v1209
      %1489 = vmatmul.mubr.bf16.gmra.mrb[0].mxu0 %v1208
      %v1490 = vpop.f32.mrb[0].mxu0
      %v1491 = vadd.f32 %v1076, %v1490
      %v1492 = vpop.f32.mrb[0].mxu0
      %v1493 = vpop.f32.mrb[0].mxu0
      %v1494 = vadd.f32 %v1076, %v1493
      %v1495 = vpop.f32.mrb[0].mxu0
      %1496 = vmatprep.mubr.bf16.mxu0 %v1211
      %1497 = vmatmul.mubr.bf16.gmra.mrb[0].mxu0 %v1210
      %v1498 = vpop.f32.mrb[0].mxu0
      %v1499 = vadd.f32 %v1076, %v1498
      %v1500 = vpop.f32.mrb[0].mxu0
      %v1501 = vpop.f32.mrb[0].mxu0
      %v1502 = vadd.f32 %v1076, %v1501
      %v1503 = vpop.f32.mrb[0].mxu0
      %1504 = vmatprep.mubr.bf16.mxu0 %v1213
      %1505 = vmatmul.mubr.bf16.gmra.mrb[0].mxu0 %v1212
      %v1506 = vpop.f32.mrb[0].mxu0
      %v1507 = vadd.f32 %v1076, %v1506
      %v1508 = vpop.f32.mrb[0].mxu0
      %v1509 = vpop.f32.mrb[0].mxu0
      %v1510 = vadd.f32 %v1076, %v1509
      %v1511 = vpop.f32.mrb[0].mxu0
      %1512 = vdwg.mxu0
      %v1513 = vmax.f32 %v1379, 0.0
      %v1514 = vmax.f32 %v1382, 0.0
      %v1515 = vmax.f32 %v1387, 0.0
      %v1516 = vmax.f32 %v1390, 0.0
      %v1517 = vmax.f32 %v1395, 0.0
      %v1518 = vmax.f32 %v1398, 0.0
      %v1519 = vmax.f32 %v1403, 0.0
      %v1520 = vmax.f32 %v1406, 0.0
      %v1521 = vmax.f32 %v1411, 0.0
      %v1522 = vmax.f32 %v1414, 0.0
      %v1523 = vmax.f32 %v1419, 0.0
      %v1524 = vmax.f32 %v1422, 0.0
      %v1525 = vmax.f32 %v1427, 0.0
      %v1526 = vmax.f32 %v1430, 0.0
      %v1527 = vmax.f32 %v1435, 0.0
      %v1528 = vmax.f32 %v1438, 0.0
      %v1529 = vmax.f32 %v1443, 0.0
      %v1530 = vmax.f32 %v1446, 0.0
      %v1531 = vmax.f32 %v1451, 0.0
      %v1532 = vmax.f32 %v1454, 0.0
      %v1533 = vmax.f32 %v1459, 0.0
      %v1534 = vmax.f32 %v1462, 0.0
      %v1535 = vmax.f32 %v1467, 0.0
      %v1536 = vmax.f32 %v1470, 0.0
      %v1537 = vmax.f32 %v1475, 0.0
      %v1538 = vmax.f32 %v1478, 0.0
      %v1539 = vmax.f32 %v1483, 0.0
      %v1540 = vmax.f32 %v1486, 0.0
      %v1541 = vmax.f32 %v1491, 0.0
      %v1542 = vmax.f32 %v1494, 0.0
      %v1543 = vmax.f32 %v1499, 0.0
      %v1544 = vmax.f32 %v1502, 0.0
      %v1545 = vmax.f32 %v1507, 0.0
      %v1546 = vmax.f32 %v1510, 0.0
      %v1547 = vsel %vm971, %v1513, 0.0
      %v1548 = vsel %vm972, %v1514, 0.0
      %v1549 = vsel %vm973, %v1515, 0.0
      %v1550 = vsel %vm974, %v1516, 0.0
      %v1551 = vsel %vm975, %v1517, 0.0
      %v1552 = vsel %vm976, %v1518, 0.0
      %v1553 = vsel %vm977, %v1519, 0.0
      %v1554 = vsel %vm978, %v1520, 0.0
      %v1555 = vsel %vm979, %v1521, 0.0
      %v1556 = vsel %vm980, %v1522, 0.0
      %v1557 = vsel %vm981, %v1523, 0.0
      %v1558 = vsel %vm982, %v1524, 0.0
      %v1559 = vsel %vm983, %v1525, 0.0
      %v1560 = vsel %vm984, %v1526, 0.0
      %v1561 = vsel %vm985, %v1527, 0.0
      %v1562 = vsel %vm986, %v1528, 0.0
      %v1563 = vsel %vm987, %v1529, 0.0
      %v1564 = vsel %vm988, %v1530, 0.0
      %v1565 = vsel %vm989, %v1531, 0.0
      %v1566 = vsel %vm990, %v1532, 0.0
      %v1567 = vsel %vm991, %v1533, 0.0
      %v1568 = vsel %vm992, %v1534, 0.0
      %v1569 = vsel %vm993, %v1535, 0.0
      %v1570 = vsel %vm994, %v1536, 0.0
      %v1571 = vsel %vm995, %v1537, 0.0
      %v1572 = vsel %vm996, %v1538, 0.0
      %v1573 = vsel %vm997, %v1539, 0.0
      %v1574 = vsel %vm998, %v1540, 0.0
      %v1575 = vsel %vm999, %v1541, 0.0
      %v1576 = vsel %vm1000, %v1542, 0.0
      %v1577 = vsel %vm1001, %v1543, 0.0
      %v1578 = vsel %vm1002, %v1544, 0.0
      %v1579 = vsel %vm1003, %v1545, 0.0
      %v1580 = vsel %vm1004, %v1546, 0.0
      %v1581 = vpack.c.bf16 %v1548, %v1547
      %v1582 = vpack.c.bf16 %v1550, %v1549
      %v1583 = vpack.c.bf16 %v1552, %v1551
      %v1584 = vpack.c.bf16 %v1554, %v1553
      %v1585 = vpack.c.bf16 %v1556, %v1555
      %v1586 = vpack.c.bf16 %v1558, %v1557
      %v1587 = vpack.c.bf16 %v1560, %v1559
      %v1588 = vpack.c.bf16 %v1562, %v1561
      %v1589 = vpack.c.bf16 %v1564, %v1563
      %v1590 = vpack.c.bf16 %v1566, %v1565
      %v1591 = vpack.c.bf16 %v1568, %v1567
      %v1592 = vpack.c.bf16 %v1570, %v1569
      %v1593 = vpack.c.bf16 %v1572, %v1571
      %v1594 = vpack.c.bf16 %v1574, %v1573
      %v1595 = vpack.c.bf16 %v1576, %v1575
      %v1596 = vpack.c.bf16 %v1578, %v1577
      %v1597 = vpack.c.bf16 %v1580, %v1579
      %vm1615 = vcmask 1043456
      %v1616 = vrot.slane %v1581, 4
      %v1617 = vrot.slane %v1582, 4
      %v1618 = vsel %vm1615, %v1616, %v1617
      %v1619 = vrot.slane %v1583, 4
      %v1620 = vsel %vm1615, %v1617, %v1619
      %v1621 = vrot.slane %v1584, 4
      %v1622 = vsel %vm1615, %v1619, %v1621
      %v1623 = vrot.slane %v1585, 4
      %v1624 = vsel %vm1615, %v1621, %v1623
      %v1625 = vrot.slane %v1586, 4
      %v1626 = vsel %vm1615, %v1623, %v1625
      %v1627 = vrot.slane %v1587, 4
      %v1628 = vsel %vm1615, %v1625, %v1627
      %v1629 = vrot.slane %v1588, 4
      %v1630 = vsel %vm1615, %v1627, %v1629
      %v1631 = vrot.slane %v1589, 4
      %v1632 = vsel %vm1615, %v1629, %v1631
      %v1633 = vrot.slane %v1590, 4
      %v1634 = vsel %vm1615, %v1631, %v1633
      %v1635 = vrot.slane %v1591, 4
      %v1636 = vsel %vm1615, %v1633, %v1635
      %v1637 = vrot.slane %v1592, 4
      %v1638 = vsel %vm1615, %v1635, %v1637
      %v1639 = vrot.slane %v1593, 4
      %v1640 = vsel %vm1615, %v1637, %v1639
      %v1641 = vrot.slane %v1594, 4
      %v1642 = vsel %vm1615, %v1639, %v1641
      %v1643 = vrot.slane %v1595, 4
      %v1644 = vsel %vm1615, %v1641, %v1643
      %v1645 = vrot.slane %v1596, 4
      %v1646 = vsel %vm1615, %v1643, %v1645
      %v1647 = vrot.slane %v1597, 4
      %v1648 = vsel %vm1615, %v1645, %v1647
      %1667 = vst [vmem:[#allocation2 + $0x8] sm:$0xf0] %v1616
      %1668 = vst [vmem:[#allocation2 + $0x10] sm:$0xff] %v1618
      %1669 = vst [vmem:[#allocation2 + $0x18] sm:$0xff] %v1620
      %1670 = vst [vmem:[#allocation2 + $0x20] sm:$0xff] %v1622
      %1671 = vst [vmem:[#allocation2 + $0x28] sm:$0xff] %v1624
      %1672 = vst [vmem:[#allocation2 + $0x30] sm:$0xff] %v1626
      %1673 = vst [vmem:[#allocation2 + $0x38] sm:$0xff] %v1628
      %1674 = vst [vmem:[#allocation2 + $0x40] sm:$0xff] %v1630
      %1675 = vst [vmem:[#allocation2 + $0x48] sm:$0xff] %v1632
      %1676 = vst [vmem:[#allocation2 + $0x50] sm:$0xff] %v1634
      %1677 = vst [vmem:[#allocation2 + $0x58] sm:$0xff] %v1636
      %1678 = vst [vmem:[#allocation2 + $0x60] sm:$0xff] %v1638
      %1679 = vst [vmem:[#allocation2 + $0x68] sm:$0xff] %v1640
      %1680 = vst [vmem:[#allocation2 + $0x70] sm:$0xff] %v1642
      %1681 = vst [vmem:[#allocation2 + $0x78] sm:$0xff] %v1644
      %1682 = vst [vmem:[#allocation2 + $0x80] sm:$0xff] %v1646
      %1683 = vst [vmem:[#allocation2 + $0x88] sm:$0xff] %v1648
      %1684 = vst [vmem:[#allocation2 + $0x90] sm:$0xf] %v1647
      %v1685 = vld [vmem:[%s4] sm:$0x1]
      %v1687 = vlaneseq
      %v1688 = vshrl.u32 %v1687, 7
      %v1689 = vsub.s32 0, %v1688
      %v1690 = vrot.slane %v1685, %v1689
      %v1692 = vld [vmem:[#allocation2] sm:$0xf8]
      %v1693 = vld [vmem:[#allocation2 + $0x8] sm:$0xff]
      %v1694 = vld [vmem:[#allocation2 + $0x10] sm:$0xff]
      %v1695 = vld [vmem:[#allocation2 + $0x18] sm:$0xff]
      %v1696 = vld [vmem:[#allocation2 + $0x20] sm:$0xff]
      %v1697 = vld [vmem:[#allocation2 + $0x28] sm:$0xff]
      %v1698 = vld [vmem:[#allocation2 + $0x30] sm:$0xff]
      %v1699 = vld [vmem:[#allocation2 + $0x38] sm:$0xff]
      %v1700 = vld [vmem:[#allocation2 + $0x40] sm:$0xff]
      %v1701 = vld [vmem:[#allocation2 + $0x48] sm:$0xff]
      %v1702 = vld [vmem:[#allocation2 + $0x50] sm:$0xff]
      %v1703 = vld [vmem:[#allocation2 + $0x58] sm:$0xff]
      %v1704 = vld [vmem:[#allocation2 + $0x60] sm:$0xff]
      %v1705 = vld [vmem:[#allocation2 + $0x68] sm:$0xff]
      %v1706 = vld [vmem:[#allocation2 + $0x70] sm:$0xff]
      %v1707 = vld [vmem:[#allocation2 + $0x78] sm:$0xff]
      %v1708 = vld [vmem:[#allocation2 + $0x80] sm:$0xff]
      %v1709 = vld [vmem:[#allocation2 + $0x88] sm:$0x7]
      %v1710 = vld [vmem:[%s3] sm:$0xf]
      %v1711 = vld [vmem:[%s3 + $0x4] sm:$0xf]
      %v1712 = vld [vmem:[%s3 + $0x8] sm:$0xf]
      %v1713 = vld [vmem:[%s3 + $0xc] sm:$0xf]
      %v1714 = vld [vmem:[%s3 + $0x10] sm:$0xf]
      %v1715 = vld [vmem:[%s3 + $0x14] sm:$0xf]
      %v1716 = vld [vmem:[%s3 + $0x18] sm:$0xf]
      %v1717 = vld [vmem:[%s3 + $0x1c] sm:$0xf]
      %v1718 = vld [vmem:[%s3 + $0x20] sm:$0xf]
      %v1719 = vld [vmem:[%s3 + $0x24] sm:$0xf]
      %v1720 = vld [vmem:[%s3 + $0x28] sm:$0xf]
      %v1721 = vld [vmem:[%s3 + $0x2c] sm:$0xf]
      %v1722 = vld [vmem:[%s3 + $0x30] sm:$0xf]
      %v1723 = vld [vmem:[%s3 + $0x34] sm:$0xf]
      %v1724 = vld [vmem:[%s3 + $0x38] sm:$0xf]
      %v1725 = vld [vmem:[%s3 + $0x3c] sm:$0xf]
      %vm1744 = vcmask 1044480
      %v1745 = vrot.slane %v1692, 3
      %v1746 = vrot.slane %v1693, 3
      %v1747 = vsel %vm1744, %v1745, %v1746
      %v1748 = vrot.slane %v1694, 3
      %v1749 = vsel %vm1744, %v1746, %v1748
      %v1750 = vrot.slane %v1695, 3
      %v1751 = vsel %vm1744, %v1748, %v1750
      %v1752 = vrot.slane %v1696, 3
      %v1753 = vsel %vm1744, %v1750, %v1752
      %v1754 = vrot.slane %v1697, 3
      %v1755 = vsel %vm1744, %v1752, %v1754
      %v1756 = vrot.slane %v1698, 3
      %v1757 = vsel %vm1744, %v1754, %v1756
      %v1758 = vrot.slane %v1699, 3
      %v1759 = vsel %vm1744, %v1756, %v1758
      %v1760 = vrot.slane %v1700, 3
      %v1761 = vsel %vm1744, %v1758, %v1760
      %v1762 = vrot.slane %v1701, 3
      %v1763 = vsel %vm1744, %v1760, %v1762
      %v1764 = vrot.slane %v1702, 3
      %v1765 = vsel %vm1744, %v1762, %v1764
      %v1766 = vrot.slane %v1703, 3
      %v1767 = vsel %vm1744, %v1764, %v1766
      %v1768 = vrot.slane %v1704, 3
      %v1769 = vsel %vm1744, %v1766, %v1768
      %v1770 = vrot.slane %v1705, 3
      %v1771 = vsel %vm1744, %v1768, %v1770
      %v1772 = vrot.slane %v1706, 3
      %v1773 = vsel %vm1744, %v1770, %v1772
      %v1774 = vrot.slane %v1707, 3
      %v1775 = vsel %vm1744, %v1772, %v1774
      %v1776 = vrot.slane %v1708, 3
      %v1777 = vsel %vm1744, %v1774, %v1776
      %v1778 = vrot.slane %v1709, 3
      %v1779 = vsel %vm1744, %v1776, %v1778
      %v1813 = vunpack.c.l.b16 %v1710
      %v1814 = vunpack.c.l.b16 %v1711
      %v1815 = vunpack.c.l.b16 %v1712
      %v1816 = vunpack.c.l.b16 %v1713
      %v1817 = vunpack.c.l.b16 %v1714
      %v1818 = vunpack.c.l.b16 %v1715
      %v1819 = vunpack.c.l.b16 %v1716
      %v1820 = vunpack.c.l.b16 %v1717
      %v1821 = vunpack.c.l.b16 %v1718
      %v1822 = vunpack.c.l.b16 %v1719
      %v1823 = vunpack.c.l.b16 %v1720
      %v1824 = vunpack.c.l.b16 %v1721
      %v1825 = vunpack.c.l.b16 %v1722
      %v1826 = vunpack.c.l.b16 %v1723
      %v1827 = vunpack.c.l.b16 %v1724
      %v1828 = vunpack.c.l.b16 %v1725
      %v1829 = vpack.c.b16 %v1814, %v1813
      %v1830 = vpack.c.b16 %v1816, %v1815
      %v1831 = vpack.c.b16 %v1818, %v1817
      %v1832 = vpack.c.b16 %v1820, %v1819
      %v1833 = vpack.c.b16 %v1822, %v1821
      %v1834 = vpack.c.b16 %v1824, %v1823
      %v1835 = vpack.c.b16 %v1826, %v1825
      %v1836 = vpack.c.b16 %v1828, %v1827
      %1845 = vmatprep.subr.bf16.mxu0 0
      %1846 = vmatpush1.bf16.msra.mxu0 %v1829
      %1847 = vmatprep.subr.bf16.mxu0 0
      %1848 = vmatpush1.bf16.msra.mxu0 %v1830
      %1849 = vmatprep.subr.bf16.mxu0 0
      %1850 = vmatpush1.bf16.msra.mxu0 %v1831
      %1851 = vmatprep.subr.bf16.mxu0 0
      %1852 = vmatpush1.bf16.msra.mxu0 %v1832
      %1853 = vmatprep.subr.bf16.mxu0 0
      %1854 = vmatpush1.bf16.msra.mxu0 %v1833
      %1855 = vmatprep.subr.bf16.mxu0 0
      %1856 = vmatpush1.bf16.msra.mxu0 %v1834
      %1857 = vmatprep.subr.bf16.mxu0 0
      %1858 = vmatpush1.bf16.msra.mxu0 %v1835
      %1859 = vmatprep.subr.bf16.mxu0 0
      %1860 = vmatpush1.bf16.msra.mxu0 %v1836
      %1861 = vmatprep.subr.bf16.mxu0 0
      %1862 = vmatpush1.bf16.msra.mxu0 0
      %1863 = vmatprep.subr.bf16.mxu0 0
      %1864 = vmatpush1.bf16.msra.mxu0 0
      %1865 = vmatprep.subr.bf16.mxu0 0
      %1866 = vmatpush1.bf16.msra.mxu0 0
      %1867 = vmatprep.subr.bf16.mxu0 0
      %1868 = vmatpush1.bf16.msra.mxu0 0
      %1869 = vmatprep.subr.bf16.mxu0 0
      %1870 = vmatpush1.bf16.msra.mxu0 0
      %1871 = vmatprep.subr.bf16.mxu0 0
      %1872 = vmatpush1.bf16.msra.mxu0 0
      %1873 = vmatprep.subr.bf16.mxu0 0
      %1874 = vmatpush1.bf16.msra.mxu0 0
      %1875 = vmatprep.subr.bf16.mxu0 0
      %1876 = vmatpush1.bf16.msra.mxu0 0
      %1877 = vmatprep.mubr.bf16.mxu0 0
      %1878 = vmatmul.mubr.bf16.gmra.mrb[0].mxu0 %v1747
      %v1879 = vpop.f32.mrb[0].mxu0
      %v1880 = vadd.f32 0.0, %v1879
      %v1881 = vpop.f32.mrb[0].mxu0
      %v1882 = vpop.f32.mrb[0].mxu0
      %v1883 = vadd.f32 0.0, %v1882
      %v1884 = vpop.f32.mrb[0].mxu0
      %1885 = vmatprep.mubr.bf16.mxu0 0
      %1886 = vmatmul.mubr.bf16.gmra.mrb[0].mxu0 %v1749
      %v1887 = vpop.f32.mrb[0].mxu0
      %v1888 = vadd.f32 0.0, %v1887
      %v1889 = vpop.f32.mrb[0].mxu0
      %v1890 = vpop.f32.mrb[0].mxu0
      %v1891 = vadd.f32 0.0, %v1890
      %v1892 = vpop.f32.mrb[0].mxu0
      %1893 = vmatprep.mubr.bf16.mxu0 0
      %1894 = vmatmul.mubr.bf16.gmra.mrb[0].mxu0 %v1751
      %v1895 = vpop.f32.mrb[0].mxu0
      %v1896 = vadd.f32 0.0, %v1895
      %v1897 = vpop.f32.mrb[0].mxu0
      %v1898 = vpop.f32.mrb[0].mxu0
      %v1899 = vadd.f32 0.0, %v1898
      %v1900 = vpop.f32.mrb[0].mxu0
      %1901 = vmatprep.mubr.bf16.mxu0 0
      %1902 = vmatmul.mubr.bf16.gmra.mrb[0].mxu0 %v1753
      %v1903 = vpop.f32.mrb[0].mxu0
      %v1904 = vadd.f32 0.0, %v1903
      %v1905 = vpop.f32.mrb[0].mxu0
      %v1906 = vpop.f32.mrb[0].mxu0
      %v1907 = vadd.f32 0.0, %v1906
      %v1908 = vpop.f32.mrb[0].mxu0
      %1909 = vmatprep.mubr.bf16.mxu0 0
      %1910 = vmatmul.mubr.bf16.gmra.mrb[0].mxu0 %v1755
      %v1911 = vpop.f32.mrb[0].mxu0
      %v1912 = vadd.f32 0.0, %v1911
      %v1913 = vpop.f32.mrb[0].mxu0
      %v1914 = vpop.f32.mrb[0].mxu0
      %v1915 = vadd.f32 0.0, %v1914
      %v1916 = vpop.f32.mrb[0].mxu0
      %1917 = vmatprep.mubr.bf16.mxu0 0
      %1918 = vmatmul.mubr.bf16.gmra.mrb[0].mxu0 %v1757
      %v1919 = vpop.f32.mrb[0].mxu0
      %v1920 = vadd.f32 0.0, %v1919
      %v1921 = vpop.f32.mrb[0].mxu0
      %v1922 = vpop.f32.mrb[0].mxu0
      %v1923 = vadd.f32 0.0, %v1922
      %v1924 = vpop.f32.mrb[0].mxu0
      %1925 = vmatprep.mubr.bf16.mxu0 0
      %1926 = vmatmul.mubr.bf16.gmra.mrb[0].mxu0 %v1759
      %v1927 = vpop.f32.mrb[0].mxu0
      %v1928 = vadd.f32 0.0, %v1927
      %v1929 = vpop.f32.mrb[0].mxu0
      %v1930 = vpop.f32.mrb[0].mxu0
      %v1931 = vadd.f32 0.0, %v1930
      %v1932 = vpop.f32.mrb[0].mxu0
      %1933 = vmatprep.mubr.bf16.mxu0 0
      %1934 = vmatmul.mubr.bf16.gmra.mrb[0].mxu0 %v1761
      %v1935 = vpop.f32.mrb[0].mxu0
      %v1936 = vadd.f32 0.0, %v1935
      %v1937 = vpop.f32.mrb[0].mxu0
      %v1938 = vpop.f32.mrb[0].mxu0
      %v1939 = vadd.f32 0.0, %v1938
      %v1940 = vpop.f32.mrb[0].mxu0
      %1941 = vmatprep.mubr.bf16.mxu0 0
      %1942 = vmatmul.mubr.bf16.gmra.mrb[0].mxu0 %v1763
      %v1943 = vpop.f32.mrb[0].mxu0
      %v1944 = vadd.f32 0.0, %v1943
      %v1945 = vpop.f32.mrb[0].mxu0
      %v1946 = vpop.f32.mrb[0].mxu0
      %v1947 = vadd.f32 0.0, %v1946
      %v1948 = vpop.f32.mrb[0].mxu0
      %1949 = vmatprep.mubr.bf16.mxu0 0
      %1950 = vmatmul.mubr.bf16.gmra.mrb[0].mxu0 %v1765
      %v1951 = vpop.f32.mrb[0].mxu0
      %v1952 = vadd.f32 0.0, %v1951
      %v1953 = vpop.f32.mrb[0].mxu0
      %v1954 = vpop.f32.mrb[0].mxu0
      %v1955 = vadd.f32 0.0, %v1954
      %v1956 = vpop.f32.mrb[0].mxu0
      %1957 = vmatprep.mubr.bf16.mxu0 0
      %1958 = vmatmul.mubr.bf16.gmra.mrb[0].mxu0 %v1767
      %v1959 = vpop.f32.mrb[0].mxu0
      %v1960 = vadd.f32 0.0, %v1959
      %v1961 = vpop.f32.mrb[0].mxu0
      %v1962 = vpop.f32.mrb[0].mxu0
      %v1963 = vadd.f32 0.0, %v1962
      %v1964 = vpop.f32.mrb[0].mxu0
      %1965 = vmatprep.mubr.bf16.mxu0 0
      %1966 = vmatmul.mubr.bf16.gmra.mrb[0].mxu0 %v1769
      %v1967 = vpop.f32.mrb[0].mxu0
      %v1968 = vadd.f32 0.0, %v1967
      %v1969 = vpop.f32.mrb[0].mxu0
      %v1970 = vpop.f32.mrb[0].mxu0
      %v1971 = vadd.f32 0.0, %v1970
      %v1972 = vpop.f32.mrb[0].mxu0
      %1973 = vmatprep.mubr.bf16.mxu0 0
      %1974 = vmatmul.mubr.bf16.gmra.mrb[0].mxu0 %v1771
      %v1975 = vpop.f32.mrb[0].mxu0
      %v1976 = vadd.f32 0.0, %v1975
      %v1977 = vpop.f32.mrb[0].mxu0
      %v1978 = vpop.f32.mrb[0].mxu0
      %v1979 = vadd.f32 0.0, %v1978
      %v1980 = vpop.f32.mrb[0].mxu0
      %1981 = vmatprep.mubr.bf16.mxu0 0
      %1982 = vmatmul.mubr.bf16.gmra.mrb[0].mxu0 %v1773
      %v1983 = vpop.f32.mrb[0].mxu0
      %v1984 = vadd.f32 0.0, %v1983
      %v1985 = vpop.f32.mrb[0].mxu0
      %v1986 = vpop.f32.mrb[0].mxu0
      %v1987 = vadd.f32 0.0, %v1986
      %v1988 = vpop.f32.mrb[0].mxu0
      %1989 = vmatprep.mubr.bf16.mxu0 0
      %1990 = vmatmul.mubr.bf16.gmra.mrb[0].mxu0 %v1775
      %v1991 = vpop.f32.mrb[0].mxu0
      %v1992 = vadd.f32 0.0, %v1991
      %v1993 = vpop.f32.mrb[0].mxu0
      %v1994 = vpop.f32.mrb[0].mxu0
      %v1995 = vadd.f32 0.0, %v1994
      %v1996 = vpop.f32.mrb[0].mxu0
      %1997 = vmatprep.mubr.bf16.mxu0 0
      %1998 = vmatmul.mubr.bf16.gmra.mrb[0].mxu0 %v1777
      %v1999 = vpop.f32.mrb[0].mxu0
      %v2000 = vadd.f32 0.0, %v1999
      %v2001 = vpop.f32.mrb[0].mxu0
      %v2002 = vpop.f32.mrb[0].mxu0
      %v2003 = vadd.f32 0.0, %v2002
      %v2004 = vpop.f32.mrb[0].mxu0
      %2005 = vmatprep.mubr.bf16.mxu0 0
      %2006 = vmatmul.mubr.bf16.gmra.mrb[0].mxu0 %v1779
      %v2007 = vpop.f32.mrb[0].mxu0
      %v2008 = vadd.f32 0.0, %v2007
      %v2009 = vpop.f32.mrb[0].mxu0
      %v2010 = vpop.f32.mrb[0].mxu0
      %v2011 = vadd.f32 0.0, %v2010
      %v2012 = vpop.f32.mrb[0].mxu0
      %2013 = vdwg.mxu0
      %v2014 = vadd.f32 %v1690, %v1880
      %v2015 = vadd.f32 %v1690, %v1883
      %v2016 = vadd.f32 %v1690, %v1888
      %v2017 = vadd.f32 %v1690, %v1891
      %v2018 = vadd.f32 %v1690, %v1896
      %v2019 = vadd.f32 %v1690, %v1899
      %v2020 = vadd.f32 %v1690, %v1904
      %v2021 = vadd.f32 %v1690, %v1907
      %v2022 = vadd.f32 %v1690, %v1912
      %v2023 = vadd.f32 %v1690, %v1915
      %v2024 = vadd.f32 %v1690, %v1920
      %v2025 = vadd.f32 %v1690, %v1923
      %v2026 = vadd.f32 %v1690, %v1928
      %v2027 = vadd.f32 %v1690, %v1931
      %v2028 = vadd.f32 %v1690, %v1936
      %v2029 = vadd.f32 %v1690, %v1939
      %v2030 = vadd.f32 %v1690, %v1944
      %v2031 = vadd.f32 %v1690, %v1947
      %v2032 = vadd.f32 %v1690, %v1952
      %v2033 = vadd.f32 %v1690, %v1955
      %v2034 = vadd.f32 %v1690, %v1960
      %v2035 = vadd.f32 %v1690, %v1963
      %v2036 = vadd.f32 %v1690, %v1968
      %v2037 = vadd.f32 %v1690, %v1971
      %v2038 = vadd.f32 %v1690, %v1976
      %v2039 = vadd.f32 %v1690, %v1979
      %v2040 = vadd.f32 %v1690, %v1984
      %v2041 = vadd.f32 %v1690, %v1987
      %v2042 = vadd.f32 %v1690, %v1992
      %v2043 = vadd.f32 %v1690, %v1995
      %v2044 = vadd.f32 %v1690, %v2000
      %v2045 = vadd.f32 %v1690, %v2003
      %v2046 = vadd.f32 %v1690, %v2008
      %v2047 = vadd.f32 %v1690, %v2011
      %v2048 = vld [vmem:[#allocation2 + $0x88] sm:$0xf]
      %s2049 = scalar_lea.vmem %s3, 64
      %v2050 = vld [vmem:[%s2049] sm:$0xf]
      %v2051 = vld [vmem:[%s2049 + $0x4] sm:$0xf]
      %v2052 = vld [vmem:[%s2049 + $0x8] sm:$0xf]
      %v2053 = vld [vmem:[%s2049 + $0xc] sm:$0xf]
      %v2054 = vld [vmem:[%s2049 + $0x10] sm:$0xf]
      %v2055 = vld [vmem:[%s2049 + $0x14] sm:$0xf]
      %v2056 = vld [vmem:[%s2049 + $0x18] sm:$0xf]
      %v2057 = vld [vmem:[%s2049 + $0x1c] sm:$0xf]
      %v2058 = vld [vmem:[%s2049 + $0x20] sm:$0xf]
      %v2059 = vld [vmem:[%s2049 + $0x24] sm:$0xf]
      %v2060 = vld [vmem:[%s2049 + $0x28] sm:$0xf]
      %v2061 = vld [vmem:[%s2049 + $0x2c] sm:$0xf]
      %v2062 = vld [vmem:[%s2049 + $0x30] sm:$0xf]
      %v2063 = vld [vmem:[%s2049 + $0x34] sm:$0xf]
      %v2064 = vld [vmem:[%s2049 + $0x38] sm:$0xf]
      %v2065 = vld [vmem:[%s2049 + $0x3c] sm:$0xf]
      %vm2066 = vsmask.f32 4352
      %v2068 = vshrl.u32 %v1692, 16
      %v2070 = vrot.slane %v2068, 3
      %v2071 = vshll.u32 %v1692, 16
      %v2073 = vrot.slane %v2071, 4
      %v2074 = vor.u32 %v2070, %v2073
      %v2076 = vshrl.u32 %v1693, 16
      %v2078 = vrot.slane %v2076, 3
      %v2079 = vshll.u32 %v1693, 16
      %v2081 = vrot.slane %v2079, 4
      %v2082 = vor.u32 %v2078, %v2081
      %v2083 = vsel %vm2066, %v2074, %v2082
      %v2085 = vshrl.u32 %v1694, 16
      %v2087 = vrot.slane %v2085, 3
      %v2088 = vshll.u32 %v1694, 16
      %v2090 = vrot.slane %v2088, 4
      %v2091 = vor.u32 %v2087, %v2090
      %v2092 = vsel %vm2066, %v2082, %v2091
      %v2094 = vshrl.u32 %v1695, 16
      %v2096 = vrot.slane %v2094, 3
      %v2097 = vshll.u32 %v1695, 16
      %v2099 = vrot.slane %v2097, 4
      %v2100 = vor.u32 %v2096, %v2099
      %v2101 = vsel %vm2066, %v2091, %v2100
      %v2103 = vshrl.u32 %v1696, 16
      %v2105 = vrot.slane %v2103, 3
      %v2106 = vshll.u32 %v1696, 16
      %v2108 = vrot.slane %v2106, 4
      %v2109 = vor.u32 %v2105, %v2108
      %v2110 = vsel %vm2066, %v2100, %v2109
      %v2112 = vshrl.u32 %v1697, 16
      %v2114 = vrot.slane %v2112, 3
      %v2115 = vshll.u32 %v1697, 16
      %v2117 = vrot.slane %v2115, 4
      %v2118 = vor.u32 %v2114, %v2117
      %v2119 = vsel %vm2066, %v2109, %v2118
      %v2121 = vshrl.u32 %v1698, 16
      %v2123 = vrot.slane %v2121, 3
      %v2124 = vshll.u32 %v1698, 16
      %v2126 = vrot.slane %v2124, 4
      %v2127 = vor.u32 %v2123, %v2126
      %v2128 = vsel %vm2066, %v2118, %v2127
      %v2130 = vshrl.u32 %v1699, 16
      %v2132 = vrot.slane %v2130, 3
      %v2133 = vshll.u32 %v1699, 16
      %v2135 = vrot.slane %v2133, 4
      %v2136 = vor.u32 %v2132, %v2135
      %v2137 = vsel %vm2066, %v2127, %v2136
      %v2139 = vshrl.u32 %v1700, 16
      %v2141 = vrot.slane %v2139, 3
      %v2142 = vshll.u32 %v1700, 16
      %v2144 = vrot.slane %v2142, 4
      %v2145 = vor.u32 %v2141, %v2144
      %v2146 = vsel %vm2066, %v2136, %v2145
      %v2148 = vshrl.u32 %v1701, 16
      %v2150 = vrot.slane %v2148, 3
      %v2151 = vshll.u32 %v1701, 16
      %v2153 = vrot.slane %v2151, 4
      %v2154 = vor.u32 %v2150, %v2153
      %v2155 = vsel %vm2066, %v2145, %v2154
      %v2157 = vshrl.u32 %v1702, 16
      %v2159 = vrot.slane %v2157, 3
      %v2160 = vshll.u32 %v1702, 16
      %v2162 = vrot.slane %v2160, 4
      %v2163 = vor.u32 %v2159, %v2162
      %v2164 = vsel %vm2066, %v2154, %v2163
      %v2166 = vshrl.u32 %v1703, 16
      %v2168 = vrot.slane %v2166, 3
      %v2169 = vshll.u32 %v1703, 16
      %v2171 = vrot.slane %v2169, 4
      %v2172 = vor.u32 %v2168, %v2171
      %v2173 = vsel %vm2066, %v2163, %v2172
      %v2175 = vshrl.u32 %v1704, 16
      %v2177 = vrot.slane %v2175, 3
      %v2178 = vshll.u32 %v1704, 16
      %v2180 = vrot.slane %v2178, 4
      %v2181 = vor.u32 %v2177, %v2180
      %v2182 = vsel %vm2066, %v2172, %v2181
      %v2184 = vshrl.u32 %v1705, 16
      %v2186 = vrot.slane %v2184, 3
      %v2187 = vshll.u32 %v1705, 16
      %v2189 = vrot.slane %v2187, 4
      %v2190 = vor.u32 %v2186, %v2189
      %v2191 = vsel %vm2066, %v2181, %v2190
      %v2193 = vshrl.u32 %v1706, 16
      %v2195 = vrot.slane %v2193, 3
      %v2196 = vshll.u32 %v1706, 16
      %v2198 = vrot.slane %v2196, 4
      %v2199 = vor.u32 %v2195, %v2198
      %v2200 = vsel %vm2066, %v2190, %v2199
      %v2202 = vshrl.u32 %v1707, 16
      %v2204 = vrot.slane %v2202, 3
      %v2205 = vshll.u32 %v1707, 16
      %v2207 = vrot.slane %v2205, 4
      %v2208 = vor.u32 %v2204, %v2207
      %v2209 = vsel %vm2066, %v2199, %v2208
      %v2211 = vshrl.u32 %v1708, 16
      %v2213 = vrot.slane %v2211, 3
      %v2214 = vshll.u32 %v1708, 16
      %v2216 = vrot.slane %v2214, 4
      %v2217 = vor.u32 %v2213, %v2216
      %v2218 = vsel %vm2066, %v2208, %v2217
      %v2220 = vshrl.u32 %v2048, 16
      %v2222 = vrot.slane %v2220, 3
      %v2223 = vshll.u32 %v2048, 16
      %v2225 = vrot.slane %v2223, 4
      %v2226 = vor.u32 %v2222, %v2225
      %v2227 = vsel %vm2066, %v2217, %v2226
      %v2261 = vunpack.c.l.b16 %v2050
      %v2262 = vunpack.c.l.b16 %v2051
      %v2263 = vunpack.c.l.b16 %v2052
      %v2264 = vunpack.c.l.b16 %v2053
      %v2265 = vunpack.c.l.b16 %v2054
      %v2266 = vunpack.c.l.b16 %v2055
      %v2267 = vunpack.c.l.b16 %v2056
      %v2268 = vunpack.c.l.b16 %v2057
      %v2269 = vunpack.c.l.b16 %v2058
      %v2270 = vunpack.c.l.b16 %v2059
      %v2271 = vunpack.c.l.b16 %v2060
      %v2272 = vunpack.c.l.b16 %v2061
      %v2273 = vunpack.c.l.b16 %v2062
      %v2274 = vunpack.c.l.b16 %v2063
      %v2275 = vunpack.c.l.b16 %v2064
      %v2276 = vunpack.c.l.b16 %v2065
      %v2277 = vpack.c.b16 %v2262, %v2261
      %v2278 = vpack.c.b16 %v2264, %v2263
      %v2279 = vpack.c.b16 %v2266, %v2265
      %v2280 = vpack.c.b16 %v2268, %v2267
      %v2281 = vpack.c.b16 %v2270, %v2269
      %v2282 = vpack.c.b16 %v2272, %v2271
      %v2283 = vpack.c.b16 %v2274, %v2273
      %v2284 = vpack.c.b16 %v2276, %v2275
      %2293 = vmatprep.subr.bf16.mxu0 0
      %2294 = vmatpush1.bf16.msra.mxu0 %v2277
      %2295 = vmatprep.subr.bf16.mxu0 0
      %2296 = vmatpush1.bf16.msra.mxu0 %v2278
      %2297 = vmatprep.subr.bf16.mxu0 0
      %2298 = vmatpush1.bf16.msra.mxu0 %v2279
      %2299 = vmatprep.subr.bf16.mxu0 0
      %2300 = vmatpush1.bf16.msra.mxu0 %v2280
      %2301 = vmatprep.subr.bf16.mxu0 0
      %2302 = vmatpush1.bf16.msra.mxu0 %v2281
      %2303 = vmatprep.subr.bf16.mxu0 0
      %2304 = vmatpush1.bf16.msra.mxu0 %v2282
      %2305 = vmatprep.subr.bf16.mxu0 0
      %2306 = vmatpush1.bf16.msra.mxu0 %v2283
      %2307 = vmatprep.subr.bf16.mxu0 0
      %2308 = vmatpush1.bf16.msra.mxu0 %v2284
      %2309 = vmatprep.subr.bf16.mxu0 0
      %2310 = vmatpush1.bf16.msra.mxu0 0
      %2311 = vmatprep.subr.bf16.mxu0 0
      %2312 = vmatpush1.bf16.msra.mxu0 0
      %2313 = vmatprep.subr.bf16.mxu0 0
      %2314 = vmatpush1.bf16.msra.mxu0 0
      %2315 = vmatprep.subr.bf16.mxu0 0
      %2316 = vmatpush1.bf16.msra.mxu0 0
      %2317 = vmatprep.subr.bf16.mxu0 0
      %2318 = vmatpush1.bf16.msra.mxu0 0
      %2319 = vmatprep.subr.bf16.mxu0 0
      %2320 = vmatpush1.bf16.msra.mxu0 0
      %2321 = vmatprep.subr.bf16.mxu0 0
      %2322 = vmatpush1.bf16.msra.mxu0 0
      %2323 = vmatprep.subr.bf16.mxu0 0
      %2324 = vmatpush1.bf16.msra.mxu0 0
      %2325 = vmatprep.mubr.bf16.mxu0 0
      %2326 = vmatmul.mubr.bf16.gmra.mrb[0].mxu0 %v2083
      %v2327 = vpop.f32.mrb[0].mxu0
      %v2328 = vadd.f32 0.0, %v2327
      %v2329 = vpop.f32.mrb[0].mxu0
      %v2330 = vpop.f32.mrb[0].mxu0
      %v2331 = vadd.f32 0.0, %v2330
      %v2332 = vpop.f32.mrb[0].mxu0
      %2333 = vmatprep.mubr.bf16.mxu0 0
      %2334 = vmatmul.mubr.bf16.gmra.mrb[0].mxu0 %v2092
      %v2335 = vpop.f32.mrb[0].mxu0
      %v2336 = vadd.f32 0.0, %v2335
      %v2337 = vpop.f32.mrb[0].mxu0
      %v2338 = vpop.f32.mrb[0].mxu0
      %v2339 = vadd.f32 0.0, %v2338
      %v2340 = vpop.f32.mrb[0].mxu0
      %2341 = vmatprep.mubr.bf16.mxu0 0
      %2342 = vmatmul.mubr.bf16.gmra.mrb[0].mxu0 %v2101
      %v2343 = vpop.f32.mrb[0].mxu0
      %v2344 = vadd.f32 0.0, %v2343
      %v2345 = vpop.f32.mrb[0].mxu0
      %v2346 = vpop.f32.mrb[0].mxu0
      %v2347 = vadd.f32 0.0, %v2346
      %v2348 = vpop.f32.mrb[0].mxu0
      %2349 = vmatprep.mubr.bf16.mxu0 0
      %2350 = vmatmul.mubr.bf16.gmra.mrb[0].mxu0 %v2110
      %v2351 = vpop.f32.mrb[0].mxu0
      %v2352 = vadd.f32 0.0, %v2351
      %v2353 = vpop.f32.mrb[0].mxu0
      %v2354 = vpop.f32.mrb[0].mxu0
      %v2355 = vadd.f32 0.0, %v2354
      %v2356 = vpop.f32.mrb[0].mxu0
      %2357 = vmatprep.mubr.bf16.mxu0 0
      %2358 = vmatmul.mubr.bf16.gmra.mrb[0].mxu0 %v2119
      %v2359 = vpop.f32.mrb[0].mxu0
      %v2360 = vadd.f32 0.0, %v2359
      %v2361 = vpop.f32.mrb[0].mxu0
      %v2362 = vpop.f32.mrb[0].mxu0
      %v2363 = vadd.f32 0.0, %v2362
      %v2364 = vpop.f32.mrb[0].mxu0
      %2365 = vmatprep.mubr.bf16.mxu0 0
      %2366 = vmatmul.mubr.bf16.gmra.mrb[0].mxu0 %v2128
      %v2367 = vpop.f32.mrb[0].mxu0
      %v2368 = vadd.f32 0.0, %v2367
      %v2369 = vpop.f32.mrb[0].mxu0
      %v2370 = vpop.f32.mrb[0].mxu0
      %v2371 = vadd.f32 0.0, %v2370
      %v2372 = vpop.f32.mrb[0].mxu0
      %2373 = vmatprep.mubr.bf16.mxu0 0
      %2374 = vmatmul.mubr.bf16.gmra.mrb[0].mxu0 %v2137
      %v2375 = vpop.f32.mrb[0].mxu0
      %v2376 = vadd.f32 0.0, %v2375
      %v2377 = vpop.f32.mrb[0].mxu0
      %v2378 = vpop.f32.mrb[0].mxu0
      %v2379 = vadd.f32 0.0, %v2378
      %v2380 = vpop.f32.mrb[0].mxu0
      %2381 = vmatprep.mubr.bf16.mxu0 0
      %2382 = vmatmul.mubr.bf16.gmra.mrb[0].mxu0 %v2146
      %v2383 = vpop.f32.mrb[0].mxu0
      %v2384 = vadd.f32 0.0, %v2383
      %v2385 = vpop.f32.mrb[0].mxu0
      %v2386 = vpop.f32.mrb[0].mxu0
      %v2387 = vadd.f32 0.0, %v2386
      %v2388 = vpop.f32.mrb[0].mxu0
      %2389 = vmatprep.mubr.bf16.mxu0 0
      %2390 = vmatmul.mubr.bf16.gmra.mrb[0].mxu0 %v2155
      %v2391 = vpop.f32.mrb[0].mxu0
      %v2392 = vadd.f32 0.0, %v2391
      %v2393 = vpop.f32.mrb[0].mxu0
      %v2394 = vpop.f32.mrb[0].mxu0
      %v2395 = vadd.f32 0.0, %v2394
      %v2396 = vpop.f32.mrb[0].mxu0
      %2397 = vmatprep.mubr.bf16.mxu0 0
      %2398 = vmatmul.mubr.bf16.gmra.mrb[0].mxu0 %v2164
      %v2399 = vpop.f32.mrb[0].mxu0
      %v2400 = vadd.f32 0.0, %v2399
      %v2401 = vpop.f32.mrb[0].mxu0
      %v2402 = vpop.f32.mrb[0].mxu0
      %v2403 = vadd.f32 0.0, %v2402
      %v2404 = vpop.f32.mrb[0].mxu0
      %2405 = vmatprep.mubr.bf16.mxu0 0
      %2406 = vmatmul.mubr.bf16.gmra.mrb[0].mxu0 %v2173
      %v2407 = vpop.f32.mrb[0].mxu0
      %v2408 = vadd.f32 0.0, %v2407
      %v2409 = vpop.f32.mrb[0].mxu0
      %v2410 = vpop.f32.mrb[0].mxu0
      %v2411 = vadd.f32 0.0, %v2410
      %v2412 = vpop.f32.mrb[0].mxu0
      %2413 = vmatprep.mubr.bf16.mxu0 0
      %2414 = vmatmul.mubr.bf16.gmra.mrb[0].mxu0 %v2182
      %v2415 = vpop.f32.mrb[0].mxu0
      %v2416 = vadd.f32 0.0, %v2415
      %v2417 = vpop.f32.mrb[0].mxu0
      %v2418 = vpop.f32.mrb[0].mxu0
      %v2419 = vadd.f32 0.0, %v2418
      %v2420 = vpop.f32.mrb[0].mxu0
      %2421 = vmatprep.mubr.bf16.mxu0 0
      %2422 = vmatmul.mubr.bf16.gmra.mrb[0].mxu0 %v2191
      %v2423 = vpop.f32.mrb[0].mxu0
      %v2424 = vadd.f32 0.0, %v2423
      %v2425 = vpop.f32.mrb[0].mxu0
      %v2426 = vpop.f32.mrb[0].mxu0
      %v2427 = vadd.f32 0.0, %v2426
      %v2428 = vpop.f32.mrb[0].mxu0
      %2429 = vmatprep.mubr.bf16.mxu0 0
      %2430 = vmatmul.mubr.bf16.gmra.mrb[0].mxu0 %v2200
      %v2431 = vpop.f32.mrb[0].mxu0
      %v2432 = vadd.f32 0.0, %v2431
      %v2433 = vpop.f32.mrb[0].mxu0
      %v2434 = vpop.f32.mrb[0].mxu0
      %v2435 = vadd.f32 0.0, %v2434
      %v2436 = vpop.f32.mrb[0].mxu0
      %2437 = vmatprep.mubr.bf16.mxu0 0
      %2438 = vmatmul.mubr.bf16.gmra.mrb[0].mxu0 %v2209
      %v2439 = vpop.f32.mrb[0].mxu0
      %v2440 = vadd.f32 0.0, %v2439
      %v2441 = vpop.f32.mrb[0].mxu0
      %v2442 = vpop.f32.mrb[0].mxu0
      %v2443 = vadd.f32 0.0, %v2442
      %v2444 = vpop.f32.mrb[0].mxu0
      %2445 = vmatprep.mubr.bf16.mxu0 0
      %2446 = vmatmul.mubr.bf16.gmra.mrb[0].mxu0 %v2218
      %v2447 = vpop.f32.mrb[0].mxu0
      %v2448 = vadd.f32 0.0, %v2447
      %v2449 = vpop.f32.mrb[0].mxu0
      %v2450 = vpop.f32.mrb[0].mxu0
      %v2451 = vadd.f32 0.0, %v2450
      %v2452 = vpop.f32.mrb[0].mxu0
      %2453 = vmatprep.mubr.bf16.mxu0 0
      %2454 = vmatmul.mubr.bf16.gmra.mrb[0].mxu0 %v2227
      %v2455 = vpop.f32.mrb[0].mxu0
      %v2456 = vadd.f32 0.0, %v2455
      %v2457 = vpop.f32.mrb[0].mxu0
      %v2458 = vpop.f32.mrb[0].mxu0
      %v2459 = vadd.f32 0.0, %v2458
      %v2460 = vpop.f32.mrb[0].mxu0
      %2461 = vdwg.mxu0
      %v2462 = vadd.f32 %v2014, %v2328
      %v2463 = vadd.f32 %v2015, %v2331
      %v2464 = vadd.f32 %v2016, %v2336
      %v2465 = vadd.f32 %v2017, %v2339
      %v2466 = vadd.f32 %v2018, %v2344
      %v2467 = vadd.f32 %v2019, %v2347
      %v2468 = vadd.f32 %v2020, %v2352
      %v2469 = vadd.f32 %v2021, %v2355
      %v2470 = vadd.f32 %v2022, %v2360
      %v2471 = vadd.f32 %v2023, %v2363
      %v2472 = vadd.f32 %v2024, %v2368
      %v2473 = vadd.f32 %v2025, %v2371
      %v2474 = vadd.f32 %v2026, %v2376
      %v2475 = vadd.f32 %v2027, %v2379
      %v2476 = vadd.f32 %v2028, %v2384
      %v2477 = vadd.f32 %v2029, %v2387
      %v2478 = vadd.f32 %v2030, %v2392
      %v2479 = vadd.f32 %v2031, %v2395
      %v2480 = vadd.f32 %v2032, %v2400
      %v2481 = vadd.f32 %v2033, %v2403
      %v2482 = vadd.f32 %v2034, %v2408
      %v2483 = vadd.f32 %v2035, %v2411
      %v2484 = vadd.f32 %v2036, %v2416
      %v2485 = vadd.f32 %v2037, %v2419
      %v2486 = vadd.f32 %v2038, %v2424
      %v2487 = vadd.f32 %v2039, %v2427
      %v2488 = vadd.f32 %v2040, %v2432
      %v2489 = vadd.f32 %v2041, %v2435
      %v2490 = vadd.f32 %v2042, %v2440
      %v2491 = vadd.f32 %v2043, %v2443
      %v2492 = vadd.f32 %v2044, %v2448
      %v2493 = vadd.f32 %v2045, %v2451
      %v2494 = vadd.f32 %v2046, %v2456
      %v2495 = vadd.f32 %v2047, %v2459
      %v2496 = vld [vmem:[#allocation2] sm:$0xf0]
      %s2497 = scalar_lea.vmem %s3, 128
      %v2498 = vld [vmem:[%s2497] sm:$0xf]
      %v2499 = vld [vmem:[%s2497 + $0x4] sm:$0xf]
      %v2500 = vld [vmem:[%s2497 + $0x8] sm:$0xf]
      %v2501 = vld [vmem:[%s2497 + $0xc] sm:$0xf]
      %v2502 = vld [vmem:[%s2497 + $0x10] sm:$0xf]
      %v2503 = vld [vmem:[%s2497 + $0x14] sm:$0xf]
      %v2504 = vld [vmem:[%s2497 + $0x18] sm:$0xf]
      %v2505 = vld [vmem:[%s2497 + $0x1c] sm:$0xf]
      %v2506 = vld [vmem:[%s2497 + $0x20] sm:$0xf]
      %v2507 = vld [vmem:[%s2497 + $0x24] sm:$0xf]
      %v2508 = vld [vmem:[%s2497 + $0x28] sm:$0xf]
      %v2509 = vld [vmem:[%s2497 + $0x2c] sm:$0xf]
      %v2510 = vld [vmem:[%s2497 + $0x30] sm:$0xf]
      %v2511 = vld [vmem:[%s2497 + $0x34] sm:$0xf]
      %v2512 = vld [vmem:[%s2497 + $0x38] sm:$0xf]
      %v2513 = vld [vmem:[%s2497 + $0x3c] sm:$0xf]
      %v2516 = vrot.slane %v2496, 4
      %v2517 = vrot.slane %v1693, 4
      %v2518 = vsel %vm1615, %v2516, %v2517
      %v2519 = vrot.slane %v1694, 4
      %v2520 = vsel %vm1615, %v2517, %v2519
      %v2521 = vrot.slane %v1695, 4
      %v2522 = vsel %vm1615, %v2519, %v2521
      %v2523 = vrot.slane %v1696, 4
      %v2524 = vsel %vm1615, %v2521, %v2523
      %v2525 = vrot.slane %v1697, 4
      %v2526 = vsel %vm1615, %v2523, %v2525
      %v2527 = vrot.slane %v1698, 4
      %v2528 = vsel %vm1615, %v2525, %v2527
      %v2529 = vrot.slane %v1699, 4
      %v2530 = vsel %vm1615, %v2527, %v2529
      %v2531 = vrot.slane %v1700, 4
      %v2532 = vsel %vm1615, %v2529, %v2531
      %v2533 = vrot.slane %v1701, 4
      %v2534 = vsel %vm1615, %v2531, %v2533
      %v2535 = vrot.slane %v1702, 4
      %v2536 = vsel %vm1615, %v2533, %v2535
      %v2537 = vrot.slane %v1703, 4
      %v2538 = vsel %vm1615, %v2535, %v2537
      %v2539 = vrot.slane %v1704, 4
      %v2540 = vsel %vm1615, %v2537, %v2539
      %v2541 = vrot.slane %v1705, 4
      %v2542 = vsel %vm1615, %v2539, %v2541
      %v2543 = vrot.slane %v1706, 4
      %v2544 = vsel %vm1615, %v2541, %v2543
      %v2545 = vrot.slane %v1707, 4
      %v2546 = vsel %vm1615, %v2543, %v2545
      %v2547 = vrot.slane %v1708, 4
      %v2548 = vsel %vm1615, %v2545, %v2547
      %v2549 = vrot.slane %v2048, 4
      %v2550 = vsel %vm1615, %v2547, %v2549
      %v2584 = vunpack.c.l.b16 %v2498
      %v2585 = vunpack.c.l.b16 %v2499
      %v2586 = vunpack.c.l.b16 %v2500
      %v2587 = vunpack.c.l.b16 %v2501
      %v2588 = vunpack.c.l.b16 %v2502
      %v2589 = vunpack.c.l.b16 %v2503
      %v2590 = vunpack.c.l.b16 %v2504
      %v2591 = vunpack.c.l.b16 %v2505
      %v2592 = vunpack.c.l.b16 %v2506
      %v2593 = vunpack.c.l.b16 %v2507
      %v2594 = vunpack.c.l.b16 %v2508
      %v2595 = vunpack.c.l.b16 %v2509
      %v2596 = vunpack.c.l.b16 %v2510
      %v2597 = vunpack.c.l.b16 %v2511
      %v2598 = vunpack.c.l.b16 %v2512
      %v2599 = vunpack.c.l.b16 %v2513
      %v2600 = vpack.c.b16 %v2585, %v2584
      %v2601 = vpack.c.b16 %v2587, %v2586
      %v2602 = vpack.c.b16 %v2589, %v2588
      %v2603 = vpack.c.b16 %v2591, %v2590
      %v2604 = vpack.c.b16 %v2593, %v2592
      %v2605 = vpack.c.b16 %v2595, %v2594
      %v2606 = vpack.c.b16 %v2597, %v2596
      %v2607 = vpack.c.b16 %v2599, %v2598
      %2616 = vmatprep.subr.bf16.mxu0 0
      %2617 = vmatpush1.bf16.msra.mxu0 %v2600
      %2618 = vmatprep.subr.bf16.mxu0 0
      %2619 = vmatpush1.bf16.msra.mxu0 %v2601
      %2620 = vmatprep.subr.bf16.mxu0 0
      %2621 = vmatpush1.bf16.msra.mxu0 %v2602
      %2622 = vmatprep.subr.bf16.mxu0 0
      %2623 = vmatpush1.bf16.msra.mxu0 %v2603
      %2624 = vmatprep.subr.bf16.mxu0 0
      %2625 = vmatpush1.bf16.msra.mxu0 %v2604
      %2626 = vmatprep.subr.bf16.mxu0 0
      %2627 = vmatpush1.bf16.msra.mxu0 %v2605
      %2628 = vmatprep.subr.bf16.mxu0 0
      %2629 = vmatpush1.bf16.msra.mxu0 %v2606
      %2630 = vmatprep.subr.bf16.mxu0 0
      %2631 = vmatpush1.bf16.msra.mxu0 %v2607
      %2632 = vmatprep.subr.bf16.mxu0 0
      %2633 = vmatpush1.bf16.msra.mxu0 0
      %2634 = vmatprep.subr.bf16.mxu0 0
      %2635 = vmatpush1.bf16.msra.mxu0 0
      %2636 = vmatprep.subr.bf16.mxu0 0
      %2637 = vmatpush1.bf16.msra.mxu0 0
      %2638 = vmatprep.subr.bf16.mxu0 0
      %2639 = vmatpush1.bf16.msra.mxu0 0
      %2640 = vmatprep.subr.bf16.mxu0 0
      %2641 = vmatpush1.bf16.msra.mxu0 0
      %2642 = vmatprep.subr.bf16.mxu0 0
      %2643 = vmatpush1.bf16.msra.mxu0 0
      %2644 = vmatprep.subr.bf16.mxu0 0
      %2645 = vmatpush1.bf16.msra.mxu0 0
      %2646 = vmatprep.subr.bf16.mxu0 0
      %2647 = vmatpush1.bf16.msra.mxu0 0
      %2648 = vmatprep.mubr.bf16.mxu0 0
      %2649 = vmatmul.mubr.bf16.gmra.mrb[0].mxu0 %v2518
      %v2650 = vpop.f32.mrb[0].mxu0
      %v2651 = vadd.f32 0.0, %v2650
      %v2652 = vpop.f32.mrb[0].mxu0
      %v2653 = vpop.f32.mrb[0].mxu0
      %v2654 = vadd.f32 0.0, %v2653
      %v2655 = vpop.f32.mrb[0].mxu0
      %2656 = vmatprep.mubr.bf16.mxu0 0
      %2657 = vmatmul.mubr.bf16.gmra.mrb[0].mxu0 %v2520
      %v2658 = vpop.f32.mrb[0].mxu0
      %v2659 = vadd.f32 0.0, %v2658
      %v2660 = vpop.f32.mrb[0].mxu0
      %v2661 = vpop.f32.mrb[0].mxu0
      %v2662 = vadd.f32 0.0, %v2661
      %v2663 = vpop.f32.mrb[0].mxu0
      %2664 = vmatprep.mubr.bf16.mxu0 0
      %2665 = vmatmul.mubr.bf16.gmra.mrb[0].mxu0 %v2522
      %v2666 = vpop.f32.mrb[0].mxu0
      %v2667 = vadd.f32 0.0, %v2666
      %v2668 = vpop.f32.mrb[0].mxu0
      %v2669 = vpop.f32.mrb[0].mxu0
      %v2670 = vadd.f32 0.0, %v2669
      %v2671 = vpop.f32.mrb[0].mxu0
      %2672 = vmatprep.mubr.bf16.mxu0 0
      %2673 = vmatmul.mubr.bf16.gmra.mrb[0].mxu0 %v2524
      %v2674 = vpop.f32.mrb[0].mxu0
      %v2675 = vadd.f32 0.0, %v2674
      %v2676 = vpop.f32.mrb[0].mxu0
      %v2677 = vpop.f32.mrb[0].mxu0
      %v2678 = vadd.f32 0.0, %v2677
      %v2679 = vpop.f32.mrb[0].mxu0
      %2680 = vmatprep.mubr.bf16.mxu0 0
      %2681 = vmatmul.mubr.bf16.gmra.mrb[0].mxu0 %v2526
      %v2682 = vpop.f32.mrb[0].mxu0
      %v2683 = vadd.f32 0.0, %v2682
      %v2684 = vpop.f32.mrb[0].mxu0
      %v2685 = vpop.f32.mrb[0].mxu0
      %v2686 = vadd.f32 0.0, %v2685
      %v2687 = vpop.f32.mrb[0].mxu0
      %2688 = vmatprep.mubr.bf16.mxu0 0
      %2689 = vmatmul.mubr.bf16.gmra.mrb[0].mxu0 %v2528
      %v2690 = vpop.f32.mrb[0].mxu0
      %v2691 = vadd.f32 0.0, %v2690
      %v2692 = vpop.f32.mrb[0].mxu0
      %v2693 = vpop.f32.mrb[0].mxu0
      %v2694 = vadd.f32 0.0, %v2693
      %v2695 = vpop.f32.mrb[0].mxu0
      %2696 = vmatprep.mubr.bf16.mxu0 0
      %2697 = vmatmul.mubr.bf16.gmra.mrb[0].mxu0 %v2530
      %v2698 = vpop.f32.mrb[0].mxu0
      %v2699 = vadd.f32 0.0, %v2698
      %v2700 = vpop.f32.mrb[0].mxu0
      %v2701 = vpop.f32.mrb[0].mxu0
      %v2702 = vadd.f32 0.0, %v2701
      %v2703 = vpop.f32.mrb[0].mxu0
      %2704 = vmatprep.mubr.bf16.mxu0 0
      %2705 = vmatmul.mubr.bf16.gmra.mrb[0].mxu0 %v2532
      %v2706 = vpop.f32.mrb[0].mxu0
      %v2707 = vadd.f32 0.0, %v2706
      %v2708 = vpop.f32.mrb[0].mxu0
      %v2709 = vpop.f32.mrb[0].mxu0
      %v2710 = vadd.f32 0.0, %v2709
      %v2711 = vpop.f32.mrb[0].mxu0
      %2712 = vmatprep.mubr.bf16.mxu0 0
      %2713 = vmatmul.mubr.bf16.gmra.mrb[0].mxu0 %v2534
      %v2714 = vpop.f32.mrb[0].mxu0
      %v2715 = vadd.f32 0.0, %v2714
      %v2716 = vpop.f32.mrb[0].mxu0
      %v2717 = vpop.f32.mrb[0].mxu0
      %v2718 = vadd.f32 0.0, %v2717
      %v2719 = vpop.f32.mrb[0].mxu0
      %2720 = vmatprep.mubr.bf16.mxu0 0
      %2721 = vmatmul.mubr.bf16.gmra.mrb[0].mxu0 %v2536
      %v2722 = vpop.f32.mrb[0].mxu0
      %v2723 = vadd.f32 0.0, %v2722
      %v2724 = vpop.f32.mrb[0].mxu0
      %v2725 = vpop.f32.mrb[0].mxu0
      %v2726 = vadd.f32 0.0, %v2725
      %v2727 = vpop.f32.mrb[0].mxu0
      %2728 = vmatprep.mubr.bf16.mxu0 0
      %2729 = vmatmul.mubr.bf16.gmra.mrb[0].mxu0 %v2538
      %v2730 = vpop.f32.mrb[0].mxu0
      %v2731 = vadd.f32 0.0, %v2730
      %v2732 = vpop.f32.mrb[0].mxu0
      %v2733 = vpop.f32.mrb[0].mxu0
      %v2734 = vadd.f32 0.0, %v2733
      %v2735 = vpop.f32.mrb[0].mxu0
      %2736 = vmatprep.mubr.bf16.mxu0 0
      %2737 = vmatmul.mubr.bf16.gmra.mrb[0].mxu0 %v2540
      %v2738 = vpop.f32.mrb[0].mxu0
      %v2739 = vadd.f32 0.0, %v2738
      %v2740 = vpop.f32.mrb[0].mxu0
      %v2741 = vpop.f32.mrb[0].mxu0
      %v2742 = vadd.f32 0.0, %v2741
      %v2743 = vpop.f32.mrb[0].mxu0
      %2744 = vmatprep.mubr.bf16.mxu0 0
      %2745 = vmatmul.mubr.bf16.gmra.mrb[0].mxu0 %v2542
      %v2746 = vpop.f32.mrb[0].mxu0
      %v2747 = vadd.f32 0.0, %v2746
      %v2748 = vpop.f32.mrb[0].mxu0
      %v2749 = vpop.f32.mrb[0].mxu0
      %v2750 = vadd.f32 0.0, %v2749
      %v2751 = vpop.f32.mrb[0].mxu0
      %2752 = vmatprep.mubr.bf16.mxu0 0
      %2753 = vmatmul.mubr.bf16.gmra.mrb[0].mxu0 %v2544
      %v2754 = vpop.f32.mrb[0].mxu0
      %v2755 = vadd.f32 0.0, %v2754
      %v2756 = vpop.f32.mrb[0].mxu0
      %v2757 = vpop.f32.mrb[0].mxu0
      %v2758 = vadd.f32 0.0, %v2757
      %v2759 = vpop.f32.mrb[0].mxu0
      %2760 = vmatprep.mubr.bf16.mxu0 0
      %2761 = vmatmul.mubr.bf16.gmra.mrb[0].mxu0 %v2546
      %v2762 = vpop.f32.mrb[0].mxu0
      %v2763 = vadd.f32 0.0, %v2762
      %v2764 = vpop.f32.mrb[0].mxu0
      %v2765 = vpop.f32.mrb[0].mxu0
      %v2766 = vadd.f32 0.0, %v2765
      %v2767 = vpop.f32.mrb[0].mxu0
      %2768 = vmatprep.mubr.bf16.mxu0 0
      %2769 = vmatmul.mubr.bf16.gmra.mrb[0].mxu0 %v2548
      %v2770 = vpop.f32.mrb[0].mxu0
      %v2771 = vadd.f32 0.0, %v2770
      %v2772 = vpop.f32.mrb[0].mxu0
      %v2773 = vpop.f32.mrb[0].mxu0
      %v2774 = vadd.f32 0.0, %v2773
      %v2775 = vpop.f32.mrb[0].mxu0
      %2776 = vmatprep.mubr.bf16.mxu0 0
      %2777 = vmatmul.mubr.bf16.gmra.mrb[0].mxu0 %v2550
      %v2778 = vpop.f32.mrb[0].mxu0
      %v2779 = vadd.f32 0.0, %v2778
      %v2780 = vpop.f32.mrb[0].mxu0
      %v2781 = vpop.f32.mrb[0].mxu0
      %v2782 = vadd.f32 0.0, %v2781
      %v2783 = vpop.f32.mrb[0].mxu0
      %2784 = vdwg.mxu0
      %v2785 = vadd.f32 %v2462, %v2651
      %v2786 = vadd.f32 %v2463, %v2654
      %v2787 = vadd.f32 %v2464, %v2659
      %v2788 = vadd.f32 %v2465, %v2662
      %v2789 = vadd.f32 %v2466, %v2667
      %v2790 = vadd.f32 %v2467, %v2670
      %v2791 = vadd.f32 %v2468, %v2675
      %v2792 = vadd.f32 %v2469, %v2678
      %v2793 = vadd.f32 %v2470, %v2683
      %v2794 = vadd.f32 %v2471, %v2686
      %v2795 = vadd.f32 %v2472, %v2691
      %v2796 = vadd.f32 %v2473, %v2694
      %v2797 = vadd.f32 %v2474, %v2699
      %v2798 = vadd.f32 %v2475, %v2702
      %v2799 = vadd.f32 %v2476, %v2707
      %v2800 = vadd.f32 %v2477, %v2710
      %v2801 = vadd.f32 %v2478, %v2715
      %v2802 = vadd.f32 %v2479, %v2718
      %v2803 = vadd.f32 %v2480, %v2723
      %v2804 = vadd.f32 %v2481, %v2726
      %v2805 = vadd.f32 %v2482, %v2731
      %v2806 = vadd.f32 %v2483, %v2734
      %v2807 = vadd.f32 %v2484, %v2739
      %v2808 = vadd.f32 %v2485, %v2742
      %v2809 = vadd.f32 %v2486, %v2747
      %v2810 = vadd.f32 %v2487, %v2750
      %v2811 = vadd.f32 %v2488, %v2755
      %v2812 = vadd.f32 %v2489, %v2758
      %v2813 = vadd.f32 %v2490, %v2763
      %v2814 = vadd.f32 %v2491, %v2766
      %v2815 = vadd.f32 %v2492, %v2771
      %v2816 = vadd.f32 %v2493, %v2774
      %v2817 = vadd.f32 %v2494, %v2779
      %v2818 = vadd.f32 %v2495, %v2782
      %v2819 = vld [vmem:[#allocation2 + $0x8] sm:$0xf8]
      %v2820 = vld [vmem:[#allocation2 + $0x10] sm:$0xff]
      %v2821 = vld [vmem:[#allocation2 + $0x18] sm:$0xff]
      %v2822 = vld [vmem:[#allocation2 + $0x20] sm:$0xff]
      %v2823 = vld [vmem:[#allocation2 + $0x28] sm:$0xff]
      %v2824 = vld [vmem:[#allocation2 + $0x30] sm:$0xff]
      %v2825 = vld [vmem:[#allocation2 + $0x38] sm:$0xff]
      %v2826 = vld [vmem:[#allocation2 + $0x40] sm:$0xff]
      %v2827 = vld [vmem:[#allocation2 + $0x48] sm:$0xff]
      %v2828 = vld [vmem:[#allocation2 + $0x50] sm:$0xff]
      %v2829 = vld [vmem:[#allocation2 + $0x58] sm:$0xff]
      %v2830 = vld [vmem:[#allocation2 + $0x60] sm:$0xff]
      %v2831 = vld [vmem:[#allocation2 + $0x68] sm:$0xff]
      %v2832 = vld [vmem:[#allocation2 + $0x70] sm:$0xff]
      %v2833 = vld [vmem:[#allocation2 + $0x78] sm:$0xff]
      %v2834 = vld [vmem:[#allocation2 + $0x80] sm:$0xff]
      %v2835 = vld [vmem:[#allocation2 + $0x88] sm:$0xff]
      %v2836 = vld [vmem:[#allocation2 + $0x90] sm:$0xf]
      %s2837 = scalar_lea.vmem %s3, 192
      %v2838 = vld [vmem:[%s2837] sm:$0xf]
      %v2839 = vld [vmem:[%s2837 + $0x4] sm:$0xf]
      %v2840 = vld [vmem:[%s2837 + $0x8] sm:$0xf]
      %v2841 = vld [vmem:[%s2837 + $0xc] sm:$0xf]
      %v2842 = vld [vmem:[%s2837 + $0x10] sm:$0xf]
      %v2843 = vld [vmem:[%s2837 + $0x14] sm:$0xf]
      %v2844 = vld [vmem:[%s2837 + $0x18] sm:$0xf]
      %v2845 = vld [vmem:[%s2837 + $0x1c] sm:$0xf]
      %v2846 = vld [vmem:[%s2837 + $0x20] sm:$0xf]
      %v2847 = vld [vmem:[%s2837 + $0x24] sm:$0xf]
      %v2848 = vld [vmem:[%s2837 + $0x28] sm:$0xf]
      %v2849 = vld [vmem:[%s2837 + $0x2c] sm:$0xf]
      %v2850 = vld [vmem:[%s2837 + $0x30] sm:$0xf]
      %v2851 = vld [vmem:[%s2837 + $0x34] sm:$0xf]
      %v2852 = vld [vmem:[%s2837 + $0x38] sm:$0xf]
      %v2853 = vld [vmem:[%s2837 + $0x3c] sm:$0xf]
      %v2855 = vshrl.u32 %v2819, 16
      %v2857 = vrot.slane %v2855, 3
      %v2858 = vshll.u32 %v2819, 16
      %v2860 = vrot.slane %v2858, 4
      %v2861 = vor.u32 %v2857, %v2860
      %v2863 = vshrl.u32 %v2820, 16
      %v2865 = vrot.slane %v2863, 3
      %v2866 = vshll.u32 %v2820, 16
      %v2868 = vrot.slane %v2866, 4
      %v2869 = vor.u32 %v2865, %v2868
      %v2870 = vsel %vm2066, %v2861, %v2869
      %v2872 = vshrl.u32 %v2821, 16
      %v2874 = vrot.slane %v2872, 3
      %v2875 = vshll.u32 %v2821, 16
      %v2877 = vrot.slane %v2875, 4
      %v2878 = vor.u32 %v2874, %v2877
      %v2879 = vsel %vm2066, %v2869, %v2878
      %v2881 = vshrl.u32 %v2822, 16
      %v2883 = vrot.slane %v2881, 3
      %v2884 = vshll.u32 %v2822, 16
      %v2886 = vrot.slane %v2884, 4
      %v2887 = vor.u32 %v2883, %v2886
      %v2888 = vsel %vm2066, %v2878, %v2887
      %v2890 = vshrl.u32 %v2823, 16
      %v2892 = vrot.slane %v2890, 3
      %v2893 = vshll.u32 %v2823, 16
      %v2895 = vrot.slane %v2893, 4
      %v2896 = vor.u32 %v2892, %v2895
      %v2897 = vsel %vm2066, %v2887, %v2896
      %v2899 = vshrl.u32 %v2824, 16
      %v2901 = vrot.slane %v2899, 3
      %v2902 = vshll.u32 %v2824, 16
      %v2904 = vrot.slane %v2902, 4
      %v2905 = vor.u32 %v2901, %v2904
      %v2906 = vsel %vm2066, %v2896, %v2905
      %v2908 = vshrl.u32 %v2825, 16
      %v2910 = vrot.slane %v2908, 3
      %v2911 = vshll.u32 %v2825, 16
      %v2913 = vrot.slane %v2911, 4
      %v2914 = vor.u32 %v2910, %v2913
      %v2915 = vsel %vm2066, %v2905, %v2914
      %v2917 = vshrl.u32 %v2826, 16
      %v2919 = vrot.slane %v2917, 3
      %v2920 = vshll.u32 %v2826, 16
      %v2922 = vrot.slane %v2920, 4
      %v2923 = vor.u32 %v2919, %v2922
      %v2924 = vsel %vm2066, %v2914, %v2923
      %v2926 = vshrl.u32 %v2827, 16
      %v2928 = vrot.slane %v2926, 3
      %v2929 = vshll.u32 %v2827, 16
      %v2931 = vrot.slane %v2929, 4
      %v2932 = vor.u32 %v2928, %v2931
      %v2933 = vsel %vm2066, %v2923, %v2932
      %v2935 = vshrl.u32 %v2828, 16
      %v2937 = vrot.slane %v2935, 3
      %v2938 = vshll.u32 %v2828, 16
      %v2940 = vrot.slane %v2938, 4
      %v2941 = vor.u32 %v2937, %v2940
      %v2942 = vsel %vm2066, %v2932, %v2941
      %v2944 = vshrl.u32 %v2829, 16
      %v2946 = vrot.slane %v2944, 3
      %v2947 = vshll.u32 %v2829, 16
      %v2949 = vrot.slane %v2947, 4
      %v2950 = vor.u32 %v2946, %v2949
      %v2951 = vsel %vm2066, %v2941, %v2950
      %v2953 = vshrl.u32 %v2830, 16
      %v2955 = vrot.slane %v2953, 3
      %v2956 = vshll.u32 %v2830, 16
      %v2958 = vrot.slane %v2956, 4
      %v2959 = vor.u32 %v2955, %v2958
      %v2960 = vsel %vm2066, %v2950, %v2959
      %v2962 = vshrl.u32 %v2831, 16
      %v2964 = vrot.slane %v2962, 3
      %v2965 = vshll.u32 %v2831, 16
      %v2967 = vrot.slane %v2965, 4
      %v2968 = vor.u32 %v2964, %v2967
      %v2969 = vsel %vm2066, %v2959, %v2968
      %v2971 = vshrl.u32 %v2832, 16
      %v2973 = vrot.slane %v2971, 3
      %v2974 = vshll.u32 %v2832, 16
      %v2976 = vrot.slane %v2974, 4
      %v2977 = vor.u32 %v2973, %v2976
      %v2978 = vsel %vm2066, %v2968, %v2977
      %v2980 = vshrl.u32 %v2833, 16
      %v2982 = vrot.slane %v2980, 3
      %v2983 = vshll.u32 %v2833, 16
      %v2985 = vrot.slane %v2983, 4
      %v2986 = vor.u32 %v2982, %v2985
      %v2987 = vsel %vm2066, %v2977, %v2986
      %v2989 = vshrl.u32 %v2834, 16
      %v2991 = vrot.slane %v2989, 3
      %v2992 = vshll.u32 %v2834, 16
      %v2994 = vrot.slane %v2992, 4
      %v2995 = vor.u32 %v2991, %v2994
      %v2996 = vsel %vm2066, %v2986, %v2995
      %v2998 = vshrl.u32 %v2835, 16
      %v3000 = vrot.slane %v2998, 3
      %v3001 = vshll.u32 %v2835, 16
      %v3003 = vrot.slane %v3001, 4
      %v3004 = vor.u32 %v3000, %v3003
      %v3005 = vsel %vm2066, %v2995, %v3004
      %v3007 = vshrl.u32 %v2836, 16
      %v3009 = vrot.slane %v3007, 3
      %v3010 = vshll.u32 %v2836, 16
      %v3012 = vrot.slane %v3010, 4
      %v3013 = vor.u32 %v3009, %v3012
      %v3014 = vsel %vm2066, %v3004, %v3013
      %v3048 = vunpack.c.l.b16 %v2838
      %v3049 = vunpack.c.l.b16 %v2839
      %v3050 = vunpack.c.l.b16 %v2840
      %v3051 = vunpack.c.l.b16 %v2841
      %v3052 = vunpack.c.l.b16 %v2842
      %v3053 = vunpack.c.l.b16 %v2843
      %v3054 = vunpack.c.l.b16 %v2844
      %v3055 = vunpack.c.l.b16 %v2845
      %v3056 = vunpack.c.l.b16 %v2846
      %v3057 = vunpack.c.l.b16 %v2847
      %v3058 = vunpack.c.l.b16 %v2848
      %v3059 = vunpack.c.l.b16 %v2849
      %v3060 = vunpack.c.l.b16 %v2850
      %v3061 = vunpack.c.l.b16 %v2851
      %v3062 = vunpack.c.l.b16 %v2852
      %v3063 = vunpack.c.l.b16 %v2853
      %v3064 = vpack.c.b16 %v3049, %v3048
      %v3065 = vpack.c.b16 %v3051, %v3050
      %v3066 = vpack.c.b16 %v3053, %v3052
      %v3067 = vpack.c.b16 %v3055, %v3054
      %v3068 = vpack.c.b16 %v3057, %v3056
      %v3069 = vpack.c.b16 %v3059, %v3058
      %v3070 = vpack.c.b16 %v3061, %v3060
      %v3071 = vpack.c.b16 %v3063, %v3062
      %3080 = vmatprep.subr.bf16.mxu0 0
      %3081 = vmatpush1.bf16.msra.mxu0 %v3064
      %3082 = vmatprep.subr.bf16.mxu0 0
      %3083 = vmatpush1.bf16.msra.mxu0 %v3065
      %3084 = vmatprep.subr.bf16.mxu0 0
      %3085 = vmatpush1.bf16.msra.mxu0 %v3066
      %3086 = vmatprep.subr.bf16.mxu0 0
      %3087 = vmatpush1.bf16.msra.mxu0 %v3067
      %3088 = vmatprep.subr.bf16.mxu0 0
      %3089 = vmatpush1.bf16.msra.mxu0 %v3068
      %3090 = vmatprep.subr.bf16.mxu0 0
      %3091 = vmatpush1.bf16.msra.mxu0 %v3069
      %3092 = vmatprep.subr.bf16.mxu0 0
      %3093 = vmatpush1.bf16.msra.mxu0 %v3070
      %3094 = vmatprep.subr.bf16.mxu0 0
      %3095 = vmatpush1.bf16.msra.mxu0 %v3071
      %3096 = vmatprep.subr.bf16.mxu0 0
      %3097 = vmatpush1.bf16.msra.mxu0 0
      %3098 = vmatprep.subr.bf16.mxu0 0
      %3099 = vmatpush1.bf16.msra.mxu0 0
      %3100 = vmatprep.subr.bf16.mxu0 0
      %3101 = vmatpush1.bf16.msra.mxu0 0
      %3102 = vmatprep.subr.bf16.mxu0 0
      %3103 = vmatpush1.bf16.msra.mxu0 0
      %3104 = vmatprep.subr.bf16.mxu0 0
      %3105 = vmatpush1.bf16.msra.mxu0 0
      %3106 = vmatprep.subr.bf16.mxu0 0
      %3107 = vmatpush1.bf16.msra.mxu0 0
      %3108 = vmatprep.subr.bf16.mxu0 0
      %3109 = vmatpush1.bf16.msra.mxu0 0
      %3110 = vmatprep.subr.bf16.mxu0 0
      %3111 = vmatpush1.bf16.msra.mxu0 0
      %3112 = vmatprep.mubr.bf16.mxu0 0
      %3113 = vmatmul.mubr.bf16.gmra.mrb[0].mxu0 %v2870
      %v3114 = vpop.f32.mrb[0].mxu0
      %v3115 = vadd.f32 0.0, %v3114
      %v3116 = vpop.f32.mrb[0].mxu0
      %v3117 = vpop.f32.mrb[0].mxu0
      %v3118 = vadd.f32 0.0, %v3117
      %v3119 = vpop.f32.mrb[0].mxu0
      %3120 = vmatprep.mubr.bf16.mxu0 0
      %3121 = vmatmul.mubr.bf16.gmra.mrb[0].mxu0 %v2879
      %v3122 = vpop.f32.mrb[0].mxu0
      %v3123 = vadd.f32 0.0, %v3122
      %v3124 = vpop.f32.mrb[0].mxu0
      %v3125 = vpop.f32.mrb[0].mxu0
      %v3126 = vadd.f32 0.0, %v3125
      %v3127 = vpop.f32.mrb[0].mxu0
      %3128 = vmatprep.mubr.bf16.mxu0 0
      %3129 = vmatmul.mubr.bf16.gmra.mrb[0].mxu0 %v2888
      %v3130 = vpop.f32.mrb[0].mxu0
      %v3131 = vadd.f32 0.0, %v3130
      %v3132 = vpop.f32.mrb[0].mxu0
      %v3133 = vpop.f32.mrb[0].mxu0
      %v3134 = vadd.f32 0.0, %v3133
      %v3135 = vpop.f32.mrb[0].mxu0
      %3136 = vmatprep.mubr.bf16.mxu0 0
      %3137 = vmatmul.mubr.bf16.gmra.mrb[0].mxu0 %v2897
      %v3138 = vpop.f32.mrb[0].mxu0
      %v3139 = vadd.f32 0.0, %v3138
      %v3140 = vpop.f32.mrb[0].mxu0
      %v3141 = vpop.f32.mrb[0].mxu0
      %v3142 = vadd.f32 0.0, %v3141
      %v3143 = vpop.f32.mrb[0].mxu0
      %3144 = vmatprep.mubr.bf16.mxu0 0
      %3145 = vmatmul.mubr.bf16.gmra.mrb[0].mxu0 %v2906
      %v3146 = vpop.f32.mrb[0].mxu0
      %v3147 = vadd.f32 0.0, %v3146
      %v3148 = vpop.f32.mrb[0].mxu0
      %v3149 = vpop.f32.mrb[0].mxu0
      %v3150 = vadd.f32 0.0, %v3149
      %v3151 = vpop.f32.mrb[0].mxu0
      %3152 = vmatprep.mubr.bf16.mxu0 0
      %3153 = vmatmul.mubr.bf16.gmra.mrb[0].mxu0 %v2915
      %v3154 = vpop.f32.mrb[0].mxu0
      %v3155 = vadd.f32 0.0, %v3154
      %v3156 = vpop.f32.mrb[0].mxu0
      %v3157 = vpop.f32.mrb[0].mxu0
      %v3158 = vadd.f32 0.0, %v3157
      %v3159 = vpop.f32.mrb[0].mxu0
      %3160 = vmatprep.mubr.bf16.mxu0 0
      %3161 = vmatmul.mubr.bf16.gmra.mrb[0].mxu0 %v2924
      %v3162 = vpop.f32.mrb[0].mxu0
      %v3163 = vadd.f32 0.0, %v3162
      %v3164 = vpop.f32.mrb[0].mxu0
      %v3165 = vpop.f32.mrb[0].mxu0
      %v3166 = vadd.f32 0.0, %v3165
      %v3167 = vpop.f32.mrb[0].mxu0
      %3168 = vmatprep.mubr.bf16.mxu0 0
      %3169 = vmatmul.mubr.bf16.gmra.mrb[0].mxu0 %v2933
      %v3170 = vpop.f32.mrb[0].mxu0
      %v3171 = vadd.f32 0.0, %v3170
      %v3172 = vpop.f32.mrb[0].mxu0
      %v3173 = vpop.f32.mrb[0].mxu0
      %v3174 = vadd.f32 0.0, %v3173
      %v3175 = vpop.f32.mrb[0].mxu0
      %3176 = vmatprep.mubr.bf16.mxu0 0
      %3177 = vmatmul.mubr.bf16.gmra.mrb[0].mxu0 %v2942
      %v3178 = vpop.f32.mrb[0].mxu0
      %v3179 = vadd.f32 0.0, %v3178
      %v3180 = vpop.f32.mrb[0].mxu0
      %v3181 = vpop.f32.mrb[0].mxu0
      %v3182 = vadd.f32 0.0, %v3181
      %v3183 = vpop.f32.mrb[0].mxu0
      %3184 = vmatprep.mubr.bf16.mxu0 0
      %3185 = vmatmul.mubr.bf16.gmra.mrb[0].mxu0 %v2951
      %v3186 = vpop.f32.mrb[0].mxu0
      %v3187 = vadd.f32 0.0, %v3186
      %v3188 = vpop.f32.mrb[0].mxu0
      %v3189 = vpop.f32.mrb[0].mxu0
      %v3190 = vadd.f32 0.0, %v3189
      %v3191 = vpop.f32.mrb[0].mxu0
      %3192 = vmatprep.mubr.bf16.mxu0 0
      %3193 = vmatmul.mubr.bf16.gmra.mrb[0].mxu0 %v2960
      %v3194 = vpop.f32.mrb[0].mxu0
      %v3195 = vadd.f32 0.0, %v3194
      %v3196 = vpop.f32.mrb[0].mxu0
      %v3197 = vpop.f32.mrb[0].mxu0
      %v3198 = vadd.f32 0.0, %v3197
      %v3199 = vpop.f32.mrb[0].mxu0
      %3200 = vmatprep.mubr.bf16.mxu0 0
      %3201 = vmatmul.mubr.bf16.gmra.mrb[0].mxu0 %v2969
      %v3202 = vpop.f32.mrb[0].mxu0
      %v3203 = vadd.f32 0.0, %v3202
      %v3204 = vpop.f32.mrb[0].mxu0
      %v3205 = vpop.f32.mrb[0].mxu0
      %v3206 = vadd.f32 0.0, %v3205
      %v3207 = vpop.f32.mrb[0].mxu0
      %3208 = vmatprep.mubr.bf16.mxu0 0
      %3209 = vmatmul.mubr.bf16.gmra.mrb[0].mxu0 %v2978
      %v3210 = vpop.f32.mrb[0].mxu0
      %v3211 = vadd.f32 0.0, %v3210
      %v3212 = vpop.f32.mrb[0].mxu0
      %v3213 = vpop.f32.mrb[0].mxu0
      %v3214 = vadd.f32 0.0, %v3213
      %v3215 = vpop.f32.mrb[0].mxu0
      %3216 = vmatprep.mubr.bf16.mxu0 0
      %3217 = vmatmul.mubr.bf16.gmra.mrb[0].mxu0 %v2987
      %v3218 = vpop.f32.mrb[0].mxu0
      %v3219 = vadd.f32 0.0, %v3218
      %v3220 = vpop.f32.mrb[0].mxu0
      %v3221 = vpop.f32.mrb[0].mxu0
      %v3222 = vadd.f32 0.0, %v3221
      %v3223 = vpop.f32.mrb[0].mxu0
      %3224 = vmatprep.mubr.bf16.mxu0 0
      %3225 = vmatmul.mubr.bf16.gmra.mrb[0].mxu0 %v2996
      %v3226 = vpop.f32.mrb[0].mxu0
      %v3227 = vadd.f32 0.0, %v3226
      %v3228 = vpop.f32.mrb[0].mxu0
      %v3229 = vpop.f32.mrb[0].mxu0
      %v3230 = vadd.f32 0.0, %v3229
      %v3231 = vpop.f32.mrb[0].mxu0
      %3232 = vmatprep.mubr.bf16.mxu0 0
      %3233 = vmatmul.mubr.bf16.gmra.mrb[0].mxu0 %v3005
      %v3234 = vpop.f32.mrb[0].mxu0
      %v3235 = vadd.f32 0.0, %v3234
      %v3236 = vpop.f32.mrb[0].mxu0
      %v3237 = vpop.f32.mrb[0].mxu0
      %v3238 = vadd.f32 0.0, %v3237
      %v3239 = vpop.f32.mrb[0].mxu0
      %3240 = vmatprep.mubr.bf16.mxu0 0
      %3241 = vmatmul.mubr.bf16.gmra.mrb[0].mxu0 %v3014
      %v3242 = vpop.f32.mrb[0].mxu0
      %v3243 = vadd.f32 0.0, %v3242
      %v3244 = vpop.f32.mrb[0].mxu0
      %v3245 = vpop.f32.mrb[0].mxu0
      %v3246 = vadd.f32 0.0, %v3245
      %v3247 = vpop.f32.mrb[0].mxu0
      %3248 = vdwg.mxu0
      %v3249 = vadd.f32 %v2785, %v3115
      %v3250 = vadd.f32 %v2786, %v3118
      %v3251 = vadd.f32 %v2787, %v3123
      %v3252 = vadd.f32 %v2788, %v3126
      %v3253 = vadd.f32 %v2789, %v3131
      %v3254 = vadd.f32 %v2790, %v3134
      %v3255 = vadd.f32 %v2791, %v3139
      %v3256 = vadd.f32 %v2792, %v3142
      %v3257 = vadd.f32 %v2793, %v3147
      %v3258 = vadd.f32 %v2794, %v3150
      %v3259 = vadd.f32 %v2795, %v3155
      %v3260 = vadd.f32 %v2796, %v3158
      %v3261 = vadd.f32 %v2797, %v3163
      %v3262 = vadd.f32 %v2798, %v3166
      %v3263 = vadd.f32 %v2799, %v3171
      %v3264 = vadd.f32 %v2800, %v3174
      %v3265 = vadd.f32 %v2801, %v3179
      %v3266 = vadd.f32 %v2802, %v3182
      %v3267 = vadd.f32 %v2803, %v3187
      %v3268 = vadd.f32 %v2804, %v3190
      %v3269 = vadd.f32 %v2805, %v3195
      %v3270 = vadd.f32 %v2806, %v3198
      %v3271 = vadd.f32 %v2807, %v3203
      %v3272 = vadd.f32 %v2808, %v3206
      %v3273 = vadd.f32 %v2809, %v3211
      %v3274 = vadd.f32 %v2810, %v3214
      %v3275 = vadd.f32 %v2811, %v3219
      %v3276 = vadd.f32 %v2812, %v3222
      %v3277 = vadd.f32 %v2813, %v3227
      %v3278 = vadd.f32 %v2814, %v3230
      %v3279 = vadd.f32 %v2815, %v3235
      %v3280 = vadd.f32 %v2816, %v3238
      %v3281 = vadd.f32 %v2817, %v3243
      %v3282 = vadd.f32 %v2818, %v3246
      %v3283 = vld [vmem:[#allocation2 + $0x8] sm:$0xf0]
      %s3284 = scalar_lea.vmem %s3, 256
      %v3285 = vld [vmem:[%s3284] sm:$0xf]
      %v3286 = vld [vmem:[%s3284 + $0x4] sm:$0xf]
      %v3287 = vld [vmem:[%s3284 + $0x8] sm:$0xf]
      %v3288 = vld [vmem:[%s3284 + $0xc] sm:$0xf]
      %v3289 = vld [vmem:[%s3284 + $0x10] sm:$0xf]
      %v3290 = vld [vmem:[%s3284 + $0x14] sm:$0xf]
      %v3291 = vld [vmem:[%s3284 + $0x18] sm:$0xf]
      %v3292 = vld [vmem:[%s3284 + $0x1c] sm:$0xf]
      %v3293 = vld [vmem:[%s3284 + $0x20] sm:$0xf]
      %v3294 = vld [vmem:[%s3284 + $0x24] sm:$0xf]
      %v3295 = vld [vmem:[%s3284 + $0x28] sm:$0xf]
      %v3296 = vld [vmem:[%s3284 + $0x2c] sm:$0xf]
      %v3297 = vld [vmem:[%s3284 + $0x30] sm:$0xf]
      %v3298 = vld [vmem:[%s3284 + $0x34] sm:$0xf]
      %v3299 = vld [vmem:[%s3284 + $0x38] sm:$0xf]
      %v3300 = vld [vmem:[%s3284 + $0x3c] sm:$0xf]
      %v3319 = vrot.slane %v3283, 4
      %v3320 = vrot.slane %v2820, 4
      %v3321 = vsel %vm1615, %v3319, %v3320
      %v3322 = vrot.slane %v2821, 4
      %v3323 = vsel %vm1615, %v3320, %v3322
      %v3324 = vrot.slane %v2822, 4
      %v3325 = vsel %vm1615, %v3322, %v3324
      %v3326 = vrot.slane %v2823, 4
      %v3327 = vsel %vm1615, %v3324, %v3326
      %v3328 = vrot.slane %v2824, 4
      %v3329 = vsel %vm1615, %v3326, %v3328
      %v3330 = vrot.slane %v2825, 4
      %v3331 = vsel %vm1615, %v3328, %v3330
      %v3332 = vrot.slane %v2826, 4
      %v3333 = vsel %vm1615, %v3330, %v3332
      %v3334 = vrot.slane %v2827, 4
      %v3335 = vsel %vm1615, %v3332, %v3334
      %v3336 = vrot.slane %v2828, 4
      %v3337 = vsel %vm1615, %v3334, %v3336
      %v3338 = vrot.slane %v2829, 4
      %v3339 = vsel %vm1615, %v3336, %v3338
      %v3340 = vrot.slane %v2830, 4
      %v3341 = vsel %vm1615, %v3338, %v3340
      %v3342 = vrot.slane %v2831, 4
      %v3343 = vsel %vm1615, %v3340, %v3342
      %v3344 = vrot.slane %v2832, 4
      %v3345 = vsel %vm1615, %v3342, %v3344
      %v3346 = vrot.slane %v2833, 4
      %v3347 = vsel %vm1615, %v3344, %v3346
      %v3348 = vrot.slane %v2834, 4
      %v3349 = vsel %vm1615, %v3346, %v3348
      %v3350 = vrot.slane %v2835, 4
      %v3351 = vsel %vm1615, %v3348, %v3350
      %v3352 = vrot.slane %v2836, 4
      %v3353 = vsel %vm1615, %v3350, %v3352
      %v3387 = vunpack.c.l.b16 %v3285
      %v3388 = vunpack.c.l.b16 %v3286
      %v3389 = vunpack.c.l.b16 %v3287
      %v3390 = vunpack.c.l.b16 %v3288
      %v3391 = vunpack.c.l.b16 %v3289
      %v3392 = vunpack.c.l.b16 %v3290
      %v3393 = vunpack.c.l.b16 %v3291
      %v3394 = vunpack.c.l.b16 %v3292
      %v3395 = vunpack.c.l.b16 %v3293
      %v3396 = vunpack.c.l.b16 %v3294
      %v3397 = vunpack.c.l.b16 %v3295
      %v3398 = vunpack.c.l.b16 %v3296
      %v3399 = vunpack.c.l.b16 %v3297
      %v3400 = vunpack.c.l.b16 %v3298
      %v3401 = vunpack.c.l.b16 %v3299
      %v3402 = vunpack.c.l.b16 %v3300
      %v3403 = vpack.c.b16 %v3388, %v3387
      %v3404 = vpack.c.b16 %v3390, %v3389
      %v3405 = vpack.c.b16 %v3392, %v3391
      %v3406 = vpack.c.b16 %v3394, %v3393
      %v3407 = vpack.c.b16 %v3396, %v3395
      %v3408 = vpack.c.b16 %v3398, %v3397
      %v3409 = vpack.c.b16 %v3400, %v3399
      %v3410 = vpack.c.b16 %v3402, %v3401
      %3419 = vmatprep.subr.bf16.mxu0 0
      %3420 = vmatpush1.bf16.msra.mxu0 %v3403
      %3421 = vmatprep.subr.bf16.mxu0 0
      %3422 = vmatpush1.bf16.msra.mxu0 %v3404
      %3423 = vmatprep.subr.bf16.mxu0 0
      %3424 = vmatpush1.bf16.msra.mxu0 %v3405
      %3425 = vmatprep.subr.bf16.mxu0 0
      %3426 = vmatpush1.bf16.msra.mxu0 %v3406
      %3427 = vmatprep.subr.bf16.mxu0 0
      %3428 = vmatpush1.bf16.msra.mxu0 %v3407
      %3429 = vmatprep.subr.bf16.mxu0 0
      %3430 = vmatpush1.bf16.msra.mxu0 %v3408
      %3431 = vmatprep.subr.bf16.mxu0 0
      %3432 = vmatpush1.bf16.msra.mxu0 %v3409
      %3433 = vmatprep.subr.bf16.mxu0 0
      %3434 = vmatpush1.bf16.msra.mxu0 %v3410
      %3435 = vmatprep.subr.bf16.mxu0 0
      %3436 = vmatpush1.bf16.msra.mxu0 0
      %3437 = vmatprep.subr.bf16.mxu0 0
      %3438 = vmatpush1.bf16.msra.mxu0 0
      %3439 = vmatprep.subr.bf16.mxu0 0
      %3440 = vmatpush1.bf16.msra.mxu0 0
      %3441 = vmatprep.subr.bf16.mxu0 0
      %3442 = vmatpush1.bf16.msra.mxu0 0
      %3443 = vmatprep.subr.bf16.mxu0 0
      %3444 = vmatpush1.bf16.msra.mxu0 0
      %3445 = vmatprep.subr.bf16.mxu0 0
      %3446 = vmatpush1.bf16.msra.mxu0 0
      %3447 = vmatprep.subr.bf16.mxu0 0
      %3448 = vmatpush1.bf16.msra.mxu0 0
      %3449 = vmatprep.subr.bf16.mxu0 0
      %3450 = vmatpush1.bf16.msra.mxu0 0
      %3451 = vmatprep.mubr.bf16.mxu0 0
      %3452 = vmatmul.mubr.bf16.gmra.mrb[0].mxu0 %v3321
      %v3453 = vpop.f32.mrb[0].mxu0
      %v3454 = vadd.f32 0.0, %v3453
      %v3455 = vpop.f32.mrb[0].mxu0
      %v3456 = vpop.f32.mrb[0].mxu0
      %v3457 = vadd.f32 0.0, %v3456
      %v3458 = vpop.f32.mrb[0].mxu0
      %3459 = vmatprep.mubr.bf16.mxu0 0
      %3460 = vmatmul.mubr.bf16.gmra.mrb[0].mxu0 %v3323
      %v3461 = vpop.f32.mrb[0].mxu0
      %v3462 = vadd.f32 0.0, %v3461
      %v3463 = vpop.f32.mrb[0].mxu0
      %v3464 = vpop.f32.mrb[0].mxu0
      %v3465 = vadd.f32 0.0, %v3464
      %v3466 = vpop.f32.mrb[0].mxu0
      %3467 = vmatprep.mubr.bf16.mxu0 0
      %3468 = vmatmul.mubr.bf16.gmra.mrb[0].mxu0 %v3325
      %v3469 = vpop.f32.mrb[0].mxu0
      %v3470 = vadd.f32 0.0, %v3469
      %v3471 = vpop.f32.mrb[0].mxu0
      %v3472 = vpop.f32.mrb[0].mxu0
      %v3473 = vadd.f32 0.0, %v3472
      %v3474 = vpop.f32.mrb[0].mxu0
      %3475 = vmatprep.mubr.bf16.mxu0 0
      %3476 = vmatmul.mubr.bf16.gmra.mrb[0].mxu0 %v3327
      %v3477 = vpop.f32.mrb[0].mxu0
      %v3478 = vadd.f32 0.0, %v3477
      %v3479 = vpop.f32.mrb[0].mxu0
      %v3480 = vpop.f32.mrb[0].mxu0
      %v3481 = vadd.f32 0.0, %v3480
      %v3482 = vpop.f32.mrb[0].mxu0
      %3483 = vmatprep.mubr.bf16.mxu0 0
      %3484 = vmatmul.mubr.bf16.gmra.mrb[0].mxu0 %v3329
      %v3485 = vpop.f32.mrb[0].mxu0
      %v3486 = vadd.f32 0.0, %v3485
      %v3487 = vpop.f32.mrb[0].mxu0
      %v3488 = vpop.f32.mrb[0].mxu0
      %v3489 = vadd.f32 0.0, %v3488
      %v3490 = vpop.f32.mrb[0].mxu0
      %3491 = vmatprep.mubr.bf16.mxu0 0
      %3492 = vmatmul.mubr.bf16.gmra.mrb[0].mxu0 %v3331
      %v3493 = vpop.f32.mrb[0].mxu0
      %v3494 = vadd.f32 0.0, %v3493
      %v3495 = vpop.f32.mrb[0].mxu0
      %v3496 = vpop.f32.mrb[0].mxu0
      %v3497 = vadd.f32 0.0, %v3496
      %v3498 = vpop.f32.mrb[0].mxu0
      %3499 = vmatprep.mubr.bf16.mxu0 0
      %3500 = vmatmul.mubr.bf16.gmra.mrb[0].mxu0 %v3333
      %v3501 = vpop.f32.mrb[0].mxu0
      %v3502 = vadd.f32 0.0, %v3501
      %v3503 = vpop.f32.mrb[0].mxu0
      %v3504 = vpop.f32.mrb[0].mxu0
      %v3505 = vadd.f32 0.0, %v3504
      %v3506 = vpop.f32.mrb[0].mxu0
      %3507 = vmatprep.mubr.bf16.mxu0 0
      %3508 = vmatmul.mubr.bf16.gmra.mrb[0].mxu0 %v3335
      %v3509 = vpop.f32.mrb[0].mxu0
      %v3510 = vadd.f32 0.0, %v3509
      %v3511 = vpop.f32.mrb[0].mxu0
      %v3512 = vpop.f32.mrb[0].mxu0
      %v3513 = vadd.f32 0.0, %v3512
      %v3514 = vpop.f32.mrb[0].mxu0
      %3515 = vmatprep.mubr.bf16.mxu0 0
      %3516 = vmatmul.mubr.bf16.gmra.mrb[0].mxu0 %v3337
      %v3517 = vpop.f32.mrb[0].mxu0
      %v3518 = vadd.f32 0.0, %v3517
      %v3519 = vpop.f32.mrb[0].mxu0
      %v3520 = vpop.f32.mrb[0].mxu0
      %v3521 = vadd.f32 0.0, %v3520
      %v3522 = vpop.f32.mrb[0].mxu0
      %3523 = vmatprep.mubr.bf16.mxu0 0
      %3524 = vmatmul.mubr.bf16.gmra.mrb[0].mxu0 %v3339
      %v3525 = vpop.f32.mrb[0].mxu0
      %v3526 = vadd.f32 0.0, %v3525
      %v3527 = vpop.f32.mrb[0].mxu0
      %v3528 = vpop.f32.mrb[0].mxu0
      %v3529 = vadd.f32 0.0, %v3528
      %v3530 = vpop.f32.mrb[0].mxu0
      %3531 = vmatprep.mubr.bf16.mxu0 0
      %3532 = vmatmul.mubr.bf16.gmra.mrb[0].mxu0 %v3341
      %v3533 = vpop.f32.mrb[0].mxu0
      %v3534 = vadd.f32 0.0, %v3533
      %v3535 = vpop.f32.mrb[0].mxu0
      %v3536 = vpop.f32.mrb[0].mxu0
      %v3537 = vadd.f32 0.0, %v3536
      %v3538 = vpop.f32.mrb[0].mxu0
      %3539 = vmatprep.mubr.bf16.mxu0 0
      %3540 = vmatmul.mubr.bf16.gmra.mrb[0].mxu0 %v3343
      %v3541 = vpop.f32.mrb[0].mxu0
      %v3542 = vadd.f32 0.0, %v3541
      %v3543 = vpop.f32.mrb[0].mxu0
      %v3544 = vpop.f32.mrb[0].mxu0
      %v3545 = vadd.f32 0.0, %v3544
      %v3546 = vpop.f32.mrb[0].mxu0
      %3547 = vmatprep.mubr.bf16.mxu0 0
      %3548 = vmatmul.mubr.bf16.gmra.mrb[0].mxu0 %v3345
      %v3549 = vpop.f32.mrb[0].mxu0
      %v3550 = vadd.f32 0.0, %v3549
      %v3551 = vpop.f32.mrb[0].mxu0
      %v3552 = vpop.f32.mrb[0].mxu0
      %v3553 = vadd.f32 0.0, %v3552
      %v3554 = vpop.f32.mrb[0].mxu0
      %3555 = vmatprep.mubr.bf16.mxu0 0
      %3556 = vmatmul.mubr.bf16.gmra.mrb[0].mxu0 %v3347
      %v3557 = vpop.f32.mrb[0].mxu0
      %v3558 = vadd.f32 0.0, %v3557
      %v3559 = vpop.f32.mrb[0].mxu0
      %v3560 = vpop.f32.mrb[0].mxu0
      %v3561 = vadd.f32 0.0, %v3560
      %v3562 = vpop.f32.mrb[0].mxu0
      %3563 = vmatprep.mubr.bf16.mxu0 0
      %3564 = vmatmul.mubr.bf16.gmra.mrb[0].mxu0 %v3349
      %v3565 = vpop.f32.mrb[0].mxu0
      %v3566 = vadd.f32 0.0, %v3565
      %v3567 = vpop.f32.mrb[0].mxu0
      %v3568 = vpop.f32.mrb[0].mxu0
      %v3569 = vadd.f32 0.0, %v3568
      %v3570 = vpop.f32.mrb[0].mxu0
      %3571 = vmatprep.mubr.bf16.mxu0 0
      %3572 = vmatmul.mubr.bf16.gmra.mrb[0].mxu0 %v3351
      %v3573 = vpop.f32.mrb[0].mxu0
      %v3574 = vadd.f32 0.0, %v3573
      %v3575 = vpop.f32.mrb[0].mxu0
      %v3576 = vpop.f32.mrb[0].mxu0
      %v3577 = vadd.f32 0.0, %v3576
      %v3578 = vpop.f32.mrb[0].mxu0
      %3579 = vmatprep.mubr.bf16.mxu0 0
      %3580 = vmatmul.mubr.bf16.gmra.mrb[0].mxu0 %v3353
      %v3581 = vpop.f32.mrb[0].mxu0
      %v3582 = vadd.f32 0.0, %v3581
      %v3583 = vpop.f32.mrb[0].mxu0
      %v3584 = vpop.f32.mrb[0].mxu0
      %v3585 = vadd.f32 0.0, %v3584
      %v3586 = vpop.f32.mrb[0].mxu0
      %3587 = vdwg.mxu0
      %v3588 = vadd.f32 %v3249, %v3454
      %v3589 = vadd.f32 %v3250, %v3457
      %v3590 = vadd.f32 %v3251, %v3462
      %v3591 = vadd.f32 %v3252, %v3465
      %v3592 = vadd.f32 %v3253, %v3470
      %v3593 = vadd.f32 %v3254, %v3473
      %v3594 = vadd.f32 %v3255, %v3478
      %v3595 = vadd.f32 %v3256, %v3481
      %v3596 = vadd.f32 %v3257, %v3486
      %v3597 = vadd.f32 %v3258, %v3489
      %v3598 = vadd.f32 %v3259, %v3494
      %v3599 = vadd.f32 %v3260, %v3497
      %v3600 = vadd.f32 %v3261, %v3502
      %v3601 = vadd.f32 %v3262, %v3505
      %v3602 = vadd.f32 %v3263, %v3510
      %v3603 = vadd.f32 %v3264, %v3513
      %v3604 = vadd.f32 %v3265, %v3518
      %v3605 = vadd.f32 %v3266, %v3521
      %v3606 = vadd.f32 %v3267, %v3526
      %v3607 = vadd.f32 %v3268, %v3529
      %v3608 = vadd.f32 %v3269, %v3534
      %v3609 = vadd.f32 %v3270, %v3537
      %v3610 = vadd.f32 %v3271, %v3542
      %v3611 = vadd.f32 %v3272, %v3545
      %v3612 = vadd.f32 %v3273, %v3550
      %v3613 = vadd.f32 %v3274, %v3553
      %v3614 = vadd.f32 %v3275, %v3558
      %v3615 = vadd.f32 %v3276, %v3561
      %v3616 = vadd.f32 %v3277, %v3566
      %v3617 = vadd.f32 %v3278, %v3569
      %v3618 = vadd.f32 %v3279, %v3574
      %v3619 = vadd.f32 %v3280, %v3577
      %v3620 = vadd.f32 %v3281, %v3582
      %v3621 = vadd.f32 %v3282, %v3585
      %v3622 = vld [vmem:[#allocation2 + $0x90] sm:$0x1f]
      %s3623 = scalar_lea.vmem %s3, 320
      %v3624 = vld [vmem:[%s3623] sm:$0xf]
      %v3625 = vld [vmem:[%s3623 + $0x4] sm:$0xf]
      %v3626 = vld [vmem:[%s3623 + $0x8] sm:$0xf]
      %v3627 = vld [vmem:[%s3623 + $0xc] sm:$0xf]
      %v3628 = vld [vmem:[%s3623 + $0x10] sm:$0xf]
      %v3629 = vld [vmem:[%s3623 + $0x14] sm:$0xf]
      %v3630 = vld [vmem:[%s3623 + $0x18] sm:$0xf]
      %v3631 = vld [vmem:[%s3623 + $0x1c] sm:$0xf]
      %v3632 = vld [vmem:[%s3623 + $0x20] sm:$0xf]
      %v3633 = vld [vmem:[%s3623 + $0x24] sm:$0xf]
      %v3634 = vld [vmem:[%s3623 + $0x28] sm:$0xf]
      %v3635 = vld [vmem:[%s3623 + $0x2c] sm:$0xf]
      %v3636 = vld [vmem:[%s3623 + $0x30] sm:$0xf]
      %v3637 = vld [vmem:[%s3623 + $0x34] sm:$0xf]
      %v3638 = vld [vmem:[%s3623 + $0x38] sm:$0xf]
      %v3639 = vld [vmem:[%s3623 + $0x3c] sm:$0xf]
      %vm3640 = vsmask.f32 3328
      %v3642 = vshrl.u32 %v3283, 16
      %v3644 = vrot.slane %v3642, 4
      %v3645 = vshll.u32 %v3283, 16
      %v3647 = vrot.slane %v3645, 5
      %v3648 = vor.u32 %v3644, %v3647
      %v3649 = vrot.slane %v2863, 4
      %v3650 = vrot.slane %v2866, 5
      %v3651 = vor.u32 %v3649, %v3650
      %v3652 = vsel %vm3640, %v3648, %v3651
      %v3653 = vrot.slane %v2872, 4
      %v3654 = vrot.slane %v2875, 5
      %v3655 = vor.u32 %v3653, %v3654
      %v3656 = vsel %vm3640, %v3651, %v3655
      %v3657 = vrot.slane %v2881, 4
      %v3658 = vrot.slane %v2884, 5
      %v3659 = vor.u32 %v3657, %v3658
      %v3660 = vsel %vm3640, %v3655, %v3659
      %v3661 = vrot.slane %v2890, 4
      %v3662 = vrot.slane %v2893, 5
      %v3663 = vor.u32 %v3661, %v3662
      %v3664 = vsel %vm3640, %v3659, %v3663
      %v3665 = vrot.slane %v2899, 4
      %v3666 = vrot.slane %v2902, 5
      %v3667 = vor.u32 %v3665, %v3666
      %v3668 = vsel %vm3640, %v3663, %v3667
      %v3669 = vrot.slane %v2908, 4
      %v3670 = vrot.slane %v2911, 5
      %v3671 = vor.u32 %v3669, %v3670
      %v3672 = vsel %vm3640, %v3667, %v3671
      %v3673 = vrot.slane %v2917, 4
      %v3674 = vrot.slane %v2920, 5
      %v3675 = vor.u32 %v3673, %v3674
      %v3676 = vsel %vm3640, %v3671, %v3675
      %v3677 = vrot.slane %v2926, 4
      %v3678 = vrot.slane %v2929, 5
      %v3679 = vor.u32 %v3677, %v3678
      %v3680 = vsel %vm3640, %v3675, %v3679
      %v3681 = vrot.slane %v2935, 4
      %v3682 = vrot.slane %v2938, 5
      %v3683 = vor.u32 %v3681, %v3682
      %v3684 = vsel %vm3640, %v3679, %v3683
      %v3685 = vrot.slane %v2944, 4
      %v3686 = vrot.slane %v2947, 5
      %v3687 = vor.u32 %v3685, %v3686
      %v3688 = vsel %vm3640, %v3683, %v3687
      %v3689 = vrot.slane %v2953, 4
      %v3690 = vrot.slane %v2956, 5
      %v3691 = vor.u32 %v3689, %v3690
      %v3692 = vsel %vm3640, %v3687, %v3691
      %v3693 = vrot.slane %v2962, 4
      %v3694 = vrot.slane %v2965, 5
      %v3695 = vor.u32 %v3693, %v3694
      %v3696 = vsel %vm3640, %v3691, %v3695
      %v3697 = vrot.slane %v2971, 4
      %v3698 = vrot.slane %v2974, 5
      %v3699 = vor.u32 %v3697, %v3698
      %v3700 = vsel %vm3640, %v3695, %v3699
      %v3701 = vrot.slane %v2980, 4
      %v3702 = vrot.slane %v2983, 5
      %v3703 = vor.u32 %v3701, %v3702
      %v3704 = vsel %vm3640, %v3699, %v3703
      %v3705 = vrot.slane %v2989, 4
      %v3706 = vrot.slane %v2992, 5
      %v3707 = vor.u32 %v3705, %v3706
      %v3708 = vsel %vm3640, %v3703, %v3707
      %v3709 = vrot.slane %v2998, 4
      %v3710 = vrot.slane %v3001, 5
      %v3711 = vor.u32 %v3709, %v3710
      %v3712 = vsel %vm3640, %v3707, %v3711
      %v3714 = vshrl.u32 %v3622, 16
      %v3716 = vrot.slane %v3714, 4
      %v3717 = vshll.u32 %v3622, 16
      %v3719 = vrot.slane %v3717, 5
      %v3720 = vor.u32 %v3716, %v3719
      %v3721 = vsel %vm3640, %v3711, %v3720
      %v3755 = vunpack.c.l.b16 %v3624
      %v3756 = vunpack.c.l.b16 %v3625
      %v3757 = vunpack.c.l.b16 %v3626
      %v3758 = vunpack.c.l.b16 %v3627
      %v3759 = vunpack.c.l.b16 %v3628
      %v3760 = vunpack.c.l.b16 %v3629
      %v3761 = vunpack.c.l.b16 %v3630
      %v3762 = vunpack.c.l.b16 %v3631
      %v3763 = vunpack.c.l.b16 %v3632
      %v3764 = vunpack.c.l.b16 %v3633
      %v3765 = vunpack.c.l.b16 %v3634
      %v3766 = vunpack.c.l.b16 %v3635
      %v3767 = vunpack.c.l.b16 %v3636
      %v3768 = vunpack.c.l.b16 %v3637
      %v3769 = vunpack.c.l.b16 %v3638
      %v3770 = vunpack.c.l.b16 %v3639
      %v3771 = vpack.c.b16 %v3756, %v3755
      %v3772 = vpack.c.b16 %v3758, %v3757
      %v3773 = vpack.c.b16 %v3760, %v3759
      %v3774 = vpack.c.b16 %v3762, %v3761
      %v3775 = vpack.c.b16 %v3764, %v3763
      %v3776 = vpack.c.b16 %v3766, %v3765
      %v3777 = vpack.c.b16 %v3768, %v3767
      %v3778 = vpack.c.b16 %v3770, %v3769
      %3787 = vmatprep.subr.bf16.mxu0 0
      %3788 = vmatpush1.bf16.msra.mxu0 %v3771
      %3789 = vmatprep.subr.bf16.mxu0 0
      %3790 = vmatpush1.bf16.msra.mxu0 %v3772
      %3791 = vmatprep.subr.bf16.mxu0 0
      %3792 = vmatpush1.bf16.msra.mxu0 %v3773
      %3793 = vmatprep.subr.bf16.mxu0 0
      %3794 = vmatpush1.bf16.msra.mxu0 %v3774
      %3795 = vmatprep.subr.bf16.mxu0 0
      %3796 = vmatpush1.bf16.msra.mxu0 %v3775
      %3797 = vmatprep.subr.bf16.mxu0 0
      %3798 = vmatpush1.bf16.msra.mxu0 %v3776
      %3799 = vmatprep.subr.bf16.mxu0 0
      %3800 = vmatpush1.bf16.msra.mxu0 %v3777
      %3801 = vmatprep.subr.bf16.mxu0 0
      %3802 = vmatpush1.bf16.msra.mxu0 %v3778
      %3803 = vmatprep.subr.bf16.mxu0 0
      %3804 = vmatpush1.bf16.msra.mxu0 0
      %3805 = vmatprep.subr.bf16.mxu0 0
      %3806 = vmatpush1.bf16.msra.mxu0 0
      %3807 = vmatprep.subr.bf16.mxu0 0
      %3808 = vmatpush1.bf16.msra.mxu0 0
      %3809 = vmatprep.subr.bf16.mxu0 0
      %3810 = vmatpush1.bf16.msra.mxu0 0
      %3811 = vmatprep.subr.bf16.mxu0 0
      %3812 = vmatpush1.bf16.msra.mxu0 0
      %3813 = vmatprep.subr.bf16.mxu0 0
      %3814 = vmatpush1.bf16.msra.mxu0 0
      %3815 = vmatprep.subr.bf16.mxu0 0
      %3816 = vmatpush1.bf16.msra.mxu0 0
      %3817 = vmatprep.subr.bf16.mxu0 0
      %3818 = vmatpush1.bf16.msra.mxu0 0
      %3819 = vmatprep.mubr.bf16.mxu0 0
      %3820 = vmatmul.mubr.bf16.gmra.mrb[0].mxu0 %v3652
      %v3821 = vpop.f32.mrb[0].mxu0
      %v3822 = vadd.f32 0.0, %v3821
      %v3823 = vpop.f32.mrb[0].mxu0
      %v3824 = vpop.f32.mrb[0].mxu0
      %v3825 = vadd.f32 0.0, %v3824
      %v3826 = vpop.f32.mrb[0].mxu0
      %3827 = vmatprep.mubr.bf16.mxu0 0
      %3828 = vmatmul.mubr.bf16.gmra.mrb[0].mxu0 %v3656
      %v3829 = vpop.f32.mrb[0].mxu0
      %v3830 = vadd.f32 0.0, %v3829
      %v3831 = vpop.f32.mrb[0].mxu0
      %v3832 = vpop.f32.mrb[0].mxu0
      %v3833 = vadd.f32 0.0, %v3832
      %v3834 = vpop.f32.mrb[0].mxu0
      %3835 = vmatprep.mubr.bf16.mxu0 0
      %3836 = vmatmul.mubr.bf16.gmra.mrb[0].mxu0 %v3660
      %v3837 = vpop.f32.mrb[0].mxu0
      %v3838 = vadd.f32 0.0, %v3837
      %v3839 = vpop.f32.mrb[0].mxu0
      %v3840 = vpop.f32.mrb[0].mxu0
      %v3841 = vadd.f32 0.0, %v3840
      %v3842 = vpop.f32.mrb[0].mxu0
      %3843 = vmatprep.mubr.bf16.mxu0 0
      %3844 = vmatmul.mubr.bf16.gmra.mrb[0].mxu0 %v3664
      %v3845 = vpop.f32.mrb[0].mxu0
      %v3846 = vadd.f32 0.0, %v3845
      %v3847 = vpop.f32.mrb[0].mxu0
      %v3848 = vpop.f32.mrb[0].mxu0
      %v3849 = vadd.f32 0.0, %v3848
      %v3850 = vpop.f32.mrb[0].mxu0
      %3851 = vmatprep.mubr.bf16.mxu0 0
      %3852 = vmatmul.mubr.bf16.gmra.mrb[0].mxu0 %v3668
      %v3853 = vpop.f32.mrb[0].mxu0
      %v3854 = vadd.f32 0.0, %v3853
      %v3855 = vpop.f32.mrb[0].mxu0
      %v3856 = vpop.f32.mrb[0].mxu0
      %v3857 = vadd.f32 0.0, %v3856
      %v3858 = vpop.f32.mrb[0].mxu0
      %3859 = vmatprep.mubr.bf16.mxu0 0
      %3860 = vmatmul.mubr.bf16.gmra.mrb[0].mxu0 %v3672
      %v3861 = vpop.f32.mrb[0].mxu0
      %v3862 = vadd.f32 0.0, %v3861
      %v3863 = vpop.f32.mrb[0].mxu0
      %v3864 = vpop.f32.mrb[0].mxu0
      %v3865 = vadd.f32 0.0, %v3864
      %v3866 = vpop.f32.mrb[0].mxu0
      %3867 = vmatprep.mubr.bf16.mxu0 0
      %3868 = vmatmul.mubr.bf16.gmra.mrb[0].mxu0 %v3676
      %v3869 = vpop.f32.mrb[0].mxu0
      %v3870 = vadd.f32 0.0, %v3869
      %v3871 = vpop.f32.mrb[0].mxu0
      %v3872 = vpop.f32.mrb[0].mxu0
      %v3873 = vadd.f32 0.0, %v3872
      %v3874 = vpop.f32.mrb[0].mxu0
      %3875 = vmatprep.mubr.bf16.mxu0 0
      %3876 = vmatmul.mubr.bf16.gmra.mrb[0].mxu0 %v3680
      %v3877 = vpop.f32.mrb[0].mxu0
      %v3878 = vadd.f32 0.0, %v3877
      %v3879 = vpop.f32.mrb[0].mxu0
      %v3880 = vpop.f32.mrb[0].mxu0
      %v3881 = vadd.f32 0.0, %v3880
      %v3882 = vpop.f32.mrb[0].mxu0
      %3883 = vmatprep.mubr.bf16.mxu0 0
      %3884 = vmatmul.mubr.bf16.gmra.mrb[0].mxu0 %v3684
      %v3885 = vpop.f32.mrb[0].mxu0
      %v3886 = vadd.f32 0.0, %v3885
      %v3887 = vpop.f32.mrb[0].mxu0
      %v3888 = vpop.f32.mrb[0].mxu0
      %v3889 = vadd.f32 0.0, %v3888
      %v3890 = vpop.f32.mrb[0].mxu0
      %3891 = vmatprep.mubr.bf16.mxu0 0
      %3892 = vmatmul.mubr.bf16.gmra.mrb[0].mxu0 %v3688
      %v3893 = vpop.f32.mrb[0].mxu0
      %v3894 = vadd.f32 0.0, %v3893
      %v3895 = vpop.f32.mrb[0].mxu0
      %v3896 = vpop.f32.mrb[0].mxu0
      %v3897 = vadd.f32 0.0, %v3896
      %v3898 = vpop.f32.mrb[0].mxu0
      %3899 = vmatprep.mubr.bf16.mxu0 0
      %3900 = vmatmul.mubr.bf16.gmra.mrb[0].mxu0 %v3692
      %v3901 = vpop.f32.mrb[0].mxu0
      %v3902 = vadd.f32 0.0, %v3901
      %v3903 = vpop.f32.mrb[0].mxu0
      %v3904 = vpop.f32.mrb[0].mxu0
      %v3905 = vadd.f32 0.0, %v3904
      %v3906 = vpop.f32.mrb[0].mxu0
      %3907 = vmatprep.mubr.bf16.mxu0 0
      %3908 = vmatmul.mubr.bf16.gmra.mrb[0].mxu0 %v3696
      %v3909 = vpop.f32.mrb[0].mxu0
      %v3910 = vadd.f32 0.0, %v3909
      %v3911 = vpop.f32.mrb[0].mxu0
      %v3912 = vpop.f32.mrb[0].mxu0
      %v3913 = vadd.f32 0.0, %v3912
      %v3914 = vpop.f32.mrb[0].mxu0
      %3915 = vmatprep.mubr.bf16.mxu0 0
      %3916 = vmatmul.mubr.bf16.gmra.mrb[0].mxu0 %v3700
      %v3917 = vpop.f32.mrb[0].mxu0
      %v3918 = vadd.f32 0.0, %v3917
      %v3919 = vpop.f32.mrb[0].mxu0
      %v3920 = vpop.f32.mrb[0].mxu0
      %v3921 = vadd.f32 0.0, %v3920
      %v3922 = vpop.f32.mrb[0].mxu0
      %3923 = vmatprep.mubr.bf16.mxu0 0
      %3924 = vmatmul.mubr.bf16.gmra.mrb[0].mxu0 %v3704
      %v3925 = vpop.f32.mrb[0].mxu0
      %v3926 = vadd.f32 0.0, %v3925
      %v3927 = vpop.f32.mrb[0].mxu0
      %v3928 = vpop.f32.mrb[0].mxu0
      %v3929 = vadd.f32 0.0, %v3928
      %v3930 = vpop.f32.mrb[0].mxu0
      %3931 = vmatprep.mubr.bf16.mxu0 0
      %3932 = vmatmul.mubr.bf16.gmra.mrb[0].mxu0 %v3708
      %v3933 = vpop.f32.mrb[0].mxu0
      %v3934 = vadd.f32 0.0, %v3933
      %v3935 = vpop.f32.mrb[0].mxu0
      %v3936 = vpop.f32.mrb[0].mxu0
      %v3937 = vadd.f32 0.0, %v3936
      %v3938 = vpop.f32.mrb[0].mxu0
      %3939 = vmatprep.mubr.bf16.mxu0 0
      %3940 = vmatmul.mubr.bf16.gmra.mrb[0].mxu0 %v3712
      %v3941 = vpop.f32.mrb[0].mxu0
      %v3942 = vadd.f32 0.0, %v3941
      %v3943 = vpop.f32.mrb[0].mxu0
      %v3944 = vpop.f32.mrb[0].mxu0
      %v3945 = vadd.f32 0.0, %v3944
      %v3946 = vpop.f32.mrb[0].mxu0
      %3947 = vmatprep.mubr.bf16.mxu0 0
      %3948 = vmatmul.mubr.bf16.gmra.mrb[0].mxu0 %v3721
      %v3949 = vpop.f32.mrb[0].mxu0
      %v3950 = vadd.f32 0.0, %v3949
      %v3951 = vpop.f32.mrb[0].mxu0
      %v3952 = vpop.f32.mrb[0].mxu0
      %v3953 = vadd.f32 0.0, %v3952
      %v3954 = vpop.f32.mrb[0].mxu0
      %3955 = vdwg.mxu0
      %v3956 = vadd.f32 %v3588, %v3822
      %v3957 = vadd.f32 %v3589, %v3825
      %v3958 = vadd.f32 %v3590, %v3830
      %v3959 = vadd.f32 %v3591, %v3833
      %v3960 = vadd.f32 %v3592, %v3838
      %v3961 = vadd.f32 %v3593, %v3841
      %v3962 = vadd.f32 %v3594, %v3846
      %v3963 = vadd.f32 %v3595, %v3849
      %v3964 = vadd.f32 %v3596, %v3854
      %v3965 = vadd.f32 %v3597, %v3857
      %v3966 = vadd.f32 %v3598, %v3862
      %v3967 = vadd.f32 %v3599, %v3865
      %v3968 = vadd.f32 %v3600, %v3870
      %v3969 = vadd.f32 %v3601, %v3873
      %v3970 = vadd.f32 %v3602, %v3878
      %v3971 = vadd.f32 %v3603, %v3881
      %v3972 = vadd.f32 %v3604, %v3886
      %v3973 = vadd.f32 %v3605, %v3889
      %v3974 = vadd.f32 %v3606, %v3894
      %v3975 = vadd.f32 %v3607, %v3897
      %v3976 = vadd.f32 %v3608, %v3902
      %v3977 = vadd.f32 %v3609, %v3905
      %v3978 = vadd.f32 %v3610, %v3910
      %v3979 = vadd.f32 %v3611, %v3913
      %v3980 = vadd.f32 %v3612, %v3918
      %v3981 = vadd.f32 %v3613, %v3921
      %v3982 = vadd.f32 %v3614, %v3926
      %v3983 = vadd.f32 %v3615, %v3929
      %v3984 = vadd.f32 %v3616, %v3934
      %v3985 = vadd.f32 %v3617, %v3937
      %v3986 = vadd.f32 %v3618, %v3942
      %v3987 = vadd.f32 %v3619, %v3945
      %v3988 = vadd.f32 %v3620, %v3950
      %v3989 = vadd.f32 %v3621, %v3953
      %v3990 = vld [vmem:[#allocation2 + $0x10] sm:$0xf0]
      %v3991 = vld [vmem:[#allocation2 + $0x18] sm:$0xff]
      %v3992 = vld [vmem:[#allocation2 + $0x20] sm:$0xff]
      %v3993 = vld [vmem:[#allocation2 + $0x28] sm:$0xff]
      %v3994 = vld [vmem:[#allocation2 + $0x30] sm:$0xff]
      %v3995 = vld [vmem:[#allocation2 + $0x38] sm:$0xff]
      %v3996 = vld [vmem:[#allocation2 + $0x40] sm:$0xff]
      %v3997 = vld [vmem:[#allocation2 + $0x48] sm:$0xff]
      %v3998 = vld [vmem:[#allocation2 + $0x50] sm:$0xff]
      %v3999 = vld [vmem:[#allocation2 + $0x58] sm:$0xff]
      %v4000 = vld [vmem:[#allocation2 + $0x60] sm:$0xff]
      %v4001 = vld [vmem:[#allocation2 + $0x68] sm:$0xff]
      %v4002 = vld [vmem:[#allocation2 + $0x70] sm:$0xff]
      %v4003 = vld [vmem:[#allocation2 + $0x78] sm:$0xff]
      %v4004 = vld [vmem:[#allocation2 + $0x80] sm:$0xff]
      %v4005 = vld [vmem:[#allocation2 + $0x88] sm:$0xff]
      %v4006 = vld [vmem:[#allocation2 + $0x90] sm:$0xff]
      %v4007 = vld [vmem:[#allocation2 + $0x98] sm:$0xf]
      %s4008 = scalar_lea.vmem %s3, 384
      %v4009 = vld [vmem:[%s4008] sm:$0xf]
      %v4010 = vld [vmem:[%s4008 + $0x4] sm:$0xf]
      %v4011 = vld [vmem:[%s4008 + $0x8] sm:$0xf]
      %v4012 = vld [vmem:[%s4008 + $0xc] sm:$0xf]
      %v4013 = vld [vmem:[%s4008 + $0x10] sm:$0xf]
      %v4014 = vld [vmem:[%s4008 + $0x14] sm:$0xf]
      %v4015 = vld [vmem:[%s4008 + $0x18] sm:$0xf]
      %v4016 = vld [vmem:[%s4008 + $0x1c] sm:$0xf]
      %v4017 = vld [vmem:[%s4008 + $0x20] sm:$0xf]
      %v4018 = vld [vmem:[%s4008 + $0x24] sm:$0xf]
      %v4019 = vld [vmem:[%s4008 + $0x28] sm:$0xf]
      %v4020 = vld [vmem:[%s4008 + $0x2c] sm:$0xf]
      %v4021 = vld [vmem:[%s4008 + $0x30] sm:$0xf]
      %v4022 = vld [vmem:[%s4008 + $0x34] sm:$0xf]
      %v4023 = vld [vmem:[%s4008 + $0x38] sm:$0xf]
      %v4024 = vld [vmem:[%s4008 + $0x3c] sm:$0xf]
      %v4043 = vrot.slane %v3990, 4
      %v4044 = vrot.slane %v3991, 4
      %v4045 = vsel %vm1615, %v4043, %v4044
      %v4046 = vrot.slane %v3992, 4
      %v4047 = vsel %vm1615, %v4044, %v4046
      %v4048 = vrot.slane %v3993, 4
      %v4049 = vsel %vm1615, %v4046, %v4048
      %v4050 = vrot.slane %v3994, 4
      %v4051 = vsel %vm1615, %v4048, %v4050
      %v4052 = vrot.slane %v3995, 4
      %v4053 = vsel %vm1615, %v4050, %v4052
      %v4054 = vrot.slane %v3996, 4
      %v4055 = vsel %vm1615, %v4052, %v4054
      %v4056 = vrot.slane %v3997, 4
      %v4057 = vsel %vm1615, %v4054, %v4056
      %v4058 = vrot.slane %v3998, 4
      %v4059 = vsel %vm1615, %v4056, %v4058
      %v4060 = vrot.slane %v3999, 4
      %v4061 = vsel %vm1615, %v4058, %v4060
      %v4062 = vrot.slane %v4000, 4
      %v4063 = vsel %vm1615, %v4060, %v4062
      %v4064 = vrot.slane %v4001, 4
      %v4065 = vsel %vm1615, %v4062, %v4064
      %v4066 = vrot.slane %v4002, 4
      %v4067 = vsel %vm1615, %v4064, %v4066
      %v4068 = vrot.slane %v4003, 4
      %v4069 = vsel %vm1615, %v4066, %v4068
      %v4070 = vrot.slane %v4004, 4
      %v4071 = vsel %vm1615, %v4068, %v4070
      %v4072 = vrot.slane %v4005, 4
      %v4073 = vsel %vm1615, %v4070, %v4072
      %v4074 = vrot.slane %v4006, 4
      %v4075 = vsel %vm1615, %v4072, %v4074
      %v4076 = vrot.slane %v4007, 4
      %v4077 = vsel %vm1615, %v4074, %v4076
      %v4111 = vunpack.c.l.b16 %v4009
      %v4112 = vunpack.c.l.b16 %v4010
      %v4113 = vunpack.c.l.b16 %v4011
      %v4114 = vunpack.c.l.b16 %v4012
      %v4115 = vunpack.c.l.b16 %v4013
      %v4116 = vunpack.c.l.b16 %v4014
      %v4117 = vunpack.c.l.b16 %v4015
      %v4118 = vunpack.c.l.b16 %v4016
      %v4119 = vunpack.c.l.b16 %v4017
      %v4120 = vunpack.c.l.b16 %v4018
      %v4121 = vunpack.c.l.b16 %v4019
      %v4122 = vunpack.c.l.b16 %v4020
      %v4123 = vunpack.c.l.b16 %v4021
      %v4124 = vunpack.c.l.b16 %v4022
      %v4125 = vunpack.c.l.b16 %v4023
      %v4126 = vunpack.c.l.b16 %v4024
      %v4127 = vpack.c.b16 %v4112, %v4111
      %v4128 = vpack.c.b16 %v4114, %v4113
      %v4129 = vpack.c.b16 %v4116, %v4115
      %v4130 = vpack.c.b16 %v4118, %v4117
      %v4131 = vpack.c.b16 %v4120, %v4119
      %v4132 = vpack.c.b16 %v4122, %v4121
      %v4133 = vpack.c.b16 %v4124, %v4123
      %v4134 = vpack.c.b16 %v4126, %v4125
      %4143 = vmatprep.subr.bf16.mxu0 0
      %4144 = vmatpush1.bf16.msra.mxu0 %v4127
      %4145 = vmatprep.subr.bf16.mxu0 0
      %4146 = vmatpush1.bf16.msra.mxu0 %v4128
      %4147 = vmatprep.subr.bf16.mxu0 0
      %4148 = vmatpush1.bf16.msra.mxu0 %v4129
      %4149 = vmatprep.subr.bf16.mxu0 0
      %4150 = vmatpush1.bf16.msra.mxu0 %v4130
      %4151 = vmatprep.subr.bf16.mxu0 0
      %4152 = vmatpush1.bf16.msra.mxu0 %v4131
      %4153 = vmatprep.subr.bf16.mxu0 0
      %4154 = vmatpush1.bf16.msra.mxu0 %v4132
      %4155 = vmatprep.subr.bf16.mxu0 0
      %4156 = vmatpush1.bf16.msra.mxu0 %v4133
      %4157 = vmatprep.subr.bf16.mxu0 0
      %4158 = vmatpush1.bf16.msra.mxu0 %v4134
      %4159 = vmatprep.subr.bf16.mxu0 0
      %4160 = vmatpush1.bf16.msra.mxu0 0
      %4161 = vmatprep.subr.bf16.mxu0 0
      %4162 = vmatpush1.bf16.msra.mxu0 0
      %4163 = vmatprep.subr.bf16.mxu0 0
      %4164 = vmatpush1.bf16.msra.mxu0 0
      %4165 = vmatprep.subr.bf16.mxu0 0
      %4166 = vmatpush1.bf16.msra.mxu0 0
      %4167 = vmatprep.subr.bf16.mxu0 0
      %4168 = vmatpush1.bf16.msra.mxu0 0
      %4169 = vmatprep.subr.bf16.mxu0 0
      %4170 = vmatpush1.bf16.msra.mxu0 0
      %4171 = vmatprep.subr.bf16.mxu0 0
      %4172 = vmatpush1.bf16.msra.mxu0 0
      %4173 = vmatprep.subr.bf16.mxu0 0
      %4174 = vmatpush1.bf16.msra.mxu0 0
      %4175 = vmatprep.mubr.bf16.mxu0 0
      %4176 = vmatmul.mubr.bf16.gmra.mrb[0].mxu0 %v4045
      %v4177 = vpop.f32.mrb[0].mxu0
      %v4178 = vadd.f32 0.0, %v4177
      %v4179 = vpop.f32.mrb[0].mxu0
      %v4180 = vpop.f32.mrb[0].mxu0
      %v4181 = vadd.f32 0.0, %v4180
      %v4182 = vpop.f32.mrb[0].mxu0
      %4183 = vmatprep.mubr.bf16.mxu0 0
      %4184 = vmatmul.mubr.bf16.gmra.mrb[0].mxu0 %v4047
      %v4185 = vpop.f32.mrb[0].mxu0
      %v4186 = vadd.f32 0.0, %v4185
      %v4187 = vpop.f32.mrb[0].mxu0
      %v4188 = vpop.f32.mrb[0].mxu0
      %v4189 = vadd.f32 0.0, %v4188
      %v4190 = vpop.f32.mrb[0].mxu0
      %4191 = vmatprep.mubr.bf16.mxu0 0
      %4192 = vmatmul.mubr.bf16.gmra.mrb[0].mxu0 %v4049
      %v4193 = vpop.f32.mrb[0].mxu0
      %v4194 = vadd.f32 0.0, %v4193
      %v4195 = vpop.f32.mrb[0].mxu0
      %v4196 = vpop.f32.mrb[0].mxu0
      %v4197 = vadd.f32 0.0, %v4196
      %v4198 = vpop.f32.mrb[0].mxu0
      %4199 = vmatprep.mubr.bf16.mxu0 0
      %4200 = vmatmul.mubr.bf16.gmra.mrb[0].mxu0 %v4051
      %v4201 = vpop.f32.mrb[0].mxu0
      %v4202 = vadd.f32 0.0, %v4201
      %v4203 = vpop.f32.mrb[0].mxu0
      %v4204 = vpop.f32.mrb[0].mxu0
      %v4205 = vadd.f32 0.0, %v4204
      %v4206 = vpop.f32.mrb[0].mxu0
      %4207 = vmatprep.mubr.bf16.mxu0 0
      %4208 = vmatmul.mubr.bf16.gmra.mrb[0].mxu0 %v4053
      %v4209 = vpop.f32.mrb[0].mxu0
      %v4210 = vadd.f32 0.0, %v4209
      %v4211 = vpop.f32.mrb[0].mxu0
      %v4212 = vpop.f32.mrb[0].mxu0
      %v4213 = vadd.f32 0.0, %v4212
      %v4214 = vpop.f32.mrb[0].mxu0
      %4215 = vmatprep.mubr.bf16.mxu0 0
      %4216 = vmatmul.mubr.bf16.gmra.mrb[0].mxu0 %v4055
      %v4217 = vpop.f32.mrb[0].mxu0
      %v4218 = vadd.f32 0.0, %v4217
      %v4219 = vpop.f32.mrb[0].mxu0
      %v4220 = vpop.f32.mrb[0].mxu0
      %v4221 = vadd.f32 0.0, %v4220
      %v4222 = vpop.f32.mrb[0].mxu0
      %4223 = vmatprep.mubr.bf16.mxu0 0
      %4224 = vmatmul.mubr.bf16.gmra.mrb[0].mxu0 %v4057
      %v4225 = vpop.f32.mrb[0].mxu0
      %v4226 = vadd.f32 0.0, %v4225
      %v4227 = vpop.f32.mrb[0].mxu0
      %v4228 = vpop.f32.mrb[0].mxu0
      %v4229 = vadd.f32 0.0, %v4228
      %v4230 = vpop.f32.mrb[0].mxu0
      %4231 = vmatprep.mubr.bf16.mxu0 0
      %4232 = vmatmul.mubr.bf16.gmra.mrb[0].mxu0 %v4059
      %v4233 = vpop.f32.mrb[0].mxu0
      %v4234 = vadd.f32 0.0, %v4233
      %v4235 = vpop.f32.mrb[0].mxu0
      %v4236 = vpop.f32.mrb[0].mxu0
      %v4237 = vadd.f32 0.0, %v4236
      %v4238 = vpop.f32.mrb[0].mxu0
      %4239 = vmatprep.mubr.bf16.mxu0 0
      %4240 = vmatmul.mubr.bf16.gmra.mrb[0].mxu0 %v4061
      %v4241 = vpop.f32.mrb[0].mxu0
      %v4242 = vadd.f32 0.0, %v4241
      %v4243 = vpop.f32.mrb[0].mxu0
      %v4244 = vpop.f32.mrb[0].mxu0
      %v4245 = vadd.f32 0.0, %v4244
      %v4246 = vpop.f32.mrb[0].mxu0
      %4247 = vmatprep.mubr.bf16.mxu0 0
      %4248 = vmatmul.mubr.bf16.gmra.mrb[0].mxu0 %v4063
      %v4249 = vpop.f32.mrb[0].mxu0
      %v4250 = vadd.f32 0.0, %v4249
      %v4251 = vpop.f32.mrb[0].mxu0
      %v4252 = vpop.f32.mrb[0].mxu0
      %v4253 = vadd.f32 0.0, %v4252
      %v4254 = vpop.f32.mrb[0].mxu0
      %4255 = vmatprep.mubr.bf16.mxu0 0
      %4256 = vmatmul.mubr.bf16.gmra.mrb[0].mxu0 %v4065
      %v4257 = vpop.f32.mrb[0].mxu0
      %v4258 = vadd.f32 0.0, %v4257
      %v4259 = vpop.f32.mrb[0].mxu0
      %v4260 = vpop.f32.mrb[0].mxu0
      %v4261 = vadd.f32 0.0, %v4260
      %v4262 = vpop.f32.mrb[0].mxu0
      %4263 = vmatprep.mubr.bf16.mxu0 0
      %4264 = vmatmul.mubr.bf16.gmra.mrb[0].mxu0 %v4067
      %v4265 = vpop.f32.mrb[0].mxu0
      %v4266 = vadd.f32 0.0, %v4265
      %v4267 = vpop.f32.mrb[0].mxu0
      %v4268 = vpop.f32.mrb[0].mxu0
      %v4269 = vadd.f32 0.0, %v4268
      %v4270 = vpop.f32.mrb[0].mxu0
      %4271 = vmatprep.mubr.bf16.mxu0 0
      %4272 = vmatmul.mubr.bf16.gmra.mrb[0].mxu0 %v4069
      %v4273 = vpop.f32.mrb[0].mxu0
      %v4274 = vadd.f32 0.0, %v4273
      %v4275 = vpop.f32.mrb[0].mxu0
      %v4276 = vpop.f32.mrb[0].mxu0
      %v4277 = vadd.f32 0.0, %v4276
      %v4278 = vpop.f32.mrb[0].mxu0
      %4279 = vmatprep.mubr.bf16.mxu0 0
      %4280 = vmatmul.mubr.bf16.gmra.mrb[0].mxu0 %v4071
      %v4281 = vpop.f32.mrb[0].mxu0
      %v4282 = vadd.f32 0.0, %v4281
      %v4283 = vpop.f32.mrb[0].mxu0
      %v4284 = vpop.f32.mrb[0].mxu0
      %v4285 = vadd.f32 0.0, %v4284
      %v4286 = vpop.f32.mrb[0].mxu0
      %4287 = vmatprep.mubr.bf16.mxu0 0
      %4288 = vmatmul.mubr.bf16.gmra.mrb[0].mxu0 %v4073
      %v4289 = vpop.f32.mrb[0].mxu0
      %v4290 = vadd.f32 0.0, %v4289
      %v4291 = vpop.f32.mrb[0].mxu0
      %v4292 = vpop.f32.mrb[0].mxu0
      %v4293 = vadd.f32 0.0, %v4292
      %v4294 = vpop.f32.mrb[0].mxu0
      %4295 = vmatprep.mubr.bf16.mxu0 0
      %4296 = vmatmul.mubr.bf16.gmra.mrb[0].mxu0 %v4075
      %v4297 = vpop.f32.mrb[0].mxu0
      %v4298 = vadd.f32 0.0, %v4297
      %v4299 = vpop.f32.mrb[0].mxu0
      %v4300 = vpop.f32.mrb[0].mxu0
      %v4301 = vadd.f32 0.0, %v4300
      %v4302 = vpop.f32.mrb[0].mxu0
      %4303 = vmatprep.mubr.bf16.mxu0 0
      %4304 = vmatmul.mubr.bf16.gmra.mrb[0].mxu0 %v4077
      %v4305 = vpop.f32.mrb[0].mxu0
      %v4306 = vadd.f32 0.0, %v4305
      %v4307 = vpop.f32.mrb[0].mxu0
      %v4308 = vpop.f32.mrb[0].mxu0
      %v4309 = vadd.f32 0.0, %v4308
      %v4310 = vpop.f32.mrb[0].mxu0
      %4311 = vdwg.mxu0
      %v4312 = vadd.f32 %v3956, %v4178
      %v4313 = vadd.f32 %v3957, %v4181
      %v4314 = vadd.f32 %v3958, %v4186
      %v4315 = vadd.f32 %v3959, %v4189
      %v4316 = vadd.f32 %v3960, %v4194
      %v4317 = vadd.f32 %v3961, %v4197
      %v4318 = vadd.f32 %v3962, %v4202
      %v4319 = vadd.f32 %v3963, %v4205
      %v4320 = vadd.f32 %v3964, %v4210
      %v4321 = vadd.f32 %v3965, %v4213
      %v4322 = vadd.f32 %v3966, %v4218
      %v4323 = vadd.f32 %v3967, %v4221
      %v4324 = vadd.f32 %v3968, %v4226
      %v4325 = vadd.f32 %v3969, %v4229
      %v4326 = vadd.f32 %v3970, %v4234
      %v4327 = vadd.f32 %v3971, %v4237
      %v4328 = vadd.f32 %v3972, %v4242
      %v4329 = vadd.f32 %v3973, %v4245
      %v4330 = vadd.f32 %v3974, %v4250
      %v4331 = vadd.f32 %v3975, %v4253
      %v4332 = vadd.f32 %v3976, %v4258
      %v4333 = vadd.f32 %v3977, %v4261
      %v4334 = vadd.f32 %v3978, %v4266
      %v4335 = vadd.f32 %v3979, %v4269
      %v4336 = vadd.f32 %v3980, %v4274
      %v4337 = vadd.f32 %v3981, %v4277
      %v4338 = vadd.f32 %v3982, %v4282
      %v4339 = vadd.f32 %v3983, %v4285
      %v4340 = vadd.f32 %v3984, %v4290
      %v4341 = vadd.f32 %v3985, %v4293
      %v4342 = vadd.f32 %v3986, %v4298
      %v4343 = vadd.f32 %v3987, %v4301
      %v4344 = vadd.f32 %v3988, %v4306
      %v4345 = vadd.f32 %v3989, %v4309
      %v4346 = vld [vmem:[#allocation2 + $0x98] sm:$0x1f]
      %s4347 = scalar_lea.vmem %s3, 448
      %v4348 = vld [vmem:[%s4347] sm:$0xf]
      %v4349 = vld [vmem:[%s4347 + $0x4] sm:$0xf]
      %v4350 = vld [vmem:[%s4347 + $0x8] sm:$0xf]
      %v4351 = vld [vmem:[%s4347 + $0xc] sm:$0xf]
      %v4352 = vld [vmem:[%s4347 + $0x10] sm:$0xf]
      %v4353 = vld [vmem:[%s4347 + $0x14] sm:$0xf]
      %v4354 = vld [vmem:[%s4347 + $0x18] sm:$0xf]
      %v4355 = vld [vmem:[%s4347 + $0x1c] sm:$0xf]
      %v4356 = vld [vmem:[%s4347 + $0x20] sm:$0xf]
      %v4357 = vld [vmem:[%s4347 + $0x24] sm:$0xf]
      %v4358 = vld [vmem:[%s4347 + $0x28] sm:$0xf]
      %v4359 = vld [vmem:[%s4347 + $0x2c] sm:$0xf]
      %v4360 = vld [vmem:[%s4347 + $0x30] sm:$0xf]
      %v4361 = vld [vmem:[%s4347 + $0x34] sm:$0xf]
      %v4362 = vld [vmem:[%s4347 + $0x38] sm:$0xf]
      %v4363 = vld [vmem:[%s4347 + $0x3c] sm:$0xf]
      %v4365 = vshrl.u32 %v3990, 16
      %v4367 = vrot.slane %v4365, 4
      %v4368 = vshll.u32 %v3990, 16
      %v4370 = vrot.slane %v4368, 5
      %v4371 = vor.u32 %v4367, %v4370
      %v4373 = vshrl.u32 %v3991, 16
      %v4375 = vrot.slane %v4373, 4
      %v4376 = vshll.u32 %v3991, 16
      %v4378 = vrot.slane %v4376, 5
      %v4379 = vor.u32 %v4375, %v4378
      %v4380 = vsel %vm3640, %v4371, %v4379
      %v4382 = vshrl.u32 %v3992, 16
      %v4384 = vrot.slane %v4382, 4
      %v4385 = vshll.u32 %v3992, 16
      %v4387 = vrot.slane %v4385, 5
      %v4388 = vor.u32 %v4384, %v4387
      %v4389 = vsel %vm3640, %v4379, %v4388
      %v4391 = vshrl.u32 %v3993, 16
      %v4393 = vrot.slane %v4391, 4
      %v4394 = vshll.u32 %v3993, 16
      %v4396 = vrot.slane %v4394, 5
      %v4397 = vor.u32 %v4393, %v4396
      %v4398 = vsel %vm3640, %v4388, %v4397
      %v4400 = vshrl.u32 %v3994, 16
      %v4402 = vrot.slane %v4400, 4
      %v4403 = vshll.u32 %v3994, 16
      %v4405 = vrot.slane %v4403, 5
      %v4406 = vor.u32 %v4402, %v4405
      %v4407 = vsel %vm3640, %v4397, %v4406
      %v4409 = vshrl.u32 %v3995, 16
      %v4411 = vrot.slane %v4409, 4
      %v4412 = vshll.u32 %v3995, 16
      %v4414 = vrot.slane %v4412, 5
      %v4415 = vor.u32 %v4411, %v4414
      %v4416 = vsel %vm3640, %v4406, %v4415
      %v4418 = vshrl.u32 %v3996, 16
      %v4420 = vrot.slane %v4418, 4
      %v4421 = vshll.u32 %v3996, 16
      %v4423 = vrot.slane %v4421, 5
      %v4424 = vor.u32 %v4420, %v4423
      %v4425 = vsel %vm3640, %v4415, %v4424
      %v4427 = vshrl.u32 %v3997, 16
      %v4429 = vrot.slane %v4427, 4
      %v4430 = vshll.u32 %v3997, 16
      %v4432 = vrot.slane %v4430, 5
      %v4433 = vor.u32 %v4429, %v4432
      %v4434 = vsel %vm3640, %v4424, %v4433
      %v4436 = vshrl.u32 %v3998, 16
      %v4438 = vrot.slane %v4436, 4
      %v4439 = vshll.u32 %v3998, 16
      %v4441 = vrot.slane %v4439, 5
      %v4442 = vor.u32 %v4438, %v4441
      %v4443 = vsel %vm3640, %v4433, %v4442
      %v4445 = vshrl.u32 %v3999, 16
      %v4447 = vrot.slane %v4445, 4
      %v4448 = vshll.u32 %v3999, 16
      %v4450 = vrot.slane %v4448, 5
      %v4451 = vor.u32 %v4447, %v4450
      %v4452 = vsel %vm3640, %v4442, %v4451
      %v4454 = vshrl.u32 %v4000, 16
      %v4456 = vrot.slane %v4454, 4
      %v4457 = vshll.u32 %v4000, 16
      %v4459 = vrot.slane %v4457, 5
      %v4460 = vor.u32 %v4456, %v4459
      %v4461 = vsel %vm3640, %v4451, %v4460
      %v4463 = vshrl.u32 %v4001, 16
      %v4465 = vrot.slane %v4463, 4
      %v4466 = vshll.u32 %v4001, 16
      %v4468 = vrot.slane %v4466, 5
      %v4469 = vor.u32 %v4465, %v4468
      %v4470 = vsel %vm3640, %v4460, %v4469
      %v4472 = vshrl.u32 %v4002, 16
      %v4474 = vrot.slane %v4472, 4
      %v4475 = vshll.u32 %v4002, 16
      %v4477 = vrot.slane %v4475, 5
      %v4478 = vor.u32 %v4474, %v4477
      %v4479 = vsel %vm3640, %v4469, %v4478
      %v4481 = vshrl.u32 %v4003, 16
      %v4483 = vrot.slane %v4481, 4
      %v4484 = vshll.u32 %v4003, 16
      %v4486 = vrot.slane %v4484, 5
      %v4487 = vor.u32 %v4483, %v4486
      %v4488 = vsel %vm3640, %v4478, %v4487
      %v4490 = vshrl.u32 %v4004, 16
      %v4492 = vrot.slane %v4490, 4
      %v4493 = vshll.u32 %v4004, 16
      %v4495 = vrot.slane %v4493, 5
      %v4496 = vor.u32 %v4492, %v4495
      %v4497 = vsel %vm3640, %v4487, %v4496
      %v4499 = vshrl.u32 %v4005, 16
      %v4501 = vrot.slane %v4499, 4
      %v4502 = vshll.u32 %v4005, 16
      %v4504 = vrot.slane %v4502, 5
      %v4505 = vor.u32 %v4501, %v4504
      %v4506 = vsel %vm3640, %v4496, %v4505
      %v4508 = vshrl.u32 %v4006, 16
      %v4510 = vrot.slane %v4508, 4
      %v4511 = vshll.u32 %v4006, 16
      %v4513 = vrot.slane %v4511, 5
      %v4514 = vor.u32 %v4510, %v4513
      %v4515 = vsel %vm3640, %v4505, %v4514
      %v4517 = vshrl.u32 %v4346, 16
      %v4519 = vrot.slane %v4517, 4
      %v4520 = vshll.u32 %v4346, 16
      %v4522 = vrot.slane %v4520, 5
      %v4523 = vor.u32 %v4519, %v4522
      %v4524 = vsel %vm3640, %v4514, %v4523
      %v4558 = vunpack.c.l.b16 %v4348
      %v4559 = vunpack.c.l.b16 %v4349
      %v4560 = vunpack.c.l.b16 %v4350
      %v4561 = vunpack.c.l.b16 %v4351
      %v4562 = vunpack.c.l.b16 %v4352
      %v4563 = vunpack.c.l.b16 %v4353
      %v4564 = vunpack.c.l.b16 %v4354
      %v4565 = vunpack.c.l.b16 %v4355
      %v4566 = vunpack.c.l.b16 %v4356
      %v4567 = vunpack.c.l.b16 %v4357
      %v4568 = vunpack.c.l.b16 %v4358
      %v4569 = vunpack.c.l.b16 %v4359
      %v4570 = vunpack.c.l.b16 %v4360
      %v4571 = vunpack.c.l.b16 %v4361
      %v4572 = vunpack.c.l.b16 %v4362
      %v4573 = vunpack.c.l.b16 %v4363
      %v4574 = vpack.c.b16 %v4559, %v4558
      %v4575 = vpack.c.b16 %v4561, %v4560
      %v4576 = vpack.c.b16 %v4563, %v4562
      %v4577 = vpack.c.b16 %v4565, %v4564
      %v4578 = vpack.c.b16 %v4567, %v4566
      %v4579 = vpack.c.b16 %v4569, %v4568
      %v4580 = vpack.c.b16 %v4571, %v4570
      %v4581 = vpack.c.b16 %v4573, %v4572
      %4590 = vmatprep.subr.bf16.mxu0 0
      %4591 = vmatpush1.bf16.msra.mxu0 %v4574
      %4592 = vmatprep.subr.bf16.mxu0 0
      %4593 = vmatpush1.bf16.msra.mxu0 %v4575
      %4594 = vmatprep.subr.bf16.mxu0 0
      %4595 = vmatpush1.bf16.msra.mxu0 %v4576
      %4596 = vmatprep.subr.bf16.mxu0 0
      %4597 = vmatpush1.bf16.msra.mxu0 %v4577
      %4598 = vmatprep.subr.bf16.mxu0 0
      %4599 = vmatpush1.bf16.msra.mxu0 %v4578
      %4600 = vmatprep.subr.bf16.mxu0 0
      %4601 = vmatpush1.bf16.msra.mxu0 %v4579
      %4602 = vmatprep.subr.bf16.mxu0 0
      %4603 = vmatpush1.bf16.msra.mxu0 %v4580
      %4604 = vmatprep.subr.bf16.mxu0 0
      %4605 = vmatpush1.bf16.msra.mxu0 %v4581
      %4606 = vmatprep.subr.bf16.mxu0 0
      %4607 = vmatpush1.bf16.msra.mxu0 0
      %4608 = vmatprep.subr.bf16.mxu0 0
      %4609 = vmatpush1.bf16.msra.mxu0 0
      %4610 = vmatprep.subr.bf16.mxu0 0
      %4611 = vmatpush1.bf16.msra.mxu0 0
      %4612 = vmatprep.subr.bf16.mxu0 0
      %4613 = vmatpush1.bf16.msra.mxu0 0
      %4614 = vmatprep.subr.bf16.mxu0 0
      %4615 = vmatpush1.bf16.msra.mxu0 0
      %4616 = vmatprep.subr.bf16.mxu0 0
      %4617 = vmatpush1.bf16.msra.mxu0 0
      %4618 = vmatprep.subr.bf16.mxu0 0
      %4619 = vmatpush1.bf16.msra.mxu0 0
      %4620 = vmatprep.subr.bf16.mxu0 0
      %4621 = vmatpush1.bf16.msra.mxu0 0
      %4622 = vmatprep.mubr.bf16.mxu0 0
      %4623 = vmatmul.mubr.bf16.gmra.mrb[0].mxu0 %v4380
      %v4624 = vpop.f32.mrb[0].mxu0
      %v4625 = vadd.f32 0.0, %v4624
      %v4626 = vpop.f32.mrb[0].mxu0
      %v4627 = vpop.f32.mrb[0].mxu0
      %v4628 = vadd.f32 0.0, %v4627
      %v4629 = vpop.f32.mrb[0].mxu0
      %4630 = vmatprep.mubr.bf16.mxu0 0
      %4631 = vmatmul.mubr.bf16.gmra.mrb[0].mxu0 %v4389
      %v4632 = vpop.f32.mrb[0].mxu0
      %v4633 = vadd.f32 0.0, %v4632
      %v4634 = vpop.f32.mrb[0].mxu0
      %v4635 = vpop.f32.mrb[0].mxu0
      %v4636 = vadd.f32 0.0, %v4635
      %v4637 = vpop.f32.mrb[0].mxu0
      %4638 = vmatprep.mubr.bf16.mxu0 0
      %4639 = vmatmul.mubr.bf16.gmra.mrb[0].mxu0 %v4398
      %v4640 = vpop.f32.mrb[0].mxu0
      %v4641 = vadd.f32 0.0, %v4640
      %v4642 = vpop.f32.mrb[0].mxu0
      %v4643 = vpop.f32.mrb[0].mxu0
      %v4644 = vadd.f32 0.0, %v4643
      %v4645 = vpop.f32.mrb[0].mxu0
      %4646 = vmatprep.mubr.bf16.mxu0 0
      %4647 = vmatmul.mubr.bf16.gmra.mrb[0].mxu0 %v4407
      %v4648 = vpop.f32.mrb[0].mxu0
      %v4649 = vadd.f32 0.0, %v4648
      %v4650 = vpop.f32.mrb[0].mxu0
      %v4651 = vpop.f32.mrb[0].mxu0
      %v4652 = vadd.f32 0.0, %v4651
      %v4653 = vpop.f32.mrb[0].mxu0
      %4654 = vmatprep.mubr.bf16.mxu0 0
      %4655 = vmatmul.mubr.bf16.gmra.mrb[0].mxu0 %v4416
      %v4656 = vpop.f32.mrb[0].mxu0
      %v4657 = vadd.f32 0.0, %v4656
      %v4658 = vpop.f32.mrb[0].mxu0
      %v4659 = vpop.f32.mrb[0].mxu0
      %v4660 = vadd.f32 0.0, %v4659
      %v4661 = vpop.f32.mrb[0].mxu0
      %4662 = vmatprep.mubr.bf16.mxu0 0
      %4663 = vmatmul.mubr.bf16.gmra.mrb[0].mxu0 %v4425
      %v4664 = vpop.f32.mrb[0].mxu0
      %v4665 = vadd.f32 0.0, %v4664
      %v4666 = vpop.f32.mrb[0].mxu0
      %v4667 = vpop.f32.mrb[0].mxu0
      %v4668 = vadd.f32 0.0, %v4667
      %v4669 = vpop.f32.mrb[0].mxu0
      %4670 = vmatprep.mubr.bf16.mxu0 0
      %4671 = vmatmul.mubr.bf16.gmra.mrb[0].mxu0 %v4434
      %v4672 = vpop.f32.mrb[0].mxu0
      %v4673 = vadd.f32 0.0, %v4672
      %v4674 = vpop.f32.mrb[0].mxu0
      %v4675 = vpop.f32.mrb[0].mxu0
      %v4676 = vadd.f32 0.0, %v4675
      %v4677 = vpop.f32.mrb[0].mxu0
      %4678 = vmatprep.mubr.bf16.mxu0 0
      %4679 = vmatmul.mubr.bf16.gmra.mrb[0].mxu0 %v4443
      %v4680 = vpop.f32.mrb[0].mxu0
      %v4681 = vadd.f32 0.0, %v4680
      %v4682 = vpop.f32.mrb[0].mxu0
      %v4683 = vpop.f32.mrb[0].mxu0
      %v4684 = vadd.f32 0.0, %v4683
      %v4685 = vpop.f32.mrb[0].mxu0
      %4686 = vmatprep.mubr.bf16.mxu0 0
      %4687 = vmatmul.mubr.bf16.gmra.mrb[0].mxu0 %v4452
      %v4688 = vpop.f32.mrb[0].mxu0
      %v4689 = vadd.f32 0.0, %v4688
      %v4690 = vpop.f32.mrb[0].mxu0
      %v4691 = vpop.f32.mrb[0].mxu0
      %v4692 = vadd.f32 0.0, %v4691
      %v4693 = vpop.f32.mrb[0].mxu0
      %4694 = vmatprep.mubr.bf16.mxu0 0
      %4695 = vmatmul.mubr.bf16.gmra.mrb[0].mxu0 %v4461
      %v4696 = vpop.f32.mrb[0].mxu0
      %v4697 = vadd.f32 0.0, %v4696
      %v4698 = vpop.f32.mrb[0].mxu0
      %v4699 = vpop.f32.mrb[0].mxu0
      %v4700 = vadd.f32 0.0, %v4699
      %v4701 = vpop.f32.mrb[0].mxu0
      %4702 = vmatprep.mubr.bf16.mxu0 0
      %4703 = vmatmul.mubr.bf16.gmra.mrb[0].mxu0 %v4470
      %v4704 = vpop.f32.mrb[0].mxu0
      %v4705 = vadd.f32 0.0, %v4704
      %v4706 = vpop.f32.mrb[0].mxu0
      %v4707 = vpop.f32.mrb[0].mxu0
      %v4708 = vadd.f32 0.0, %v4707
      %v4709 = vpop.f32.mrb[0].mxu0
      %4710 = vmatprep.mubr.bf16.mxu0 0
      %4711 = vmatmul.mubr.bf16.gmra.mrb[0].mxu0 %v4479
      %v4712 = vpop.f32.mrb[0].mxu0
      %v4713 = vadd.f32 0.0, %v4712
      %v4714 = vpop.f32.mrb[0].mxu0
      %v4715 = vpop.f32.mrb[0].mxu0
      %v4716 = vadd.f32 0.0, %v4715
      %v4717 = vpop.f32.mrb[0].mxu0
      %4718 = vmatprep.mubr.bf16.mxu0 0
      %4719 = vmatmul.mubr.bf16.gmra.mrb[0].mxu0 %v4488
      %v4720 = vpop.f32.mrb[0].mxu0
      %v4721 = vadd.f32 0.0, %v4720
      %v4722 = vpop.f32.mrb[0].mxu0
      %v4723 = vpop.f32.mrb[0].mxu0
      %v4724 = vadd.f32 0.0, %v4723
      %v4725 = vpop.f32.mrb[0].mxu0
      %4726 = vmatprep.mubr.bf16.mxu0 0
      %4727 = vmatmul.mubr.bf16.gmra.mrb[0].mxu0 %v4497
      %v4728 = vpop.f32.mrb[0].mxu0
      %v4729 = vadd.f32 0.0, %v4728
      %v4730 = vpop.f32.mrb[0].mxu0
      %v4731 = vpop.f32.mrb[0].mxu0
      %v4732 = vadd.f32 0.0, %v4731
      %v4733 = vpop.f32.mrb[0].mxu0
      %4734 = vmatprep.mubr.bf16.mxu0 0
      %4735 = vmatmul.mubr.bf16.gmra.mrb[0].mxu0 %v4506
      %v4736 = vpop.f32.mrb[0].mxu0
      %v4737 = vadd.f32 0.0, %v4736
      %v4738 = vpop.f32.mrb[0].mxu0
      %v4739 = vpop.f32.mrb[0].mxu0
      %v4740 = vadd.f32 0.0, %v4739
      %v4741 = vpop.f32.mrb[0].mxu0
      %4742 = vmatprep.mubr.bf16.mxu0 0
      %4743 = vmatmul.mubr.bf16.gmra.mrb[0].mxu0 %v4515
      %v4744 = vpop.f32.mrb[0].mxu0
      %v4745 = vadd.f32 0.0, %v4744
      %v4746 = vpop.f32.mrb[0].mxu0
      %v4747 = vpop.f32.mrb[0].mxu0
      %v4748 = vadd.f32 0.0, %v4747
      %v4749 = vpop.f32.mrb[0].mxu0
      %4750 = vmatprep.mubr.bf16.mxu0 0
      %4751 = vmatmul.mubr.bf16.gmra.mrb[0].mxu0 %v4524
      %v4752 = vpop.f32.mrb[0].mxu0
      %v4753 = vadd.f32 0.0, %v4752
      %v4754 = vpop.f32.mrb[0].mxu0
      %v4755 = vpop.f32.mrb[0].mxu0
      %v4756 = vadd.f32 0.0, %v4755
      %v4757 = vpop.f32.mrb[0].mxu0
      %4758 = vdwg.mxu0
      %v4759 = vadd.f32 %v4312, %v4625
      %v4760 = vadd.f32 %v4313, %v4628
      %v4761 = vadd.f32 %v4314, %v4633
      %v4762 = vadd.f32 %v4315, %v4636
      %v4763 = vadd.f32 %v4316, %v4641
      %v4764 = vadd.f32 %v4317, %v4644
      %v4765 = vadd.f32 %v4318, %v4649
      %v4766 = vadd.f32 %v4319, %v4652
      %v4767 = vadd.f32 %v4320, %v4657
      %v4768 = vadd.f32 %v4321, %v4660
      %v4769 = vadd.f32 %v4322, %v4665
      %v4770 = vadd.f32 %v4323, %v4668
      %v4771 = vadd.f32 %v4324, %v4673
      %v4772 = vadd.f32 %v4325, %v4676
      %v4773 = vadd.f32 %v4326, %v4681
      %v4774 = vadd.f32 %v4327, %v4684
      %v4775 = vadd.f32 %v4328, %v4689
      %v4776 = vadd.f32 %v4329, %v4692
      %v4777 = vadd.f32 %v4330, %v4697
      %v4778 = vadd.f32 %v4331, %v4700
      %v4779 = vadd.f32 %v4332, %v4705
      %v4780 = vadd.f32 %v4333, %v4708
      %v4781 = vadd.f32 %v4334, %v4713
      %v4782 = vadd.f32 %v4335, %v4716
      %v4783 = vadd.f32 %v4336, %v4721
      %v4784 = vadd.f32 %v4337, %v4724
      %v4785 = vadd.f32 %v4338, %v4729
      %v4786 = vadd.f32 %v4339, %v4732
      %v4787 = vadd.f32 %v4340, %v4737
      %v4788 = vadd.f32 %v4341, %v4740
      %v4789 = vadd.f32 %v4342, %v4745
      %v4790 = vadd.f32 %v4343, %v4748
      %v4791 = vadd.f32 %v4344, %v4753
      %v4792 = vadd.f32 %v4345, %v4756
      %v4793 = vld [vmem:[#allocation2 + $0x10] sm:$0xe0]
      %s4794 = scalar_lea.vmem %s3, 512
      %v4795 = vld [vmem:[%s4794] sm:$0xf]
      %v4796 = vld [vmem:[%s4794 + $0x4] sm:$0xf]
      %v4797 = vld [vmem:[%s4794 + $0x8] sm:$0xf]
      %v4798 = vld [vmem:[%s4794 + $0xc] sm:$0xf]
      %v4799 = vld [vmem:[%s4794 + $0x10] sm:$0xf]
      %v4800 = vld [vmem:[%s4794 + $0x14] sm:$0xf]
      %v4801 = vld [vmem:[%s4794 + $0x18] sm:$0xf]
      %v4802 = vld [vmem:[%s4794 + $0x1c] sm:$0xf]
      %v4803 = vld [vmem:[%s4794 + $0x20] sm:$0xf]
      %v4804 = vld [vmem:[%s4794 + $0x24] sm:$0xf]
      %v4805 = vld [vmem:[%s4794 + $0x28] sm:$0xf]
      %v4806 = vld [vmem:[%s4794 + $0x2c] sm:$0xf]
      %v4807 = vld [vmem:[%s4794 + $0x30] sm:$0xf]
      %v4808 = vld [vmem:[%s4794 + $0x34] sm:$0xf]
      %v4809 = vld [vmem:[%s4794 + $0x38] sm:$0xf]
      %v4810 = vld [vmem:[%s4794 + $0x3c] sm:$0xf]
      %vm4813 = vcmask 1042432
      %v4814 = vrot.slane %v4793, 5
      %v4815 = vrot.slane %v3991, 5
      %v4816 = vsel %vm4813, %v4814, %v4815
      %v4817 = vrot.slane %v3992, 5
      %v4818 = vsel %vm4813, %v4815, %v4817
      %v4819 = vrot.slane %v3993, 5
      %v4820 = vsel %vm4813, %v4817, %v4819
      %v4821 = vrot.slane %v3994, 5
      %v4822 = vsel %vm4813, %v4819, %v4821
      %v4823 = vrot.slane %v3995, 5
      %v4824 = vsel %vm4813, %v4821, %v4823
      %v4825 = vrot.slane %v3996, 5
      %v4826 = vsel %vm4813, %v4823, %v4825
      %v4827 = vrot.slane %v3997, 5
      %v4828 = vsel %vm4813, %v4825, %v4827
      %v4829 = vrot.slane %v3998, 5
      %v4830 = vsel %vm4813, %v4827, %v4829
      %v4831 = vrot.slane %v3999, 5
      %v4832 = vsel %vm4813, %v4829, %v4831
      %v4833 = vrot.slane %v4000, 5
      %v4834 = vsel %vm4813, %v4831, %v4833
      %v4835 = vrot.slane %v4001, 5
      %v4836 = vsel %vm4813, %v4833, %v4835
      %v4837 = vrot.slane %v4002, 5
      %v4838 = vsel %vm4813, %v4835, %v4837
      %v4839 = vrot.slane %v4003, 5
      %v4840 = vsel %vm4813, %v4837, %v4839
      %v4841 = vrot.slane %v4004, 5
      %v4842 = vsel %vm4813, %v4839, %v4841
      %v4843 = vrot.slane %v4005, 5
      %v4844 = vsel %vm4813, %v4841, %v4843
      %v4845 = vrot.slane %v4006, 5
      %v4846 = vsel %vm4813, %v4843, %v4845
      %v4847 = vrot.slane %v4346, 5
      %v4848 = vsel %vm4813, %v4845, %v4847
      %v4882 = vunpack.c.l.b16 %v4795
      %v4883 = vunpack.c.l.b16 %v4796
      %v4884 = vunpack.c.l.b16 %v4797
      %v4885 = vunpack.c.l.b16 %v4798
      %v4886 = vunpack.c.l.b16 %v4799
      %v4887 = vunpack.c.l.b16 %v4800
      %v4888 = vunpack.c.l.b16 %v4801
      %v4889 = vunpack.c.l.b16 %v4802
      %v4890 = vunpack.c.l.b16 %v4803
      %v4891 = vunpack.c.l.b16 %v4804
      %v4892 = vunpack.c.l.b16 %v4805
      %v4893 = vunpack.c.l.b16 %v4806
      %v4894 = vunpack.c.l.b16 %v4807
      %v4895 = vunpack.c.l.b16 %v4808
      %v4896 = vunpack.c.l.b16 %v4809
      %v4897 = vunpack.c.l.b16 %v4810
      %v4898 = vpack.c.b16 %v4883, %v4882
      %v4899 = vpack.c.b16 %v4885, %v4884
      %v4900 = vpack.c.b16 %v4887, %v4886
      %v4901 = vpack.c.b16 %v4889, %v4888
      %v4902 = vpack.c.b16 %v4891, %v4890
      %v4903 = vpack.c.b16 %v4893, %v4892
      %v4904 = vpack.c.b16 %v4895, %v4894
      %v4905 = vpack.c.b16 %v4897, %v4896
      %4914 = vmatprep.subr.bf16.mxu0 0
      %4915 = vmatpush1.bf16.msra.mxu0 %v4898
      %4916 = vmatprep.subr.bf16.mxu0 0
      %4917 = vmatpush1.bf16.msra.mxu0 %v4899
      %4918 = vmatprep.subr.bf16.mxu0 0
      %4919 = vmatpush1.bf16.msra.mxu0 %v4900
      %4920 = vmatprep.subr.bf16.mxu0 0
      %4921 = vmatpush1.bf16.msra.mxu0 %v4901
      %4922 = vmatprep.subr.bf16.mxu0 0
      %4923 = vmatpush1.bf16.msra.mxu0 %v4902
      %4924 = vmatprep.subr.bf16.mxu0 0
      %4925 = vmatpush1.bf16.msra.mxu0 %v4903
      %4926 = vmatprep.subr.bf16.mxu0 0
      %4927 = vmatpush1.bf16.msra.mxu0 %v4904
      %4928 = vmatprep.subr.bf16.mxu0 0
      %4929 = vmatpush1.bf16.msra.mxu0 %v4905
      %4930 = vmatprep.subr.bf16.mxu0 0
      %4931 = vmatpush1.bf16.msra.mxu0 0
      %4932 = vmatprep.subr.bf16.mxu0 0
      %4933 = vmatpush1.bf16.msra.mxu0 0
      %4934 = vmatprep.subr.bf16.mxu0 0
      %4935 = vmatpush1.bf16.msra.mxu0 0
      %4936 = vmatprep.subr.bf16.mxu0 0
      %4937 = vmatpush1.bf16.msra.mxu0 0
      %4938 = vmatprep.subr.bf16.mxu0 0
      %4939 = vmatpush1.bf16.msra.mxu0 0
      %4940 = vmatprep.subr.bf16.mxu0 0
      %4941 = vmatpush1.bf16.msra.mxu0 0
      %4942 = vmatprep.subr.bf16.mxu0 0
      %4943 = vmatpush1.bf16.msra.mxu0 0
      %4944 = vmatprep.subr.bf16.mxu0 0
      %4945 = vmatpush1.bf16.msra.mxu0 0
      %4946 = vmatprep.mubr.bf16.mxu0 0
      %4947 = vmatmul.mubr.bf16.gmra.mrb[0].mxu0 %v4816
      %v4948 = vpop.f32.mrb[0].mxu0
      %v4949 = vadd.f32 0.0, %v4948
      %v4950 = vpop.f32.mrb[0].mxu0
      %v4951 = vpop.f32.mrb[0].mxu0
      %v4952 = vadd.f32 0.0, %v4951
      %v4953 = vpop.f32.mrb[0].mxu0
      %4954 = vmatprep.mubr.bf16.mxu0 0
      %4955 = vmatmul.mubr.bf16.gmra.mrb[0].mxu0 %v4818
      %v4956 = vpop.f32.mrb[0].mxu0
      %v4957 = vadd.f32 0.0, %v4956
      %v4958 = vpop.f32.mrb[0].mxu0
      %v4959 = vpop.f32.mrb[0].mxu0
      %v4960 = vadd.f32 0.0, %v4959
      %v4961 = vpop.f32.mrb[0].mxu0
      %4962 = vmatprep.mubr.bf16.mxu0 0
      %4963 = vmatmul.mubr.bf16.gmra.mrb[0].mxu0 %v4820
      %v4964 = vpop.f32.mrb[0].mxu0
      %v4965 = vadd.f32 0.0, %v4964
      %v4966 = vpop.f32.mrb[0].mxu0
      %v4967 = vpop.f32.mrb[0].mxu0
      %v4968 = vadd.f32 0.0, %v4967
      %v4969 = vpop.f32.mrb[0].mxu0
      %4970 = vmatprep.mubr.bf16.mxu0 0
      %4971 = vmatmul.mubr.bf16.gmra.mrb[0].mxu0 %v4822
      %v4972 = vpop.f32.mrb[0].mxu0
      %v4973 = vadd.f32 0.0, %v4972
      %v4974 = vpop.f32.mrb[0].mxu0
      %v4975 = vpop.f32.mrb[0].mxu0
      %v4976 = vadd.f32 0.0, %v4975
      %v4977 = vpop.f32.mrb[0].mxu0
      %4978 = vmatprep.mubr.bf16.mxu0 0
      %4979 = vmatmul.mubr.bf16.gmra.mrb[0].mxu0 %v4824
      %v4980 = vpop.f32.mrb[0].mxu0
      %v4981 = vadd.f32 0.0, %v4980
      %v4982 = vpop.f32.mrb[0].mxu0
      %v4983 = vpop.f32.mrb[0].mxu0
      %v4984 = vadd.f32 0.0, %v4983
      %v4985 = vpop.f32.mrb[0].mxu0
      %4986 = vmatprep.mubr.bf16.mxu0 0
      %4987 = vmatmul.mubr.bf16.gmra.mrb[0].mxu0 %v4826
      %v4988 = vpop.f32.mrb[0].mxu0
      %v4989 = vadd.f32 0.0, %v4988
      %v4990 = vpop.f32.mrb[0].mxu0
      %v4991 = vpop.f32.mrb[0].mxu0
      %v4992 = vadd.f32 0.0, %v4991
      %v4993 = vpop.f32.mrb[0].mxu0
      %4994 = vmatprep.mubr.bf16.mxu0 0
      %4995 = vmatmul.mubr.bf16.gmra.mrb[0].mxu0 %v4828
      %v4996 = vpop.f32.mrb[0].mxu0
      %v4997 = vadd.f32 0.0, %v4996
      %v4998 = vpop.f32.mrb[0].mxu0
      %v4999 = vpop.f32.mrb[0].mxu0
      %v5000 = vadd.f32 0.0, %v4999
      %v5001 = vpop.f32.mrb[0].mxu0
      %5002 = vmatprep.mubr.bf16.mxu0 0
      %5003 = vmatmul.mubr.bf16.gmra.mrb[0].mxu0 %v4830
      %v5004 = vpop.f32.mrb[0].mxu0
      %v5005 = vadd.f32 0.0, %v5004
      %v5006 = vpop.f32.mrb[0].mxu0
      %v5007 = vpop.f32.mrb[0].mxu0
      %v5008 = vadd.f32 0.0, %v5007
      %v5009 = vpop.f32.mrb[0].mxu0
      %5010 = vmatprep.mubr.bf16.mxu0 0
      %5011 = vmatmul.mubr.bf16.gmra.mrb[0].mxu0 %v4832
      %v5012 = vpop.f32.mrb[0].mxu0
      %v5013 = vadd.f32 0.0, %v5012
      %v5014 = vpop.f32.mrb[0].mxu0
      %v5015 = vpop.f32.mrb[0].mxu0
      %v5016 = vadd.f32 0.0, %v5015
      %v5017 = vpop.f32.mrb[0].mxu0
      %5018 = vmatprep.mubr.bf16.mxu0 0
      %5019 = vmatmul.mubr.bf16.gmra.mrb[0].mxu0 %v4834
      %v5020 = vpop.f32.mrb[0].mxu0
      %v5021 = vadd.f32 0.0, %v5020
      %v5022 = vpop.f32.mrb[0].mxu0
      %v5023 = vpop.f32.mrb[0].mxu0
      %v5024 = vadd.f32 0.0, %v5023
      %v5025 = vpop.f32.mrb[0].mxu0
      %5026 = vmatprep.mubr.bf16.mxu0 0
      %5027 = vmatmul.mubr.bf16.gmra.mrb[0].mxu0 %v4836
      %v5028 = vpop.f32.mrb[0].mxu0
      %v5029 = vadd.f32 0.0, %v5028
      %v5030 = vpop.f32.mrb[0].mxu0
      %v5031 = vpop.f32.mrb[0].mxu0
      %v5032 = vadd.f32 0.0, %v5031
      %v5033 = vpop.f32.mrb[0].mxu0
      %5034 = vmatprep.mubr.bf16.mxu0 0
      %5035 = vmatmul.mubr.bf16.gmra.mrb[0].mxu0 %v4838
      %v5036 = vpop.f32.mrb[0].mxu0
      %v5037 = vadd.f32 0.0, %v5036
      %v5038 = vpop.f32.mrb[0].mxu0
      %v5039 = vpop.f32.mrb[0].mxu0
      %v5040 = vadd.f32 0.0, %v5039
      %v5041 = vpop.f32.mrb[0].mxu0
      %5042 = vmatprep.mubr.bf16.mxu0 0
      %5043 = vmatmul.mubr.bf16.gmra.mrb[0].mxu0 %v4840
      %v5044 = vpop.f32.mrb[0].mxu0
      %v5045 = vadd.f32 0.0, %v5044
      %v5046 = vpop.f32.mrb[0].mxu0
      %v5047 = vpop.f32.mrb[0].mxu0
      %v5048 = vadd.f32 0.0, %v5047
      %v5049 = vpop.f32.mrb[0].mxu0
      %5050 = vmatprep.mubr.bf16.mxu0 0
      %5051 = vmatmul.mubr.bf16.gmra.mrb[0].mxu0 %v4842
      %v5052 = vpop.f32.mrb[0].mxu0
      %v5053 = vadd.f32 0.0, %v5052
      %v5054 = vpop.f32.mrb[0].mxu0
      %v5055 = vpop.f32.mrb[0].mxu0
      %v5056 = vadd.f32 0.0, %v5055
      %v5057 = vpop.f32.mrb[0].mxu0
      %5058 = vmatprep.mubr.bf16.mxu0 0
      %5059 = vmatmul.mubr.bf16.gmra.mrb[0].mxu0 %v4844
      %v5060 = vpop.f32.mrb[0].mxu0
      %v5061 = vadd.f32 0.0, %v5060
      %v5062 = vpop.f32.mrb[0].mxu0
      %v5063 = vpop.f32.mrb[0].mxu0
      %v5064 = vadd.f32 0.0, %v5063
      %v5065 = vpop.f32.mrb[0].mxu0
      %5066 = vmatprep.mubr.bf16.mxu0 0
      %5067 = vmatmul.mubr.bf16.gmra.mrb[0].mxu0 %v4846
      %v5068 = vpop.f32.mrb[0].mxu0
      %v5069 = vadd.f32 0.0, %v5068
      %v5070 = vpop.f32.mrb[0].mxu0
      %v5071 = vpop.f32.mrb[0].mxu0
      %v5072 = vadd.f32 0.0, %v5071
      %v5073 = vpop.f32.mrb[0].mxu0
      %5074 = vmatprep.mubr.bf16.mxu0 0
      %5075 = vmatmul.mubr.bf16.gmra.mrb[0].mxu0 %v4848
      %v5076 = vpop.f32.mrb[0].mxu0
      %v5077 = vadd.f32 0.0, %v5076
      %v5078 = vpop.f32.mrb[0].mxu0
      %v5079 = vpop.f32.mrb[0].mxu0
      %v5080 = vadd.f32 0.0, %v5079
      %v5081 = vpop.f32.mrb[0].mxu0
      %5082 = vdwg.mxu0
      %v5083 = vadd.f32 %v4759, %v4949
      %v5084 = vadd.f32 %v4760, %v4952
      %v5085 = vadd.f32 %v4761, %v4957
      %v5086 = vadd.f32 %v4762, %v4960
      %v5087 = vadd.f32 %v4763, %v4965
      %v5088 = vadd.f32 %v4764, %v4968
      %v5089 = vadd.f32 %v4765, %v4973
      %v5090 = vadd.f32 %v4766, %v4976
      %v5091 = vadd.f32 %v4767, %v4981
      %v5092 = vadd.f32 %v4768, %v4984
      %v5093 = vadd.f32 %v4769, %v4989
      %v5094 = vadd.f32 %v4770, %v4992
      %v5095 = vadd.f32 %v4771, %v4997
      %v5096 = vadd.f32 %v4772, %v5000
      %v5097 = vadd.f32 %v4773, %v5005
      %v5098 = vadd.f32 %v4774, %v5008
      %v5099 = vadd.f32 %v4775, %v5013
      %v5100 = vadd.f32 %v4776, %v5016
      %v5101 = vadd.f32 %v4777, %v5021
      %v5102 = vadd.f32 %v4778, %v5024
      %v5103 = vadd.f32 %v4779, %v5029
      %v5104 = vadd.f32 %v4780, %v5032
      %v5105 = vadd.f32 %v4781, %v5037
      %v5106 = vadd.f32 %v4782, %v5040
      %v5107 = vadd.f32 %v4783, %v5045
      %v5108 = vadd.f32 %v4784, %v5048
      %v5109 = vadd.f32 %v4785, %v5053
      %v5110 = vadd.f32 %v4786, %v5056
      %v5111 = vadd.f32 %v4787, %v5061
      %v5112 = vadd.f32 %v4788, %v5064
      %v5113 = vadd.f32 %v4789, %v5069
      %v5114 = vadd.f32 %v4790, %v5072
      %v5115 = vadd.f32 %v4791, %v5077
      %v5116 = vadd.f32 %v4792, %v5080
      %v5117 = vmax.f32 %v5083, 0.0
      %v5118 = vmax.f32 %v5084, 0.0
      %v5119 = vmax.f32 %v5085, 0.0
      %v5120 = vmax.f32 %v5086, 0.0
      %v5121 = vmax.f32 %v5087, 0.0
      %v5122 = vmax.f32 %v5088, 0.0
      %v5123 = vmax.f32 %v5089, 0.0
      %v5124 = vmax.f32 %v5090, 0.0
      %v5125 = vmax.f32 %v5091, 0.0
      %v5126 = vmax.f32 %v5092, 0.0
      %v5127 = vmax.f32 %v5093, 0.0
      %v5128 = vmax.f32 %v5094, 0.0
      %v5129 = vmax.f32 %v5095, 0.0
      %v5130 = vmax.f32 %v5096, 0.0
      %v5131 = vmax.f32 %v5097, 0.0
      %v5132 = vmax.f32 %v5098, 0.0
      %v5133 = vmax.f32 %v5099, 0.0
      %v5134 = vmax.f32 %v5100, 0.0
      %v5135 = vmax.f32 %v5101, 0.0
      %v5136 = vmax.f32 %v5102, 0.0
      %v5137 = vmax.f32 %v5103, 0.0
      %v5138 = vmax.f32 %v5104, 0.0
      %v5139 = vmax.f32 %v5105, 0.0
      %v5140 = vmax.f32 %v5106, 0.0
      %v5141 = vmax.f32 %v5107, 0.0
      %v5142 = vmax.f32 %v5108, 0.0
      %v5143 = vmax.f32 %v5109, 0.0
      %v5144 = vmax.f32 %v5110, 0.0
      %v5145 = vmax.f32 %v5111, 0.0
      %v5146 = vmax.f32 %v5112, 0.0
      %v5147 = vmax.f32 %v5113, 0.0
      %v5148 = vmax.f32 %v5114, 0.0
      %v5149 = vmax.f32 %v5115, 0.0
      %v5150 = vmax.f32 %v5116, 0.0
      %v5151 = vsel %vm971, %v5117, 0.0
      %v5152 = vsel %vm972, %v5118, 0.0
      %v5153 = vsel %vm973, %v5119, 0.0
      %v5154 = vsel %vm974, %v5120, 0.0
      %v5155 = vsel %vm975, %v5121, 0.0
      %v5156 = vsel %vm976, %v5122, 0.0
      %v5157 = vsel %vm977, %v5123, 0.0
      %v5158 = vsel %vm978, %v5124, 0.0
      %v5159 = vsel %vm979, %v5125, 0.0
      %v5160 = vsel %vm980, %v5126, 0.0
      %v5161 = vsel %vm981, %v5127, 0.0
      %v5162 = vsel %vm982, %v5128, 0.0
      %v5163 = vsel %vm983, %v5129, 0.0
      %v5164 = vsel %vm984, %v5130, 0.0
      %v5165 = vsel %vm985, %v5131, 0.0
      %v5166 = vsel %vm986, %v5132, 0.0
      %v5167 = vsel %vm987, %v5133, 0.0
      %v5168 = vsel %vm988, %v5134, 0.0
      %v5169 = vsel %vm989, %v5135, 0.0
      %v5170 = vsel %vm990, %v5136, 0.0
      %v5171 = vsel %vm991, %v5137, 0.0
      %v5172 = vsel %vm992, %v5138, 0.0
      %v5173 = vsel %vm993, %v5139, 0.0
      %v5174 = vsel %vm994, %v5140, 0.0
      %v5175 = vsel %vm995, %v5141, 0.0
      %v5176 = vsel %vm996, %v5142, 0.0
      %v5177 = vsel %vm997, %v5143, 0.0
      %v5178 = vsel %vm998, %v5144, 0.0
      %v5179 = vsel %vm999, %v5145, 0.0
      %v5180 = vsel %vm1000, %v5146, 0.0
      %v5181 = vsel %vm1001, %v5147, 0.0
      %v5182 = vsel %vm1002, %v5148, 0.0
      %v5183 = vsel %vm1003, %v5149, 0.0
      %v5184 = vsel %vm1004, %v5150, 0.0
      %v5185 = vpack.c.bf16 %v5152, %v5151
      %v5186 = vpack.c.bf16 %v5154, %v5153
      %v5187 = vpack.c.bf16 %v5156, %v5155
      %v5188 = vpack.c.bf16 %v5158, %v5157
      %v5189 = vpack.c.bf16 %v5160, %v5159
      %v5190 = vpack.c.bf16 %v5162, %v5161
      %v5191 = vpack.c.bf16 %v5164, %v5163
      %v5192 = vpack.c.bf16 %v5166, %v5165
      %v5193 = vpack.c.bf16 %v5168, %v5167
      %v5194 = vpack.c.bf16 %v5170, %v5169
      %v5195 = vpack.c.bf16 %v5172, %v5171
      %v5196 = vpack.c.bf16 %v5174, %v5173
      %v5197 = vpack.c.bf16 %v5176, %v5175
      %v5198 = vpack.c.bf16 %v5178, %v5177
      %v5199 = vpack.c.bf16 %v5180, %v5179
      %v5200 = vpack.c.bf16 %v5182, %v5181
      %v5201 = vpack.c.bf16 %v5184, %v5183
      %v5219 = vrot.slane %v5185, 4
      %v5220 = vrot.slane %v5186, 4
      %v5221 = vsel %vm1615, %v5219, %v5220
      %v5222 = vrot.slane %v5187, 4
      %v5223 = vsel %vm1615, %v5220, %v5222
      %v5224 = vrot.slane %v5188, 4
      %v5225 = vsel %vm1615, %v5222, %v5224
      %v5226 = vrot.slane %v5189, 4
      %v5227 = vsel %vm1615, %v5224, %v5226
      %v5228 = vrot.slane %v5190, 4
      %v5229 = vsel %vm1615, %v5226, %v5228
      %v5230 = vrot.slane %v5191, 4
      %v5231 = vsel %vm1615, %v5228, %v5230
      %v5232 = vrot.slane %v5192, 4
      %v5233 = vsel %vm1615, %v5230, %v5232
      %v5234 = vrot.slane %v5193, 4
      %v5235 = vsel %vm1615, %v5232, %v5234
      %v5236 = vrot.slane %v5194, 4
      %v5237 = vsel %vm1615, %v5234, %v5236
      %v5238 = vrot.slane %v5195, 4
      %v5239 = vsel %vm1615, %v5236, %v5238
      %v5240 = vrot.slane %v5196, 4
      %v5241 = vsel %vm1615, %v5238, %v5240
      %v5242 = vrot.slane %v5197, 4
      %v5243 = vsel %vm1615, %v5240, %v5242
      %v5244 = vrot.slane %v5198, 4
      %v5245 = vsel %vm1615, %v5242, %v5244
      %v5246 = vrot.slane %v5199, 4
      %v5247 = vsel %vm1615, %v5244, %v5246
      %v5248 = vrot.slane %v5200, 4
      %v5249 = vsel %vm1615, %v5246, %v5248
      %v5250 = vrot.slane %v5201, 4
      %v5251 = vsel %vm1615, %v5248, %v5250
      %5270 = vst [vmem:[#allocation2 + $0x8] sm:$0xf0] %v5219
      %5271 = vst [vmem:[#allocation2 + $0x10] sm:$0xff] %v5221
      %5272 = vst [vmem:[#allocation2 + $0x18] sm:$0xff] %v5223
      %5273 = vst [vmem:[#allocation2 + $0x20] sm:$0xff] %v5225
      %5274 = vst [vmem:[#allocation2 + $0x28] sm:$0xff] %v5227
      %5275 = vst [vmem:[#allocation2 + $0x30] sm:$0xff] %v5229
      %5276 = vst [vmem:[#allocation2 + $0x38] sm:$0xff] %v5231
      %5277 = vst [vmem:[#allocation2 + $0x40] sm:$0xff] %v5233
      %5278 = vst [vmem:[#allocation2 + $0x48] sm:$0xff] %v5235
      %5279 = vst [vmem:[#allocation2 + $0x50] sm:$0xff] %v5237
      %5280 = vst [vmem:[#allocation2 + $0x58] sm:$0xff] %v5239
      %5281 = vst [vmem:[#allocation2 + $0x60] sm:$0xff] %v5241
      %5282 = vst [vmem:[#allocation2 + $0x68] sm:$0xff] %v5243
      %5283 = vst [vmem:[#allocation2 + $0x70] sm:$0xff] %v5245
      %5284 = vst [vmem:[#allocation2 + $0x78] sm:$0xff] %v5247
      %5285 = vst [vmem:[#allocation2 + $0x80] sm:$0xff] %v5249
      %5286 = vst [vmem:[#allocation2 + $0x88] sm:$0xff] %v5251
      %5287 = vst [vmem:[#allocation2 + $0x90] sm:$0xf] %v5250
      %v5288 = vld [vmem:[%s6] sm:$0x1]
      %v5290 = vlaneseq
      %v5291 = vshrl.u32 %v5290, 7
      %v5292 = vsub.s32 0, %v5291
      %v5293 = vrot.slane %v5288, %v5292
      %v5295 = vld [vmem:[#allocation2] sm:$0xf8]
      %v5296 = vld [vmem:[#allocation2 + $0x8] sm:$0xff]
      %v5297 = vld [vmem:[#allocation2 + $0x10] sm:$0xff]
      %v5298 = vld [vmem:[#allocation2 + $0x18] sm:$0xff]
      %v5299 = vld [vmem:[#allocation2 + $0x20] sm:$0xff]
      %v5300 = vld [vmem:[#allocation2 + $0x28] sm:$0xff]
      %v5301 = vld [vmem:[#allocation2 + $0x30] sm:$0xff]
      %v5302 = vld [vmem:[#allocation2 + $0x38] sm:$0xff]
      %v5303 = vld [vmem:[#allocation2 + $0x40] sm:$0xff]
      %v5304 = vld [vmem:[#allocation2 + $0x48] sm:$0xff]
      %v5305 = vld [vmem:[#allocation2 + $0x50] sm:$0xff]
      %v5306 = vld [vmem:[#allocation2 + $0x58] sm:$0xff]
      %v5307 = vld [vmem:[#allocation2 + $0x60] sm:$0xff]
      %v5308 = vld [vmem:[#allocation2 + $0x68] sm:$0xff]
      %v5309 = vld [vmem:[#allocation2 + $0x70] sm:$0xff]
      %v5310 = vld [vmem:[#allocation2 + $0x78] sm:$0xff]
      %v5311 = vld [vmem:[#allocation2 + $0x80] sm:$0xff]
      %v5312 = vld [vmem:[#allocation2 + $0x88] sm:$0x7]
      %v5313 = vld [vmem:[%s5] sm:$0xf]
      %v5314 = vld [vmem:[%s5 + $0x4] sm:$0xf]
      %v5315 = vld [vmem:[%s5 + $0x8] sm:$0xf]
      %v5316 = vld [vmem:[%s5 + $0xc] sm:$0xf]
      %v5317 = vld [vmem:[%s5 + $0x10] sm:$0xf]
      %v5318 = vld [vmem:[%s5 + $0x14] sm:$0xf]
      %v5319 = vld [vmem:[%s5 + $0x18] sm:$0xf]
      %v5320 = vld [vmem:[%s5 + $0x1c] sm:$0xf]
      %v5321 = vld [vmem:[%s5 + $0x20] sm:$0xf]
      %v5322 = vld [vmem:[%s5 + $0x24] sm:$0xf]
      %v5323 = vld [vmem:[%s5 + $0x28] sm:$0xf]
      %v5324 = vld [vmem:[%s5 + $0x2c] sm:$0xf]
      %v5325 = vld [vmem:[%s5 + $0x30] sm:$0xf]
      %v5326 = vld [vmem:[%s5 + $0x34] sm:$0xf]
      %v5327 = vld [vmem:[%s5 + $0x38] sm:$0xf]
      %v5328 = vld [vmem:[%s5 + $0x3c] sm:$0xf]
      %v5347 = vrot.slane %v5295, 3
      %v5348 = vrot.slane %v5296, 3
      %v5349 = vsel %vm1744, %v5347, %v5348
      %v5350 = vrot.slane %v5297, 3
      %v5351 = vsel %vm1744, %v5348, %v5350
      %v5352 = vrot.slane %v5298, 3
      %v5353 = vsel %vm1744, %v5350, %v5352
      %v5354 = vrot.slane %v5299, 3
      %v5355 = vsel %vm1744, %v5352, %v5354
      %v5356 = vrot.slane %v5300, 3
      %v5357 = vsel %vm1744, %v5354, %v5356
      %v5358 = vrot.slane %v5301, 3
      %v5359 = vsel %vm1744, %v5356, %v5358
      %v5360 = vrot.slane %v5302, 3
      %v5361 = vsel %vm1744, %v5358, %v5360
      %v5362 = vrot.slane %v5303, 3
      %v5363 = vsel %vm1744, %v5360, %v5362
      %v5364 = vrot.slane %v5304, 3
      %v5365 = vsel %vm1744, %v5362, %v5364
      %v5366 = vrot.slane %v5305, 3
      %v5367 = vsel %vm1744, %v5364, %v5366
      %v5368 = vrot.slane %v5306, 3
      %v5369 = vsel %vm1744, %v5366, %v5368
      %v5370 = vrot.slane %v5307, 3
      %v5371 = vsel %vm1744, %v5368, %v5370
      %v5372 = vrot.slane %v5308, 3
      %v5373 = vsel %vm1744, %v5370, %v5372
      %v5374 = vrot.slane %v5309, 3
      %v5375 = vsel %vm1744, %v5372, %v5374
      %v5376 = vrot.slane %v5310, 3
      %v5377 = vsel %vm1744, %v5374, %v5376
      %v5378 = vrot.slane %v5311, 3
      %v5379 = vsel %vm1744, %v5376, %v5378
      %v5380 = vrot.slane %v5312, 3
      %v5381 = vsel %vm1744, %v5378, %v5380
      %v5415 = vunpack.c.l.b16 %v5313
      %v5416 = vunpack.c.l.b16 %v5314
      %v5417 = vunpack.c.l.b16 %v5315
      %v5418 = vunpack.c.l.b16 %v5316
      %v5419 = vunpack.c.l.b16 %v5317
      %v5420 = vunpack.c.l.b16 %v5318
      %v5421 = vunpack.c.l.b16 %v5319
      %v5422 = vunpack.c.l.b16 %v5320
      %v5423 = vunpack.c.l.b16 %v5321
      %v5424 = vunpack.c.l.b16 %v5322
      %v5425 = vunpack.c.l.b16 %v5323
      %v5426 = vunpack.c.l.b16 %v5324
      %v5427 = vunpack.c.l.b16 %v5325
      %v5428 = vunpack.c.l.b16 %v5326
      %v5429 = vunpack.c.l.b16 %v5327
      %v5430 = vunpack.c.l.b16 %v5328
      %v5431 = vpack.c.b16 %v5416, %v5415
      %v5432 = vpack.c.b16 %v5418, %v5417
      %v5433 = vpack.c.b16 %v5420, %v5419
      %v5434 = vpack.c.b16 %v5422, %v5421
      %v5435 = vpack.c.b16 %v5424, %v5423
      %v5436 = vpack.c.b16 %v5426, %v5425
      %v5437 = vpack.c.b16 %v5428, %v5427
      %v5438 = vpack.c.b16 %v5430, %v5429
      %5447 = vmatprep.subr.bf16.mxu0 0
      %5448 = vmatpush1.bf16.msra.mxu0 %v5431
      %5449 = vmatprep.subr.bf16.mxu0 0
      %5450 = vmatpush1.bf16.msra.mxu0 %v5432
      %5451 = vmatprep.subr.bf16.mxu0 0
      %5452 = vmatpush1.bf16.msra.mxu0 %v5433
      %5453 = vmatprep.subr.bf16.mxu0 0
      %5454 = vmatpush1.bf16.msra.mxu0 %v5434
      %5455 = vmatprep.subr.bf16.mxu0 0
      %5456 = vmatpush1.bf16.msra.mxu0 %v5435
      %5457 = vmatprep.subr.bf16.mxu0 0
      %5458 = vmatpush1.bf16.msra.mxu0 %v5436
      %5459 = vmatprep.subr.bf16.mxu0 0
      %5460 = vmatpush1.bf16.msra.mxu0 %v5437
      %5461 = vmatprep.subr.bf16.mxu0 0
      %5462 = vmatpush1.bf16.msra.mxu0 %v5438
      %5463 = vmatprep.subr.bf16.mxu0 0
      %5464 = vmatpush1.bf16.msra.mxu0 0
      %5465 = vmatprep.subr.bf16.mxu0 0
      %5466 = vmatpush1.bf16.msra.mxu0 0
      %5467 = vmatprep.subr.bf16.mxu0 0
      %5468 = vmatpush1.bf16.msra.mxu0 0
      %5469 = vmatprep.subr.bf16.mxu0 0
      %5470 = vmatpush1.bf16.msra.mxu0 0
      %5471 = vmatprep.subr.bf16.mxu0 0
      %5472 = vmatpush1.bf16.msra.mxu0 0
      %5473 = vmatprep.subr.bf16.mxu0 0
      %5474 = vmatpush1.bf16.msra.mxu0 0
      %5475 = vmatprep.subr.bf16.mxu0 0
      %5476 = vmatpush1.bf16.msra.mxu0 0
      %5477 = vmatprep.subr.bf16.mxu0 0
      %5478 = vmatpush1.bf16.msra.mxu0 0
      %5479 = vmatprep.mubr.bf16.mxu0 0
      %5480 = vmatmul.mubr.bf16.gmra.mrb[0].mxu0 %v5349
      %v5481 = vpop.f32.mrb[0].mxu0
      %v5482 = vadd.f32 0.0, %v5481
      %v5483 = vpop.f32.mrb[0].mxu0
      %v5484 = vpop.f32.mrb[0].mxu0
      %v5485 = vadd.f32 0.0, %v5484
      %v5486 = vpop.f32.mrb[0].mxu0
      %5487 = vmatprep.mubr.bf16.mxu0 0
      %5488 = vmatmul.mubr.bf16.gmra.mrb[0].mxu0 %v5351
      %v5489 = vpop.f32.mrb[0].mxu0
      %v5490 = vadd.f32 0.0, %v5489
      %v5491 = vpop.f32.mrb[0].mxu0
      %v5492 = vpop.f32.mrb[0].mxu0
      %v5493 = vadd.f32 0.0, %v5492
      %v5494 = vpop.f32.mrb[0].mxu0
      %5495 = vmatprep.mubr.bf16.mxu0 0
      %5496 = vmatmul.mubr.bf16.gmra.mrb[0].mxu0 %v5353
      %v5497 = vpop.f32.mrb[0].mxu0
      %v5498 = vadd.f32 0.0, %v5497
      %v5499 = vpop.f32.mrb[0].mxu0
      %v5500 = vpop.f32.mrb[0].mxu0
      %v5501 = vadd.f32 0.0, %v5500
      %v5502 = vpop.f32.mrb[0].mxu0
      %5503 = vmatprep.mubr.bf16.mxu0 0
      %5504 = vmatmul.mubr.bf16.gmra.mrb[0].mxu0 %v5355
      %v5505 = vpop.f32.mrb[0].mxu0
      %v5506 = vadd.f32 0.0, %v5505
      %v5507 = vpop.f32.mrb[0].mxu0
      %v5508 = vpop.f32.mrb[0].mxu0
      %v5509 = vadd.f32 0.0, %v5508
      %v5510 = vpop.f32.mrb[0].mxu0
      %5511 = vmatprep.mubr.bf16.mxu0 0
      %5512 = vmatmul.mubr.bf16.gmra.mrb[0].mxu0 %v5357
      %v5513 = vpop.f32.mrb[0].mxu0
      %v5514 = vadd.f32 0.0, %v5513
      %v5515 = vpop.f32.mrb[0].mxu0
      %v5516 = vpop.f32.mrb[0].mxu0
      %v5517 = vadd.f32 0.0, %v5516
      %v5518 = vpop.f32.mrb[0].mxu0
      %5519 = vmatprep.mubr.bf16.mxu0 0
      %5520 = vmatmul.mubr.bf16.gmra.mrb[0].mxu0 %v5359
      %v5521 = vpop.f32.mrb[0].mxu0
      %v5522 = vadd.f32 0.0, %v5521
      %v5523 = vpop.f32.mrb[0].mxu0
      %v5524 = vpop.f32.mrb[0].mxu0
      %v5525 = vadd.f32 0.0, %v5524
      %v5526 = vpop.f32.mrb[0].mxu0
      %5527 = vmatprep.mubr.bf16.mxu0 0
      %5528 = vmatmul.mubr.bf16.gmra.mrb[0].mxu0 %v5361
      %v5529 = vpop.f32.mrb[0].mxu0
      %v5530 = vadd.f32 0.0, %v5529
      %v5531 = vpop.f32.mrb[0].mxu0
      %v5532 = vpop.f32.mrb[0].mxu0
      %v5533 = vadd.f32 0.0, %v5532
      %v5534 = vpop.f32.mrb[0].mxu0
      %5535 = vmatprep.mubr.bf16.mxu0 0
      %5536 = vmatmul.mubr.bf16.gmra.mrb[0].mxu0 %v5363
      %v5537 = vpop.f32.mrb[0].mxu0
      %v5538 = vadd.f32 0.0, %v5537
      %v5539 = vpop.f32.mrb[0].mxu0
      %v5540 = vpop.f32.mrb[0].mxu0
      %v5541 = vadd.f32 0.0, %v5540
      %v5542 = vpop.f32.mrb[0].mxu0
      %5543 = vmatprep.mubr.bf16.mxu0 0
      %5544 = vmatmul.mubr.bf16.gmra.mrb[0].mxu0 %v5365
      %v5545 = vpop.f32.mrb[0].mxu0
      %v5546 = vadd.f32 0.0, %v5545
      %v5547 = vpop.f32.mrb[0].mxu0
      %v5548 = vpop.f32.mrb[0].mxu0
      %v5549 = vadd.f32 0.0, %v5548
      %v5550 = vpop.f32.mrb[0].mxu0
      %5551 = vmatprep.mubr.bf16.mxu0 0
      %5552 = vmatmul.mubr.bf16.gmra.mrb[0].mxu0 %v5367
      %v5553 = vpop.f32.mrb[0].mxu0
      %v5554 = vadd.f32 0.0, %v5553
      %v5555 = vpop.f32.mrb[0].mxu0
      %v5556 = vpop.f32.mrb[0].mxu0
      %v5557 = vadd.f32 0.0, %v5556
      %v5558 = vpop.f32.mrb[0].mxu0
      %5559 = vmatprep.mubr.bf16.mxu0 0
      %5560 = vmatmul.mubr.bf16.gmra.mrb[0].mxu0 %v5369
      %v5561 = vpop.f32.mrb[0].mxu0
      %v5562 = vadd.f32 0.0, %v5561
      %v5563 = vpop.f32.mrb[0].mxu0
      %v5564 = vpop.f32.mrb[0].mxu0
      %v5565 = vadd.f32 0.0, %v5564
      %v5566 = vpop.f32.mrb[0].mxu0
      %5567 = vmatprep.mubr.bf16.mxu0 0
      %5568 = vmatmul.mubr.bf16.gmra.mrb[0].mxu0 %v5371
      %v5569 = vpop.f32.mrb[0].mxu0
      %v5570 = vadd.f32 0.0, %v5569
      %v5571 = vpop.f32.mrb[0].mxu0
      %v5572 = vpop.f32.mrb[0].mxu0
      %v5573 = vadd.f32 0.0, %v5572
      %v5574 = vpop.f32.mrb[0].mxu0
      %5575 = vmatprep.mubr.bf16.mxu0 0
      %5576 = vmatmul.mubr.bf16.gmra.mrb[0].mxu0 %v5373
      %v5577 = vpop.f32.mrb[0].mxu0
      %v5578 = vadd.f32 0.0, %v5577
      %v5579 = vpop.f32.mrb[0].mxu0
      %v5580 = vpop.f32.mrb[0].mxu0
      %v5581 = vadd.f32 0.0, %v5580
      %v5582 = vpop.f32.mrb[0].mxu0
      %5583 = vmatprep.mubr.bf16.mxu0 0
      %5584 = vmatmul.mubr.bf16.gmra.mrb[0].mxu0 %v5375
      %v5585 = vpop.f32.mrb[0].mxu0
      %v5586 = vadd.f32 0.0, %v5585
      %v5587 = vpop.f32.mrb[0].mxu0
      %v5588 = vpop.f32.mrb[0].mxu0
      %v5589 = vadd.f32 0.0, %v5588
      %v5590 = vpop.f32.mrb[0].mxu0
      %5591 = vmatprep.mubr.bf16.mxu0 0
      %5592 = vmatmul.mubr.bf16.gmra.mrb[0].mxu0 %v5377
      %v5593 = vpop.f32.mrb[0].mxu0
      %v5594 = vadd.f32 0.0, %v5593
      %v5595 = vpop.f32.mrb[0].mxu0
      %v5596 = vpop.f32.mrb[0].mxu0
      %v5597 = vadd.f32 0.0, %v5596
      %v5598 = vpop.f32.mrb[0].mxu0
      %5599 = vmatprep.mubr.bf16.mxu0 0
      %5600 = vmatmul.mubr.bf16.gmra.mrb[0].mxu0 %v5379
      %v5601 = vpop.f32.mrb[0].mxu0
      %v5602 = vadd.f32 0.0, %v5601
      %v5603 = vpop.f32.mrb[0].mxu0
      %v5604 = vpop.f32.mrb[0].mxu0
      %v5605 = vadd.f32 0.0, %v5604
      %v5606 = vpop.f32.mrb[0].mxu0
      %5607 = vmatprep.mubr.bf16.mxu0 0
      %5608 = vmatmul.mubr.bf16.gmra.mrb[0].mxu0 %v5381
      %v5609 = vpop.f32.mrb[0].mxu0
      %v5610 = vadd.f32 0.0, %v5609
      %v5611 = vpop.f32.mrb[0].mxu0
      %v5612 = vpop.f32.mrb[0].mxu0
      %v5613 = vadd.f32 0.0, %v5612
      %v5614 = vpop.f32.mrb[0].mxu0
      %5615 = vdwg.mxu0
      %v5616 = vadd.f32 %v5293, %v5482
      %v5617 = vadd.f32 %v5293, %v5485
      %v5618 = vadd.f32 %v5293, %v5490
      %v5619 = vadd.f32 %v5293, %v5493
      %v5620 = vadd.f32 %v5293, %v5498
      %v5621 = vadd.f32 %v5293, %v5501
      %v5622 = vadd.f32 %v5293, %v5506
      %v5623 = vadd.f32 %v5293, %v5509
      %v5624 = vadd.f32 %v5293, %v5514
      %v5625 = vadd.f32 %v5293, %v5517
      %v5626 = vadd.f32 %v5293, %v5522
      %v5627 = vadd.f32 %v5293, %v5525
      %v5628 = vadd.f32 %v5293, %v5530
      %v5629 = vadd.f32 %v5293, %v5533
      %v5630 = vadd.f32 %v5293, %v5538
      %v5631 = vadd.f32 %v5293, %v5541
      %v5632 = vadd.f32 %v5293, %v5546
      %v5633 = vadd.f32 %v5293, %v5549
      %v5634 = vadd.f32 %v5293, %v5554
      %v5635 = vadd.f32 %v5293, %v5557
      %v5636 = vadd.f32 %v5293, %v5562
      %v5637 = vadd.f32 %v5293, %v5565
      %v5638 = vadd.f32 %v5293, %v5570
      %v5639 = vadd.f32 %v5293, %v5573
      %v5640 = vadd.f32 %v5293, %v5578
      %v5641 = vadd.f32 %v5293, %v5581
      %v5642 = vadd.f32 %v5293, %v5586
      %v5643 = vadd.f32 %v5293, %v5589
      %v5644 = vadd.f32 %v5293, %v5594
      %v5645 = vadd.f32 %v5293, %v5597
      %v5646 = vadd.f32 %v5293, %v5602
      %v5647 = vadd.f32 %v5293, %v5605
      %v5648 = vadd.f32 %v5293, %v5610
      %v5649 = vadd.f32 %v5293, %v5613
      %v5650 = vld [vmem:[#allocation2 + $0x88] sm:$0xf]
      %s5651 = scalar_lea.vmem %s5, 64
      %v5652 = vld [vmem:[%s5651] sm:$0xf]
      %v5653 = vld [vmem:[%s5651 + $0x4] sm:$0xf]
      %v5654 = vld [vmem:[%s5651 + $0x8] sm:$0xf]
      %v5655 = vld [vmem:[%s5651 + $0xc] sm:$0xf]
      %v5656 = vld [vmem:[%s5651 + $0x10] sm:$0xf]
      %v5657 = vld [vmem:[%s5651 + $0x14] sm:$0xf]
      %v5658 = vld [vmem:[%s5651 + $0x18] sm:$0xf]
      %v5659 = vld [vmem:[%s5651 + $0x1c] sm:$0xf]
      %v5660 = vld [vmem:[%s5651 + $0x20] sm:$0xf]
      %v5661 = vld [vmem:[%s5651 + $0x24] sm:$0xf]
      %v5662 = vld [vmem:[%s5651 + $0x28] sm:$0xf]
      %v5663 = vld [vmem:[%s5651 + $0x2c] sm:$0xf]
      %v5664 = vld [vmem:[%s5651 + $0x30] sm:$0xf]
      %v5665 = vld [vmem:[%s5651 + $0x34] sm:$0xf]
      %v5666 = vld [vmem:[%s5651 + $0x38] sm:$0xf]
      %v5667 = vld [vmem:[%s5651 + $0x3c] sm:$0xf]
      %v5669 = vshrl.u32 %v5295, 16
      %v5671 = vrot.slane %v5669, 3
      %v5672 = vshll.u32 %v5295, 16
      %v5674 = vrot.slane %v5672, 4
      %v5675 = vor.u32 %v5671, %v5674
      %v5677 = vshrl.u32 %v5296, 16
      %v5679 = vrot.slane %v5677, 3
      %v5680 = vshll.u32 %v5296, 16
      %v5682 = vrot.slane %v5680, 4
      %v5683 = vor.u32 %v5679, %v5682
      %v5684 = vsel %vm2066, %v5675, %v5683
      %v5686 = vshrl.u32 %v5297, 16
      %v5688 = vrot.slane %v5686, 3
      %v5689 = vshll.u32 %v5297, 16
      %v5691 = vrot.slane %v5689, 4
      %v5692 = vor.u32 %v5688, %v5691
      %v5693 = vsel %vm2066, %v5683, %v5692
      %v5695 = vshrl.u32 %v5298, 16
      %v5697 = vrot.slane %v5695, 3
      %v5698 = vshll.u32 %v5298, 16
      %v5700 = vrot.slane %v5698, 4
      %v5701 = vor.u32 %v5697, %v5700
      %v5702 = vsel %vm2066, %v5692, %v5701
      %v5704 = vshrl.u32 %v5299, 16
      %v5706 = vrot.slane %v5704, 3
      %v5707 = vshll.u32 %v5299, 16
      %v5709 = vrot.slane %v5707, 4
      %v5710 = vor.u32 %v5706, %v5709
      %v5711 = vsel %vm2066, %v5701, %v5710
      %v5713 = vshrl.u32 %v5300, 16
      %v5715 = vrot.slane %v5713, 3
      %v5716 = vshll.u32 %v5300, 16
      %v5718 = vrot.slane %v5716, 4
      %v5719 = vor.u32 %v5715, %v5718
      %v5720 = vsel %vm2066, %v5710, %v5719
      %v5722 = vshrl.u32 %v5301, 16
      %v5724 = vrot.slane %v5722, 3
      %v5725 = vshll.u32 %v5301, 16
      %v5727 = vrot.slane %v5725, 4
      %v5728 = vor.u32 %v5724, %v5727
      %v5729 = vsel %vm2066, %v5719, %v5728
      %v5731 = vshrl.u32 %v5302, 16
      %v5733 = vrot.slane %v5731, 3
      %v5734 = vshll.u32 %v5302, 16
      %v5736 = vrot.slane %v5734, 4
      %v5737 = vor.u32 %v5733, %v5736
      %v5738 = vsel %vm2066, %v5728, %v5737
      %v5740 = vshrl.u32 %v5303, 16
      %v5742 = vrot.slane %v5740, 3
      %v5743 = vshll.u32 %v5303, 16
      %v5745 = vrot.slane %v5743, 4
      %v5746 = vor.u32 %v5742, %v5745
      %v5747 = vsel %vm2066, %v5737, %v5746
      %v5749 = vshrl.u32 %v5304, 16
      %v5751 = vrot.slane %v5749, 3
      %v5752 = vshll.u32 %v5304, 16
      %v5754 = vrot.slane %v5752, 4
      %v5755 = vor.u32 %v5751, %v5754
      %v5756 = vsel %vm2066, %v5746, %v5755
      %v5758 = vshrl.u32 %v5305, 16
      %v5760 = vrot.slane %v5758, 3
      %v5761 = vshll.u32 %v5305, 16
      %v5763 = vrot.slane %v5761, 4
      %v5764 = vor.u32 %v5760, %v5763
      %v5765 = vsel %vm2066, %v5755, %v5764
      %v5767 = vshrl.u32 %v5306, 16
      %v5769 = vrot.slane %v5767, 3
      %v5770 = vshll.u32 %v5306, 16
      %v5772 = vrot.slane %v5770, 4
      %v5773 = vor.u32 %v5769, %v5772
      %v5774 = vsel %vm2066, %v5764, %v5773
      %v5776 = vshrl.u32 %v5307, 16
      %v5778 = vrot.slane %v5776, 3
      %v5779 = vshll.u32 %v5307, 16
      %v5781 = vrot.slane %v5779, 4
      %v5782 = vor.u32 %v5778, %v5781
      %v5783 = vsel %vm2066, %v5773, %v5782
      %v5785 = vshrl.u32 %v5308, 16
      %v5787 = vrot.slane %v5785, 3
      %v5788 = vshll.u32 %v5308, 16
      %v5790 = vrot.slane %v5788, 4
      %v5791 = vor.u32 %v5787, %v5790
      %v5792 = vsel %vm2066, %v5782, %v5791
      %v5794 = vshrl.u32 %v5309, 16
      %v5796 = vrot.slane %v5794, 3
      %v5797 = vshll.u32 %v5309, 16
      %v5799 = vrot.slane %v5797, 4
      %v5800 = vor.u32 %v5796, %v5799
      %v5801 = vsel %vm2066, %v5791, %v5800
      %v5803 = vshrl.u32 %v5310, 16
      %v5805 = vrot.slane %v5803, 3
      %v5806 = vshll.u32 %v5310, 16
      %v5808 = vrot.slane %v5806, 4
      %v5809 = vor.u32 %v5805, %v5808
      %v5810 = vsel %vm2066, %v5800, %v5809
      %v5812 = vshrl.u32 %v5311, 16
      %v5814 = vrot.slane %v5812, 3
      %v5815 = vshll.u32 %v5311, 16
      %v5817 = vrot.slane %v5815, 4
      %v5818 = vor.u32 %v5814, %v5817
      %v5819 = vsel %vm2066, %v5809, %v5818
      %v5821 = vshrl.u32 %v5650, 16
      %v5823 = vrot.slane %v5821, 3
      %v5824 = vshll.u32 %v5650, 16
      %v5826 = vrot.slane %v5824, 4
      %v5827 = vor.u32 %v5823, %v5826
      %v5828 = vsel %vm2066, %v5818, %v5827
      %v5862 = vunpack.c.l.b16 %v5652
      %v5863 = vunpack.c.l.b16 %v5653
      %v5864 = vunpack.c.l.b16 %v5654
      %v5865 = vunpack.c.l.b16 %v5655
      %v5866 = vunpack.c.l.b16 %v5656
      %v5867 = vunpack.c.l.b16 %v5657
      %v5868 = vunpack.c.l.b16 %v5658
      %v5869 = vunpack.c.l.b16 %v5659
      %v5870 = vunpack.c.l.b16 %v5660
      %v5871 = vunpack.c.l.b16 %v5661
      %v5872 = vunpack.c.l.b16 %v5662
      %v5873 = vunpack.c.l.b16 %v5663
      %v5874 = vunpack.c.l.b16 %v5664
      %v5875 = vunpack.c.l.b16 %v5665
      %v5876 = vunpack.c.l.b16 %v5666
      %v5877 = vunpack.c.l.b16 %v5667
      %v5878 = vpack.c.b16 %v5863, %v5862
      %v5879 = vpack.c.b16 %v5865, %v5864
      %v5880 = vpack.c.b16 %v5867, %v5866
      %v5881 = vpack.c.b16 %v5869, %v5868
      %v5882 = vpack.c.b16 %v5871, %v5870
      %v5883 = vpack.c.b16 %v5873, %v5872
      %v5884 = vpack.c.b16 %v5875, %v5874
      %v5885 = vpack.c.b16 %v5877, %v5876
      %5894 = vmatprep.subr.bf16.mxu0 0
      %5895 = vmatpush1.bf16.msra.mxu0 %v5878
      %5896 = vmatprep.subr.bf16.mxu0 0
      %5897 = vmatpush1.bf16.msra.mxu0 %v5879
      %5898 = vmatprep.subr.bf16.mxu0 0
      %5899 = vmatpush1.bf16.msra.mxu0 %v5880
      %5900 = vmatprep.subr.bf16.mxu0 0
      %5901 = vmatpush1.bf16.msra.mxu0 %v5881
      %5902 = vmatprep.subr.bf16.mxu0 0
      %5903 = vmatpush1.bf16.msra.mxu0 %v5882
      %5904 = vmatprep.subr.bf16.mxu0 0
      %5905 = vmatpush1.bf16.msra.mxu0 %v5883
      %5906 = vmatprep.subr.bf16.mxu0 0
      %5907 = vmatpush1.bf16.msra.mxu0 %v5884
      %5908 = vmatprep.subr.bf16.mxu0 0
      %5909 = vmatpush1.bf16.msra.mxu0 %v5885
      %5910 = vmatprep.subr.bf16.mxu0 0
      %5911 = vmatpush1.bf16.msra.mxu0 0
      %5912 = vmatprep.subr.bf16.mxu0 0
      %5913 = vmatpush1.bf16.msra.mxu0 0
      %5914 = vmatprep.subr.bf16.mxu0 0
      %5915 = vmatpush1.bf16.msra.mxu0 0
      %5916 = vmatprep.subr.bf16.mxu0 0
      %5917 = vmatpush1.bf16.msra.mxu0 0
      %5918 = vmatprep.subr.bf16.mxu0 0
      %5919 = vmatpush1.bf16.msra.mxu0 0
      %5920 = vmatprep.subr.bf16.mxu0 0
      %5921 = vmatpush1.bf16.msra.mxu0 0
      %5922 = vmatprep.subr.bf16.mxu0 0
      %5923 = vmatpush1.bf16.msra.mxu0 0
      %5924 = vmatprep.subr.bf16.mxu0 0
      %5925 = vmatpush1.bf16.msra.mxu0 0
      %5926 = vmatprep.mubr.bf16.mxu0 0
      %5927 = vmatmul.mubr.bf16.gmra.mrb[0].mxu0 %v5684
      %v5928 = vpop.f32.mrb[0].mxu0
      %v5929 = vadd.f32 0.0, %v5928
      %v5930 = vpop.f32.mrb[0].mxu0
      %v5931 = vpop.f32.mrb[0].mxu0
      %v5932 = vadd.f32 0.0, %v5931
      %v5933 = vpop.f32.mrb[0].mxu0
      %5934 = vmatprep.mubr.bf16.mxu0 0
      %5935 = vmatmul.mubr.bf16.gmra.mrb[0].mxu0 %v5693
      %v5936 = vpop.f32.mrb[0].mxu0
      %v5937 = vadd.f32 0.0, %v5936
      %v5938 = vpop.f32.mrb[0].mxu0
      %v5939 = vpop.f32.mrb[0].mxu0
      %v5940 = vadd.f32 0.0, %v5939
      %v5941 = vpop.f32.mrb[0].mxu0
      %5942 = vmatprep.mubr.bf16.mxu0 0
      %5943 = vmatmul.mubr.bf16.gmra.mrb[0].mxu0 %v5702
      %v5944 = vpop.f32.mrb[0].mxu0
      %v5945 = vadd.f32 0.0, %v5944
      %v5946 = vpop.f32.mrb[0].mxu0
      %v5947 = vpop.f32.mrb[0].mxu0
      %v5948 = vadd.f32 0.0, %v5947
      %v5949 = vpop.f32.mrb[0].mxu0
      %5950 = vmatprep.mubr.bf16.mxu0 0
      %5951 = vmatmul.mubr.bf16.gmra.mrb[0].mxu0 %v5711
      %v5952 = vpop.f32.mrb[0].mxu0
      %v5953 = vadd.f32 0.0, %v5952
      %v5954 = vpop.f32.mrb[0].mxu0
      %v5955 = vpop.f32.mrb[0].mxu0
      %v5956 = vadd.f32 0.0, %v5955
      %v5957 = vpop.f32.mrb[0].mxu0
      %5958 = vmatprep.mubr.bf16.mxu0 0
      %5959 = vmatmul.mubr.bf16.gmra.mrb[0].mxu0 %v5720
      %v5960 = vpop.f32.mrb[0].mxu0
      %v5961 = vadd.f32 0.0, %v5960
      %v5962 = vpop.f32.mrb[0].mxu0
      %v5963 = vpop.f32.mrb[0].mxu0
      %v5964 = vadd.f32 0.0, %v5963
      %v5965 = vpop.f32.mrb[0].mxu0
      %5966 = vmatprep.mubr.bf16.mxu0 0
      %5967 = vmatmul.mubr.bf16.gmra.mrb[0].mxu0 %v5729
      %v5968 = vpop.f32.mrb[0].mxu0
      %v5969 = vadd.f32 0.0, %v5968
      %v5970 = vpop.f32.mrb[0].mxu0
      %v5971 = vpop.f32.mrb[0].mxu0
      %v5972 = vadd.f32 0.0, %v5971
      %v5973 = vpop.f32.mrb[0].mxu0
      %5974 = vmatprep.mubr.bf16.mxu0 0
      %5975 = vmatmul.mubr.bf16.gmra.mrb[0].mxu0 %v5738
      %v5976 = vpop.f32.mrb[0].mxu0
      %v5977 = vadd.f32 0.0, %v5976
      %v5978 = vpop.f32.mrb[0].mxu0
      %v5979 = vpop.f32.mrb[0].mxu0
      %v5980 = vadd.f32 0.0, %v5979
      %v5981 = vpop.f32.mrb[0].mxu0
      %5982 = vmatprep.mubr.bf16.mxu0 0
      %5983 = vmatmul.mubr.bf16.gmra.mrb[0].mxu0 %v5747
      %v5984 = vpop.f32.mrb[0].mxu0
      %v5985 = vadd.f32 0.0, %v5984
      %v5986 = vpop.f32.mrb[0].mxu0
      %v5987 = vpop.f32.mrb[0].mxu0
      %v5988 = vadd.f32 0.0, %v5987
      %v5989 = vpop.f32.mrb[0].mxu0
      %5990 = vmatprep.mubr.bf16.mxu0 0
      %5991 = vmatmul.mubr.bf16.gmra.mrb[0].mxu0 %v5756
      %v5992 = vpop.f32.mrb[0].mxu0
      %v5993 = vadd.f32 0.0, %v5992
      %v5994 = vpop.f32.mrb[0].mxu0
      %v5995 = vpop.f32.mrb[0].mxu0
      %v5996 = vadd.f32 0.0, %v5995
      %v5997 = vpop.f32.mrb[0].mxu0
      %5998 = vmatprep.mubr.bf16.mxu0 0
      %5999 = vmatmul.mubr.bf16.gmra.mrb[0].mxu0 %v5765
      %v6000 = vpop.f32.mrb[0].mxu0
      %v6001 = vadd.f32 0.0, %v6000
      %v6002 = vpop.f32.mrb[0].mxu0
      %v6003 = vpop.f32.mrb[0].mxu0
      %v6004 = vadd.f32 0.0, %v6003
      %v6005 = vpop.f32.mrb[0].mxu0
      %6006 = vmatprep.mubr.bf16.mxu0 0
      %6007 = vmatmul.mubr.bf16.gmra.mrb[0].mxu0 %v5774
      %v6008 = vpop.f32.mrb[0].mxu0
      %v6009 = vadd.f32 0.0, %v6008
      %v6010 = vpop.f32.mrb[0].mxu0
      %v6011 = vpop.f32.mrb[0].mxu0
      %v6012 = vadd.f32 0.0, %v6011
      %v6013 = vpop.f32.mrb[0].mxu0
      %6014 = vmatprep.mubr.bf16.mxu0 0
      %6015 = vmatmul.mubr.bf16.gmra.mrb[0].mxu0 %v5783
      %v6016 = vpop.f32.mrb[0].mxu0
      %v6017 = vadd.f32 0.0, %v6016
      %v6018 = vpop.f32.mrb[0].mxu0
      %v6019 = vpop.f32.mrb[0].mxu0
      %v6020 = vadd.f32 0.0, %v6019
      %v6021 = vpop.f32.mrb[0].mxu0
      %6022 = vmatprep.mubr.bf16.mxu0 0
      %6023 = vmatmul.mubr.bf16.gmra.mrb[0].mxu0 %v5792
      %v6024 = vpop.f32.mrb[0].mxu0
      %v6025 = vadd.f32 0.0, %v6024
      %v6026 = vpop.f32.mrb[0].mxu0
      %v6027 = vpop.f32.mrb[0].mxu0
      %v6028 = vadd.f32 0.0, %v6027
      %v6029 = vpop.f32.mrb[0].mxu0
      %6030 = vmatprep.mubr.bf16.mxu0 0
      %6031 = vmatmul.mubr.bf16.gmra.mrb[0].mxu0 %v5801
      %v6032 = vpop.f32.mrb[0].mxu0
      %v6033 = vadd.f32 0.0, %v6032
      %v6034 = vpop.f32.mrb[0].mxu0
      %v6035 = vpop.f32.mrb[0].mxu0
      %v6036 = vadd.f32 0.0, %v6035
      %v6037 = vpop.f32.mrb[0].mxu0
      %6038 = vmatprep.mubr.bf16.mxu0 0
      %6039 = vmatmul.mubr.bf16.gmra.mrb[0].mxu0 %v5810
      %v6040 = vpop.f32.mrb[0].mxu0
      %v6041 = vadd.f32 0.0, %v6040
      %v6042 = vpop.f32.mrb[0].mxu0
      %v6043 = vpop.f32.mrb[0].mxu0
      %v6044 = vadd.f32 0.0, %v6043
      %v6045 = vpop.f32.mrb[0].mxu0
      %6046 = vmatprep.mubr.bf16.mxu0 0
      %6047 = vmatmul.mubr.bf16.gmra.mrb[0].mxu0 %v5819
      %v6048 = vpop.f32.mrb[0].mxu0
      %v6049 = vadd.f32 0.0, %v6048
      %v6050 = vpop.f32.mrb[0].mxu0
      %v6051 = vpop.f32.mrb[0].mxu0
      %v6052 = vadd.f32 0.0, %v6051
      %v6053 = vpop.f32.mrb[0].mxu0
      %6054 = vmatprep.mubr.bf16.mxu0 0
      %6055 = vmatmul.mubr.bf16.gmra.mrb[0].mxu0 %v5828
      %v6056 = vpop.f32.mrb[0].mxu0
      %v6057 = vadd.f32 0.0, %v6056
      %v6058 = vpop.f32.mrb[0].mxu0
      %v6059 = vpop.f32.mrb[0].mxu0
      %v6060 = vadd.f32 0.0, %v6059
      %v6061 = vpop.f32.mrb[0].mxu0
      %6062 = vdwg.mxu0
      %v6063 = vadd.f32 %v5616, %v5929
      %v6064 = vadd.f32 %v5617, %v5932
      %v6065 = vadd.f32 %v5618, %v5937
      %v6066 = vadd.f32 %v5619, %v5940
      %v6067 = vadd.f32 %v5620, %v5945
      %v6068 = vadd.f32 %v5621, %v5948
      %v6069 = vadd.f32 %v5622, %v5953
      %v6070 = vadd.f32 %v5623, %v5956
      %v6071 = vadd.f32 %v5624, %v5961
      %v6072 = vadd.f32 %v5625, %v5964
      %v6073 = vadd.f32 %v5626, %v5969
      %v6074 = vadd.f32 %v5627, %v5972
      %v6075 = vadd.f32 %v5628, %v5977
      %v6076 = vadd.f32 %v5629, %v5980
      %v6077 = vadd.f32 %v5630, %v5985
      %v6078 = vadd.f32 %v5631, %v5988
      %v6079 = vadd.f32 %v5632, %v5993
      %v6080 = vadd.f32 %v5633, %v5996
      %v6081 = vadd.f32 %v5634, %v6001
      %v6082 = vadd.f32 %v5635, %v6004
      %v6083 = vadd.f32 %v5636, %v6009
      %v6084 = vadd.f32 %v5637, %v6012
      %v6085 = vadd.f32 %v5638, %v6017
      %v6086 = vadd.f32 %v5639, %v6020
      %v6087 = vadd.f32 %v5640, %v6025
      %v6088 = vadd.f32 %v5641, %v6028
      %v6089 = vadd.f32 %v5642, %v6033
      %v6090 = vadd.f32 %v5643, %v6036
      %v6091 = vadd.f32 %v5644, %v6041
      %v6092 = vadd.f32 %v5645, %v6044
      %v6093 = vadd.f32 %v5646, %v6049
      %v6094 = vadd.f32 %v5647, %v6052
      %v6095 = vadd.f32 %v5648, %v6057
      %v6096 = vadd.f32 %v5649, %v6060
      %v6097 = vld [vmem:[#allocation2] sm:$0xf0]
      %s6098 = scalar_lea.vmem %s5, 128
      %v6099 = vld [vmem:[%s6098] sm:$0xf]
      %v6100 = vld [vmem:[%s6098 + $0x4] sm:$0xf]
      %v6101 = vld [vmem:[%s6098 + $0x8] sm:$0xf]
      %v6102 = vld [vmem:[%s6098 + $0xc] sm:$0xf]
      %v6103 = vld [vmem:[%s6098 + $0x10] sm:$0xf]
      %v6104 = vld [vmem:[%s6098 + $0x14] sm:$0xf]
      %v6105 = vld [vmem:[%s6098 + $0x18] sm:$0xf]
      %v6106 = vld [vmem:[%s6098 + $0x1c] sm:$0xf]
      %v6107 = vld [vmem:[%s6098 + $0x20] sm:$0xf]
      %v6108 = vld [vmem:[%s6098 + $0x24] sm:$0xf]
      %v6109 = vld [vmem:[%s6098 + $0x28] sm:$0xf]
      %v6110 = vld [vmem:[%s6098 + $0x2c] sm:$0xf]
      %v6111 = vld [vmem:[%s6098 + $0x30] sm:$0xf]
      %v6112 = vld [vmem:[%s6098 + $0x34] sm:$0xf]
      %v6113 = vld [vmem:[%s6098 + $0x38] sm:$0xf]
      %v6114 = vld [vmem:[%s6098 + $0x3c] sm:$0xf]
      %v6117 = vrot.slane %v6097, 4
      %v6118 = vrot.slane %v5296, 4
      %v6119 = vsel %vm1615, %v6117, %v6118
      %v6120 = vrot.slane %v5297, 4
      %v6121 = vsel %vm1615, %v6118, %v6120
      %v6122 = vrot.slane %v5298, 4
      %v6123 = vsel %vm1615, %v6120, %v6122
      %v6124 = vrot.slane %v5299, 4
      %v6125 = vsel %vm1615, %v6122, %v6124
      %v6126 = vrot.slane %v5300, 4
      %v6127 = vsel %vm1615, %v6124, %v6126
      %v6128 = vrot.slane %v5301, 4
      %v6129 = vsel %vm1615, %v6126, %v6128
      %v6130 = vrot.slane %v5302, 4
      %v6131 = vsel %vm1615, %v6128, %v6130
      %v6132 = vrot.slane %v5303, 4
      %v6133 = vsel %vm1615, %v6130, %v6132
      %v6134 = vrot.slane %v5304, 4
      %v6135 = vsel %vm1615, %v6132, %v6134
      %v6136 = vrot.slane %v5305, 4
      %v6137 = vsel %vm1615, %v6134, %v6136
      %v6138 = vrot.slane %v5306, 4
      %v6139 = vsel %vm1615, %v6136, %v6138
      %v6140 = vrot.slane %v5307, 4
      %v6141 = vsel %vm1615, %v6138, %v6140
      %v6142 = vrot.slane %v5308, 4
      %v6143 = vsel %vm1615, %v6140, %v6142
      %v6144 = vrot.slane %v5309, 4
      %v6145 = vsel %vm1615, %v6142, %v6144
      %v6146 = vrot.slane %v5310, 4
      %v6147 = vsel %vm1615, %v6144, %v6146
      %v6148 = vrot.slane %v5311, 4
      %v6149 = vsel %vm1615, %v6146, %v6148
      %v6150 = vrot.slane %v5650, 4
      %v6151 = vsel %vm1615, %v6148, %v6150
      %v6185 = vunpack.c.l.b16 %v6099
      %v6186 = vunpack.c.l.b16 %v6100
      %v6187 = vunpack.c.l.b16 %v6101
      %v6188 = vunpack.c.l.b16 %v6102
      %v6189 = vunpack.c.l.b16 %v6103
      %v6190 = vunpack.c.l.b16 %v6104
      %v6191 = vunpack.c.l.b16 %v6105
      %v6192 = vunpack.c.l.b16 %v6106
      %v6193 = vunpack.c.l.b16 %v6107
      %v6194 = vunpack.c.l.b16 %v6108
      %v6195 = vunpack.c.l.b16 %v6109
      %v6196 = vunpack.c.l.b16 %v6110
      %v6197 = vunpack.c.l.b16 %v6111
      %v6198 = vunpack.c.l.b16 %v6112
      %v6199 = vunpack.c.l.b16 %v6113
      %v6200 = vunpack.c.l.b16 %v6114
      %v6201 = vpack.c.b16 %v6186, %v6185
      %v6202 = vpack.c.b16 %v6188, %v6187
      %v6203 = vpack.c.b16 %v6190, %v6189
      %v6204 = vpack.c.b16 %v6192, %v6191
      %v6205 = vpack.c.b16 %v6194, %v6193
      %v6206 = vpack.c.b16 %v6196, %v6195
      %v6207 = vpack.c.b16 %v6198, %v6197
      %v6208 = vpack.c.b16 %v6200, %v6199
      %6217 = vmatprep.subr.bf16.mxu0 0
      %6218 = vmatpush1.bf16.msra.mxu0 %v6201
      %6219 = vmatprep.subr.bf16.mxu0 0
      %6220 = vmatpush1.bf16.msra.mxu0 %v6202
      %6221 = vmatprep.subr.bf16.mxu0 0
      %6222 = vmatpush1.bf16.msra.mxu0 %v6203
      %6223 = vmatprep.subr.bf16.mxu0 0
      %6224 = vmatpush1.bf16.msra.mxu0 %v6204
      %6225 = vmatprep.subr.bf16.mxu0 0
      %6226 = vmatpush1.bf16.msra.mxu0 %v6205
      %6227 = vmatprep.subr.bf16.mxu0 0
      %6228 = vmatpush1.bf16.msra.mxu0 %v6206
      %6229 = vmatprep.subr.bf16.mxu0 0
      %6230 = vmatpush1.bf16.msra.mxu0 %v6207
      %6231 = vmatprep.subr.bf16.mxu0 0
      %6232 = vmatpush1.bf16.msra.mxu0 %v6208
      %6233 = vmatprep.subr.bf16.mxu0 0
      %6234 = vmatpush1.bf16.msra.mxu0 0
      %6235 = vmatprep.subr.bf16.mxu0 0
      %6236 = vmatpush1.bf16.msra.mxu0 0
      %6237 = vmatprep.subr.bf16.mxu0 0
      %6238 = vmatpush1.bf16.msra.mxu0 0
      %6239 = vmatprep.subr.bf16.mxu0 0
      %6240 = vmatpush1.bf16.msra.mxu0 0
      %6241 = vmatprep.subr.bf16.mxu0 0
      %6242 = vmatpush1.bf16.msra.mxu0 0
      %6243 = vmatprep.subr.bf16.mxu0 0
      %6244 = vmatpush1.bf16.msra.mxu0 0
      %6245 = vmatprep.subr.bf16.mxu0 0
      %6246 = vmatpush1.bf16.msra.mxu0 0
      %6247 = vmatprep.subr.bf16.mxu0 0
      %6248 = vmatpush1.bf16.msra.mxu0 0
      %6249 = vmatprep.mubr.bf16.mxu0 0
      %6250 = vmatmul.mubr.bf16.gmra.mrb[0].mxu0 %v6119
      %v6251 = vpop.f32.mrb[0].mxu0
      %v6252 = vadd.f32 0.0, %v6251
      %v6253 = vpop.f32.mrb[0].mxu0
      %v6254 = vpop.f32.mrb[0].mxu0
      %v6255 = vadd.f32 0.0, %v6254
      %v6256 = vpop.f32.mrb[0].mxu0
      %6257 = vmatprep.mubr.bf16.mxu0 0
      %6258 = vmatmul.mubr.bf16.gmra.mrb[0].mxu0 %v6121
      %v6259 = vpop.f32.mrb[0].mxu0
      %v6260 = vadd.f32 0.0, %v6259
      %v6261 = vpop.f32.mrb[0].mxu0
      %v6262 = vpop.f32.mrb[0].mxu0
      %v6263 = vadd.f32 0.0, %v6262
      %v6264 = vpop.f32.mrb[0].mxu0
      %6265 = vmatprep.mubr.bf16.mxu0 0
      %6266 = vmatmul.mubr.bf16.gmra.mrb[0].mxu0 %v6123
      %v6267 = vpop.f32.mrb[0].mxu0
      %v6268 = vadd.f32 0.0, %v6267
      %v6269 = vpop.f32.mrb[0].mxu0
      %v6270 = vpop.f32.mrb[0].mxu0
      %v6271 = vadd.f32 0.0, %v6270
      %v6272 = vpop.f32.mrb[0].mxu0
      %6273 = vmatprep.mubr.bf16.mxu0 0
      %6274 = vmatmul.mubr.bf16.gmra.mrb[0].mxu0 %v6125
      %v6275 = vpop.f32.mrb[0].mxu0
      %v6276 = vadd.f32 0.0, %v6275
      %v6277 = vpop.f32.mrb[0].mxu0
      %v6278 = vpop.f32.mrb[0].mxu0
      %v6279 = vadd.f32 0.0, %v6278
      %v6280 = vpop.f32.mrb[0].mxu0
      %6281 = vmatprep.mubr.bf16.mxu0 0
      %6282 = vmatmul.mubr.bf16.gmra.mrb[0].mxu0 %v6127
      %v6283 = vpop.f32.mrb[0].mxu0
      %v6284 = vadd.f32 0.0, %v6283
      %v6285 = vpop.f32.mrb[0].mxu0
      %v6286 = vpop.f32.mrb[0].mxu0
      %v6287 = vadd.f32 0.0, %v6286
      %v6288 = vpop.f32.mrb[0].mxu0
      %6289 = vmatprep.mubr.bf16.mxu0 0
      %6290 = vmatmul.mubr.bf16.gmra.mrb[0].mxu0 %v6129
      %v6291 = vpop.f32.mrb[0].mxu0
      %v6292 = vadd.f32 0.0, %v6291
      %v6293 = vpop.f32.mrb[0].mxu0
      %v6294 = vpop.f32.mrb[0].mxu0
      %v6295 = vadd.f32 0.0, %v6294
      %v6296 = vpop.f32.mrb[0].mxu0
      %6297 = vmatprep.mubr.bf16.mxu0 0
      %6298 = vmatmul.mubr.bf16.gmra.mrb[0].mxu0 %v6131
      %v6299 = vpop.f32.mrb[0].mxu0
      %v6300 = vadd.f32 0.0, %v6299
      %v6301 = vpop.f32.mrb[0].mxu0
      %v6302 = vpop.f32.mrb[0].mxu0
      %v6303 = vadd.f32 0.0, %v6302
      %v6304 = vpop.f32.mrb[0].mxu0
      %6305 = vmatprep.mubr.bf16.mxu0 0
      %6306 = vmatmul.mubr.bf16.gmra.mrb[0].mxu0 %v6133
      %v6307 = vpop.f32.mrb[0].mxu0
      %v6308 = vadd.f32 0.0, %v6307
      %v6309 = vpop.f32.mrb[0].mxu0
      %v6310 = vpop.f32.mrb[0].mxu0
      %v6311 = vadd.f32 0.0, %v6310
      %v6312 = vpop.f32.mrb[0].mxu0
      %6313 = vmatprep.mubr.bf16.mxu0 0
      %6314 = vmatmul.mubr.bf16.gmra.mrb[0].mxu0 %v6135
      %v6315 = vpop.f32.mrb[0].mxu0
      %v6316 = vadd.f32 0.0, %v6315
      %v6317 = vpop.f32.mrb[0].mxu0
      %v6318 = vpop.f32.mrb[0].mxu0
      %v6319 = vadd.f32 0.0, %v6318
      %v6320 = vpop.f32.mrb[0].mxu0
      %6321 = vmatprep.mubr.bf16.mxu0 0
      %6322 = vmatmul.mubr.bf16.gmra.mrb[0].mxu0 %v6137
      %v6323 = vpop.f32.mrb[0].mxu0
      %v6324 = vadd.f32 0.0, %v6323
      %v6325 = vpop.f32.mrb[0].mxu0
      %v6326 = vpop.f32.mrb[0].mxu0
      %v6327 = vadd.f32 0.0, %v6326
      %v6328 = vpop.f32.mrb[0].mxu0
      %6329 = vmatprep.mubr.bf16.mxu0 0
      %6330 = vmatmul.mubr.bf16.gmra.mrb[0].mxu0 %v6139
      %v6331 = vpop.f32.mrb[0].mxu0
      %v6332 = vadd.f32 0.0, %v6331
      %v6333 = vpop.f32.mrb[0].mxu0
      %v6334 = vpop.f32.mrb[0].mxu0
      %v6335 = vadd.f32 0.0, %v6334
      %v6336 = vpop.f32.mrb[0].mxu0
      %6337 = vmatprep.mubr.bf16.mxu0 0
      %6338 = vmatmul.mubr.bf16.gmra.mrb[0].mxu0 %v6141
      %v6339 = vpop.f32.mrb[0].mxu0
      %v6340 = vadd.f32 0.0, %v6339
      %v6341 = vpop.f32.mrb[0].mxu0
      %v6342 = vpop.f32.mrb[0].mxu0
      %v6343 = vadd.f32 0.0, %v6342
      %v6344 = vpop.f32.mrb[0].mxu0
      %6345 = vmatprep.mubr.bf16.mxu0 0
      %6346 = vmatmul.mubr.bf16.gmra.mrb[0].mxu0 %v6143
      %v6347 = vpop.f32.mrb[0].mxu0
      %v6348 = vadd.f32 0.0, %v6347
      %v6349 = vpop.f32.mrb[0].mxu0
      %v6350 = vpop.f32.mrb[0].mxu0
      %v6351 = vadd.f32 0.0, %v6350
      %v6352 = vpop.f32.mrb[0].mxu0
      %6353 = vmatprep.mubr.bf16.mxu0 0
      %6354 = vmatmul.mubr.bf16.gmra.mrb[0].mxu0 %v6145
      %v6355 = vpop.f32.mrb[0].mxu0
      %v6356 = vadd.f32 0.0, %v6355
      %v6357 = vpop.f32.mrb[0].mxu0
      %v6358 = vpop.f32.mrb[0].mxu0
      %v6359 = vadd.f32 0.0, %v6358
      %v6360 = vpop.f32.mrb[0].mxu0
      %6361 = vmatprep.mubr.bf16.mxu0 0
      %6362 = vmatmul.mubr.bf16.gmra.mrb[0].mxu0 %v6147
      %v6363 = vpop.f32.mrb[0].mxu0
      %v6364 = vadd.f32 0.0, %v6363
      %v6365 = vpop.f32.mrb[0].mxu0
      %v6366 = vpop.f32.mrb[0].mxu0
      %v6367 = vadd.f32 0.0, %v6366
      %v6368 = vpop.f32.mrb[0].mxu0
      %6369 = vmatprep.mubr.bf16.mxu0 0
      %6370 = vmatmul.mubr.bf16.gmra.mrb[0].mxu0 %v6149
      %v6371 = vpop.f32.mrb[0].mxu0
      %v6372 = vadd.f32 0.0, %v6371
      %v6373 = vpop.f32.mrb[0].mxu0
      %v6374 = vpop.f32.mrb[0].mxu0
      %v6375 = vadd.f32 0.0, %v6374
      %v6376 = vpop.f32.mrb[0].mxu0
      %6377 = vmatprep.mubr.bf16.mxu0 0
      %6378 = vmatmul.mubr.bf16.gmra.mrb[0].mxu0 %v6151
      %v6379 = vpop.f32.mrb[0].mxu0
      %v6380 = vadd.f32 0.0, %v6379
      %v6381 = vpop.f32.mrb[0].mxu0
      %v6382 = vpop.f32.mrb[0].mxu0
      %v6383 = vadd.f32 0.0, %v6382
      %v6384 = vpop.f32.mrb[0].mxu0
      %6385 = vdwg.mxu0
      %v6386 = vadd.f32 %v6063, %v6252
      %v6387 = vadd.f32 %v6064, %v6255
      %v6388 = vadd.f32 %v6065, %v6260
      %v6389 = vadd.f32 %v6066, %v6263
      %v6390 = vadd.f32 %v6067, %v6268
      %v6391 = vadd.f32 %v6068, %v6271
      %v6392 = vadd.f32 %v6069, %v6276
      %v6393 = vadd.f32 %v6070, %v6279
      %v6394 = vadd.f32 %v6071, %v6284
      %v6395 = vadd.f32 %v6072, %v6287
      %v6396 = vadd.f32 %v6073, %v6292
      %v6397 = vadd.f32 %v6074, %v6295
      %v6398 = vadd.f32 %v6075, %v6300
      %v6399 = vadd.f32 %v6076, %v6303
      %v6400 = vadd.f32 %v6077, %v6308
      %v6401 = vadd.f32 %v6078, %v6311
      %v6402 = vadd.f32 %v6079, %v6316
      %v6403 = vadd.f32 %v6080, %v6319
      %v6404 = vadd.f32 %v6081, %v6324
      %v6405 = vadd.f32 %v6082, %v6327
      %v6406 = vadd.f32 %v6083, %v6332
      %v6407 = vadd.f32 %v6084, %v6335
      %v6408 = vadd.f32 %v6085, %v6340
      %v6409 = vadd.f32 %v6086, %v6343
      %v6410 = vadd.f32 %v6087, %v6348
      %v6411 = vadd.f32 %v6088, %v6351
      %v6412 = vadd.f32 %v6089, %v6356
      %v6413 = vadd.f32 %v6090, %v6359
      %v6414 = vadd.f32 %v6091, %v6364
      %v6415 = vadd.f32 %v6092, %v6367
      %v6416 = vadd.f32 %v6093, %v6372
      %v6417 = vadd.f32 %v6094, %v6375
      %v6418 = vadd.f32 %v6095, %v6380
      %v6419 = vadd.f32 %v6096, %v6383
      %v6420 = vld [vmem:[#allocation2 + $0x8] sm:$0xf8]
      %v6421 = vld [vmem:[#allocation2 + $0x10] sm:$0xff]
      %v6422 = vld [vmem:[#allocation2 + $0x18] sm:$0xff]
      %v6423 = vld [vmem:[#allocation2 + $0x20] sm:$0xff]
      %v6424 = vld [vmem:[#allocation2 + $0x28] sm:$0xff]
      %v6425 = vld [vmem:[#allocation2 + $0x30] sm:$0xff]
      %v6426 = vld [vmem:[#allocation2 + $0x38] sm:$0xff]
      %v6427 = vld [vmem:[#allocation2 + $0x40] sm:$0xff]
      %v6428 = vld [vmem:[#allocation2 + $0x48] sm:$0xff]
      %v6429 = vld [vmem:[#allocation2 + $0x50] sm:$0xff]
      %v6430 = vld [vmem:[#allocation2 + $0x58] sm:$0xff]
      %v6431 = vld [vmem:[#allocation2 + $0x60] sm:$0xff]
      %v6432 = vld [vmem:[#allocation2 + $0x68] sm:$0xff]
      %v6433 = vld [vmem:[#allocation2 + $0x70] sm:$0xff]
      %v6434 = vld [vmem:[#allocation2 + $0x78] sm:$0xff]
      %v6435 = vld [vmem:[#allocation2 + $0x80] sm:$0xff]
      %v6436 = vld [vmem:[#allocation2 + $0x88] sm:$0xff]
      %v6437 = vld [vmem:[#allocation2 + $0x90] sm:$0xf]
      %s6438 = scalar_lea.vmem %s5, 192
      %v6439 = vld [vmem:[%s6438] sm:$0xf]
      %v6440 = vld [vmem:[%s6438 + $0x4] sm:$0xf]
      %v6441 = vld [vmem:[%s6438 + $0x8] sm:$0xf]
      %v6442 = vld [vmem:[%s6438 + $0xc] sm:$0xf]
      %v6443 = vld [vmem:[%s6438 + $0x10] sm:$0xf]
      %v6444 = vld [vmem:[%s6438 + $0x14] sm:$0xf]
      %v6445 = vld [vmem:[%s6438 + $0x18] sm:$0xf]
      %v6446 = vld [vmem:[%s6438 + $0x1c] sm:$0xf]
      %v6447 = vld [vmem:[%s6438 + $0x20] sm:$0xf]
      %v6448 = vld [vmem:[%s6438 + $0x24] sm:$0xf]
      %v6449 = vld [vmem:[%s6438 + $0x28] sm:$0xf]
      %v6450 = vld [vmem:[%s6438 + $0x2c] sm:$0xf]
      %v6451 = vld [vmem:[%s6438 + $0x30] sm:$0xf]
      %v6452 = vld [vmem:[%s6438 + $0x34] sm:$0xf]
      %v6453 = vld [vmem:[%s6438 + $0x38] sm:$0xf]
      %v6454 = vld [vmem:[%s6438 + $0x3c] sm:$0xf]
      %v6456 = vshrl.u32 %v6420, 16
      %v6458 = vrot.slane %v6456, 3
      %v6459 = vshll.u32 %v6420, 16
      %v6461 = vrot.slane %v6459, 4
      %v6462 = vor.u32 %v6458, %v6461
      %v6464 = vshrl.u32 %v6421, 16
      %v6466 = vrot.slane %v6464, 3
      %v6467 = vshll.u32 %v6421, 16
      %v6469 = vrot.slane %v6467, 4
      %v6470 = vor.u32 %v6466, %v6469
      %v6471 = vsel %vm2066, %v6462, %v6470
      %v6473 = vshrl.u32 %v6422, 16
      %v6475 = vrot.slane %v6473, 3
      %v6476 = vshll.u32 %v6422, 16
      %v6478 = vrot.slane %v6476, 4
      %v6479 = vor.u32 %v6475, %v6478
      %v6480 = vsel %vm2066, %v6470, %v6479
      %v6482 = vshrl.u32 %v6423, 16
      %v6484 = vrot.slane %v6482, 3
      %v6485 = vshll.u32 %v6423, 16
      %v6487 = vrot.slane %v6485, 4
      %v6488 = vor.u32 %v6484, %v6487
      %v6489 = vsel %vm2066, %v6479, %v6488
      %v6491 = vshrl.u32 %v6424, 16
      %v6493 = vrot.slane %v6491, 3
      %v6494 = vshll.u32 %v6424, 16
      %v6496 = vrot.slane %v6494, 4
      %v6497 = vor.u32 %v6493, %v6496
      %v6498 = vsel %vm2066, %v6488, %v6497
      %v6500 = vshrl.u32 %v6425, 16
      %v6502 = vrot.slane %v6500, 3
      %v6503 = vshll.u32 %v6425, 16
      %v6505 = vrot.slane %v6503, 4
      %v6506 = vor.u32 %v6502, %v6505
      %v6507 = vsel %vm2066, %v6497, %v6506
      %v6509 = vshrl.u32 %v6426, 16
      %v6511 = vrot.slane %v6509, 3
      %v6512 = vshll.u32 %v6426, 16
      %v6514 = vrot.slane %v6512, 4
      %v6515 = vor.u32 %v6511, %v6514
      %v6516 = vsel %vm2066, %v6506, %v6515
      %v6518 = vshrl.u32 %v6427, 16
      %v6520 = vrot.slane %v6518, 3
      %v6521 = vshll.u32 %v6427, 16
      %v6523 = vrot.slane %v6521, 4
      %v6524 = vor.u32 %v6520, %v6523
      %v6525 = vsel %vm2066, %v6515, %v6524
      %v6527 = vshrl.u32 %v6428, 16
      %v6529 = vrot.slane %v6527, 3
      %v6530 = vshll.u32 %v6428, 16
      %v6532 = vrot.slane %v6530, 4
      %v6533 = vor.u32 %v6529, %v6532
      %v6534 = vsel %vm2066, %v6524, %v6533
      %v6536 = vshrl.u32 %v6429, 16
      %v6538 = vrot.slane %v6536, 3
      %v6539 = vshll.u32 %v6429, 16
      %v6541 = vrot.slane %v6539, 4
      %v6542 = vor.u32 %v6538, %v6541
      %v6543 = vsel %vm2066, %v6533, %v6542
      %v6545 = vshrl.u32 %v6430, 16
      %v6547 = vrot.slane %v6545, 3
      %v6548 = vshll.u32 %v6430, 16
      %v6550 = vrot.slane %v6548, 4
      %v6551 = vor.u32 %v6547, %v6550
      %v6552 = vsel %vm2066, %v6542, %v6551
      %v6554 = vshrl.u32 %v6431, 16
      %v6556 = vrot.slane %v6554, 3
      %v6557 = vshll.u32 %v6431, 16
      %v6559 = vrot.slane %v6557, 4
      %v6560 = vor.u32 %v6556, %v6559
      %v6561 = vsel %vm2066, %v6551, %v6560
      %v6563 = vshrl.u32 %v6432, 16
      %v6565 = vrot.slane %v6563, 3
      %v6566 = vshll.u32 %v6432, 16
      %v6568 = vrot.slane %v6566, 4
      %v6569 = vor.u32 %v6565, %v6568
      %v6570 = vsel %vm2066, %v6560, %v6569
      %v6572 = vshrl.u32 %v6433, 16
      %v6574 = vrot.slane %v6572, 3
      %v6575 = vshll.u32 %v6433, 16
      %v6577 = vrot.slane %v6575, 4
      %v6578 = vor.u32 %v6574, %v6577
      %v6579 = vsel %vm2066, %v6569, %v6578
      %v6581 = vshrl.u32 %v6434, 16
      %v6583 = vrot.slane %v6581, 3
      %v6584 = vshll.u32 %v6434, 16
      %v6586 = vrot.slane %v6584, 4
      %v6587 = vor.u32 %v6583, %v6586
      %v6588 = vsel %vm2066, %v6578, %v6587
      %v6590 = vshrl.u32 %v6435, 16
      %v6592 = vrot.slane %v6590, 3
      %v6593 = vshll.u32 %v6435, 16
      %v6595 = vrot.slane %v6593, 4
      %v6596 = vor.u32 %v6592, %v6595
      %v6597 = vsel %vm2066, %v6587, %v6596
      %v6599 = vshrl.u32 %v6436, 16
      %v6601 = vrot.slane %v6599, 3
      %v6602 = vshll.u32 %v6436, 16
      %v6604 = vrot.slane %v6602, 4
      %v6605 = vor.u32 %v6601, %v6604
      %v6606 = vsel %vm2066, %v6596, %v6605
      %v6608 = vshrl.u32 %v6437, 16
      %v6610 = vrot.slane %v6608, 3
      %v6611 = vshll.u32 %v6437, 16
      %v6613 = vrot.slane %v6611, 4
      %v6614 = vor.u32 %v6610, %v6613
      %v6615 = vsel %vm2066, %v6605, %v6614
      %v6649 = vunpack.c.l.b16 %v6439
      %v6650 = vunpack.c.l.b16 %v6440
      %v6651 = vunpack.c.l.b16 %v6441
      %v6652 = vunpack.c.l.b16 %v6442
      %v6653 = vunpack.c.l.b16 %v6443
      %v6654 = vunpack.c.l.b16 %v6444
      %v6655 = vunpack.c.l.b16 %v6445
      %v6656 = vunpack.c.l.b16 %v6446
      %v6657 = vunpack.c.l.b16 %v6447
      %v6658 = vunpack.c.l.b16 %v6448
      %v6659 = vunpack.c.l.b16 %v6449
      %v6660 = vunpack.c.l.b16 %v6450
      %v6661 = vunpack.c.l.b16 %v6451
      %v6662 = vunpack.c.l.b16 %v6452
      %v6663 = vunpack.c.l.b16 %v6453
      %v6664 = vunpack.c.l.b16 %v6454
      %v6665 = vpack.c.b16 %v6650, %v6649
      %v6666 = vpack.c.b16 %v6652, %v6651
      %v6667 = vpack.c.b16 %v6654, %v6653
      %v6668 = vpack.c.b16 %v6656, %v6655
      %v6669 = vpack.c.b16 %v6658, %v6657
      %v6670 = vpack.c.b16 %v6660, %v6659
      %v6671 = vpack.c.b16 %v6662, %v6661
      %v6672 = vpack.c.b16 %v6664, %v6663
      %6681 = vmatprep.subr.bf16.mxu0 0
      %6682 = vmatpush1.bf16.msra.mxu0 %v6665
      %6683 = vmatprep.subr.bf16.mxu0 0
      %6684 = vmatpush1.bf16.msra.mxu0 %v6666
      %6685 = vmatprep.subr.bf16.mxu0 0
      %6686 = vmatpush1.bf16.msra.mxu0 %v6667
      %6687 = vmatprep.subr.bf16.mxu0 0
      %6688 = vmatpush1.bf16.msra.mxu0 %v6668
      %6689 = vmatprep.subr.bf16.mxu0 0
      %6690 = vmatpush1.bf16.msra.mxu0 %v6669
      %6691 = vmatprep.subr.bf16.mxu0 0
      %6692 = vmatpush1.bf16.msra.mxu0 %v6670
      %6693 = vmatprep.subr.bf16.mxu0 0
      %6694 = vmatpush1.bf16.msra.mxu0 %v6671
      %6695 = vmatprep.subr.bf16.mxu0 0
      %6696 = vmatpush1.bf16.msra.mxu0 %v6672
      %6697 = vmatprep.subr.bf16.mxu0 0
      %6698 = vmatpush1.bf16.msra.mxu0 0
      %6699 = vmatprep.subr.bf16.mxu0 0
      %6700 = vmatpush1.bf16.msra.mxu0 0
      %6701 = vmatprep.subr.bf16.mxu0 0
      %6702 = vmatpush1.bf16.msra.mxu0 0
      %6703 = vmatprep.subr.bf16.mxu0 0
      %6704 = vmatpush1.bf16.msra.mxu0 0
      %6705 = vmatprep.subr.bf16.mxu0 0
      %6706 = vmatpush1.bf16.msra.mxu0 0
      %6707 = vmatprep.subr.bf16.mxu0 0
      %6708 = vmatpush1.bf16.msra.mxu0 0
      %6709 = vmatprep.subr.bf16.mxu0 0
      %6710 = vmatpush1.bf16.msra.mxu0 0
      %6711 = vmatprep.subr.bf16.mxu0 0
      %6712 = vmatpush1.bf16.msra.mxu0 0
      %6713 = vmatprep.mubr.bf16.mxu0 0
      %6714 = vmatmul.mubr.bf16.gmra.mrb[0].mxu0 %v6471
      %v6715 = vpop.f32.mrb[0].mxu0
      %v6716 = vadd.f32 0.0, %v6715
      %v6717 = vpop.f32.mrb[0].mxu0
      %v6718 = vpop.f32.mrb[0].mxu0
      %v6719 = vadd.f32 0.0, %v6718
      %v6720 = vpop.f32.mrb[0].mxu0
      %6721 = vmatprep.mubr.bf16.mxu0 0
      %6722 = vmatmul.mubr.bf16.gmra.mrb[0].mxu0 %v6480
      %v6723 = vpop.f32.mrb[0].mxu0
      %v6724 = vadd.f32 0.0, %v6723
      %v6725 = vpop.f32.mrb[0].mxu0
      %v6726 = vpop.f32.mrb[0].mxu0
      %v6727 = vadd.f32 0.0, %v6726
      %v6728 = vpop.f32.mrb[0].mxu0
      %6729 = vmatprep.mubr.bf16.mxu0 0
      %6730 = vmatmul.mubr.bf16.gmra.mrb[0].mxu0 %v6489
      %v6731 = vpop.f32.mrb[0].mxu0
      %v6732 = vadd.f32 0.0, %v6731
      %v6733 = vpop.f32.mrb[0].mxu0
      %v6734 = vpop.f32.mrb[0].mxu0
      %v6735 = vadd.f32 0.0, %v6734
      %v6736 = vpop.f32.mrb[0].mxu0
      %6737 = vmatprep.mubr.bf16.mxu0 0
      %6738 = vmatmul.mubr.bf16.gmra.mrb[0].mxu0 %v6498
      %v6739 = vpop.f32.mrb[0].mxu0
      %v6740 = vadd.f32 0.0, %v6739
      %v6741 = vpop.f32.mrb[0].mxu0
      %v6742 = vpop.f32.mrb[0].mxu0
      %v6743 = vadd.f32 0.0, %v6742
      %v6744 = vpop.f32.mrb[0].mxu0
      %6745 = vmatprep.mubr.bf16.mxu0 0
      %6746 = vmatmul.mubr.bf16.gmra.mrb[0].mxu0 %v6507
      %v6747 = vpop.f32.mrb[0].mxu0
      %v6748 = vadd.f32 0.0, %v6747
      %v6749 = vpop.f32.mrb[0].mxu0
      %v6750 = vpop.f32.mrb[0].mxu0
      %v6751 = vadd.f32 0.0, %v6750
      %v6752 = vpop.f32.mrb[0].mxu0
      %6753 = vmatprep.mubr.bf16.mxu0 0
      %6754 = vmatmul.mubr.bf16.gmra.mrb[0].mxu0 %v6516
      %v6755 = vpop.f32.mrb[0].mxu0
      %v6756 = vadd.f32 0.0, %v6755
      %v6757 = vpop.f32.mrb[0].mxu0
      %v6758 = vpop.f32.mrb[0].mxu0
      %v6759 = vadd.f32 0.0, %v6758
      %v6760 = vpop.f32.mrb[0].mxu0
      %6761 = vmatprep.mubr.bf16.mxu0 0
      %6762 = vmatmul.mubr.bf16.gmra.mrb[0].mxu0 %v6525
      %v6763 = vpop.f32.mrb[0].mxu0
      %v6764 = vadd.f32 0.0, %v6763
      %v6765 = vpop.f32.mrb[0].mxu0
      %v6766 = vpop.f32.mrb[0].mxu0
      %v6767 = vadd.f32 0.0, %v6766
      %v6768 = vpop.f32.mrb[0].mxu0
      %6769 = vmatprep.mubr.bf16.mxu0 0
      %6770 = vmatmul.mubr.bf16.gmra.mrb[0].mxu0 %v6534
      %v6771 = vpop.f32.mrb[0].mxu0
      %v6772 = vadd.f32 0.0, %v6771
      %v6773 = vpop.f32.mrb[0].mxu0
      %v6774 = vpop.f32.mrb[0].mxu0
      %v6775 = vadd.f32 0.0, %v6774
      %v6776 = vpop.f32.mrb[0].mxu0
      %6777 = vmatprep.mubr.bf16.mxu0 0
      %6778 = vmatmul.mubr.bf16.gmra.mrb[0].mxu0 %v6543
      %v6779 = vpop.f32.mrb[0].mxu0
      %v6780 = vadd.f32 0.0, %v6779
      %v6781 = vpop.f32.mrb[0].mxu0
      %v6782 = vpop.f32.mrb[0].mxu0
      %v6783 = vadd.f32 0.0, %v6782
      %v6784 = vpop.f32.mrb[0].mxu0
      %6785 = vmatprep.mubr.bf16.mxu0 0
      %6786 = vmatmul.mubr.bf16.gmra.mrb[0].mxu0 %v6552
      %v6787 = vpop.f32.mrb[0].mxu0
      %v6788 = vadd.f32 0.0, %v6787
      %v6789 = vpop.f32.mrb[0].mxu0
      %v6790 = vpop.f32.mrb[0].mxu0
      %v6791 = vadd.f32 0.0, %v6790
      %v6792 = vpop.f32.mrb[0].mxu0
      %6793 = vmatprep.mubr.bf16.mxu0 0
      %6794 = vmatmul.mubr.bf16.gmra.mrb[0].mxu0 %v6561
      %v6795 = vpop.f32.mrb[0].mxu0
      %v6796 = vadd.f32 0.0, %v6795
      %v6797 = vpop.f32.mrb[0].mxu0
      %v6798 = vpop.f32.mrb[0].mxu0
      %v6799 = vadd.f32 0.0, %v6798
      %v6800 = vpop.f32.mrb[0].mxu0
      %6801 = vmatprep.mubr.bf16.mxu0 0
      %6802 = vmatmul.mubr.bf16.gmra.mrb[0].mxu0 %v6570
      %v6803 = vpop.f32.mrb[0].mxu0
      %v6804 = vadd.f32 0.0, %v6803
      %v6805 = vpop.f32.mrb[0].mxu0
      %v6806 = vpop.f32.mrb[0].mxu0
      %v6807 = vadd.f32 0.0, %v6806
      %v6808 = vpop.f32.mrb[0].mxu0
      %6809 = vmatprep.mubr.bf16.mxu0 0
      %6810 = vmatmul.mubr.bf16.gmra.mrb[0].mxu0 %v6579
      %v6811 = vpop.f32.mrb[0].mxu0
      %v6812 = vadd.f32 0.0, %v6811
      %v6813 = vpop.f32.mrb[0].mxu0
      %v6814 = vpop.f32.mrb[0].mxu0
      %v6815 = vadd.f32 0.0, %v6814
      %v6816 = vpop.f32.mrb[0].mxu0
      %6817 = vmatprep.mubr.bf16.mxu0 0
      %6818 = vmatmul.mubr.bf16.gmra.mrb[0].mxu0 %v6588
      %v6819 = vpop.f32.mrb[0].mxu0
      %v6820 = vadd.f32 0.0, %v6819
      %v6821 = vpop.f32.mrb[0].mxu0
      %v6822 = vpop.f32.mrb[0].mxu0
      %v6823 = vadd.f32 0.0, %v6822
      %v6824 = vpop.f32.mrb[0].mxu0
      %6825 = vmatprep.mubr.bf16.mxu0 0
      %6826 = vmatmul.mubr.bf16.gmra.mrb[0].mxu0 %v6597
      %v6827 = vpop.f32.mrb[0].mxu0
      %v6828 = vadd.f32 0.0, %v6827
      %v6829 = vpop.f32.mrb[0].mxu0
      %v6830 = vpop.f32.mrb[0].mxu0
      %v6831 = vadd.f32 0.0, %v6830
      %v6832 = vpop.f32.mrb[0].mxu0
      %6833 = vmatprep.mubr.bf16.mxu0 0
      %6834 = vmatmul.mubr.bf16.gmra.mrb[0].mxu0 %v6606
      %v6835 = vpop.f32.mrb[0].mxu0
      %v6836 = vadd.f32 0.0, %v6835
      %v6837 = vpop.f32.mrb[0].mxu0
      %v6838 = vpop.f32.mrb[0].mxu0
      %v6839 = vadd.f32 0.0, %v6838
      %v6840 = vpop.f32.mrb[0].mxu0
      %6841 = vmatprep.mubr.bf16.mxu0 0
      %6842 = vmatmul.mubr.bf16.gmra.mrb[0].mxu0 %v6615
      %v6843 = vpop.f32.mrb[0].mxu0
      %v6844 = vadd.f32 0.0, %v6843
      %v6845 = vpop.f32.mrb[0].mxu0
      %v6846 = vpop.f32.mrb[0].mxu0
      %v6847 = vadd.f32 0.0, %v6846
      %v6848 = vpop.f32.mrb[0].mxu0
      %6849 = vdwg.mxu0
      %v6850 = vadd.f32 %v6386, %v6716
      %v6851 = vadd.f32 %v6387, %v6719
      %v6852 = vadd.f32 %v6388, %v6724
      %v6853 = vadd.f32 %v6389, %v6727
      %v6854 = vadd.f32 %v6390, %v6732
      %v6855 = vadd.f32 %v6391, %v6735
      %v6856 = vadd.f32 %v6392, %v6740
      %v6857 = vadd.f32 %v6393, %v6743
      %v6858 = vadd.f32 %v6394, %v6748
      %v6859 = vadd.f32 %v6395, %v6751
      %v6860 = vadd.f32 %v6396, %v6756
      %v6861 = vadd.f32 %v6397, %v6759
      %v6862 = vadd.f32 %v6398, %v6764
      %v6863 = vadd.f32 %v6399, %v6767
      %v6864 = vadd.f32 %v6400, %v6772
      %v6865 = vadd.f32 %v6401, %v6775
      %v6866 = vadd.f32 %v6402, %v6780
      %v6867 = vadd.f32 %v6403, %v6783
      %v6868 = vadd.f32 %v6404, %v6788
      %v6869 = vadd.f32 %v6405, %v6791
      %v6870 = vadd.f32 %v6406, %v6796
      %v6871 = vadd.f32 %v6407, %v6799
      %v6872 = vadd.f32 %v6408, %v6804
      %v6873 = vadd.f32 %v6409, %v6807
      %v6874 = vadd.f32 %v6410, %v6812
      %v6875 = vadd.f32 %v6411, %v6815
      %v6876 = vadd.f32 %v6412, %v6820
      %v6877 = vadd.f32 %v6413, %v6823
      %v6878 = vadd.f32 %v6414, %v6828
      %v6879 = vadd.f32 %v6415, %v6831
      %v6880 = vadd.f32 %v6416, %v6836
      %v6881 = vadd.f32 %v6417, %v6839
      %v6882 = vadd.f32 %v6418, %v6844
      %v6883 = vadd.f32 %v6419, %v6847
      %v6884 = vld [vmem:[#allocation2 + $0x8] sm:$0xf0]
      %s6885 = scalar_lea.vmem %s5, 256
      %v6886 = vld [vmem:[%s6885] sm:$0xf]
      %v6887 = vld [vmem:[%s6885 + $0x4] sm:$0xf]
      %v6888 = vld [vmem:[%s6885 + $0x8] sm:$0xf]
      %v6889 = vld [vmem:[%s6885 + $0xc] sm:$0xf]
      %v6890 = vld [vmem:[%s6885 + $0x10] sm:$0xf]
      %v6891 = vld [vmem:[%s6885 + $0x14] sm:$0xf]
      %v6892 = vld [vmem:[%s6885 + $0x18] sm:$0xf]
      %v6893 = vld [vmem:[%s6885 + $0x1c] sm:$0xf]
      %v6894 = vld [vmem:[%s6885 + $0x20] sm:$0xf]
      %v6895 = vld [vmem:[%s6885 + $0x24] sm:$0xf]
      %v6896 = vld [vmem:[%s6885 + $0x28] sm:$0xf]
      %v6897 = vld [vmem:[%s6885 + $0x2c] sm:$0xf]
      %v6898 = vld [vmem:[%s6885 + $0x30] sm:$0xf]
      %v6899 = vld [vmem:[%s6885 + $0x34] sm:$0xf]
      %v6900 = vld [vmem:[%s6885 + $0x38] sm:$0xf]
      %v6901 = vld [vmem:[%s6885 + $0x3c] sm:$0xf]
      %v6920 = vrot.slane %v6884, 4
      %v6921 = vrot.slane %v6421, 4
      %v6922 = vsel %vm1615, %v6920, %v6921
      %v6923 = vrot.slane %v6422, 4
      %v6924 = vsel %vm1615, %v6921, %v6923
      %v6925 = vrot.slane %v6423, 4
      %v6926 = vsel %vm1615, %v6923, %v6925
      %v6927 = vrot.slane %v6424, 4
      %v6928 = vsel %vm1615, %v6925, %v6927
      %v6929 = vrot.slane %v6425, 4
      %v6930 = vsel %vm1615, %v6927, %v6929
      %v6931 = vrot.slane %v6426, 4
      %v6932 = vsel %vm1615, %v6929, %v6931
      %v6933 = vrot.slane %v6427, 4
      %v6934 = vsel %vm1615, %v6931, %v6933
      %v6935 = vrot.slane %v6428, 4
      %v6936 = vsel %vm1615, %v6933, %v6935
      %v6937 = vrot.slane %v6429, 4
      %v6938 = vsel %vm1615, %v6935, %v6937
      %v6939 = vrot.slane %v6430, 4
      %v6940 = vsel %vm1615, %v6937, %v6939
      %v6941 = vrot.slane %v6431, 4
      %v6942 = vsel %vm1615, %v6939, %v6941
      %v6943 = vrot.slane %v6432, 4
      %v6944 = vsel %vm1615, %v6941, %v6943
      %v6945 = vrot.slane %v6433, 4
      %v6946 = vsel %vm1615, %v6943, %v6945
      %v6947 = vrot.slane %v6434, 4
      %v6948 = vsel %vm1615, %v6945, %v6947
      %v6949 = vrot.slane %v6435, 4
      %v6950 = vsel %vm1615, %v6947, %v6949
      %v6951 = vrot.slane %v6436, 4
      %v6952 = vsel %vm1615, %v6949, %v6951
      %v6953 = vrot.slane %v6437, 4
      %v6954 = vsel %vm1615, %v6951, %v6953
      %v6988 = vunpack.c.l.b16 %v6886
      %v6989 = vunpack.c.l.b16 %v6887
      %v6990 = vunpack.c.l.b16 %v6888
      %v6991 = vunpack.c.l.b16 %v6889
      %v6992 = vunpack.c.l.b16 %v6890
      %v6993 = vunpack.c.l.b16 %v6891
      %v6994 = vunpack.c.l.b16 %v6892
      %v6995 = vunpack.c.l.b16 %v6893
      %v6996 = vunpack.c.l.b16 %v6894
      %v6997 = vunpack.c.l.b16 %v6895
      %v6998 = vunpack.c.l.b16 %v6896
      %v6999 = vunpack.c.l.b16 %v6897
      %v7000 = vunpack.c.l.b16 %v6898
      %v7001 = vunpack.c.l.b16 %v6899
      %v7002 = vunpack.c.l.b16 %v6900
      %v7003 = vunpack.c.l.b16 %v6901
      %v7004 = vpack.c.b16 %v6989, %v6988
      %v7005 = vpack.c.b16 %v6991, %v6990
      %v7006 = vpack.c.b16 %v6993, %v6992
      %v7007 = vpack.c.b16 %v6995, %v6994
      %v7008 = vpack.c.b16 %v6997, %v6996
      %v7009 = vpack.c.b16 %v6999, %v6998
      %v7010 = vpack.c.b16 %v7001, %v7000
      %v7011 = vpack.c.b16 %v7003, %v7002
      %7020 = vmatprep.subr.bf16.mxu0 0
      %7021 = vmatpush1.bf16.msra.mxu0 %v7004
      %7022 = vmatprep.subr.bf16.mxu0 0
      %7023 = vmatpush1.bf16.msra.mxu0 %v7005
      %7024 = vmatprep.subr.bf16.mxu0 0
      %7025 = vmatpush1.bf16.msra.mxu0 %v7006
      %7026 = vmatprep.subr.bf16.mxu0 0
      %7027 = vmatpush1.bf16.msra.mxu0 %v7007
      %7028 = vmatprep.subr.bf16.mxu0 0
      %7029 = vmatpush1.bf16.msra.mxu0 %v7008
      %7030 = vmatprep.subr.bf16.mxu0 0
      %7031 = vmatpush1.bf16.msra.mxu0 %v7009
      %7032 = vmatprep.subr.bf16.mxu0 0
      %7033 = vmatpush1.bf16.msra.mxu0 %v7010
      %7034 = vmatprep.subr.bf16.mxu0 0
      %7035 = vmatpush1.bf16.msra.mxu0 %v7011
      %7036 = vmatprep.subr.bf16.mxu0 0
      %7037 = vmatpush1.bf16.msra.mxu0 0
      %7038 = vmatprep.subr.bf16.mxu0 0
      %7039 = vmatpush1.bf16.msra.mxu0 0
      %7040 = vmatprep.subr.bf16.mxu0 0
      %7041 = vmatpush1.bf16.msra.mxu0 0
      %7042 = vmatprep.subr.bf16.mxu0 0
      %7043 = vmatpush1.bf16.msra.mxu0 0
      %7044 = vmatprep.subr.bf16.mxu0 0
      %7045 = vmatpush1.bf16.msra.mxu0 0
      %7046 = vmatprep.subr.bf16.mxu0 0
      %7047 = vmatpush1.bf16.msra.mxu0 0
      %7048 = vmatprep.subr.bf16.mxu0 0
      %7049 = vmatpush1.bf16.msra.mxu0 0
      %7050 = vmatprep.subr.bf16.mxu0 0
      %7051 = vmatpush1.bf16.msra.mxu0 0
      %7052 = vmatprep.mubr.bf16.mxu0 0
      %7053 = vmatmul.mubr.bf16.gmra.mrb[0].mxu0 %v6922
      %v7054 = vpop.f32.mrb[0].mxu0
      %v7055 = vadd.f32 0.0, %v7054
      %v7056 = vpop.f32.mrb[0].mxu0
      %v7057 = vpop.f32.mrb[0].mxu0
      %v7058 = vadd.f32 0.0, %v7057
      %v7059 = vpop.f32.mrb[0].mxu0
      %7060 = vmatprep.mubr.bf16.mxu0 0
      %7061 = vmatmul.mubr.bf16.gmra.mrb[0].mxu0 %v6924
      %v7062 = vpop.f32.mrb[0].mxu0
      %v7063 = vadd.f32 0.0, %v7062
      %v7064 = vpop.f32.mrb[0].mxu0
      %v7065 = vpop.f32.mrb[0].mxu0
      %v7066 = vadd.f32 0.0, %v7065
      %v7067 = vpop.f32.mrb[0].mxu0
      %7068 = vmatprep.mubr.bf16.mxu0 0
      %7069 = vmatmul.mubr.bf16.gmra.mrb[0].mxu0 %v6926
      %v7070 = vpop.f32.mrb[0].mxu0
      %v7071 = vadd.f32 0.0, %v7070
      %v7072 = vpop.f32.mrb[0].mxu0
      %v7073 = vpop.f32.mrb[0].mxu0
      %v7074 = vadd.f32 0.0, %v7073
      %v7075 = vpop.f32.mrb[0].mxu0
      %7076 = vmatprep.mubr.bf16.mxu0 0
      %7077 = vmatmul.mubr.bf16.gmra.mrb[0].mxu0 %v6928
      %v7078 = vpop.f32.mrb[0].mxu0
      %v7079 = vadd.f32 0.0, %v7078
      %v7080 = vpop.f32.mrb[0].mxu0
      %v7081 = vpop.f32.mrb[0].mxu0
      %v7082 = vadd.f32 0.0, %v7081
      %v7083 = vpop.f32.mrb[0].mxu0
      %7084 = vmatprep.mubr.bf16.mxu0 0
      %7085 = vmatmul.mubr.bf16.gmra.mrb[0].mxu0 %v6930
      %v7086 = vpop.f32.mrb[0].mxu0
      %v7087 = vadd.f32 0.0, %v7086
      %v7088 = vpop.f32.mrb[0].mxu0
      %v7089 = vpop.f32.mrb[0].mxu0
      %v7090 = vadd.f32 0.0, %v7089
      %v7091 = vpop.f32.mrb[0].mxu0
      %7092 = vmatprep.mubr.bf16.mxu0 0
      %7093 = vmatmul.mubr.bf16.gmra.mrb[0].mxu0 %v6932
      %v7094 = vpop.f32.mrb[0].mxu0
      %v7095 = vadd.f32 0.0, %v7094
      %v7096 = vpop.f32.mrb[0].mxu0
      %v7097 = vpop.f32.mrb[0].mxu0
      %v7098 = vadd.f32 0.0, %v7097
      %v7099 = vpop.f32.mrb[0].mxu0
      %7100 = vmatprep.mubr.bf16.mxu0 0
      %7101 = vmatmul.mubr.bf16.gmra.mrb[0].mxu0 %v6934
      %v7102 = vpop.f32.mrb[0].mxu0
      %v7103 = vadd.f32 0.0, %v7102
      %v7104 = vpop.f32.mrb[0].mxu0
      %v7105 = vpop.f32.mrb[0].mxu0
      %v7106 = vadd.f32 0.0, %v7105
      %v7107 = vpop.f32.mrb[0].mxu0
      %7108 = vmatprep.mubr.bf16.mxu0 0
      %7109 = vmatmul.mubr.bf16.gmra.mrb[0].mxu0 %v6936
      %v7110 = vpop.f32.mrb[0].mxu0
      %v7111 = vadd.f32 0.0, %v7110
      %v7112 = vpop.f32.mrb[0].mxu0
      %v7113 = vpop.f32.mrb[0].mxu0
      %v7114 = vadd.f32 0.0, %v7113
      %v7115 = vpop.f32.mrb[0].mxu0
      %7116 = vmatprep.mubr.bf16.mxu0 0
      %7117 = vmatmul.mubr.bf16.gmra.mrb[0].mxu0 %v6938
      %v7118 = vpop.f32.mrb[0].mxu0
      %v7119 = vadd.f32 0.0, %v7118
      %v7120 = vpop.f32.mrb[0].mxu0
      %v7121 = vpop.f32.mrb[0].mxu0
      %v7122 = vadd.f32 0.0, %v7121
      %v7123 = vpop.f32.mrb[0].mxu0
      %7124 = vmatprep.mubr.bf16.mxu0 0
      %7125 = vmatmul.mubr.bf16.gmra.mrb[0].mxu0 %v6940
      %v7126 = vpop.f32.mrb[0].mxu0
      %v7127 = vadd.f32 0.0, %v7126
      %v7128 = vpop.f32.mrb[0].mxu0
      %v7129 = vpop.f32.mrb[0].mxu0
      %v7130 = vadd.f32 0.0, %v7129
      %v7131 = vpop.f32.mrb[0].mxu0
      %7132 = vmatprep.mubr.bf16.mxu0 0
      %7133 = vmatmul.mubr.bf16.gmra.mrb[0].mxu0 %v6942
      %v7134 = vpop.f32.mrb[0].mxu0
      %v7135 = vadd.f32 0.0, %v7134
      %v7136 = vpop.f32.mrb[0].mxu0
      %v7137 = vpop.f32.mrb[0].mxu0
      %v7138 = vadd.f32 0.0, %v7137
      %v7139 = vpop.f32.mrb[0].mxu0
      %7140 = vmatprep.mubr.bf16.mxu0 0
      %7141 = vmatmul.mubr.bf16.gmra.mrb[0].mxu0 %v6944
      %v7142 = vpop.f32.mrb[0].mxu0
      %v7143 = vadd.f32 0.0, %v7142
      %v7144 = vpop.f32.mrb[0].mxu0
      %v7145 = vpop.f32.mrb[0].mxu0
      %v7146 = vadd.f32 0.0, %v7145
      %v7147 = vpop.f32.mrb[0].mxu0
      %7148 = vmatprep.mubr.bf16.mxu0 0
      %7149 = vmatmul.mubr.bf16.gmra.mrb[0].mxu0 %v6946
      %v7150 = vpop.f32.mrb[0].mxu0
      %v7151 = vadd.f32 0.0, %v7150
      %v7152 = vpop.f32.mrb[0].mxu0
      %v7153 = vpop.f32.mrb[0].mxu0
      %v7154 = vadd.f32 0.0, %v7153
      %v7155 = vpop.f32.mrb[0].mxu0
      %7156 = vmatprep.mubr.bf16.mxu0 0
      %7157 = vmatmul.mubr.bf16.gmra.mrb[0].mxu0 %v6948
      %v7158 = vpop.f32.mrb[0].mxu0
      %v7159 = vadd.f32 0.0, %v7158
      %v7160 = vpop.f32.mrb[0].mxu0
      %v7161 = vpop.f32.mrb[0].mxu0
      %v7162 = vadd.f32 0.0, %v7161
      %v7163 = vpop.f32.mrb[0].mxu0
      %7164 = vmatprep.mubr.bf16.mxu0 0
      %7165 = vmatmul.mubr.bf16.gmra.mrb[0].mxu0 %v6950
      %v7166 = vpop.f32.mrb[0].mxu0
      %v7167 = vadd.f32 0.0, %v7166
      %v7168 = vpop.f32.mrb[0].mxu0
      %v7169 = vpop.f32.mrb[0].mxu0
      %v7170 = vadd.f32 0.0, %v7169
      %v7171 = vpop.f32.mrb[0].mxu0
      %7172 = vmatprep.mubr.bf16.mxu0 0
      %7173 = vmatmul.mubr.bf16.gmra.mrb[0].mxu0 %v6952
      %v7174 = vpop.f32.mrb[0].mxu0
      %v7175 = vadd.f32 0.0, %v7174
      %v7176 = vpop.f32.mrb[0].mxu0
      %v7177 = vpop.f32.mrb[0].mxu0
      %v7178 = vadd.f32 0.0, %v7177
      %v7179 = vpop.f32.mrb[0].mxu0
      %7180 = vmatprep.mubr.bf16.mxu0 0
      %7181 = vmatmul.mubr.bf16.gmra.mrb[0].mxu0 %v6954
      %v7182 = vpop.f32.mrb[0].mxu0
      %v7183 = vadd.f32 0.0, %v7182
      %v7184 = vpop.f32.mrb[0].mxu0
      %v7185 = vpop.f32.mrb[0].mxu0
      %v7186 = vadd.f32 0.0, %v7185
      %v7187 = vpop.f32.mrb[0].mxu0
      %7188 = vdwg.mxu0
      %v7189 = vadd.f32 %v6850, %v7055
      %v7190 = vadd.f32 %v6851, %v7058
      %v7191 = vadd.f32 %v6852, %v7063
      %v7192 = vadd.f32 %v6853, %v7066
      %v7193 = vadd.f32 %v6854, %v7071
      %v7194 = vadd.f32 %v6855, %v7074
      %v7195 = vadd.f32 %v6856, %v7079
      %v7196 = vadd.f32 %v6857, %v7082
      %v7197 = vadd.f32 %v6858, %v7087
      %v7198 = vadd.f32 %v6859, %v7090
      %v7199 = vadd.f32 %v6860, %v7095
      %v7200 = vadd.f32 %v6861, %v7098
      %v7201 = vadd.f32 %v6862, %v7103
      %v7202 = vadd.f32 %v6863, %v7106
      %v7203 = vadd.f32 %v6864, %v7111
      %v7204 = vadd.f32 %v6865, %v7114
      %v7205 = vadd.f32 %v6866, %v7119
      %v7206 = vadd.f32 %v6867, %v7122
      %v7207 = vadd.f32 %v6868, %v7127
      %v7208 = vadd.f32 %v6869, %v7130
      %v7209 = vadd.f32 %v6870, %v7135
      %v7210 = vadd.f32 %v6871, %v7138
      %v7211 = vadd.f32 %v6872, %v7143
      %v7212 = vadd.f32 %v6873, %v7146
      %v7213 = vadd.f32 %v6874, %v7151
      %v7214 = vadd.f32 %v6875, %v7154
      %v7215 = vadd.f32 %v6876, %v7159
      %v7216 = vadd.f32 %v6877, %v7162
      %v7217 = vadd.f32 %v6878, %v7167
      %v7218 = vadd.f32 %v6879, %v7170
      %v7219 = vadd.f32 %v6880, %v7175
      %v7220 = vadd.f32 %v6881, %v7178
      %v7221 = vadd.f32 %v6882, %v7183
      %v7222 = vadd.f32 %v6883, %v7186
      %v7223 = vld [vmem:[#allocation2 + $0x90] sm:$0x1f]
      %s7224 = scalar_lea.vmem %s5, 320
      %v7225 = vld [vmem:[%s7224] sm:$0xf]
      %v7226 = vld [vmem:[%s7224 + $0x4] sm:$0xf]
      %v7227 = vld [vmem:[%s7224 + $0x8] sm:$0xf]
      %v7228 = vld [vmem:[%s7224 + $0xc] sm:$0xf]
      %v7229 = vld [vmem:[%s7224 + $0x10] sm:$0xf]
      %v7230 = vld [vmem:[%s7224 + $0x14] sm:$0xf]
      %v7231 = vld [vmem:[%s7224 + $0x18] sm:$0xf]
      %v7232 = vld [vmem:[%s7224 + $0x1c] sm:$0xf]
      %v7233 = vld [vmem:[%s7224 + $0x20] sm:$0xf]
      %v7234 = vld [vmem:[%s7224 + $0x24] sm:$0xf]
      %v7235 = vld [vmem:[%s7224 + $0x28] sm:$0xf]
      %v7236 = vld [vmem:[%s7224 + $0x2c] sm:$0xf]
      %v7237 = vld [vmem:[%s7224 + $0x30] sm:$0xf]
      %v7238 = vld [vmem:[%s7224 + $0x34] sm:$0xf]
      %v7239 = vld [vmem:[%s7224 + $0x38] sm:$0xf]
      %v7240 = vld [vmem:[%s7224 + $0x3c] sm:$0xf]
      %v7242 = vshrl.u32 %v6884, 16
      %v7244 = vrot.slane %v7242, 4
      %v7245 = vshll.u32 %v6884, 16
      %v7247 = vrot.slane %v7245, 5
      %v7248 = vor.u32 %v7244, %v7247
      %v7249 = vrot.slane %v6464, 4
      %v7250 = vrot.slane %v6467, 5
      %v7251 = vor.u32 %v7249, %v7250
      %v7252 = vsel %vm3640, %v7248, %v7251
      %v7253 = vrot.slane %v6473, 4
      %v7254 = vrot.slane %v6476, 5
      %v7255 = vor.u32 %v7253, %v7254
      %v7256 = vsel %vm3640, %v7251, %v7255
      %v7257 = vrot.slane %v6482, 4
      %v7258 = vrot.slane %v6485, 5
      %v7259 = vor.u32 %v7257, %v7258
      %v7260 = vsel %vm3640, %v7255, %v7259
      %v7261 = vrot.slane %v6491, 4
      %v7262 = vrot.slane %v6494, 5
      %v7263 = vor.u32 %v7261, %v7262
      %v7264 = vsel %vm3640, %v7259, %v7263
      %v7265 = vrot.slane %v6500, 4
      %v7266 = vrot.slane %v6503, 5
      %v7267 = vor.u32 %v7265, %v7266
      %v7268 = vsel %vm3640, %v7263, %v7267
      %v7269 = vrot.slane %v6509, 4
      %v7270 = vrot.slane %v6512, 5
      %v7271 = vor.u32 %v7269, %v7270
      %v7272 = vsel %vm3640, %v7267, %v7271
      %v7273 = vrot.slane %v6518, 4
      %v7274 = vrot.slane %v6521, 5
      %v7275 = vor.u32 %v7273, %v7274
      %v7276 = vsel %vm3640, %v7271, %v7275
      %v7277 = vrot.slane %v6527, 4
      %v7278 = vrot.slane %v6530, 5
      %v7279 = vor.u32 %v7277, %v7278
      %v7280 = vsel %vm3640, %v7275, %v7279
      %v7281 = vrot.slane %v6536, 4
      %v7282 = vrot.slane %v6539, 5
      %v7283 = vor.u32 %v7281, %v7282
      %v7284 = vsel %vm3640, %v7279, %v7283
      %v7285 = vrot.slane %v6545, 4
      %v7286 = vrot.slane %v6548, 5
      %v7287 = vor.u32 %v7285, %v7286
      %v7288 = vsel %vm3640, %v7283, %v7287
      %v7289 = vrot.slane %v6554, 4
      %v7290 = vrot.slane %v6557, 5
      %v7291 = vor.u32 %v7289, %v7290
      %v7292 = vsel %vm3640, %v7287, %v7291
      %v7293 = vrot.slane %v6563, 4
      %v7294 = vrot.slane %v6566, 5
      %v7295 = vor.u32 %v7293, %v7294
      %v7296 = vsel %vm3640, %v7291, %v7295
      %v7297 = vrot.slane %v6572, 4
      %v7298 = vrot.slane %v6575, 5
      %v7299 = vor.u32 %v7297, %v7298
      %v7300 = vsel %vm3640, %v7295, %v7299
      %v7301 = vrot.slane %v6581, 4
      %v7302 = vrot.slane %v6584, 5
      %v7303 = vor.u32 %v7301, %v7302
      %v7304 = vsel %vm3640, %v7299, %v7303
      %v7305 = vrot.slane %v6590, 4
      %v7306 = vrot.slane %v6593, 5
      %v7307 = vor.u32 %v7305, %v7306
      %v7308 = vsel %vm3640, %v7303, %v7307
      %v7309 = vrot.slane %v6599, 4
      %v7310 = vrot.slane %v6602, 5
      %v7311 = vor.u32 %v7309, %v7310
      %v7312 = vsel %vm3640, %v7307, %v7311
      %v7314 = vshrl.u32 %v7223, 16
      %v7316 = vrot.slane %v7314, 4
      %v7317 = vshll.u32 %v7223, 16
      %v7319 = vrot.slane %v7317, 5
      %v7320 = vor.u32 %v7316, %v7319
      %v7321 = vsel %vm3640, %v7311, %v7320
      %v7355 = vunpack.c.l.b16 %v7225
      %v7356 = vunpack.c.l.b16 %v7226
      %v7357 = vunpack.c.l.b16 %v7227
      %v7358 = vunpack.c.l.b16 %v7228
      %v7359 = vunpack.c.l.b16 %v7229
      %v7360 = vunpack.c.l.b16 %v7230
      %v7361 = vunpack.c.l.b16 %v7231
      %v7362 = vunpack.c.l.b16 %v7232
      %v7363 = vunpack.c.l.b16 %v7233
      %v7364 = vunpack.c.l.b16 %v7234
      %v7365 = vunpack.c.l.b16 %v7235
      %v7366 = vunpack.c.l.b16 %v7236
      %v7367 = vunpack.c.l.b16 %v7237
      %v7368 = vunpack.c.l.b16 %v7238
      %v7369 = vunpack.c.l.b16 %v7239
      %v7370 = vunpack.c.l.b16 %v7240
      %v7371 = vpack.c.b16 %v7356, %v7355
      %v7372 = vpack.c.b16 %v7358, %v7357
      %v7373 = vpack.c.b16 %v7360, %v7359
      %v7374 = vpack.c.b16 %v7362, %v7361
      %v7375 = vpack.c.b16 %v7364, %v7363
      %v7376 = vpack.c.b16 %v7366, %v7365
      %v7377 = vpack.c.b16 %v7368, %v7367
      %v7378 = vpack.c.b16 %v7370, %v7369
      %7387 = vmatprep.subr.bf16.mxu0 0
      %7388 = vmatpush1.bf16.msra.mxu0 %v7371
      %7389 = vmatprep.subr.bf16.mxu0 0
      %7390 = vmatpush1.bf16.msra.mxu0 %v7372
      %7391 = vmatprep.subr.bf16.mxu0 0
      %7392 = vmatpush1.bf16.msra.mxu0 %v7373
      %7393 = vmatprep.subr.bf16.mxu0 0
      %7394 = vmatpush1.bf16.msra.mxu0 %v7374
      %7395 = vmatprep.subr.bf16.mxu0 0
      %7396 = vmatpush1.bf16.msra.mxu0 %v7375
      %7397 = vmatprep.subr.bf16.mxu0 0
      %7398 = vmatpush1.bf16.msra.mxu0 %v7376
      %7399 = vmatprep.subr.bf16.mxu0 0
      %7400 = vmatpush1.bf16.msra.mxu0 %v7377
      %7401 = vmatprep.subr.bf16.mxu0 0
      %7402 = vmatpush1.bf16.msra.mxu0 %v7378
      %7403 = vmatprep.subr.bf16.mxu0 0
      %7404 = vmatpush1.bf16.msra.mxu0 0
      %7405 = vmatprep.subr.bf16.mxu0 0
      %7406 = vmatpush1.bf16.msra.mxu0 0
      %7407 = vmatprep.subr.bf16.mxu0 0
      %7408 = vmatpush1.bf16.msra.mxu0 0
      %7409 = vmatprep.subr.bf16.mxu0 0
      %7410 = vmatpush1.bf16.msra.mxu0 0
      %7411 = vmatprep.subr.bf16.mxu0 0
      %7412 = vmatpush1.bf16.msra.mxu0 0
      %7413 = vmatprep.subr.bf16.mxu0 0
      %7414 = vmatpush1.bf16.msra.mxu0 0
      %7415 = vmatprep.subr.bf16.mxu0 0
      %7416 = vmatpush1.bf16.msra.mxu0 0
      %7417 = vmatprep.subr.bf16.mxu0 0
      %7418 = vmatpush1.bf16.msra.mxu0 0
      %7419 = vmatprep.mubr.bf16.mxu0 0
      %7420 = vmatmul.mubr.bf16.gmra.mrb[0].mxu0 %v7252
      %v7421 = vpop.f32.mrb[0].mxu0
      %v7422 = vadd.f32 0.0, %v7421
      %v7423 = vpop.f32.mrb[0].mxu0
      %v7424 = vpop.f32.mrb[0].mxu0
      %v7425 = vadd.f32 0.0, %v7424
      %v7426 = vpop.f32.mrb[0].mxu0
      %7427 = vmatprep.mubr.bf16.mxu0 0
      %7428 = vmatmul.mubr.bf16.gmra.mrb[0].mxu0 %v7256
      %v7429 = vpop.f32.mrb[0].mxu0
      %v7430 = vadd.f32 0.0, %v7429
      %v7431 = vpop.f32.mrb[0].mxu0
      %v7432 = vpop.f32.mrb[0].mxu0
      %v7433 = vadd.f32 0.0, %v7432
      %v7434 = vpop.f32.mrb[0].mxu0
      %7435 = vmatprep.mubr.bf16.mxu0 0
      %7436 = vmatmul.mubr.bf16.gmra.mrb[0].mxu0 %v7260
      %v7437 = vpop.f32.mrb[0].mxu0
      %v7438 = vadd.f32 0.0, %v7437
      %v7439 = vpop.f32.mrb[0].mxu0
      %v7440 = vpop.f32.mrb[0].mxu0
      %v7441 = vadd.f32 0.0, %v7440
      %v7442 = vpop.f32.mrb[0].mxu0
      %7443 = vmatprep.mubr.bf16.mxu0 0
      %7444 = vmatmul.mubr.bf16.gmra.mrb[0].mxu0 %v7264
      %v7445 = vpop.f32.mrb[0].mxu0
      %v7446 = vadd.f32 0.0, %v7445
      %v7447 = vpop.f32.mrb[0].mxu0
      %v7448 = vpop.f32.mrb[0].mxu0
      %v7449 = vadd.f32 0.0, %v7448
      %v7450 = vpop.f32.mrb[0].mxu0
      %7451 = vmatprep.mubr.bf16.mxu0 0
      %7452 = vmatmul.mubr.bf16.gmra.mrb[0].mxu0 %v7268
      %v7453 = vpop.f32.mrb[0].mxu0
      %v7454 = vadd.f32 0.0, %v7453
      %v7455 = vpop.f32.mrb[0].mxu0
      %v7456 = vpop.f32.mrb[0].mxu0
      %v7457 = vadd.f32 0.0, %v7456
      %v7458 = vpop.f32.mrb[0].mxu0
      %7459 = vmatprep.mubr.bf16.mxu0 0
      %7460 = vmatmul.mubr.bf16.gmra.mrb[0].mxu0 %v7272
      %v7461 = vpop.f32.mrb[0].mxu0
      %v7462 = vadd.f32 0.0, %v7461
      %v7463 = vpop.f32.mrb[0].mxu0
      %v7464 = vpop.f32.mrb[0].mxu0
      %v7465 = vadd.f32 0.0, %v7464
      %v7466 = vpop.f32.mrb[0].mxu0
      %7467 = vmatprep.mubr.bf16.mxu0 0
      %7468 = vmatmul.mubr.bf16.gmra.mrb[0].mxu0 %v7276
      %v7469 = vpop.f32.mrb[0].mxu0
      %v7470 = vadd.f32 0.0, %v7469
      %v7471 = vpop.f32.mrb[0].mxu0
      %v7472 = vpop.f32.mrb[0].mxu0
      %v7473 = vadd.f32 0.0, %v7472
      %v7474 = vpop.f32.mrb[0].mxu0
      %7475 = vmatprep.mubr.bf16.mxu0 0
      %7476 = vmatmul.mubr.bf16.gmra.mrb[0].mxu0 %v7280
      %v7477 = vpop.f32.mrb[0].mxu0
      %v7478 = vadd.f32 0.0, %v7477
      %v7479 = vpop.f32.mrb[0].mxu0
      %v7480 = vpop.f32.mrb[0].mxu0
      %v7481 = vadd.f32 0.0, %v7480
      %v7482 = vpop.f32.mrb[0].mxu0
      %7483 = vmatprep.mubr.bf16.mxu0 0
      %7484 = vmatmul.mubr.bf16.gmra.mrb[0].mxu0 %v7284
      %v7485 = vpop.f32.mrb[0].mxu0
      %v7486 = vadd.f32 0.0, %v7485
      %v7487 = vpop.f32.mrb[0].mxu0
      %v7488 = vpop.f32.mrb[0].mxu0
      %v7489 = vadd.f32 0.0, %v7488
      %v7490 = vpop.f32.mrb[0].mxu0
      %7491 = vmatprep.mubr.bf16.mxu0 0
      %7492 = vmatmul.mubr.bf16.gmra.mrb[0].mxu0 %v7288
      %v7493 = vpop.f32.mrb[0].mxu0
      %v7494 = vadd.f32 0.0, %v7493
      %v7495 = vpop.f32.mrb[0].mxu0
      %v7496 = vpop.f32.mrb[0].mxu0
      %v7497 = vadd.f32 0.0, %v7496
      %v7498 = vpop.f32.mrb[0].mxu0
      %7499 = vmatprep.mubr.bf16.mxu0 0
      %7500 = vmatmul.mubr.bf16.gmra.mrb[0].mxu0 %v7292
      %v7501 = vpop.f32.mrb[0].mxu0
      %v7502 = vadd.f32 0.0, %v7501
      %v7503 = vpop.f32.mrb[0].mxu0
      %v7504 = vpop.f32.mrb[0].mxu0
      %v7505 = vadd.f32 0.0, %v7504
      %v7506 = vpop.f32.mrb[0].mxu0
      %7507 = vmatprep.mubr.bf16.mxu0 0
      %7508 = vmatmul.mubr.bf16.gmra.mrb[0].mxu0 %v7296
      %v7509 = vpop.f32.mrb[0].mxu0
      %v7510 = vadd.f32 0.0, %v7509
      %v7511 = vpop.f32.mrb[0].mxu0
      %v7512 = vpop.f32.mrb[0].mxu0
      %v7513 = vadd.f32 0.0, %v7512
      %v7514 = vpop.f32.mrb[0].mxu0
      %7515 = vmatprep.mubr.bf16.mxu0 0
      %7516 = vmatmul.mubr.bf16.gmra.mrb[0].mxu0 %v7300
      %v7517 = vpop.f32.mrb[0].mxu0
      %v7518 = vadd.f32 0.0, %v7517
      %v7519 = vpop.f32.mrb[0].mxu0
      %v7520 = vpop.f32.mrb[0].mxu0
      %v7521 = vadd.f32 0.0, %v7520
      %v7522 = vpop.f32.mrb[0].mxu0
      %7523 = vmatprep.mubr.bf16.mxu0 0
      %7524 = vmatmul.mubr.bf16.gmra.mrb[0].mxu0 %v7304
      %v7525 = vpop.f32.mrb[0].mxu0
      %v7526 = vadd.f32 0.0, %v7525
      %v7527 = vpop.f32.mrb[0].mxu0
      %v7528 = vpop.f32.mrb[0].mxu0
      %v7529 = vadd.f32 0.0, %v7528
      %v7530 = vpop.f32.mrb[0].mxu0
      %7531 = vmatprep.mubr.bf16.mxu0 0
      %7532 = vmatmul.mubr.bf16.gmra.mrb[0].mxu0 %v7308
      %v7533 = vpop.f32.mrb[0].mxu0
      %v7534 = vadd.f32 0.0, %v7533
      %v7535 = vpop.f32.mrb[0].mxu0
      %v7536 = vpop.f32.mrb[0].mxu0
      %v7537 = vadd.f32 0.0, %v7536
      %v7538 = vpop.f32.mrb[0].mxu0
      %7539 = vmatprep.mubr.bf16.mxu0 0
      %7540 = vmatmul.mubr.bf16.gmra.mrb[0].mxu0 %v7312
      %v7541 = vpop.f32.mrb[0].mxu0
      %v7542 = vadd.f32 0.0, %v7541
      %v7543 = vpop.f32.mrb[0].mxu0
      %v7544 = vpop.f32.mrb[0].mxu0
      %v7545 = vadd.f32 0.0, %v7544
      %v7546 = vpop.f32.mrb[0].mxu0
      %7547 = vmatprep.mubr.bf16.mxu0 0
      %7548 = vmatmul.mubr.bf16.gmra.mrb[0].mxu0 %v7321
      %v7549 = vpop.f32.mrb[0].mxu0
      %v7550 = vadd.f32 0.0, %v7549
      %v7551 = vpop.f32.mrb[0].mxu0
      %v7552 = vpop.f32.mrb[0].mxu0
      %v7553 = vadd.f32 0.0, %v7552
      %v7554 = vpop.f32.mrb[0].mxu0
      %7555 = vdwg.mxu0
      %v7556 = vadd.f32 %v7189, %v7422
      %v7557 = vadd.f32 %v7190, %v7425
      %v7558 = vadd.f32 %v7191, %v7430
      %v7559 = vadd.f32 %v7192, %v7433
      %v7560 = vadd.f32 %v7193, %v7438
      %v7561 = vadd.f32 %v7194, %v7441
      %v7562 = vadd.f32 %v7195, %v7446
      %v7563 = vadd.f32 %v7196, %v7449
      %v7564 = vadd.f32 %v7197, %v7454
      %v7565 = vadd.f32 %v7198, %v7457
      %v7566 = vadd.f32 %v7199, %v7462
      %v7567 = vadd.f32 %v7200, %v7465
      %v7568 = vadd.f32 %v7201, %v7470
      %v7569 = vadd.f32 %v7202, %v7473
      %v7570 = vadd.f32 %v7203, %v7478
      %v7571 = vadd.f32 %v7204, %v7481
      %v7572 = vadd.f32 %v7205, %v7486
      %v7573 = vadd.f32 %v7206, %v7489
      %v7574 = vadd.f32 %v7207, %v7494
      %v7575 = vadd.f32 %v7208, %v7497
      %v7576 = vadd.f32 %v7209, %v7502
      %v7577 = vadd.f32 %v7210, %v7505
      %v7578 = vadd.f32 %v7211, %v7510
      %v7579 = vadd.f32 %v7212, %v7513
      %v7580 = vadd.f32 %v7213, %v7518
      %v7581 = vadd.f32 %v7214, %v7521
      %v7582 = vadd.f32 %v7215, %v7526
      %v7583 = vadd.f32 %v7216, %v7529
      %v7584 = vadd.f32 %v7217, %v7534
      %v7585 = vadd.f32 %v7218, %v7537
      %v7586 = vadd.f32 %v7219, %v7542
      %v7587 = vadd.f32 %v7220, %v7545
      %v7588 = vadd.f32 %v7221, %v7550
      %v7589 = vadd.f32 %v7222, %v7553
      %v7590 = vld [vmem:[#allocation2 + $0x10] sm:$0xf0]
      %v7591 = vld [vmem:[#allocation2 + $0x18] sm:$0xff]
      %v7592 = vld [vmem:[#allocation2 + $0x20] sm:$0xff]
      %v7593 = vld [vmem:[#allocation2 + $0x28] sm:$0xff]
      %v7594 = vld [vmem:[#allocation2 + $0x30] sm:$0xff]
      %v7595 = vld [vmem:[#allocation2 + $0x38] sm:$0xff]
      %v7596 = vld [vmem:[#allocation2 + $0x40] sm:$0xff]
      %v7597 = vld [vmem:[#allocation2 + $0x48] sm:$0xff]
      %v7598 = vld [vmem:[#allocation2 + $0x50] sm:$0xff]
      %v7599 = vld [vmem:[#allocation2 + $0x58] sm:$0xff]
      %v7600 = vld [vmem:[#allocation2 + $0x60] sm:$0xff]
      %v7601 = vld [vmem:[#allocation2 + $0x68] sm:$0xff]
      %v7602 = vld [vmem:[#allocation2 + $0x70] sm:$0xff]
      %v7603 = vld [vmem:[#allocation2 + $0x78] sm:$0xff]
      %v7604 = vld [vmem:[#allocation2 + $0x80] sm:$0xff]
      %v7605 = vld [vmem:[#allocation2 + $0x88] sm:$0xff]
      %v7606 = vld [vmem:[#allocation2 + $0x90] sm:$0xff]
      %v7607 = vld [vmem:[#allocation2 + $0x98] sm:$0xf]
      %s7608 = scalar_lea.vmem %s5, 384
      %v7609 = vld [vmem:[%s7608] sm:$0xf]
      %v7610 = vld [vmem:[%s7608 + $0x4] sm:$0xf]
      %v7611 = vld [vmem:[%s7608 + $0x8] sm:$0xf]
      %v7612 = vld [vmem:[%s7608 + $0xc] sm:$0xf]
      %v7613 = vld [vmem:[%s7608 + $0x10] sm:$0xf]
      %v7614 = vld [vmem:[%s7608 + $0x14] sm:$0xf]
      %v7615 = vld [vmem:[%s7608 + $0x18] sm:$0xf]
      %v7616 = vld [vmem:[%s7608 + $0x1c] sm:$0xf]
      %v7617 = vld [vmem:[%s7608 + $0x20] sm:$0xf]
      %v7618 = vld [vmem:[%s7608 + $0x24] sm:$0xf]
      %v7619 = vld [vmem:[%s7608 + $0x28] sm:$0xf]
      %v7620 = vld [vmem:[%s7608 + $0x2c] sm:$0xf]
      %v7621 = vld [vmem:[%s7608 + $0x30] sm:$0xf]
      %v7622 = vld [vmem:[%s7608 + $0x34] sm:$0xf]
      %v7623 = vld [vmem:[%s7608 + $0x38] sm:$0xf]
      %v7624 = vld [vmem:[%s7608 + $0x3c] sm:$0xf]
      %v7643 = vrot.slane %v7590, 4
      %v7644 = vrot.slane %v7591, 4
      %v7645 = vsel %vm1615, %v7643, %v7644
      %v7646 = vrot.slane %v7592, 4
      %v7647 = vsel %vm1615, %v7644, %v7646
      %v7648 = vrot.slane %v7593, 4
      %v7649 = vsel %vm1615, %v7646, %v7648
      %v7650 = vrot.slane %v7594, 4
      %v7651 = vsel %vm1615, %v7648, %v7650
      %v7652 = vrot.slane %v7595, 4
      %v7653 = vsel %vm1615, %v7650, %v7652
      %v7654 = vrot.slane %v7596, 4
      %v7655 = vsel %vm1615, %v7652, %v7654
      %v7656 = vrot.slane %v7597, 4
      %v7657 = vsel %vm1615, %v7654, %v7656
      %v7658 = vrot.slane %v7598, 4
      %v7659 = vsel %vm1615, %v7656, %v7658
      %v7660 = vrot.slane %v7599, 4
      %v7661 = vsel %vm1615, %v7658, %v7660
      %v7662 = vrot.slane %v7600, 4
      %v7663 = vsel %vm1615, %v7660, %v7662
      %v7664 = vrot.slane %v7601, 4
      %v7665 = vsel %vm1615, %v7662, %v7664
      %v7666 = vrot.slane %v7602, 4
      %v7667 = vsel %vm1615, %v7664, %v7666
      %v7668 = vrot.slane %v7603, 4
      %v7669 = vsel %vm1615, %v7666, %v7668
      %v7670 = vrot.slane %v7604, 4
      %v7671 = vsel %vm1615, %v7668, %v7670
      %v7672 = vrot.slane %v7605, 4
      %v7673 = vsel %vm1615, %v7670, %v7672
      %v7674 = vrot.slane %v7606, 4
      %v7675 = vsel %vm1615, %v7672, %v7674
      %v7676 = vrot.slane %v7607, 4
      %v7677 = vsel %vm1615, %v7674, %v7676
      %v7711 = vunpack.c.l.b16 %v7609
      %v7712 = vunpack.c.l.b16 %v7610
      %v7713 = vunpack.c.l.b16 %v7611
      %v7714 = vunpack.c.l.b16 %v7612
      %v7715 = vunpack.c.l.b16 %v7613
      %v7716 = vunpack.c.l.b16 %v7614
      %v7717 = vunpack.c.l.b16 %v7615
      %v7718 = vunpack.c.l.b16 %v7616
      %v7719 = vunpack.c.l.b16 %v7617
      %v7720 = vunpack.c.l.b16 %v7618
      %v7721 = vunpack.c.l.b16 %v7619
      %v7722 = vunpack.c.l.b16 %v7620
      %v7723 = vunpack.c.l.b16 %v7621
      %v7724 = vunpack.c.l.b16 %v7622
      %v7725 = vunpack.c.l.b16 %v7623
      %v7726 = vunpack.c.l.b16 %v7624
      %v7727 = vpack.c.b16 %v7712, %v7711
      %v7728 = vpack.c.b16 %v7714, %v7713
      %v7729 = vpack.c.b16 %v7716, %v7715
      %v7730 = vpack.c.b16 %v7718, %v7717
      %v7731 = vpack.c.b16 %v7720, %v7719
      %v7732 = vpack.c.b16 %v7722, %v7721
      %v7733 = vpack.c.b16 %v7724, %v7723
      %v7734 = vpack.c.b16 %v7726, %v7725
      %7743 = vmatprep.subr.bf16.mxu0 0
      %7744 = vmatpush1.bf16.msra.mxu0 %v7727
      %7745 = vmatprep.subr.bf16.mxu0 0
      %7746 = vmatpush1.bf16.msra.mxu0 %v7728
      %7747 = vmatprep.subr.bf16.mxu0 0
      %7748 = vmatpush1.bf16.msra.mxu0 %v7729
      %7749 = vmatprep.subr.bf16.mxu0 0
      %7750 = vmatpush1.bf16.msra.mxu0 %v7730
      %7751 = vmatprep.subr.bf16.mxu0 0
      %7752 = vmatpush1.bf16.msra.mxu0 %v7731
      %7753 = vmatprep.subr.bf16.mxu0 0
      %7754 = vmatpush1.bf16.msra.mxu0 %v7732
      %7755 = vmatprep.subr.bf16.mxu0 0
      %7756 = vmatpush1.bf16.msra.mxu0 %v7733
      %7757 = vmatprep.subr.bf16.mxu0 0
      %7758 = vmatpush1.bf16.msra.mxu0 %v7734
      %7759 = vmatprep.subr.bf16.mxu0 0
      %7760 = vmatpush1.bf16.msra.mxu0 0
      %7761 = vmatprep.subr.bf16.mxu0 0
      %7762 = vmatpush1.bf16.msra.mxu0 0
      %7763 = vmatprep.subr.bf16.mxu0 0
      %7764 = vmatpush1.bf16.msra.mxu0 0
      %7765 = vmatprep.subr.bf16.mxu0 0
      %7766 = vmatpush1.bf16.msra.mxu0 0
      %7767 = vmatprep.subr.bf16.mxu0 0
      %7768 = vmatpush1.bf16.msra.mxu0 0
      %7769 = vmatprep.subr.bf16.mxu0 0
      %7770 = vmatpush1.bf16.msra.mxu0 0
      %7771 = vmatprep.subr.bf16.mxu0 0
      %7772 = vmatpush1.bf16.msra.mxu0 0
      %7773 = vmatprep.subr.bf16.mxu0 0
      %7774 = vmatpush1.bf16.msra.mxu0 0
      %7775 = vmatprep.mubr.bf16.mxu0 0
      %7776 = vmatmul.mubr.bf16.gmra.mrb[0].mxu0 %v7645
      %v7777 = vpop.f32.mrb[0].mxu0
      %v7778 = vadd.f32 0.0, %v7777
      %v7779 = vpop.f32.mrb[0].mxu0
      %v7780 = vpop.f32.mrb[0].mxu0
      %v7781 = vadd.f32 0.0, %v7780
      %v7782 = vpop.f32.mrb[0].mxu0
      %7783 = vmatprep.mubr.bf16.mxu0 0
      %7784 = vmatmul.mubr.bf16.gmra.mrb[0].mxu0 %v7647
      %v7785 = vpop.f32.mrb[0].mxu0
      %v7786 = vadd.f32 0.0, %v7785
      %v7787 = vpop.f32.mrb[0].mxu0
      %v7788 = vpop.f32.mrb[0].mxu0
      %v7789 = vadd.f32 0.0, %v7788
      %v7790 = vpop.f32.mrb[0].mxu0
      %7791 = vmatprep.mubr.bf16.mxu0 0
      %7792 = vmatmul.mubr.bf16.gmra.mrb[0].mxu0 %v7649
      %v7793 = vpop.f32.mrb[0].mxu0
      %v7794 = vadd.f32 0.0, %v7793
      %v7795 = vpop.f32.mrb[0].mxu0
      %v7796 = vpop.f32.mrb[0].mxu0
      %v7797 = vadd.f32 0.0, %v7796
      %v7798 = vpop.f32.mrb[0].mxu0
      %7799 = vmatprep.mubr.bf16.mxu0 0
      %7800 = vmatmul.mubr.bf16.gmra.mrb[0].mxu0 %v7651
      %v7801 = vpop.f32.mrb[0].mxu0
      %v7802 = vadd.f32 0.0, %v7801
      %v7803 = vpop.f32.mrb[0].mxu0
      %v7804 = vpop.f32.mrb[0].mxu0
      %v7805 = vadd.f32 0.0, %v7804
      %v7806 = vpop.f32.mrb[0].mxu0
      %7807 = vmatprep.mubr.bf16.mxu0 0
      %7808 = vmatmul.mubr.bf16.gmra.mrb[0].mxu0 %v7653
      %v7809 = vpop.f32.mrb[0].mxu0
      %v7810 = vadd.f32 0.0, %v7809
      %v7811 = vpop.f32.mrb[0].mxu0
      %v7812 = vpop.f32.mrb[0].mxu0
      %v7813 = vadd.f32 0.0, %v7812
      %v7814 = vpop.f32.mrb[0].mxu0
      %7815 = vmatprep.mubr.bf16.mxu0 0
      %7816 = vmatmul.mubr.bf16.gmra.mrb[0].mxu0 %v7655
      %v7817 = vpop.f32.mrb[0].mxu0
      %v7818 = vadd.f32 0.0, %v7817
      %v7819 = vpop.f32.mrb[0].mxu0
      %v7820 = vpop.f32.mrb[0].mxu0
      %v7821 = vadd.f32 0.0, %v7820
      %v7822 = vpop.f32.mrb[0].mxu0
      %7823 = vmatprep.mubr.bf16.mxu0 0
      %7824 = vmatmul.mubr.bf16.gmra.mrb[0].mxu0 %v7657
      %v7825 = vpop.f32.mrb[0].mxu0
      %v7826 = vadd.f32 0.0, %v7825
      %v7827 = vpop.f32.mrb[0].mxu0
      %v7828 = vpop.f32.mrb[0].mxu0
      %v7829 = vadd.f32 0.0, %v7828
      %v7830 = vpop.f32.mrb[0].mxu0
      %7831 = vmatprep.mubr.bf16.mxu0 0
      %7832 = vmatmul.mubr.bf16.gmra.mrb[0].mxu0 %v7659
      %v7833 = vpop.f32.mrb[0].mxu0
      %v7834 = vadd.f32 0.0, %v7833
      %v7835 = vpop.f32.mrb[0].mxu0
      %v7836 = vpop.f32.mrb[0].mxu0
      %v7837 = vadd.f32 0.0, %v7836
      %v7838 = vpop.f32.mrb[0].mxu0
      %7839 = vmatprep.mubr.bf16.mxu0 0
      %7840 = vmatmul.mubr.bf16.gmra.mrb[0].mxu0 %v7661
      %v7841 = vpop.f32.mrb[0].mxu0
      %v7842 = vadd.f32 0.0, %v7841
      %v7843 = vpop.f32.mrb[0].mxu0
      %v7844 = vpop.f32.mrb[0].mxu0
      %v7845 = vadd.f32 0.0, %v7844
      %v7846 = vpop.f32.mrb[0].mxu0
      %7847 = vmatprep.mubr.bf16.mxu0 0
      %7848 = vmatmul.mubr.bf16.gmra.mrb[0].mxu0 %v7663
      %v7849 = vpop.f32.mrb[0].mxu0
      %v7850 = vadd.f32 0.0, %v7849
      %v7851 = vpop.f32.mrb[0].mxu0
      %v7852 = vpop.f32.mrb[0].mxu0
      %v7853 = vadd.f32 0.0, %v7852
      %v7854 = vpop.f32.mrb[0].mxu0
      %7855 = vmatprep.mubr.bf16.mxu0 0
      %7856 = vmatmul.mubr.bf16.gmra.mrb[0].mxu0 %v7665
      %v7857 = vpop.f32.mrb[0].mxu0
      %v7858 = vadd.f32 0.0, %v7857
      %v7859 = vpop.f32.mrb[0].mxu0
      %v7860 = vpop.f32.mrb[0].mxu0
      %v7861 = vadd.f32 0.0, %v7860
      %v7862 = vpop.f32.mrb[0].mxu0
      %7863 = vmatprep.mubr.bf16.mxu0 0
      %7864 = vmatmul.mubr.bf16.gmra.mrb[0].mxu0 %v7667
      %v7865 = vpop.f32.mrb[0].mxu0
      %v7866 = vadd.f32 0.0, %v7865
      %v7867 = vpop.f32.mrb[0].mxu0
      %v7868 = vpop.f32.mrb[0].mxu0
      %v7869 = vadd.f32 0.0, %v7868
      %v7870 = vpop.f32.mrb[0].mxu0
      %7871 = vmatprep.mubr.bf16.mxu0 0
      %7872 = vmatmul.mubr.bf16.gmra.mrb[0].mxu0 %v7669
      %v7873 = vpop.f32.mrb[0].mxu0
      %v7874 = vadd.f32 0.0, %v7873
      %v7875 = vpop.f32.mrb[0].mxu0
      %v7876 = vpop.f32.mrb[0].mxu0
      %v7877 = vadd.f32 0.0, %v7876
      %v7878 = vpop.f32.mrb[0].mxu0
      %7879 = vmatprep.mubr.bf16.mxu0 0
      %7880 = vmatmul.mubr.bf16.gmra.mrb[0].mxu0 %v7671
      %v7881 = vpop.f32.mrb[0].mxu0
      %v7882 = vadd.f32 0.0, %v7881
      %v7883 = vpop.f32.mrb[0].mxu0
      %v7884 = vpop.f32.mrb[0].mxu0
      %v7885 = vadd.f32 0.0, %v7884
      %v7886 = vpop.f32.mrb[0].mxu0
      %7887 = vmatprep.mubr.bf16.mxu0 0
      %7888 = vmatmul.mubr.bf16.gmra.mrb[0].mxu0 %v7673
      %v7889 = vpop.f32.mrb[0].mxu0
      %v7890 = vadd.f32 0.0, %v7889
      %v7891 = vpop.f32.mrb[0].mxu0
      %v7892 = vpop.f32.mrb[0].mxu0
      %v7893 = vadd.f32 0.0, %v7892
      %v7894 = vpop.f32.mrb[0].mxu0
      %7895 = vmatprep.mubr.bf16.mxu0 0
      %7896 = vmatmul.mubr.bf16.gmra.mrb[0].mxu0 %v7675
      %v7897 = vpop.f32.mrb[0].mxu0
      %v7898 = vadd.f32 0.0, %v7897
      %v7899 = vpop.f32.mrb[0].mxu0
      %v7900 = vpop.f32.mrb[0].mxu0
      %v7901 = vadd.f32 0.0, %v7900
      %v7902 = vpop.f32.mrb[0].mxu0
      %7903 = vmatprep.mubr.bf16.mxu0 0
      %7904 = vmatmul.mubr.bf16.gmra.mrb[0].mxu0 %v7677
      %v7905 = vpop.f32.mrb[0].mxu0
      %v7906 = vadd.f32 0.0, %v7905
      %v7907 = vpop.f32.mrb[0].mxu0
      %v7908 = vpop.f32.mrb[0].mxu0
      %v7909 = vadd.f32 0.0, %v7908
      %v7910 = vpop.f32.mrb[0].mxu0
      %7911 = vdwg.mxu0
      %v7912 = vadd.f32 %v7556, %v7778
      %v7913 = vadd.f32 %v7557, %v7781
      %v7914 = vadd.f32 %v7558, %v7786
      %v7915 = vadd.f32 %v7559, %v7789
      %v7916 = vadd.f32 %v7560, %v7794
      %v7917 = vadd.f32 %v7561, %v7797
      %v7918 = vadd.f32 %v7562, %v7802
      %v7919 = vadd.f32 %v7563, %v7805
      %v7920 = vadd.f32 %v7564, %v7810
      %v7921 = vadd.f32 %v7565, %v7813
      %v7922 = vadd.f32 %v7566, %v7818
      %v7923 = vadd.f32 %v7567, %v7821
      %v7924 = vadd.f32 %v7568, %v7826
      %v7925 = vadd.f32 %v7569, %v7829
      %v7926 = vadd.f32 %v7570, %v7834
      %v7927 = vadd.f32 %v7571, %v7837
      %v7928 = vadd.f32 %v7572, %v7842
      %v7929 = vadd.f32 %v7573, %v7845
      %v7930 = vadd.f32 %v7574, %v7850
      %v7931 = vadd.f32 %v7575, %v7853
      %v7932 = vadd.f32 %v7576, %v7858
      %v7933 = vadd.f32 %v7577, %v7861
      %v7934 = vadd.f32 %v7578, %v7866
      %v7935 = vadd.f32 %v7579, %v7869
      %v7936 = vadd.f32 %v7580, %v7874
      %v7937 = vadd.f32 %v7581, %v7877
      %v7938 = vadd.f32 %v7582, %v7882
      %v7939 = vadd.f32 %v7583, %v7885
      %v7940 = vadd.f32 %v7584, %v7890
      %v7941 = vadd.f32 %v7585, %v7893
      %v7942 = vadd.f32 %v7586, %v7898
      %v7943 = vadd.f32 %v7587, %v7901
      %v7944 = vadd.f32 %v7588, %v7906
      %v7945 = vadd.f32 %v7589, %v7909
      %v7946 = vld [vmem:[#allocation2 + $0x98] sm:$0x1f]
      %s7947 = scalar_lea.vmem %s5, 448
      %v7948 = vld [vmem:[%s7947] sm:$0xf]
      %v7949 = vld [vmem:[%s7947 + $0x4] sm:$0xf]
      %v7950 = vld [vmem:[%s7947 + $0x8] sm:$0xf]
      %v7951 = vld [vmem:[%s7947 + $0xc] sm:$0xf]
      %v7952 = vld [vmem:[%s7947 + $0x10] sm:$0xf]
      %v7953 = vld [vmem:[%s7947 + $0x14] sm:$0xf]
      %v7954 = vld [vmem:[%s7947 + $0x18] sm:$0xf]
      %v7955 = vld [vmem:[%s7947 + $0x1c] sm:$0xf]
      %v7956 = vld [vmem:[%s7947 + $0x20] sm:$0xf]
      %v7957 = vld [vmem:[%s7947 + $0x24] sm:$0xf]
      %v7958 = vld [vmem:[%s7947 + $0x28] sm:$0xf]
      %v7959 = vld [vmem:[%s7947 + $0x2c] sm:$0xf]
      %v7960 = vld [vmem:[%s7947 + $0x30] sm:$0xf]
      %v7961 = vld [vmem:[%s7947 + $0x34] sm:$0xf]
      %v7962 = vld [vmem:[%s7947 + $0x38] sm:$0xf]
      %v7963 = vld [vmem:[%s7947 + $0x3c] sm:$0xf]
      %v7965 = vshrl.u32 %v7590, 16
      %v7967 = vrot.slane %v7965, 4
      %v7968 = vshll.u32 %v7590, 16
      %v7970 = vrot.slane %v7968, 5
      %v7971 = vor.u32 %v7967, %v7970
      %v7973 = vshrl.u32 %v7591, 16
      %v7975 = vrot.slane %v7973, 4
      %v7976 = vshll.u32 %v7591, 16
      %v7978 = vrot.slane %v7976, 5
      %v7979 = vor.u32 %v7975, %v7978
      %v7980 = vsel %vm3640, %v7971, %v7979
      %v7982 = vshrl.u32 %v7592, 16
      %v7984 = vrot.slane %v7982, 4
      %v7985 = vshll.u32 %v7592, 16
      %v7987 = vrot.slane %v7985, 5
      %v7988 = vor.u32 %v7984, %v7987
      %v7989 = vsel %vm3640, %v7979, %v7988
      %v7991 = vshrl.u32 %v7593, 16
      %v7993 = vrot.slane %v7991, 4
      %v7994 = vshll.u32 %v7593, 16
      %v7996 = vrot.slane %v7994, 5
      %v7997 = vor.u32 %v7993, %v7996
      %v7998 = vsel %vm3640, %v7988, %v7997
      %v8000 = vshrl.u32 %v7594, 16
      %v8002 = vrot.slane %v8000, 4
      %v8003 = vshll.u32 %v7594, 16
      %v8005 = vrot.slane %v8003, 5
      %v8006 = vor.u32 %v8002, %v8005
      %v8007 = vsel %vm3640, %v7997, %v8006
      %v8009 = vshrl.u32 %v7595, 16
      %v8011 = vrot.slane %v8009, 4
      %v8012 = vshll.u32 %v7595, 16
      %v8014 = vrot.slane %v8012, 5
      %v8015 = vor.u32 %v8011, %v8014
      %v8016 = vsel %vm3640, %v8006, %v8015
      %v8018 = vshrl.u32 %v7596, 16
      %v8020 = vrot.slane %v8018, 4
      %v8021 = vshll.u32 %v7596, 16
      %v8023 = vrot.slane %v8021, 5
      %v8024 = vor.u32 %v8020, %v8023
      %v8025 = vsel %vm3640, %v8015, %v8024
      %v8027 = vshrl.u32 %v7597, 16
      %v8029 = vrot.slane %v8027, 4
      %v8030 = vshll.u32 %v7597, 16
      %v8032 = vrot.slane %v8030, 5
      %v8033 = vor.u32 %v8029, %v8032
      %v8034 = vsel %vm3640, %v8024, %v8033
      %v8036 = vshrl.u32 %v7598, 16
      %v8038 = vrot.slane %v8036, 4
      %v8039 = vshll.u32 %v7598, 16
      %v8041 = vrot.slane %v8039, 5
      %v8042 = vor.u32 %v8038, %v8041
      %v8043 = vsel %vm3640, %v8033, %v8042
      %v8045 = vshrl.u32 %v7599, 16
      %v8047 = vrot.slane %v8045, 4
      %v8048 = vshll.u32 %v7599, 16
      %v8050 = vrot.slane %v8048, 5
      %v8051 = vor.u32 %v8047, %v8050
      %v8052 = vsel %vm3640, %v8042, %v8051
      %v8054 = vshrl.u32 %v7600, 16
      %v8056 = vrot.slane %v8054, 4
      %v8057 = vshll.u32 %v7600, 16
      %v8059 = vrot.slane %v8057, 5
      %v8060 = vor.u32 %v8056, %v8059
      %v8061 = vsel %vm3640, %v8051, %v8060
      %v8063 = vshrl.u32 %v7601, 16
      %v8065 = vrot.slane %v8063, 4
      %v8066 = vshll.u32 %v7601, 16
      %v8068 = vrot.slane %v8066, 5
      %v8069 = vor.u32 %v8065, %v8068
      %v8070 = vsel %vm3640, %v8060, %v8069
      %v8072 = vshrl.u32 %v7602, 16
      %v8074 = vrot.slane %v8072, 4
      %v8075 = vshll.u32 %v7602, 16
      %v8077 = vrot.slane %v8075, 5
      %v8078 = vor.u32 %v8074, %v8077
      %v8079 = vsel %vm3640, %v8069, %v8078
      %v8081 = vshrl.u32 %v7603, 16
      %v8083 = vrot.slane %v8081, 4
      %v8084 = vshll.u32 %v7603, 16
      %v8086 = vrot.slane %v8084, 5
      %v8087 = vor.u32 %v8083, %v8086
      %v8088 = vsel %vm3640, %v8078, %v8087
      %v8090 = vshrl.u32 %v7604, 16
      %v8092 = vrot.slane %v8090, 4
      %v8093 = vshll.u32 %v7604, 16
      %v8095 = vrot.slane %v8093, 5
      %v8096 = vor.u32 %v8092, %v8095
      %v8097 = vsel %vm3640, %v8087, %v8096
      %v8099 = vshrl.u32 %v7605, 16
      %v8101 = vrot.slane %v8099, 4
      %v8102 = vshll.u32 %v7605, 16
      %v8104 = vrot.slane %v8102, 5
      %v8105 = vor.u32 %v8101, %v8104
      %v8106 = vsel %vm3640, %v8096, %v8105
      %v8108 = vshrl.u32 %v7606, 16
      %v8110 = vrot.slane %v8108, 4
      %v8111 = vshll.u32 %v7606, 16
      %v8113 = vrot.slane %v8111, 5
      %v8114 = vor.u32 %v8110, %v8113
      %v8115 = vsel %vm3640, %v8105, %v8114
      %v8117 = vshrl.u32 %v7946, 16
      %v8119 = vrot.slane %v8117, 4
      %v8120 = vshll.u32 %v7946, 16
      %v8122 = vrot.slane %v8120, 5
      %v8123 = vor.u32 %v8119, %v8122
      %v8124 = vsel %vm3640, %v8114, %v8123
      %v8158 = vunpack.c.l.b16 %v7948
      %v8159 = vunpack.c.l.b16 %v7949
      %v8160 = vunpack.c.l.b16 %v7950
      %v8161 = vunpack.c.l.b16 %v7951
      %v8162 = vunpack.c.l.b16 %v7952
      %v8163 = vunpack.c.l.b16 %v7953
      %v8164 = vunpack.c.l.b16 %v7954
      %v8165 = vunpack.c.l.b16 %v7955
      %v8166 = vunpack.c.l.b16 %v7956
      %v8167 = vunpack.c.l.b16 %v7957
      %v8168 = vunpack.c.l.b16 %v7958
      %v8169 = vunpack.c.l.b16 %v7959
      %v8170 = vunpack.c.l.b16 %v7960
      %v8171 = vunpack.c.l.b16 %v7961
      %v8172 = vunpack.c.l.b16 %v7962
      %v8173 = vunpack.c.l.b16 %v7963
      %v8174 = vpack.c.b16 %v8159, %v8158
      %v8175 = vpack.c.b16 %v8161, %v8160
      %v8176 = vpack.c.b16 %v8163, %v8162
      %v8177 = vpack.c.b16 %v8165, %v8164
      %v8178 = vpack.c.b16 %v8167, %v8166
      %v8179 = vpack.c.b16 %v8169, %v8168
      %v8180 = vpack.c.b16 %v8171, %v8170
      %v8181 = vpack.c.b16 %v8173, %v8172
      %8190 = vmatprep.subr.bf16.mxu0 0
      %8191 = vmatpush1.bf16.msra.mxu0 %v8174
      %8192 = vmatprep.subr.bf16.mxu0 0
      %8193 = vmatpush1.bf16.msra.mxu0 %v8175
      %8194 = vmatprep.subr.bf16.mxu0 0
      %8195 = vmatpush1.bf16.msra.mxu0 %v8176
      %8196 = vmatprep.subr.bf16.mxu0 0
      %8197 = vmatpush1.bf16.msra.mxu0 %v8177
      %8198 = vmatprep.subr.bf16.mxu0 0
      %8199 = vmatpush1.bf16.msra.mxu0 %v8178
      %8200 = vmatprep.subr.bf16.mxu0 0
      %8201 = vmatpush1.bf16.msra.mxu0 %v8179
      %8202 = vmatprep.subr.bf16.mxu0 0
      %8203 = vmatpush1.bf16.msra.mxu0 %v8180
      %8204 = vmatprep.subr.bf16.mxu0 0
      %8205 = vmatpush1.bf16.msra.mxu0 %v8181
      %8206 = vmatprep.subr.bf16.mxu0 0
      %8207 = vmatpush1.bf16.msra.mxu0 0
      %8208 = vmatprep.subr.bf16.mxu0 0
      %8209 = vmatpush1.bf16.msra.mxu0 0
      %8210 = vmatprep.subr.bf16.mxu0 0
      %8211 = vmatpush1.bf16.msra.mxu0 0
      %8212 = vmatprep.subr.bf16.mxu0 0
      %8213 = vmatpush1.bf16.msra.mxu0 0
      %8214 = vmatprep.subr.bf16.mxu0 0
      %8215 = vmatpush1.bf16.msra.mxu0 0
      %8216 = vmatprep.subr.bf16.mxu0 0
      %8217 = vmatpush1.bf16.msra.mxu0 0
      %8218 = vmatprep.subr.bf16.mxu0 0
      %8219 = vmatpush1.bf16.msra.mxu0 0
      %8220 = vmatprep.subr.bf16.mxu0 0
      %8221 = vmatpush1.bf16.msra.mxu0 0
      %8222 = vmatprep.mubr.bf16.mxu0 0
      %8223 = vmatmul.mubr.bf16.gmra.mrb[0].mxu0 %v7980
      %v8224 = vpop.f32.mrb[0].mxu0
      %v8225 = vadd.f32 0.0, %v8224
      %v8226 = vpop.f32.mrb[0].mxu0
      %v8227 = vpop.f32.mrb[0].mxu0
      %v8228 = vadd.f32 0.0, %v8227
      %v8229 = vpop.f32.mrb[0].mxu0
      %8230 = vmatprep.mubr.bf16.mxu0 0
      %8231 = vmatmul.mubr.bf16.gmra.mrb[0].mxu0 %v7989
      %v8232 = vpop.f32.mrb[0].mxu0
      %v8233 = vadd.f32 0.0, %v8232
      %v8234 = vpop.f32.mrb[0].mxu0
      %v8235 = vpop.f32.mrb[0].mxu0
      %v8236 = vadd.f32 0.0, %v8235
      %v8237 = vpop.f32.mrb[0].mxu0
      %8238 = vmatprep.mubr.bf16.mxu0 0
      %8239 = vmatmul.mubr.bf16.gmra.mrb[0].mxu0 %v7998
      %v8240 = vpop.f32.mrb[0].mxu0
      %v8241 = vadd.f32 0.0, %v8240
      %v8242 = vpop.f32.mrb[0].mxu0
      %v8243 = vpop.f32.mrb[0].mxu0
      %v8244 = vadd.f32 0.0, %v8243
      %v8245 = vpop.f32.mrb[0].mxu0
      %8246 = vmatprep.mubr.bf16.mxu0 0
      %8247 = vmatmul.mubr.bf16.gmra.mrb[0].mxu0 %v8007
      %v8248 = vpop.f32.mrb[0].mxu0
      %v8249 = vadd.f32 0.0, %v8248
      %v8250 = vpop.f32.mrb[0].mxu0
      %v8251 = vpop.f32.mrb[0].mxu0
      %v8252 = vadd.f32 0.0, %v8251
      %v8253 = vpop.f32.mrb[0].mxu0
      %8254 = vmatprep.mubr.bf16.mxu0 0
      %8255 = vmatmul.mubr.bf16.gmra.mrb[0].mxu0 %v8016
      %v8256 = vpop.f32.mrb[0].mxu0
      %v8257 = vadd.f32 0.0, %v8256
      %v8258 = vpop.f32.mrb[0].mxu0
      %v8259 = vpop.f32.mrb[0].mxu0
      %v8260 = vadd.f32 0.0, %v8259
      %v8261 = vpop.f32.mrb[0].mxu0
      %8262 = vmatprep.mubr.bf16.mxu0 0
      %8263 = vmatmul.mubr.bf16.gmra.mrb[0].mxu0 %v8025
      %v8264 = vpop.f32.mrb[0].mxu0
      %v8265 = vadd.f32 0.0, %v8264
      %v8266 = vpop.f32.mrb[0].mxu0
      %v8267 = vpop.f32.mrb[0].mxu0
      %v8268 = vadd.f32 0.0, %v8267
      %v8269 = vpop.f32.mrb[0].mxu0
      %8270 = vmatprep.mubr.bf16.mxu0 0
      %8271 = vmatmul.mubr.bf16.gmra.mrb[0].mxu0 %v8034
      %v8272 = vpop.f32.mrb[0].mxu0
      %v8273 = vadd.f32 0.0, %v8272
      %v8274 = vpop.f32.mrb[0].mxu0
      %v8275 = vpop.f32.mrb[0].mxu0
      %v8276 = vadd.f32 0.0, %v8275
      %v8277 = vpop.f32.mrb[0].mxu0
      %8278 = vmatprep.mubr.bf16.mxu0 0
      %8279 = vmatmul.mubr.bf16.gmra.mrb[0].mxu0 %v8043
      %v8280 = vpop.f32.mrb[0].mxu0
      %v8281 = vadd.f32 0.0, %v8280
      %v8282 = vpop.f32.mrb[0].mxu0
      %v8283 = vpop.f32.mrb[0].mxu0
      %v8284 = vadd.f32 0.0, %v8283
      %v8285 = vpop.f32.mrb[0].mxu0
      %8286 = vmatprep.mubr.bf16.mxu0 0
      %8287 = vmatmul.mubr.bf16.gmra.mrb[0].mxu0 %v8052
      %v8288 = vpop.f32.mrb[0].mxu0
      %v8289 = vadd.f32 0.0, %v8288
      %v8290 = vpop.f32.mrb[0].mxu0
      %v8291 = vpop.f32.mrb[0].mxu0
      %v8292 = vadd.f32 0.0, %v8291
      %v8293 = vpop.f32.mrb[0].mxu0
      %8294 = vmatprep.mubr.bf16.mxu0 0
      %8295 = vmatmul.mubr.bf16.gmra.mrb[0].mxu0 %v8061
      %v8296 = vpop.f32.mrb[0].mxu0
      %v8297 = vadd.f32 0.0, %v8296
      %v8298 = vpop.f32.mrb[0].mxu0
      %v8299 = vpop.f32.mrb[0].mxu0
      %v8300 = vadd.f32 0.0, %v8299
      %v8301 = vpop.f32.mrb[0].mxu0
      %8302 = vmatprep.mubr.bf16.mxu0 0
      %8303 = vmatmul.mubr.bf16.gmra.mrb[0].mxu0 %v8070
      %v8304 = vpop.f32.mrb[0].mxu0
      %v8305 = vadd.f32 0.0, %v8304
      %v8306 = vpop.f32.mrb[0].mxu0
      %v8307 = vpop.f32.mrb[0].mxu0
      %v8308 = vadd.f32 0.0, %v8307
      %v8309 = vpop.f32.mrb[0].mxu0
      %8310 = vmatprep.mubr.bf16.mxu0 0
      %8311 = vmatmul.mubr.bf16.gmra.mrb[0].mxu0 %v8079
      %v8312 = vpop.f32.mrb[0].mxu0
      %v8313 = vadd.f32 0.0, %v8312
      %v8314 = vpop.f32.mrb[0].mxu0
      %v8315 = vpop.f32.mrb[0].mxu0
      %v8316 = vadd.f32 0.0, %v8315
      %v8317 = vpop.f32.mrb[0].mxu0
      %8318 = vmatprep.mubr.bf16.mxu0 0
      %8319 = vmatmul.mubr.bf16.gmra.mrb[0].mxu0 %v8088
      %v8320 = vpop.f32.mrb[0].mxu0
      %v8321 = vadd.f32 0.0, %v8320
      %v8322 = vpop.f32.mrb[0].mxu0
      %v8323 = vpop.f32.mrb[0].mxu0
      %v8324 = vadd.f32 0.0, %v8323
      %v8325 = vpop.f32.mrb[0].mxu0
      %8326 = vmatprep.mubr.bf16.mxu0 0
      %8327 = vmatmul.mubr.bf16.gmra.mrb[0].mxu0 %v8097
      %v8328 = vpop.f32.mrb[0].mxu0
      %v8329 = vadd.f32 0.0, %v8328
      %v8330 = vpop.f32.mrb[0].mxu0
      %v8331 = vpop.f32.mrb[0].mxu0
      %v8332 = vadd.f32 0.0, %v8331
      %v8333 = vpop.f32.mrb[0].mxu0
      %8334 = vmatprep.mubr.bf16.mxu0 0
      %8335 = vmatmul.mubr.bf16.gmra.mrb[0].mxu0 %v8106
      %v8336 = vpop.f32.mrb[0].mxu0
      %v8337 = vadd.f32 0.0, %v8336
      %v8338 = vpop.f32.mrb[0].mxu0
      %v8339 = vpop.f32.mrb[0].mxu0
      %v8340 = vadd.f32 0.0, %v8339
      %v8341 = vpop.f32.mrb[0].mxu0
      %8342 = vmatprep.mubr.bf16.mxu0 0
      %8343 = vmatmul.mubr.bf16.gmra.mrb[0].mxu0 %v8115
      %v8344 = vpop.f32.mrb[0].mxu0
      %v8345 = vadd.f32 0.0, %v8344
      %v8346 = vpop.f32.mrb[0].mxu0
      %v8347 = vpop.f32.mrb[0].mxu0
      %v8348 = vadd.f32 0.0, %v8347
      %v8349 = vpop.f32.mrb[0].mxu0
      %8350 = vmatprep.mubr.bf16.mxu0 0
      %8351 = vmatmul.mubr.bf16.gmra.mrb[0].mxu0 %v8124
      %v8352 = vpop.f32.mrb[0].mxu0
      %v8353 = vadd.f32 0.0, %v8352
      %v8354 = vpop.f32.mrb[0].mxu0
      %v8355 = vpop.f32.mrb[0].mxu0
      %v8356 = vadd.f32 0.0, %v8355
      %v8357 = vpop.f32.mrb[0].mxu0
      %8358 = vdwg.mxu0
      %v8359 = vadd.f32 %v7912, %v8225
      %v8360 = vadd.f32 %v7913, %v8228
      %v8361 = vadd.f32 %v7914, %v8233
      %v8362 = vadd.f32 %v7915, %v8236
      %v8363 = vadd.f32 %v7916, %v8241
      %v8364 = vadd.f32 %v7917, %v8244
      %v8365 = vadd.f32 %v7918, %v8249
      %v8366 = vadd.f32 %v7919, %v8252
      %v8367 = vadd.f32 %v7920, %v8257
      %v8368 = vadd.f32 %v7921, %v8260
      %v8369 = vadd.f32 %v7922, %v8265
      %v8370 = vadd.f32 %v7923, %v8268
      %v8371 = vadd.f32 %v7924, %v8273
      %v8372 = vadd.f32 %v7925, %v8276
      %v8373 = vadd.f32 %v7926, %v8281
      %v8374 = vadd.f32 %v7927, %v8284
      %v8375 = vadd.f32 %v7928, %v8289
      %v8376 = vadd.f32 %v7929, %v8292
      %v8377 = vadd.f32 %v7930, %v8297
      %v8378 = vadd.f32 %v7931, %v8300
      %v8379 = vadd.f32 %v7932, %v8305
      %v8380 = vadd.f32 %v7933, %v8308
      %v8381 = vadd.f32 %v7934, %v8313
      %v8382 = vadd.f32 %v7935, %v8316
      %v8383 = vadd.f32 %v7936, %v8321
      %v8384 = vadd.f32 %v7937, %v8324
      %v8385 = vadd.f32 %v7938, %v8329
      %v8386 = vadd.f32 %v7939, %v8332
      %v8387 = vadd.f32 %v7940, %v8337
      %v8388 = vadd.f32 %v7941, %v8340
      %v8389 = vadd.f32 %v7942, %v8345
      %v8390 = vadd.f32 %v7943, %v8348
      %v8391 = vadd.f32 %v7944, %v8353
      %v8392 = vadd.f32 %v7945, %v8356
      %v8393 = vld [vmem:[#allocation2 + $0x10] sm:$0xe0]
      %s8394 = scalar_lea.vmem %s5, 512
      %v8395 = vld [vmem:[%s8394] sm:$0xf]
      %v8396 = vld [vmem:[%s8394 + $0x4] sm:$0xf]
      %v8397 = vld [vmem:[%s8394 + $0x8] sm:$0xf]
      %v8398 = vld [vmem:[%s8394 + $0xc] sm:$0xf]
      %v8399 = vld [vmem:[%s8394 + $0x10] sm:$0xf]
      %v8400 = vld [vmem:[%s8394 + $0x14] sm:$0xf]
      %v8401 = vld [vmem:[%s8394 + $0x18] sm:$0xf]
      %v8402 = vld [vmem:[%s8394 + $0x1c] sm:$0xf]
      %v8403 = vld [vmem:[%s8394 + $0x20] sm:$0xf]
      %v8404 = vld [vmem:[%s8394 + $0x24] sm:$0xf]
      %v8405 = vld [vmem:[%s8394 + $0x28] sm:$0xf]
      %v8406 = vld [vmem:[%s8394 + $0x2c] sm:$0xf]
      %v8407 = vld [vmem:[%s8394 + $0x30] sm:$0xf]
      %v8408 = vld [vmem:[%s8394 + $0x34] sm:$0xf]
      %v8409 = vld [vmem:[%s8394 + $0x38] sm:$0xf]
      %v8410 = vld [vmem:[%s8394 + $0x3c] sm:$0xf]
      %v8413 = vrot.slane %v8393, 5
      %v8414 = vrot.slane %v7591, 5
      %v8415 = vsel %vm4813, %v8413, %v8414
      %v8416 = vrot.slane %v7592, 5
      %v8417 = vsel %vm4813, %v8414, %v8416
      %v8418 = vrot.slane %v7593, 5
      %v8419 = vsel %vm4813, %v8416, %v8418
      %v8420 = vrot.slane %v7594, 5
      %v8421 = vsel %vm4813, %v8418, %v8420
      %v8422 = vrot.slane %v7595, 5
      %v8423 = vsel %vm4813, %v8420, %v8422
      %v8424 = vrot.slane %v7596, 5
      %v8425 = vsel %vm4813, %v8422, %v8424
      %v8426 = vrot.slane %v7597, 5
      %v8427 = vsel %vm4813, %v8424, %v8426
      %v8428 = vrot.slane %v7598, 5
      %v8429 = vsel %vm4813, %v8426, %v8428
      %v8430 = vrot.slane %v7599, 5
      %v8431 = vsel %vm4813, %v8428, %v8430
      %v8432 = vrot.slane %v7600, 5
      %v8433 = vsel %vm4813, %v8430, %v8432
      %v8434 = vrot.slane %v7601, 5
      %v8435 = vsel %vm4813, %v8432, %v8434
      %v8436 = vrot.slane %v7602, 5
      %v8437 = vsel %vm4813, %v8434, %v8436
      %v8438 = vrot.slane %v7603, 5
      %v8439 = vsel %vm4813, %v8436, %v8438
      %v8440 = vrot.slane %v7604, 5
      %v8441 = vsel %vm4813, %v8438, %v8440
      %v8442 = vrot.slane %v7605, 5
      %v8443 = vsel %vm4813, %v8440, %v8442
      %v8444 = vrot.slane %v7606, 5
      %v8445 = vsel %vm4813, %v8442, %v8444
      %v8446 = vrot.slane %v7946, 5
      %v8447 = vsel %vm4813, %v8444, %v8446
      %v8481 = vunpack.c.l.b16 %v8395
      %v8482 = vunpack.c.l.b16 %v8396
      %v8483 = vunpack.c.l.b16 %v8397
      %v8484 = vunpack.c.l.b16 %v8398
      %v8485 = vunpack.c.l.b16 %v8399
      %v8486 = vunpack.c.l.b16 %v8400
      %v8487 = vunpack.c.l.b16 %v8401
      %v8488 = vunpack.c.l.b16 %v8402
      %v8489 = vunpack.c.l.b16 %v8403
      %v8490 = vunpack.c.l.b16 %v8404
      %v8491 = vunpack.c.l.b16 %v8405
      %v8492 = vunpack.c.l.b16 %v8406
      %v8493 = vunpack.c.l.b16 %v8407
      %v8494 = vunpack.c.l.b16 %v8408
      %v8495 = vunpack.c.l.b16 %v8409
      %v8496 = vunpack.c.l.b16 %v8410
      %v8497 = vpack.c.b16 %v8482, %v8481
      %v8498 = vpack.c.b16 %v8484, %v8483
      %v8499 = vpack.c.b16 %v8486, %v8485
      %v8500 = vpack.c.b16 %v8488, %v8487
      %v8501 = vpack.c.b16 %v8490, %v8489
      %v8502 = vpack.c.b16 %v8492, %v8491
      %v8503 = vpack.c.b16 %v8494, %v8493
      %v8504 = vpack.c.b16 %v8496, %v8495
      %8513 = vmatprep.subr.bf16.mxu0 0
      %8514 = vmatpush1.bf16.msra.mxu0 %v8497
      %8515 = vmatprep.subr.bf16.mxu0 0
      %8516 = vmatpush1.bf16.msra.mxu0 %v8498
      %8517 = vmatprep.subr.bf16.mxu0 0
      %8518 = vmatpush1.bf16.msra.mxu0 %v8499
      %8519 = vmatprep.subr.bf16.mxu0 0
      %8520 = vmatpush1.bf16.msra.mxu0 %v8500
      %8521 = vmatprep.subr.bf16.mxu0 0
      %8522 = vmatpush1.bf16.msra.mxu0 %v8501
      %8523 = vmatprep.subr.bf16.mxu0 0
      %8524 = vmatpush1.bf16.msra.mxu0 %v8502
      %8525 = vmatprep.subr.bf16.mxu0 0
      %8526 = vmatpush1.bf16.msra.mxu0 %v8503
      %8527 = vmatprep.subr.bf16.mxu0 0
      %8528 = vmatpush1.bf16.msra.mxu0 %v8504
      %8529 = vmatprep.subr.bf16.mxu0 0
      %8530 = vmatpush1.bf16.msra.mxu0 0
      %8531 = vmatprep.subr.bf16.mxu0 0
      %8532 = vmatpush1.bf16.msra.mxu0 0
      %8533 = vmatprep.subr.bf16.mxu0 0
      %8534 = vmatpush1.bf16.msra.mxu0 0
      %8535 = vmatprep.subr.bf16.mxu0 0
      %8536 = vmatpush1.bf16.msra.mxu0 0
      %8537 = vmatprep.subr.bf16.mxu0 0
      %8538 = vmatpush1.bf16.msra.mxu0 0
      %8539 = vmatprep.subr.bf16.mxu0 0
      %8540 = vmatpush1.bf16.msra.mxu0 0
      %8541 = vmatprep.subr.bf16.mxu0 0
      %8542 = vmatpush1.bf16.msra.mxu0 0
      %8543 = vmatprep.subr.bf16.mxu0 0
      %8544 = vmatpush1.bf16.msra.mxu0 0
      %8545 = vmatprep.mubr.bf16.mxu0 0
      %8546 = vmatmul.mubr.bf16.gmra.mrb[0].mxu0 %v8415
      %v8547 = vpop.f32.mrb[0].mxu0
      %v8548 = vadd.f32 0.0, %v8547
      %v8549 = vpop.f32.mrb[0].mxu0
      %v8550 = vpop.f32.mrb[0].mxu0
      %v8551 = vadd.f32 0.0, %v8550
      %v8552 = vpop.f32.mrb[0].mxu0
      %8553 = vmatprep.mubr.bf16.mxu0 0
      %8554 = vmatmul.mubr.bf16.gmra.mrb[0].mxu0 %v8417
      %v8555 = vpop.f32.mrb[0].mxu0
      %v8556 = vadd.f32 0.0, %v8555
      %v8557 = vpop.f32.mrb[0].mxu0
      %v8558 = vpop.f32.mrb[0].mxu0
      %v8559 = vadd.f32 0.0, %v8558
      %v8560 = vpop.f32.mrb[0].mxu0
      %8561 = vmatprep.mubr.bf16.mxu0 0
      %8562 = vmatmul.mubr.bf16.gmra.mrb[0].mxu0 %v8419
      %v8563 = vpop.f32.mrb[0].mxu0
      %v8564 = vadd.f32 0.0, %v8563
      %v8565 = vpop.f32.mrb[0].mxu0
      %v8566 = vpop.f32.mrb[0].mxu0
      %v8567 = vadd.f32 0.0, %v8566
      %v8568 = vpop.f32.mrb[0].mxu0
      %8569 = vmatprep.mubr.bf16.mxu0 0
      %8570 = vmatmul.mubr.bf16.gmra.mrb[0].mxu0 %v8421
      %v8571 = vpop.f32.mrb[0].mxu0
      %v8572 = vadd.f32 0.0, %v8571
      %v8573 = vpop.f32.mrb[0].mxu0
      %v8574 = vpop.f32.mrb[0].mxu0
      %v8575 = vadd.f32 0.0, %v8574
      %v8576 = vpop.f32.mrb[0].mxu0
      %8577 = vmatprep.mubr.bf16.mxu0 0
      %8578 = vmatmul.mubr.bf16.gmra.mrb[0].mxu0 %v8423
      %v8579 = vpop.f32.mrb[0].mxu0
      %v8580 = vadd.f32 0.0, %v8579
      %v8581 = vpop.f32.mrb[0].mxu0
      %v8582 = vpop.f32.mrb[0].mxu0
      %v8583 = vadd.f32 0.0, %v8582
      %v8584 = vpop.f32.mrb[0].mxu0
      %8585 = vmatprep.mubr.bf16.mxu0 0
      %8586 = vmatmul.mubr.bf16.gmra.mrb[0].mxu0 %v8425
      %v8587 = vpop.f32.mrb[0].mxu0
      %v8588 = vadd.f32 0.0, %v8587
      %v8589 = vpop.f32.mrb[0].mxu0
      %v8590 = vpop.f32.mrb[0].mxu0
      %v8591 = vadd.f32 0.0, %v8590
      %v8592 = vpop.f32.mrb[0].mxu0
      %8593 = vmatprep.mubr.bf16.mxu0 0
      %8594 = vmatmul.mubr.bf16.gmra.mrb[0].mxu0 %v8427
      %v8595 = vpop.f32.mrb[0].mxu0
      %v8596 = vadd.f32 0.0, %v8595
      %v8597 = vpop.f32.mrb[0].mxu0
      %v8598 = vpop.f32.mrb[0].mxu0
      %v8599 = vadd.f32 0.0, %v8598
      %v8600 = vpop.f32.mrb[0].mxu0
      %8601 = vmatprep.mubr.bf16.mxu0 0
      %8602 = vmatmul.mubr.bf16.gmra.mrb[0].mxu0 %v8429
      %v8603 = vpop.f32.mrb[0].mxu0
      %v8604 = vadd.f32 0.0, %v8603
      %v8605 = vpop.f32.mrb[0].mxu0
      %v8606 = vpop.f32.mrb[0].mxu0
      %v8607 = vadd.f32 0.0, %v8606
      %v8608 = vpop.f32.mrb[0].mxu0
      %8609 = vmatprep.mubr.bf16.mxu0 0
      %8610 = vmatmul.mubr.bf16.gmra.mrb[0].mxu0 %v8431
      %v8611 = vpop.f32.mrb[0].mxu0
      %v8612 = vadd.f32 0.0, %v8611
      %v8613 = vpop.f32.mrb[0].mxu0
      %v8614 = vpop.f32.mrb[0].mxu0
      %v8615 = vadd.f32 0.0, %v8614
      %v8616 = vpop.f32.mrb[0].mxu0
      %8617 = vmatprep.mubr.bf16.mxu0 0
      %8618 = vmatmul.mubr.bf16.gmra.mrb[0].mxu0 %v8433
      %v8619 = vpop.f32.mrb[0].mxu0
      %v8620 = vadd.f32 0.0, %v8619
      %v8621 = vpop.f32.mrb[0].mxu0
      %v8622 = vpop.f32.mrb[0].mxu0
      %v8623 = vadd.f32 0.0, %v8622
      %v8624 = vpop.f32.mrb[0].mxu0
      %8625 = vmatprep.mubr.bf16.mxu0 0
      %8626 = vmatmul.mubr.bf16.gmra.mrb[0].mxu0 %v8435
      %v8627 = vpop.f32.mrb[0].mxu0
      %v8628 = vadd.f32 0.0, %v8627
      %v8629 = vpop.f32.mrb[0].mxu0
      %v8630 = vpop.f32.mrb[0].mxu0
      %v8631 = vadd.f32 0.0, %v8630
      %v8632 = vpop.f32.mrb[0].mxu0
      %8633 = vmatprep.mubr.bf16.mxu0 0
      %8634 = vmatmul.mubr.bf16.gmra.mrb[0].mxu0 %v8437
      %v8635 = vpop.f32.mrb[0].mxu0
      %v8636 = vadd.f32 0.0, %v8635
      %v8637 = vpop.f32.mrb[0].mxu0
      %v8638 = vpop.f32.mrb[0].mxu0
      %v8639 = vadd.f32 0.0, %v8638
      %v8640 = vpop.f32.mrb[0].mxu0
      %8641 = vmatprep.mubr.bf16.mxu0 0
      %8642 = vmatmul.mubr.bf16.gmra.mrb[0].mxu0 %v8439
      %v8643 = vpop.f32.mrb[0].mxu0
      %v8644 = vadd.f32 0.0, %v8643
      %v8645 = vpop.f32.mrb[0].mxu0
      %v8646 = vpop.f32.mrb[0].mxu0
      %v8647 = vadd.f32 0.0, %v8646
      %v8648 = vpop.f32.mrb[0].mxu0
      %8649 = vmatprep.mubr.bf16.mxu0 0
      %8650 = vmatmul.mubr.bf16.gmra.mrb[0].mxu0 %v8441
      %v8651 = vpop.f32.mrb[0].mxu0
      %v8652 = vadd.f32 0.0, %v8651
      %v8653 = vpop.f32.mrb[0].mxu0
      %v8654 = vpop.f32.mrb[0].mxu0
      %v8655 = vadd.f32 0.0, %v8654
      %v8656 = vpop.f32.mrb[0].mxu0
      %8657 = vmatprep.mubr.bf16.mxu0 0
      %8658 = vmatmul.mubr.bf16.gmra.mrb[0].mxu0 %v8443
      %v8659 = vpop.f32.mrb[0].mxu0
      %v8660 = vadd.f32 0.0, %v8659
      %v8661 = vpop.f32.mrb[0].mxu0
      %v8662 = vpop.f32.mrb[0].mxu0
      %v8663 = vadd.f32 0.0, %v8662
      %v8664 = vpop.f32.mrb[0].mxu0
      %8665 = vmatprep.mubr.bf16.mxu0 0
      %8666 = vmatmul.mubr.bf16.gmra.mrb[0].mxu0 %v8445
      %v8667 = vpop.f32.mrb[0].mxu0
      %v8668 = vadd.f32 0.0, %v8667
      %v8669 = vpop.f32.mrb[0].mxu0
      %v8670 = vpop.f32.mrb[0].mxu0
      %v8671 = vadd.f32 0.0, %v8670
      %v8672 = vpop.f32.mrb[0].mxu0
      %8673 = vmatprep.mubr.bf16.mxu0 0
      %8674 = vmatmul.mubr.bf16.gmra.mrb[0].mxu0 %v8447
      %v8675 = vpop.f32.mrb[0].mxu0
      %v8676 = vadd.f32 0.0, %v8675
      %v8677 = vpop.f32.mrb[0].mxu0
      %v8678 = vpop.f32.mrb[0].mxu0
      %v8679 = vadd.f32 0.0, %v8678
      %v8680 = vpop.f32.mrb[0].mxu0
      %8681 = vdwg.mxu0
      %v8682 = vadd.f32 %v8359, %v8548
      %v8683 = vadd.f32 %v8360, %v8551
      %v8684 = vadd.f32 %v8361, %v8556
      %v8685 = vadd.f32 %v8362, %v8559
      %v8686 = vadd.f32 %v8363, %v8564
      %v8687 = vadd.f32 %v8364, %v8567
      %v8688 = vadd.f32 %v8365, %v8572
      %v8689 = vadd.f32 %v8366, %v8575
      %v8690 = vadd.f32 %v8367, %v8580
      %v8691 = vadd.f32 %v8368, %v8583
      %v8692 = vadd.f32 %v8369, %v8588
      %v8693 = vadd.f32 %v8370, %v8591
      %v8694 = vadd.f32 %v8371, %v8596
      %v8695 = vadd.f32 %v8372, %v8599
      %v8696 = vadd.f32 %v8373, %v8604
      %v8697 = vadd.f32 %v8374, %v8607
      %v8698 = vadd.f32 %v8375, %v8612
      %v8699 = vadd.f32 %v8376, %v8615
      %v8700 = vadd.f32 %v8377, %v8620
      %v8701 = vadd.f32 %v8378, %v8623
      %v8702 = vadd.f32 %v8379, %v8628
      %v8703 = vadd.f32 %v8380, %v8631
      %v8704 = vadd.f32 %v8381, %v8636
      %v8705 = vadd.f32 %v8382, %v8639
      %v8706 = vadd.f32 %v8383, %v8644
      %v8707 = vadd.f32 %v8384, %v8647
      %v8708 = vadd.f32 %v8385, %v8652
      %v8709 = vadd.f32 %v8386, %v8655
      %v8710 = vadd.f32 %v8387, %v8660
      %v8711 = vadd.f32 %v8388, %v8663
      %v8712 = vadd.f32 %v8389, %v8668
      %v8713 = vadd.f32 %v8390, %v8671
      %v8714 = vadd.f32 %v8391, %v8676
      %v8715 = vadd.f32 %v8392, %v8679
      %v8716 = vmax.f32 %v8682, 0.0
      %v8717 = vmax.f32 %v8683, 0.0
      %v8718 = vmax.f32 %v8684, 0.0
      %v8719 = vmax.f32 %v8685, 0.0
      %v8720 = vmax.f32 %v8686, 0.0
      %v8721 = vmax.f32 %v8687, 0.0
      %v8722 = vmax.f32 %v8688, 0.0
      %v8723 = vmax.f32 %v8689, 0.0
      %v8724 = vmax.f32 %v8690, 0.0
      %v8725 = vmax.f32 %v8691, 0.0
      %v8726 = vmax.f32 %v8692, 0.0
      %v8727 = vmax.f32 %v8693, 0.0
      %v8728 = vmax.f32 %v8694, 0.0
      %v8729 = vmax.f32 %v8695, 0.0
      %v8730 = vmax.f32 %v8696, 0.0
      %v8731 = vmax.f32 %v8697, 0.0
      %v8732 = vmax.f32 %v8698, 0.0
      %v8733 = vmax.f32 %v8699, 0.0
      %v8734 = vmax.f32 %v8700, 0.0
      %v8735 = vmax.f32 %v8701, 0.0
      %v8736 = vmax.f32 %v8702, 0.0
      %v8737 = vmax.f32 %v8703, 0.0
      %v8738 = vmax.f32 %v8704, 0.0
      %v8739 = vmax.f32 %v8705, 0.0
      %v8740 = vmax.f32 %v8706, 0.0
      %v8741 = vmax.f32 %v8707, 0.0
      %v8742 = vmax.f32 %v8708, 0.0
      %v8743 = vmax.f32 %v8709, 0.0
      %v8744 = vmax.f32 %v8710, 0.0
      %v8745 = vmax.f32 %v8711, 0.0
      %v8746 = vmax.f32 %v8712, 0.0
      %v8747 = vmax.f32 %v8713, 0.0
      %v8748 = vmax.f32 %v8714, 0.0
      %v8749 = vmax.f32 %v8715, 0.0
      %v8750 = vsel %vm971, %v8716, 0.0
      %v8751 = vsel %vm972, %v8717, 0.0
      %v8752 = vsel %vm973, %v8718, 0.0
      %v8753 = vsel %vm974, %v8719, 0.0
      %v8754 = vsel %vm975, %v8720, 0.0
      %v8755 = vsel %vm976, %v8721, 0.0
      %v8756 = vsel %vm977, %v8722, 0.0
      %v8757 = vsel %vm978, %v8723, 0.0
      %v8758 = vsel %vm979, %v8724, 0.0
      %v8759 = vsel %vm980, %v8725, 0.0
      %v8760 = vsel %vm981, %v8726, 0.0
      %v8761 = vsel %vm982, %v8727, 0.0
      %v8762 = vsel %vm983, %v8728, 0.0
      %v8763 = vsel %vm984, %v8729, 0.0
      %v8764 = vsel %vm985, %v8730, 0.0
      %v8765 = vsel %vm986, %v8731, 0.0
      %v8766 = vsel %vm987, %v8732, 0.0
      %v8767 = vsel %vm988, %v8733, 0.0
      %v8768 = vsel %vm989, %v8734, 0.0
      %v8769 = vsel %vm990, %v8735, 0.0
      %v8770 = vsel %vm991, %v8736, 0.0
      %v8771 = vsel %vm992, %v8737, 0.0
      %v8772 = vsel %vm993, %v8738, 0.0
      %v8773 = vsel %vm994, %v8739, 0.0
      %v8774 = vsel %vm995, %v8740, 0.0
      %v8775 = vsel %vm996, %v8741, 0.0
      %v8776 = vsel %vm997, %v8742, 0.0
      %v8777 = vsel %vm998, %v8743, 0.0
      %v8778 = vsel %vm999, %v8744, 0.0
      %v8779 = vsel %vm1000, %v8745, 0.0
      %v8780 = vsel %vm1001, %v8746, 0.0
      %v8781 = vsel %vm1002, %v8747, 0.0
      %v8782 = vsel %vm1003, %v8748, 0.0
      %v8783 = vsel %vm1004, %v8749, 0.0
      %v8784 = vpack.c.bf16 %v8751, %v8750
      %v8785 = vpack.c.bf16 %v8753, %v8752
      %v8786 = vpack.c.bf16 %v8755, %v8754
      %v8787 = vpack.c.bf16 %v8757, %v8756
      %v8788 = vpack.c.bf16 %v8759, %v8758
      %v8789 = vpack.c.bf16 %v8761, %v8760
      %v8790 = vpack.c.bf16 %v8763, %v8762
      %v8791 = vpack.c.bf16 %v8765, %v8764
      %v8792 = vpack.c.bf16 %v8767, %v8766
      %v8793 = vpack.c.bf16 %v8769, %v8768
      %v8794 = vpack.c.bf16 %v8771, %v8770
      %v8795 = vpack.c.bf16 %v8773, %v8772
      %v8796 = vpack.c.bf16 %v8775, %v8774
      %v8797 = vpack.c.bf16 %v8777, %v8776
      %v8798 = vpack.c.bf16 %v8779, %v8778
      %v8799 = vpack.c.bf16 %v8781, %v8780
      %v8800 = vpack.c.bf16 %v8783, %v8782
      %v8818 = vrot.slane %v8784, 4
      %v8819 = vrot.slane %v8785, 4
      %v8820 = vsel %vm1615, %v8818, %v8819
      %v8821 = vrot.slane %v8786, 4
      %v8822 = vsel %vm1615, %v8819, %v8821
      %v8823 = vrot.slane %v8787, 4
      %v8824 = vsel %vm1615, %v8821, %v8823
      %v8825 = vrot.slane %v8788, 4
      %v8826 = vsel %vm1615, %v8823, %v8825
      %v8827 = vrot.slane %v8789, 4
      %v8828 = vsel %vm1615, %v8825, %v8827
      %v8829 = vrot.slane %v8790, 4
      %v8830 = vsel %vm1615, %v8827, %v8829
      %v8831 = vrot.slane %v8791, 4
      %v8832 = vsel %vm1615, %v8829, %v8831
      %v8833 = vrot.slane %v8792, 4
      %v8834 = vsel %vm1615, %v8831, %v8833
      %v8835 = vrot.slane %v8793, 4
      %v8836 = vsel %vm1615, %v8833, %v8835
      %v8837 = vrot.slane %v8794, 4
      %v8838 = vsel %vm1615, %v8835, %v8837
      %v8839 = vrot.slane %v8795, 4
      %v8840 = vsel %vm1615, %v8837, %v8839
      %v8841 = vrot.slane %v8796, 4
      %v8842 = vsel %vm1615, %v8839, %v8841
      %v8843 = vrot.slane %v8797, 4
      %v8844 = vsel %vm1615, %v8841, %v8843
      %v8845 = vrot.slane %v8798, 4
      %v8846 = vsel %vm1615, %v8843, %v8845
      %v8847 = vrot.slane %v8799, 4
      %v8848 = vsel %vm1615, %v8845, %v8847
      %v8849 = vrot.slane %v8800, 4
      %v8850 = vsel %vm1615, %v8847, %v8849
      %8869 = vst [vmem:[#allocation2 + $0x8] sm:$0xf0] %v8818
      %8870 = vst [vmem:[#allocation2 + $0x10] sm:$0xff] %v8820
      %8871 = vst [vmem:[#allocation2 + $0x18] sm:$0xff] %v8822
      %8872 = vst [vmem:[#allocation2 + $0x20] sm:$0xff] %v8824
      %8873 = vst [vmem:[#allocation2 + $0x28] sm:$0xff] %v8826
      %8874 = vst [vmem:[#allocation2 + $0x30] sm:$0xff] %v8828
      %8875 = vst [vmem:[#allocation2 + $0x38] sm:$0xff] %v8830
      %8876 = vst [vmem:[#allocation2 + $0x40] sm:$0xff] %v8832
      %8877 = vst [vmem:[#allocation2 + $0x48] sm:$0xff] %v8834
      %8878 = vst [vmem:[#allocation2 + $0x50] sm:$0xff] %v8836
      %8879 = vst [vmem:[#allocation2 + $0x58] sm:$0xff] %v8838
      %8880 = vst [vmem:[#allocation2 + $0x60] sm:$0xff] %v8840
      %8881 = vst [vmem:[#allocation2 + $0x68] sm:$0xff] %v8842
      %8882 = vst [vmem:[#allocation2 + $0x70] sm:$0xff] %v8844
      %8883 = vst [vmem:[#allocation2 + $0x78] sm:$0xff] %v8846
      %8884 = vst [vmem:[#allocation2 + $0x80] sm:$0xff] %v8848
      %8885 = vst [vmem:[#allocation2 + $0x88] sm:$0xff] %v8850
      %8886 = vst [vmem:[#allocation2 + $0x90] sm:$0xf] %v8849
      %v8887 = vld [vmem:[%s8] sm:$0x1]
      %v8889 = vlaneseq
      %v8890 = vshrl.u32 %v8889, 7
      %v8891 = vsub.s32 0, %v8890
      %v8892 = vrot.slane %v8887, %v8891
      %v8894 = vld [vmem:[#allocation2] sm:$0xf8]
      %v8895 = vld [vmem:[#allocation2 + $0x8] sm:$0xff]
      %v8896 = vld [vmem:[#allocation2 + $0x10] sm:$0xff]
      %v8897 = vld [vmem:[#allocation2 + $0x18] sm:$0xff]
      %v8898 = vld [vmem:[#allocation2 + $0x20] sm:$0xff]
      %v8899 = vld [vmem:[#allocation2 + $0x28] sm:$0xff]
      %v8900 = vld [vmem:[#allocation2 + $0x30] sm:$0xff]
      %v8901 = vld [vmem:[#allocation2 + $0x38] sm:$0xff]
      %v8902 = vld [vmem:[#allocation2 + $0x40] sm:$0xff]
      %v8903 = vld [vmem:[#allocation2 + $0x48] sm:$0xff]
      %v8904 = vld [vmem:[#allocation2 + $0x50] sm:$0xff]
      %v8905 = vld [vmem:[#allocation2 + $0x58] sm:$0xff]
      %v8906 = vld [vmem:[#allocation2 + $0x60] sm:$0xff]
      %v8907 = vld [vmem:[#allocation2 + $0x68] sm:$0xff]
      %v8908 = vld [vmem:[#allocation2 + $0x70] sm:$0xff]
      %v8909 = vld [vmem:[#allocation2 + $0x78] sm:$0xff]
      %v8910 = vld [vmem:[#allocation2 + $0x80] sm:$0xff]
      %v8911 = vld [vmem:[#allocation2 + $0x88] sm:$0x7]
      %v8912 = vld [vmem:[%s7] sm:$0xf]
      %v8913 = vld [vmem:[%s7 + $0x4] sm:$0xf]
      %v8914 = vld [vmem:[%s7 + $0x8] sm:$0xf]
      %v8915 = vld [vmem:[%s7 + $0xc] sm:$0xf]
      %v8916 = vld [vmem:[%s7 + $0x10] sm:$0xf]
      %v8917 = vld [vmem:[%s7 + $0x14] sm:$0xf]
      %v8918 = vld [vmem:[%s7 + $0x18] sm:$0xf]
      %v8919 = vld [vmem:[%s7 + $0x1c] sm:$0xf]
      %v8920 = vld [vmem:[%s7 + $0x20] sm:$0xf]
      %v8921 = vld [vmem:[%s7 + $0x24] sm:$0xf]
      %v8922 = vld [vmem:[%s7 + $0x28] sm:$0xf]
      %v8923 = vld [vmem:[%s7 + $0x2c] sm:$0xf]
      %v8924 = vld [vmem:[%s7 + $0x30] sm:$0xf]
      %v8925 = vld [vmem:[%s7 + $0x34] sm:$0xf]
      %v8926 = vld [vmem:[%s7 + $0x38] sm:$0xf]
      %v8927 = vld [vmem:[%s7 + $0x3c] sm:$0xf]
      %v8946 = vrot.slane %v8894, 3
      %v8947 = vrot.slane %v8895, 3
      %v8948 = vsel %vm1744, %v8946, %v8947
      %v8949 = vrot.slane %v8896, 3
      %v8950 = vsel %vm1744, %v8947, %v8949
      %v8951 = vrot.slane %v8897, 3
      %v8952 = vsel %vm1744, %v8949, %v8951
      %v8953 = vrot.slane %v8898, 3
      %v8954 = vsel %vm1744, %v8951, %v8953
      %v8955 = vrot.slane %v8899, 3
      %v8956 = vsel %vm1744, %v8953, %v8955
      %v8957 = vrot.slane %v8900, 3
      %v8958 = vsel %vm1744, %v8955, %v8957
      %v8959 = vrot.slane %v8901, 3
      %v8960 = vsel %vm1744, %v8957, %v8959
      %v8961 = vrot.slane %v8902, 3
      %v8962 = vsel %vm1744, %v8959, %v8961
      %v8963 = vrot.slane %v8903, 3
      %v8964 = vsel %vm1744, %v8961, %v8963
      %v8965 = vrot.slane %v8904, 3
      %v8966 = vsel %vm1744, %v8963, %v8965
      %v8967 = vrot.slane %v8905, 3
      %v8968 = vsel %vm1744, %v8965, %v8967
      %v8969 = vrot.slane %v8906, 3
      %v8970 = vsel %vm1744, %v8967, %v8969
      %v8971 = vrot.slane %v8907, 3
      %v8972 = vsel %vm1744, %v8969, %v8971
      %v8973 = vrot.slane %v8908, 3
      %v8974 = vsel %vm1744, %v8971, %v8973
      %v8975 = vrot.slane %v8909, 3
      %v8976 = vsel %vm1744, %v8973, %v8975
      %v8977 = vrot.slane %v8910, 3
      %v8978 = vsel %vm1744, %v8975, %v8977
      %v8979 = vrot.slane %v8911, 3
      %v8980 = vsel %vm1744, %v8977, %v8979
      %v9014 = vunpack.c.l.b16 %v8912
      %v9015 = vunpack.c.l.b16 %v8913
      %v9016 = vunpack.c.l.b16 %v8914
      %v9017 = vunpack.c.l.b16 %v8915
      %v9018 = vunpack.c.l.b16 %v8916
      %v9019 = vunpack.c.l.b16 %v8917
      %v9020 = vunpack.c.l.b16 %v8918
      %v9021 = vunpack.c.l.b16 %v8919
      %v9022 = vunpack.c.l.b16 %v8920
      %v9023 = vunpack.c.l.b16 %v8921
      %v9024 = vunpack.c.l.b16 %v8922
      %v9025 = vunpack.c.l.b16 %v8923
      %v9026 = vunpack.c.l.b16 %v8924
      %v9027 = vunpack.c.l.b16 %v8925
      %v9028 = vunpack.c.l.b16 %v8926
      %v9029 = vunpack.c.l.b16 %v8927
      %v9030 = vpack.c.b16 %v9015, %v9014
      %v9031 = vpack.c.b16 %v9017, %v9016
      %v9032 = vpack.c.b16 %v9019, %v9018
      %v9033 = vpack.c.b16 %v9021, %v9020
      %v9034 = vpack.c.b16 %v9023, %v9022
      %v9035 = vpack.c.b16 %v9025, %v9024
      %v9036 = vpack.c.b16 %v9027, %v9026
      %v9037 = vpack.c.b16 %v9029, %v9028
      %9046 = vmatprep.subr.bf16.mxu0 0
      %9047 = vmatpush1.bf16.msra.mxu0 %v9030
      %9048 = vmatprep.subr.bf16.mxu0 0
      %9049 = vmatpush1.bf16.msra.mxu0 %v9031
      %9050 = vmatprep.subr.bf16.mxu0 0
      %9051 = vmatpush1.bf16.msra.mxu0 %v9032
      %9052 = vmatprep.subr.bf16.mxu0 0
      %9053 = vmatpush1.bf16.msra.mxu0 %v9033
      %9054 = vmatprep.subr.bf16.mxu0 0
      %9055 = vmatpush1.bf16.msra.mxu0 %v9034
      %9056 = vmatprep.subr.bf16.mxu0 0
      %9057 = vmatpush1.bf16.msra.mxu0 %v9035
      %9058 = vmatprep.subr.bf16.mxu0 0
      %9059 = vmatpush1.bf16.msra.mxu0 %v9036
      %9060 = vmatprep.subr.bf16.mxu0 0
      %9061 = vmatpush1.bf16.msra.mxu0 %v9037
      %9062 = vmatprep.subr.bf16.mxu0 0
      %9063 = vmatpush1.bf16.msra.mxu0 0
      %9064 = vmatprep.subr.bf16.mxu0 0
      %9065 = vmatpush1.bf16.msra.mxu0 0
      %9066 = vmatprep.subr.bf16.mxu0 0
      %9067 = vmatpush1.bf16.msra.mxu0 0
      %9068 = vmatprep.subr.bf16.mxu0 0
      %9069 = vmatpush1.bf16.msra.mxu0 0
      %9070 = vmatprep.subr.bf16.mxu0 0
      %9071 = vmatpush1.bf16.msra.mxu0 0
      %9072 = vmatprep.subr.bf16.mxu0 0
      %9073 = vmatpush1.bf16.msra.mxu0 0
      %9074 = vmatprep.subr.bf16.mxu0 0
      %9075 = vmatpush1.bf16.msra.mxu0 0
      %9076 = vmatprep.subr.bf16.mxu0 0
      %9077 = vmatpush1.bf16.msra.mxu0 0
      %9078 = vmatprep.mubr.bf16.mxu0 0
      %9079 = vmatmul.mubr.bf16.gmra.mrb[0].mxu0 %v8948
      %v9080 = vpop.f32.mrb[0].mxu0
      %v9081 = vadd.f32 0.0, %v9080
      %v9082 = vpop.f32.mrb[0].mxu0
      %v9083 = vpop.f32.mrb[0].mxu0
      %v9084 = vadd.f32 0.0, %v9083
      %v9085 = vpop.f32.mrb[0].mxu0
      %9086 = vmatprep.mubr.bf16.mxu0 0
      %9087 = vmatmul.mubr.bf16.gmra.mrb[0].mxu0 %v8950
      %v9088 = vpop.f32.mrb[0].mxu0
      %v9089 = vadd.f32 0.0, %v9088
      %v9090 = vpop.f32.mrb[0].mxu0
      %v9091 = vpop.f32.mrb[0].mxu0
      %v9092 = vadd.f32 0.0, %v9091
      %v9093 = vpop.f32.mrb[0].mxu0
      %9094 = vmatprep.mubr.bf16.mxu0 0
      %9095 = vmatmul.mubr.bf16.gmra.mrb[0].mxu0 %v8952
      %v9096 = vpop.f32.mrb[0].mxu0
      %v9097 = vadd.f32 0.0, %v9096
      %v9098 = vpop.f32.mrb[0].mxu0
      %v9099 = vpop.f32.mrb[0].mxu0
      %v9100 = vadd.f32 0.0, %v9099
      %v9101 = vpop.f32.mrb[0].mxu0
      %9102 = vmatprep.mubr.bf16.mxu0 0
      %9103 = vmatmul.mubr.bf16.gmra.mrb[0].mxu0 %v8954
      %v9104 = vpop.f32.mrb[0].mxu0
      %v9105 = vadd.f32 0.0, %v9104
      %v9106 = vpop.f32.mrb[0].mxu0
      %v9107 = vpop.f32.mrb[0].mxu0
      %v9108 = vadd.f32 0.0, %v9107
      %v9109 = vpop.f32.mrb[0].mxu0
      %9110 = vmatprep.mubr.bf16.mxu0 0
      %9111 = vmatmul.mubr.bf16.gmra.mrb[0].mxu0 %v8956
      %v9112 = vpop.f32.mrb[0].mxu0
      %v9113 = vadd.f32 0.0, %v9112
      %v9114 = vpop.f32.mrb[0].mxu0
      %v9115 = vpop.f32.mrb[0].mxu0
      %v9116 = vadd.f32 0.0, %v9115
      %v9117 = vpop.f32.mrb[0].mxu0
      %9118 = vmatprep.mubr.bf16.mxu0 0
      %9119 = vmatmul.mubr.bf16.gmra.mrb[0].mxu0 %v8958
      %v9120 = vpop.f32.mrb[0].mxu0
      %v9121 = vadd.f32 0.0, %v9120
      %v9122 = vpop.f32.mrb[0].mxu0
      %v9123 = vpop.f32.mrb[0].mxu0
      %v9124 = vadd.f32 0.0, %v9123
      %v9125 = vpop.f32.mrb[0].mxu0
      %9126 = vmatprep.mubr.bf16.mxu0 0
      %9127 = vmatmul.mubr.bf16.gmra.mrb[0].mxu0 %v8960
      %v9128 = vpop.f32.mrb[0].mxu0
      %v9129 = vadd.f32 0.0, %v9128
      %v9130 = vpop.f32.mrb[0].mxu0
      %v9131 = vpop.f32.mrb[0].mxu0
      %v9132 = vadd.f32 0.0, %v9131
      %v9133 = vpop.f32.mrb[0].mxu0
      %9134 = vmatprep.mubr.bf16.mxu0 0
      %9135 = vmatmul.mubr.bf16.gmra.mrb[0].mxu0 %v8962
      %v9136 = vpop.f32.mrb[0].mxu0
      %v9137 = vadd.f32 0.0, %v9136
      %v9138 = vpop.f32.mrb[0].mxu0
      %v9139 = vpop.f32.mrb[0].mxu0
      %v9140 = vadd.f32 0.0, %v9139
      %v9141 = vpop.f32.mrb[0].mxu0
      %9142 = vmatprep.mubr.bf16.mxu0 0
      %9143 = vmatmul.mubr.bf16.gmra.mrb[0].mxu0 %v8964
      %v9144 = vpop.f32.mrb[0].mxu0
      %v9145 = vadd.f32 0.0, %v9144
      %v9146 = vpop.f32.mrb[0].mxu0
      %v9147 = vpop.f32.mrb[0].mxu0
      %v9148 = vadd.f32 0.0, %v9147
      %v9149 = vpop.f32.mrb[0].mxu0
      %9150 = vmatprep.mubr.bf16.mxu0 0
      %9151 = vmatmul.mubr.bf16.gmra.mrb[0].mxu0 %v8966
      %v9152 = vpop.f32.mrb[0].mxu0
      %v9153 = vadd.f32 0.0, %v9152
      %v9154 = vpop.f32.mrb[0].mxu0
      %v9155 = vpop.f32.mrb[0].mxu0
      %v9156 = vadd.f32 0.0, %v9155
      %v9157 = vpop.f32.mrb[0].mxu0
      %9158 = vmatprep.mubr.bf16.mxu0 0
      %9159 = vmatmul.mubr.bf16.gmra.mrb[0].mxu0 %v8968
      %v9160 = vpop.f32.mrb[0].mxu0
      %v9161 = vadd.f32 0.0, %v9160
      %v9162 = vpop.f32.mrb[0].mxu0
      %v9163 = vpop.f32.mrb[0].mxu0
      %v9164 = vadd.f32 0.0, %v9163
      %v9165 = vpop.f32.mrb[0].mxu0
      %9166 = vmatprep.mubr.bf16.mxu0 0
      %9167 = vmatmul.mubr.bf16.gmra.mrb[0].mxu0 %v8970
      %v9168 = vpop.f32.mrb[0].mxu0
      %v9169 = vadd.f32 0.0, %v9168
      %v9170 = vpop.f32.mrb[0].mxu0
      %v9171 = vpop.f32.mrb[0].mxu0
      %v9172 = vadd.f32 0.0, %v9171
      %v9173 = vpop.f32.mrb[0].mxu0
      %9174 = vmatprep.mubr.bf16.mxu0 0
      %9175 = vmatmul.mubr.bf16.gmra.mrb[0].mxu0 %v8972
      %v9176 = vpop.f32.mrb[0].mxu0
      %v9177 = vadd.f32 0.0, %v9176
      %v9178 = vpop.f32.mrb[0].mxu0
      %v9179 = vpop.f32.mrb[0].mxu0
      %v9180 = vadd.f32 0.0, %v9179
      %v9181 = vpop.f32.mrb[0].mxu0
      %9182 = vmatprep.mubr.bf16.mxu0 0
      %9183 = vmatmul.mubr.bf16.gmra.mrb[0].mxu0 %v8974
      %v9184 = vpop.f32.mrb[0].mxu0
      %v9185 = vadd.f32 0.0, %v9184
      %v9186 = vpop.f32.mrb[0].mxu0
      %v9187 = vpop.f32.mrb[0].mxu0
      %v9188 = vadd.f32 0.0, %v9187
      %v9189 = vpop.f32.mrb[0].mxu0
      %9190 = vmatprep.mubr.bf16.mxu0 0
      %9191 = vmatmul.mubr.bf16.gmra.mrb[0].mxu0 %v8976
      %v9192 = vpop.f32.mrb[0].mxu0
      %v9193 = vadd.f32 0.0, %v9192
      %v9194 = vpop.f32.mrb[0].mxu0
      %v9195 = vpop.f32.mrb[0].mxu0
      %v9196 = vadd.f32 0.0, %v9195
      %v9197 = vpop.f32.mrb[0].mxu0
      %9198 = vmatprep.mubr.bf16.mxu0 0
      %9199 = vmatmul.mubr.bf16.gmra.mrb[0].mxu0 %v8978
      %v9200 = vpop.f32.mrb[0].mxu0
      %v9201 = vadd.f32 0.0, %v9200
      %v9202 = vpop.f32.mrb[0].mxu0
      %v9203 = vpop.f32.mrb[0].mxu0
      %v9204 = vadd.f32 0.0, %v9203
      %v9205 = vpop.f32.mrb[0].mxu0
      %9206 = vmatprep.mubr.bf16.mxu0 0
      %9207 = vmatmul.mubr.bf16.gmra.mrb[0].mxu0 %v8980
      %v9208 = vpop.f32.mrb[0].mxu0
      %v9209 = vadd.f32 0.0, %v9208
      %v9210 = vpop.f32.mrb[0].mxu0
      %v9211 = vpop.f32.mrb[0].mxu0
      %v9212 = vadd.f32 0.0, %v9211
      %v9213 = vpop.f32.mrb[0].mxu0
      %9214 = vdwg.mxu0
      %v9215 = vadd.f32 %v8892, %v9081
      %v9216 = vadd.f32 %v8892, %v9084
      %v9217 = vadd.f32 %v8892, %v9089
      %v9218 = vadd.f32 %v8892, %v9092
      %v9219 = vadd.f32 %v8892, %v9097
      %v9220 = vadd.f32 %v8892, %v9100
      %v9221 = vadd.f32 %v8892, %v9105
      %v9222 = vadd.f32 %v8892, %v9108
      %v9223 = vadd.f32 %v8892, %v9113
      %v9224 = vadd.f32 %v8892, %v9116
      %v9225 = vadd.f32 %v8892, %v9121
      %v9226 = vadd.f32 %v8892, %v9124
      %v9227 = vadd.f32 %v8892, %v9129
      %v9228 = vadd.f32 %v8892, %v9132
      %v9229 = vadd.f32 %v8892, %v9137
      %v9230 = vadd.f32 %v8892, %v9140
      %v9231 = vadd.f32 %v8892, %v9145
      %v9232 = vadd.f32 %v8892, %v9148
      %v9233 = vadd.f32 %v8892, %v9153
      %v9234 = vadd.f32 %v8892, %v9156
      %v9235 = vadd.f32 %v8892, %v9161
      %v9236 = vadd.f32 %v8892, %v9164
      %v9237 = vadd.f32 %v8892, %v9169
      %v9238 = vadd.f32 %v8892, %v9172
      %v9239 = vadd.f32 %v8892, %v9177
      %v9240 = vadd.f32 %v8892, %v9180
      %v9241 = vadd.f32 %v8892, %v9185
      %v9242 = vadd.f32 %v8892, %v9188
      %v9243 = vadd.f32 %v8892, %v9193
      %v9244 = vadd.f32 %v8892, %v9196
      %v9245 = vadd.f32 %v8892, %v9201
      %v9246 = vadd.f32 %v8892, %v9204
      %v9247 = vadd.f32 %v8892, %v9209
      %v9248 = vadd.f32 %v8892, %v9212
      %v9249 = vld [vmem:[#allocation2 + $0x88] sm:$0xf]
      %s9250 = scalar_lea.vmem %s7, 64
      %v9251 = vld [vmem:[%s9250] sm:$0xf]
      %v9252 = vld [vmem:[%s9250 + $0x4] sm:$0xf]
      %v9253 = vld [vmem:[%s9250 + $0x8] sm:$0xf]
      %v9254 = vld [vmem:[%s9250 + $0xc] sm:$0xf]
      %v9255 = vld [vmem:[%s9250 + $0x10] sm:$0xf]
      %v9256 = vld [vmem:[%s9250 + $0x14] sm:$0xf]
      %v9257 = vld [vmem:[%s9250 + $0x18] sm:$0xf]
      %v9258 = vld [vmem:[%s9250 + $0x1c] sm:$0xf]
      %v9259 = vld [vmem:[%s9250 + $0x20] sm:$0xf]
      %v9260 = vld [vmem:[%s9250 + $0x24] sm:$0xf]
      %v9261 = vld [vmem:[%s9250 + $0x28] sm:$0xf]
      %v9262 = vld [vmem:[%s9250 + $0x2c] sm:$0xf]
      %v9263 = vld [vmem:[%s9250 + $0x30] sm:$0xf]
      %v9264 = vld [vmem:[%s9250 + $0x34] sm:$0xf]
      %v9265 = vld [vmem:[%s9250 + $0x38] sm:$0xf]
      %v9266 = vld [vmem:[%s9250 + $0x3c] sm:$0xf]
      %v9268 = vshrl.u32 %v8894, 16
      %v9270 = vrot.slane %v9268, 3
      %v9271 = vshll.u32 %v8894, 16
      %v9273 = vrot.slane %v9271, 4
      %v9274 = vor.u32 %v9270, %v9273
      %v9276 = vshrl.u32 %v8895, 16
      %v9278 = vrot.slane %v9276, 3
      %v9279 = vshll.u32 %v8895, 16
      %v9281 = vrot.slane %v9279, 4
      %v9282 = vor.u32 %v9278, %v9281
      %v9283 = vsel %vm2066, %v9274, %v9282
      %v9285 = vshrl.u32 %v8896, 16
      %v9287 = vrot.slane %v9285, 3
      %v9288 = vshll.u32 %v8896, 16
      %v9290 = vrot.slane %v9288, 4
      %v9291 = vor.u32 %v9287, %v9290
      %v9292 = vsel %vm2066, %v9282, %v9291
      %v9294 = vshrl.u32 %v8897, 16
      %v9296 = vrot.slane %v9294, 3
      %v9297 = vshll.u32 %v8897, 16
      %v9299 = vrot.slane %v9297, 4
      %v9300 = vor.u32 %v9296, %v9299
      %v9301 = vsel %vm2066, %v9291, %v9300
      %v9303 = vshrl.u32 %v8898, 16
      %v9305 = vrot.slane %v9303, 3
      %v9306 = vshll.u32 %v8898, 16
      %v9308 = vrot.slane %v9306, 4
      %v9309 = vor.u32 %v9305, %v9308
      %v9310 = vsel %vm2066, %v9300, %v9309
      %v9312 = vshrl.u32 %v8899, 16
      %v9314 = vrot.slane %v9312, 3
      %v9315 = vshll.u32 %v8899, 16
      %v9317 = vrot.slane %v9315, 4
      %v9318 = vor.u32 %v9314, %v9317
      %v9319 = vsel %vm2066, %v9309, %v9318
      %v9321 = vshrl.u32 %v8900, 16
      %v9323 = vrot.slane %v9321, 3
      %v9324 = vshll.u32 %v8900, 16
      %v9326 = vrot.slane %v9324, 4
      %v9327 = vor.u32 %v9323, %v9326
      %v9328 = vsel %vm2066, %v9318, %v9327
      %v9330 = vshrl.u32 %v8901, 16
      %v9332 = vrot.slane %v9330, 3
      %v9333 = vshll.u32 %v8901, 16
      %v9335 = vrot.slane %v9333, 4
      %v9336 = vor.u32 %v9332, %v9335
      %v9337 = vsel %vm2066, %v9327, %v9336
      %v9339 = vshrl.u32 %v8902, 16
      %v9341 = vrot.slane %v9339, 3
      %v9342 = vshll.u32 %v8902, 16
      %v9344 = vrot.slane %v9342, 4
      %v9345 = vor.u32 %v9341, %v9344
      %v9346 = vsel %vm2066, %v9336, %v9345
      %v9348 = vshrl.u32 %v8903, 16
      %v9350 = vrot.slane %v9348, 3
      %v9351 = vshll.u32 %v8903, 16
      %v9353 = vrot.slane %v9351, 4
      %v9354 = vor.u32 %v9350, %v9353
      %v9355 = vsel %vm2066, %v9345, %v9354
      %v9357 = vshrl.u32 %v8904, 16
      %v9359 = vrot.slane %v9357, 3
      %v9360 = vshll.u32 %v8904, 16
      %v9362 = vrot.slane %v9360, 4
      %v9363 = vor.u32 %v9359, %v9362
      %v9364 = vsel %vm2066, %v9354, %v9363
      %v9366 = vshrl.u32 %v8905, 16
      %v9368 = vrot.slane %v9366, 3
      %v9369 = vshll.u32 %v8905, 16
      %v9371 = vrot.slane %v9369, 4
      %v9372 = vor.u32 %v9368, %v9371
      %v9373 = vsel %vm2066, %v9363, %v9372
      %v9375 = vshrl.u32 %v8906, 16
      %v9377 = vrot.slane %v9375, 3
      %v9378 = vshll.u32 %v8906, 16
      %v9380 = vrot.slane %v9378, 4
      %v9381 = vor.u32 %v9377, %v9380
      %v9382 = vsel %vm2066, %v9372, %v9381
      %v9384 = vshrl.u32 %v8907, 16
      %v9386 = vrot.slane %v9384, 3
      %v9387 = vshll.u32 %v8907, 16
      %v9389 = vrot.slane %v9387, 4
      %v9390 = vor.u32 %v9386, %v9389
      %v9391 = vsel %vm2066, %v9381, %v9390
      %v9393 = vshrl.u32 %v8908, 16
      %v9395 = vrot.slane %v9393, 3
      %v9396 = vshll.u32 %v8908, 16
      %v9398 = vrot.slane %v9396, 4
      %v9399 = vor.u32 %v9395, %v9398
      %v9400 = vsel %vm2066, %v9390, %v9399
      %v9402 = vshrl.u32 %v8909, 16
      %v9404 = vrot.slane %v9402, 3
      %v9405 = vshll.u32 %v8909, 16
      %v9407 = vrot.slane %v9405, 4
      %v9408 = vor.u32 %v9404, %v9407
      %v9409 = vsel %vm2066, %v9399, %v9408
      %v9411 = vshrl.u32 %v8910, 16
      %v9413 = vrot.slane %v9411, 3
      %v9414 = vshll.u32 %v8910, 16
      %v9416 = vrot.slane %v9414, 4
      %v9417 = vor.u32 %v9413, %v9416
      %v9418 = vsel %vm2066, %v9408, %v9417
      %v9420 = vshrl.u32 %v9249, 16
      %v9422 = vrot.slane %v9420, 3
      %v9423 = vshll.u32 %v9249, 16
      %v9425 = vrot.slane %v9423, 4
      %v9426 = vor.u32 %v9422, %v9425
      %v9427 = vsel %vm2066, %v9417, %v9426
      %v9461 = vunpack.c.l.b16 %v9251
      %v9462 = vunpack.c.l.b16 %v9252
      %v9463 = vunpack.c.l.b16 %v9253
      %v9464 = vunpack.c.l.b16 %v9254
      %v9465 = vunpack.c.l.b16 %v9255
      %v9466 = vunpack.c.l.b16 %v9256
      %v9467 = vunpack.c.l.b16 %v9257
      %v9468 = vunpack.c.l.b16 %v9258
      %v9469 = vunpack.c.l.b16 %v9259
      %v9470 = vunpack.c.l.b16 %v9260
      %v9471 = vunpack.c.l.b16 %v9261
      %v9472 = vunpack.c.l.b16 %v9262
      %v9473 = vunpack.c.l.b16 %v9263
      %v9474 = vunpack.c.l.b16 %v9264
      %v9475 = vunpack.c.l.b16 %v9265
      %v9476 = vunpack.c.l.b16 %v9266
      %v9477 = vpack.c.b16 %v9462, %v9461
      %v9478 = vpack.c.b16 %v9464, %v9463
      %v9479 = vpack.c.b16 %v9466, %v9465
      %v9480 = vpack.c.b16 %v9468, %v9467
      %v9481 = vpack.c.b16 %v9470, %v9469
      %v9482 = vpack.c.b16 %v9472, %v9471
      %v9483 = vpack.c.b16 %v9474, %v9473
      %v9484 = vpack.c.b16 %v9476, %v9475
      %9493 = vmatprep.subr.bf16.mxu0 0
      %9494 = vmatpush1.bf16.msra.mxu0 %v9477
      %9495 = vmatprep.subr.bf16.mxu0 0
      %9496 = vmatpush1.bf16.msra.mxu0 %v9478
      %9497 = vmatprep.subr.bf16.mxu0 0
      %9498 = vmatpush1.bf16.msra.mxu0 %v9479
      %9499 = vmatprep.subr.bf16.mxu0 0
      %9500 = vmatpush1.bf16.msra.mxu0 %v9480
      %9501 = vmatprep.subr.bf16.mxu0 0
      %9502 = vmatpush1.bf16.msra.mxu0 %v9481
      %9503 = vmatprep.subr.bf16.mxu0 0
      %9504 = vmatpush1.bf16.msra.mxu0 %v9482
      %9505 = vmatprep.subr.bf16.mxu0 0
      %9506 = vmatpush1.bf16.msra.mxu0 %v9483
      %9507 = vmatprep.subr.bf16.mxu0 0
      %9508 = vmatpush1.bf16.msra.mxu0 %v9484
      %9509 = vmatprep.subr.bf16.mxu0 0
      %9510 = vmatpush1.bf16.msra.mxu0 0
      %9511 = vmatprep.subr.bf16.mxu0 0
      %9512 = vmatpush1.bf16.msra.mxu0 0
      %9513 = vmatprep.subr.bf16.mxu0 0
      %9514 = vmatpush1.bf16.msra.mxu0 0
      %9515 = vmatprep.subr.bf16.mxu0 0
      %9516 = vmatpush1.bf16.msra.mxu0 0
      %9517 = vmatprep.subr.bf16.mxu0 0
      %9518 = vmatpush1.bf16.msra.mxu0 0
      %9519 = vmatprep.subr.bf16.mxu0 0
      %9520 = vmatpush1.bf16.msra.mxu0 0
      %9521 = vmatprep.subr.bf16.mxu0 0
      %9522 = vmatpush1.bf16.msra.mxu0 0
      %9523 = vmatprep.subr.bf16.mxu0 0
      %9524 = vmatpush1.bf16.msra.mxu0 0
      %9525 = vmatprep.mubr.bf16.mxu0 0
      %9526 = vmatmul.mubr.bf16.gmra.mrb[0].mxu0 %v9283
      %v9527 = vpop.f32.mrb[0].mxu0
      %v9528 = vadd.f32 0.0, %v9527
      %v9529 = vpop.f32.mrb[0].mxu0
      %v9530 = vpop.f32.mrb[0].mxu0
      %v9531 = vadd.f32 0.0, %v9530
      %v9532 = vpop.f32.mrb[0].mxu0
      %9533 = vmatprep.mubr.bf16.mxu0 0
      %9534 = vmatmul.mubr.bf16.gmra.mrb[0].mxu0 %v9292
      %v9535 = vpop.f32.mrb[0].mxu0
      %v9536 = vadd.f32 0.0, %v9535
      %v9537 = vpop.f32.mrb[0].mxu0
      %v9538 = vpop.f32.mrb[0].mxu0
      %v9539 = vadd.f32 0.0, %v9538
      %v9540 = vpop.f32.mrb[0].mxu0
      %9541 = vmatprep.mubr.bf16.mxu0 0
      %9542 = vmatmul.mubr.bf16.gmra.mrb[0].mxu0 %v9301
      %v9543 = vpop.f32.mrb[0].mxu0
      %v9544 = vadd.f32 0.0, %v9543
      %v9545 = vpop.f32.mrb[0].mxu0
      %v9546 = vpop.f32.mrb[0].mxu0
      %v9547 = vadd.f32 0.0, %v9546
      %v9548 = vpop.f32.mrb[0].mxu0
      %9549 = vmatprep.mubr.bf16.mxu0 0
      %9550 = vmatmul.mubr.bf16.gmra.mrb[0].mxu0 %v9310
      %v9551 = vpop.f32.mrb[0].mxu0
      %v9552 = vadd.f32 0.0, %v9551
      %v9553 = vpop.f32.mrb[0].mxu0
      %v9554 = vpop.f32.mrb[0].mxu0
      %v9555 = vadd.f32 0.0, %v9554
      %v9556 = vpop.f32.mrb[0].mxu0
      %9557 = vmatprep.mubr.bf16.mxu0 0
      %9558 = vmatmul.mubr.bf16.gmra.mrb[0].mxu0 %v9319
      %v9559 = vpop.f32.mrb[0].mxu0
      %v9560 = vadd.f32 0.0, %v9559
      %v9561 = vpop.f32.mrb[0].mxu0
      %v9562 = vpop.f32.mrb[0].mxu0
      %v9563 = vadd.f32 0.0, %v9562
      %v9564 = vpop.f32.mrb[0].mxu0
      %9565 = vmatprep.mubr.bf16.mxu0 0
      %9566 = vmatmul.mubr.bf16.gmra.mrb[0].mxu0 %v9328
      %v9567 = vpop.f32.mrb[0].mxu0
      %v9568 = vadd.f32 0.0, %v9567
      %v9569 = vpop.f32.mrb[0].mxu0
      %v9570 = vpop.f32.mrb[0].mxu0
      %v9571 = vadd.f32 0.0, %v9570
      %v9572 = vpop.f32.mrb[0].mxu0
      %9573 = vmatprep.mubr.bf16.mxu0 0
      %9574 = vmatmul.mubr.bf16.gmra.mrb[0].mxu0 %v9337
      %v9575 = vpop.f32.mrb[0].mxu0
      %v9576 = vadd.f32 0.0, %v9575
      %v9577 = vpop.f32.mrb[0].mxu0
      %v9578 = vpop.f32.mrb[0].mxu0
      %v9579 = vadd.f32 0.0, %v9578
      %v9580 = vpop.f32.mrb[0].mxu0
      %9581 = vmatprep.mubr.bf16.mxu0 0
      %9582 = vmatmul.mubr.bf16.gmra.mrb[0].mxu0 %v9346
      %v9583 = vpop.f32.mrb[0].mxu0
      %v9584 = vadd.f32 0.0, %v9583
      %v9585 = vpop.f32.mrb[0].mxu0
      %v9586 = vpop.f32.mrb[0].mxu0
      %v9587 = vadd.f32 0.0, %v9586
      %v9588 = vpop.f32.mrb[0].mxu0
      %9589 = vmatprep.mubr.bf16.mxu0 0
      %9590 = vmatmul.mubr.bf16.gmra.mrb[0].mxu0 %v9355
      %v9591 = vpop.f32.mrb[0].mxu0
      %v9592 = vadd.f32 0.0, %v9591
      %v9593 = vpop.f32.mrb[0].mxu0
      %v9594 = vpop.f32.mrb[0].mxu0
      %v9595 = vadd.f32 0.0, %v9594
      %v9596 = vpop.f32.mrb[0].mxu0
      %9597 = vmatprep.mubr.bf16.mxu0 0
      %9598 = vmatmul.mubr.bf16.gmra.mrb[0].mxu0 %v9364
      %v9599 = vpop.f32.mrb[0].mxu0
      %v9600 = vadd.f32 0.0, %v9599
      %v9601 = vpop.f32.mrb[0].mxu0
      %v9602 = vpop.f32.mrb[0].mxu0
      %v9603 = vadd.f32 0.0, %v9602
      %v9604 = vpop.f32.mrb[0].mxu0
      %9605 = vmatprep.mubr.bf16.mxu0 0
      %9606 = vmatmul.mubr.bf16.gmra.mrb[0].mxu0 %v9373
      %v9607 = vpop.f32.mrb[0].mxu0
      %v9608 = vadd.f32 0.0, %v9607
      %v9609 = vpop.f32.mrb[0].mxu0
      %v9610 = vpop.f32.mrb[0].mxu0
      %v9611 = vadd.f32 0.0, %v9610
      %v9612 = vpop.f32.mrb[0].mxu0
      %9613 = vmatprep.mubr.bf16.mxu0 0
      %9614 = vmatmul.mubr.bf16.gmra.mrb[0].mxu0 %v9382
      %v9615 = vpop.f32.mrb[0].mxu0
      %v9616 = vadd.f32 0.0, %v9615
      %v9617 = vpop.f32.mrb[0].mxu0
      %v9618 = vpop.f32.mrb[0].mxu0
      %v9619 = vadd.f32 0.0, %v9618
      %v9620 = vpop.f32.mrb[0].mxu0
      %9621 = vmatprep.mubr.bf16.mxu0 0
      %9622 = vmatmul.mubr.bf16.gmra.mrb[0].mxu0 %v9391
      %v9623 = vpop.f32.mrb[0].mxu0
      %v9624 = vadd.f32 0.0, %v9623
      %v9625 = vpop.f32.mrb[0].mxu0
      %v9626 = vpop.f32.mrb[0].mxu0
      %v9627 = vadd.f32 0.0, %v9626
      %v9628 = vpop.f32.mrb[0].mxu0
      %9629 = vmatprep.mubr.bf16.mxu0 0
      %9630 = vmatmul.mubr.bf16.gmra.mrb[0].mxu0 %v9400
      %v9631 = vpop.f32.mrb[0].mxu0
      %v9632 = vadd.f32 0.0, %v9631
      %v9633 = vpop.f32.mrb[0].mxu0
      %v9634 = vpop.f32.mrb[0].mxu0
      %v9635 = vadd.f32 0.0, %v9634
      %v9636 = vpop.f32.mrb[0].mxu0
      %9637 = vmatprep.mubr.bf16.mxu0 0
      %9638 = vmatmul.mubr.bf16.gmra.mrb[0].mxu0 %v9409
      %v9639 = vpop.f32.mrb[0].mxu0
      %v9640 = vadd.f32 0.0, %v9639
      %v9641 = vpop.f32.mrb[0].mxu0
      %v9642 = vpop.f32.mrb[0].mxu0
      %v9643 = vadd.f32 0.0, %v9642
      %v9644 = vpop.f32.mrb[0].mxu0
      %9645 = vmatprep.mubr.bf16.mxu0 0
      %9646 = vmatmul.mubr.bf16.gmra.mrb[0].mxu0 %v9418
      %v9647 = vpop.f32.mrb[0].mxu0
      %v9648 = vadd.f32 0.0, %v9647
      %v9649 = vpop.f32.mrb[0].mxu0
      %v9650 = vpop.f32.mrb[0].mxu0
      %v9651 = vadd.f32 0.0, %v9650
      %v9652 = vpop.f32.mrb[0].mxu0
      %9653 = vmatprep.mubr.bf16.mxu0 0
      %9654 = vmatmul.mubr.bf16.gmra.mrb[0].mxu0 %v9427
      %v9655 = vpop.f32.mrb[0].mxu0
      %v9656 = vadd.f32 0.0, %v9655
      %v9657 = vpop.f32.mrb[0].mxu0
      %v9658 = vpop.f32.mrb[0].mxu0
      %v9659 = vadd.f32 0.0, %v9658
      %v9660 = vpop.f32.mrb[0].mxu0
      %9661 = vdwg.mxu0
      %v9662 = vadd.f32 %v9215, %v9528
      %v9663 = vadd.f32 %v9216, %v9531
      %v9664 = vadd.f32 %v9217, %v9536
      %v9665 = vadd.f32 %v9218, %v9539
      %v9666 = vadd.f32 %v9219, %v9544
      %v9667 = vadd.f32 %v9220, %v9547
      %v9668 = vadd.f32 %v9221, %v9552
      %v9669 = vadd.f32 %v9222, %v9555
      %v9670 = vadd.f32 %v9223, %v9560
      %v9671 = vadd.f32 %v9224, %v9563
      %v9672 = vadd.f32 %v9225, %v9568
      %v9673 = vadd.f32 %v9226, %v9571
      %v9674 = vadd.f32 %v9227, %v9576
      %v9675 = vadd.f32 %v9228, %v9579
      %v9676 = vadd.f32 %v9229, %v9584
      %v9677 = vadd.f32 %v9230, %v9587
      %v9678 = vadd.f32 %v9231, %v9592
      %v9679 = vadd.f32 %v9232, %v9595
      %v9680 = vadd.f32 %v9233, %v9600
      %v9681 = vadd.f32 %v9234, %v9603
      %v9682 = vadd.f32 %v9235, %v9608
      %v9683 = vadd.f32 %v9236, %v9611
      %v9684 = vadd.f32 %v9237, %v9616
      %v9685 = vadd.f32 %v9238, %v9619
      %v9686 = vadd.f32 %v9239, %v9624
      %v9687 = vadd.f32 %v9240, %v9627
      %v9688 = vadd.f32 %v9241, %v9632
      %v9689 = vadd.f32 %v9242, %v9635
      %v9690 = vadd.f32 %v9243, %v9640
      %v9691 = vadd.f32 %v9244, %v9643
      %v9692 = vadd.f32 %v9245, %v9648
      %v9693 = vadd.f32 %v9246, %v9651
      %v9694 = vadd.f32 %v9247, %v9656
      %v9695 = vadd.f32 %v9248, %v9659
      %v9696 = vld [vmem:[#allocation2] sm:$0xf0]
      %s9697 = scalar_lea.vmem %s7, 128
      %v9698 = vld [vmem:[%s9697] sm:$0xf]
      %v9699 = vld [vmem:[%s9697 + $0x4] sm:$0xf]
      %v9700 = vld [vmem:[%s9697 + $0x8] sm:$0xf]
      %v9701 = vld [vmem:[%s9697 + $0xc] sm:$0xf]
      %v9702 = vld [vmem:[%s9697 + $0x10] sm:$0xf]
      %v9703 = vld [vmem:[%s9697 + $0x14] sm:$0xf]
      %v9704 = vld [vmem:[%s9697 + $0x18] sm:$0xf]
      %v9705 = vld [vmem:[%s9697 + $0x1c] sm:$0xf]
      %v9706 = vld [vmem:[%s9697 + $0x20] sm:$0xf]
      %v9707 = vld [vmem:[%s9697 + $0x24] sm:$0xf]
      %v9708 = vld [vmem:[%s9697 + $0x28] sm:$0xf]
      %v9709 = vld [vmem:[%s9697 + $0x2c] sm:$0xf]
      %v9710 = vld [vmem:[%s9697 + $0x30] sm:$0xf]
      %v9711 = vld [vmem:[%s9697 + $0x34] sm:$0xf]
      %v9712 = vld [vmem:[%s9697 + $0x38] sm:$0xf]
      %v9713 = vld [vmem:[%s9697 + $0x3c] sm:$0xf]
      %v9716 = vrot.slane %v9696, 4
      %v9717 = vrot.slane %v8895, 4
      %v9718 = vsel %vm1615, %v9716, %v9717
      %v9719 = vrot.slane %v8896, 4
      %v9720 = vsel %vm1615, %v9717, %v9719
      %v9721 = vrot.slane %v8897, 4
      %v9722 = vsel %vm1615, %v9719, %v9721
      %v9723 = vrot.slane %v8898, 4
      %v9724 = vsel %vm1615, %v9721, %v9723
      %v9725 = vrot.slane %v8899, 4
      %v9726 = vsel %vm1615, %v9723, %v9725
      %v9727 = vrot.slane %v8900, 4
      %v9728 = vsel %vm1615, %v9725, %v9727
      %v9729 = vrot.slane %v8901, 4
      %v9730 = vsel %vm1615, %v9727, %v9729
      %v9731 = vrot.slane %v8902, 4
      %v9732 = vsel %vm1615, %v9729, %v9731
      %v9733 = vrot.slane %v8903, 4
      %v9734 = vsel %vm1615, %v9731, %v9733
      %v9735 = vrot.slane %v8904, 4
      %v9736 = vsel %vm1615, %v9733, %v9735
      %v9737 = vrot.slane %v8905, 4
      %v9738 = vsel %vm1615, %v9735, %v9737
      %v9739 = vrot.slane %v8906, 4
      %v9740 = vsel %vm1615, %v9737, %v9739
      %v9741 = vrot.slane %v8907, 4
      %v9742 = vsel %vm1615, %v9739, %v9741
      %v9743 = vrot.slane %v8908, 4
      %v9744 = vsel %vm1615, %v9741, %v9743
      %v9745 = vrot.slane %v8909, 4
      %v9746 = vsel %vm1615, %v9743, %v9745
      %v9747 = vrot.slane %v8910, 4
      %v9748 = vsel %vm1615, %v9745, %v9747
      %v9749 = vrot.slane %v9249, 4
      %v9750 = vsel %vm1615, %v9747, %v9749
      %v9784 = vunpack.c.l.b16 %v9698
      %v9785 = vunpack.c.l.b16 %v9699
      %v9786 = vunpack.c.l.b16 %v9700
      %v9787 = vunpack.c.l.b16 %v9701
      %v9788 = vunpack.c.l.b16 %v9702
      %v9789 = vunpack.c.l.b16 %v9703
      %v9790 = vunpack.c.l.b16 %v9704
      %v9791 = vunpack.c.l.b16 %v9705
      %v9792 = vunpack.c.l.b16 %v9706
      %v9793 = vunpack.c.l.b16 %v9707
      %v9794 = vunpack.c.l.b16 %v9708
      %v9795 = vunpack.c.l.b16 %v9709
      %v9796 = vunpack.c.l.b16 %v9710
      %v9797 = vunpack.c.l.b16 %v9711
      %v9798 = vunpack.c.l.b16 %v9712
      %v9799 = vunpack.c.l.b16 %v9713
      %v9800 = vpack.c.b16 %v9785, %v9784
      %v9801 = vpack.c.b16 %v9787, %v9786
      %v9802 = vpack.c.b16 %v9789, %v9788
      %v9803 = vpack.c.b16 %v9791, %v9790
      %v9804 = vpack.c.b16 %v9793, %v9792
      %v9805 = vpack.c.b16 %v9795, %v9794
      %v9806 = vpack.c.b16 %v9797, %v9796
      %v9807 = vpack.c.b16 %v9799, %v9798
      %9816 = vmatprep.subr.bf16.mxu0 0
      %9817 = vmatpush1.bf16.msra.mxu0 %v9800
      %9818 = vmatprep.subr.bf16.mxu0 0
      %9819 = vmatpush1.bf16.msra.mxu0 %v9801
      %9820 = vmatprep.subr.bf16.mxu0 0
      %9821 = vmatpush1.bf16.msra.mxu0 %v9802
      %9822 = vmatprep.subr.bf16.mxu0 0
      %9823 = vmatpush1.bf16.msra.mxu0 %v9803
      %9824 = vmatprep.subr.bf16.mxu0 0
      %9825 = vmatpush1.bf16.msra.mxu0 %v9804
      %9826 = vmatprep.subr.bf16.mxu0 0
      %9827 = vmatpush1.bf16.msra.mxu0 %v9805
      %9828 = vmatprep.subr.bf16.mxu0 0
      %9829 = vmatpush1.bf16.msra.mxu0 %v9806
      %9830 = vmatprep.subr.bf16.mxu0 0
      %9831 = vmatpush1.bf16.msra.mxu0 %v9807
      %9832 = vmatprep.subr.bf16.mxu0 0
      %9833 = vmatpush1.bf16.msra.mxu0 0
      %9834 = vmatprep.subr.bf16.mxu0 0
      %9835 = vmatpush1.bf16.msra.mxu0 0
      %9836 = vmatprep.subr.bf16.mxu0 0
      %9837 = vmatpush1.bf16.msra.mxu0 0
      %9838 = vmatprep.subr.bf16.mxu0 0
      %9839 = vmatpush1.bf16.msra.mxu0 0
      %9840 = vmatprep.subr.bf16.mxu0 0
      %9841 = vmatpush1.bf16.msra.mxu0 0
      %9842 = vmatprep.subr.bf16.mxu0 0
      %9843 = vmatpush1.bf16.msra.mxu0 0
      %9844 = vmatprep.subr.bf16.mxu0 0
      %9845 = vmatpush1.bf16.msra.mxu0 0
      %9846 = vmatprep.subr.bf16.mxu0 0
      %9847 = vmatpush1.bf16.msra.mxu0 0
      %9848 = vmatprep.mubr.bf16.mxu0 0
      %9849 = vmatmul.mubr.bf16.gmra.mrb[0].mxu0 %v9718
      %v9850 = vpop.f32.mrb[0].mxu0
      %v9851 = vadd.f32 0.0, %v9850
      %v9852 = vpop.f32.mrb[0].mxu0
      %v9853 = vpop.f32.mrb[0].mxu0
      %v9854 = vadd.f32 0.0, %v9853
      %v9855 = vpop.f32.mrb[0].mxu0
      %9856 = vmatprep.mubr.bf16.mxu0 0
      %9857 = vmatmul.mubr.bf16.gmra.mrb[0].mxu0 %v9720
      %v9858 = vpop.f32.mrb[0].mxu0
      %v9859 = vadd.f32 0.0, %v9858
      %v9860 = vpop.f32.mrb[0].mxu0
      %v9861 = vpop.f32.mrb[0].mxu0
      %v9862 = vadd.f32 0.0, %v9861
      %v9863 = vpop.f32.mrb[0].mxu0
      %9864 = vmatprep.mubr.bf16.mxu0 0
      %9865 = vmatmul.mubr.bf16.gmra.mrb[0].mxu0 %v9722
      %v9866 = vpop.f32.mrb[0].mxu0
      %v9867 = vadd.f32 0.0, %v9866
      %v9868 = vpop.f32.mrb[0].mxu0
      %v9869 = vpop.f32.mrb[0].mxu0
      %v9870 = vadd.f32 0.0, %v9869
      %v9871 = vpop.f32.mrb[0].mxu0
      %9872 = vmatprep.mubr.bf16.mxu0 0
      %9873 = vmatmul.mubr.bf16.gmra.mrb[0].mxu0 %v9724
      %v9874 = vpop.f32.mrb[0].mxu0
      %v9875 = vadd.f32 0.0, %v9874
      %v9876 = vpop.f32.mrb[0].mxu0
      %v9877 = vpop.f32.mrb[0].mxu0
      %v9878 = vadd.f32 0.0, %v9877
      %v9879 = vpop.f32.mrb[0].mxu0
      %9880 = vmatprep.mubr.bf16.mxu0 0
      %9881 = vmatmul.mubr.bf16.gmra.mrb[0].mxu0 %v9726
      %v9882 = vpop.f32.mrb[0].mxu0
      %v9883 = vadd.f32 0.0, %v9882
      %v9884 = vpop.f32.mrb[0].mxu0
      %v9885 = vpop.f32.mrb[0].mxu0
      %v9886 = vadd.f32 0.0, %v9885
      %v9887 = vpop.f32.mrb[0].mxu0
      %9888 = vmatprep.mubr.bf16.mxu0 0
      %9889 = vmatmul.mubr.bf16.gmra.mrb[0].mxu0 %v9728
      %v9890 = vpop.f32.mrb[0].mxu0
      %v9891 = vadd.f32 0.0, %v9890
      %v9892 = vpop.f32.mrb[0].mxu0
      %v9893 = vpop.f32.mrb[0].mxu0
      %v9894 = vadd.f32 0.0, %v9893
      %v9895 = vpop.f32.mrb[0].mxu0
      %9896 = vmatprep.mubr.bf16.mxu0 0
      %9897 = vmatmul.mubr.bf16.gmra.mrb[0].mxu0 %v9730
      %v9898 = vpop.f32.mrb[0].mxu0
      %v9899 = vadd.f32 0.0, %v9898
      %v9900 = vpop.f32.mrb[0].mxu0
      %v9901 = vpop.f32.mrb[0].mxu0
      %v9902 = vadd.f32 0.0, %v9901
      %v9903 = vpop.f32.mrb[0].mxu0
      %9904 = vmatprep.mubr.bf16.mxu0 0
      %9905 = vmatmul.mubr.bf16.gmra.mrb[0].mxu0 %v9732
      %v9906 = vpop.f32.mrb[0].mxu0
      %v9907 = vadd.f32 0.0, %v9906
      %v9908 = vpop.f32.mrb[0].mxu0
      %v9909 = vpop.f32.mrb[0].mxu0
      %v9910 = vadd.f32 0.0, %v9909
      %v9911 = vpop.f32.mrb[0].mxu0
      %9912 = vmatprep.mubr.bf16.mxu0 0
      %9913 = vmatmul.mubr.bf16.gmra.mrb[0].mxu0 %v9734
      %v9914 = vpop.f32.mrb[0].mxu0
      %v9915 = vadd.f32 0.0, %v9914
      %v9916 = vpop.f32.mrb[0].mxu0
      %v9917 = vpop.f32.mrb[0].mxu0
      %v9918 = vadd.f32 0.0, %v9917
      %v9919 = vpop.f32.mrb[0].mxu0
      %9920 = vmatprep.mubr.bf16.mxu0 0
      %9921 = vmatmul.mubr.bf16.gmra.mrb[0].mxu0 %v9736
      %v9922 = vpop.f32.mrb[0].mxu0
      %v9923 = vadd.f32 0.0, %v9922
      %v9924 = vpop.f32.mrb[0].mxu0
      %v9925 = vpop.f32.mrb[0].mxu0
      %v9926 = vadd.f32 0.0, %v9925
      %v9927 = vpop.f32.mrb[0].mxu0
      %9928 = vmatprep.mubr.bf16.mxu0 0
      %9929 = vmatmul.mubr.bf16.gmra.mrb[0].mxu0 %v9738
      %v9930 = vpop.f32.mrb[0].mxu0
      %v9931 = vadd.f32 0.0, %v9930
      %v9932 = vpop.f32.mrb[0].mxu0
      %v9933 = vpop.f32.mrb[0].mxu0
      %v9934 = vadd.f32 0.0, %v9933
      %v9935 = vpop.f32.mrb[0].mxu0
      %9936 = vmatprep.mubr.bf16.mxu0 0
      %9937 = vmatmul.mubr.bf16.gmra.mrb[0].mxu0 %v9740
      %v9938 = vpop.f32.mrb[0].mxu0
      %v9939 = vadd.f32 0.0, %v9938
      %v9940 = vpop.f32.mrb[0].mxu0
      %v9941 = vpop.f32.mrb[0].mxu0
      %v9942 = vadd.f32 0.0, %v9941
      %v9943 = vpop.f32.mrb[0].mxu0
      %9944 = vmatprep.mubr.bf16.mxu0 0
      %9945 = vmatmul.mubr.bf16.gmra.mrb[0].mxu0 %v9742
      %v9946 = vpop.f32.mrb[0].mxu0
      %v9947 = vadd.f32 0.0, %v9946
      %v9948 = vpop.f32.mrb[0].mxu0
      %v9949 = vpop.f32.mrb[0].mxu0
      %v9950 = vadd.f32 0.0, %v9949
      %v9951 = vpop.f32.mrb[0].mxu0
      %9952 = vmatprep.mubr.bf16.mxu0 0
      %9953 = vmatmul.mubr.bf16.gmra.mrb[0].mxu0 %v9744
      %v9954 = vpop.f32.mrb[0].mxu0
      %v9955 = vadd.f32 0.0, %v9954
      %v9956 = vpop.f32.mrb[0].mxu0
      %v9957 = vpop.f32.mrb[0].mxu0
      %v9958 = vadd.f32 0.0, %v9957
      %v9959 = vpop.f32.mrb[0].mxu0
      %9960 = vmatprep.mubr.bf16.mxu0 0
      %9961 = vmatmul.mubr.bf16.gmra.mrb[0].mxu0 %v9746
      %v9962 = vpop.f32.mrb[0].mxu0
      %v9963 = vadd.f32 0.0, %v9962
      %v9964 = vpop.f32.mrb[0].mxu0
      %v9965 = vpop.f32.mrb[0].mxu0
      %v9966 = vadd.f32 0.0, %v9965
      %v9967 = vpop.f32.mrb[0].mxu0
      %9968 = vmatprep.mubr.bf16.mxu0 0
      %9969 = vmatmul.mubr.bf16.gmra.mrb[0].mxu0 %v9748
      %v9970 = vpop.f32.mrb[0].mxu0
      %v9971 = vadd.f32 0.0, %v9970
      %v9972 = vpop.f32.mrb[0].mxu0
      %v9973 = vpop.f32.mrb[0].mxu0
      %v9974 = vadd.f32 0.0, %v9973
      %v9975 = vpop.f32.mrb[0].mxu0
      %9976 = vmatprep.mubr.bf16.mxu0 0
      %9977 = vmatmul.mubr.bf16.gmra.mrb[0].mxu0 %v9750
      %v9978 = vpop.f32.mrb[0].mxu0
      %v9979 = vadd.f32 0.0, %v9978
      %v9980 = vpop.f32.mrb[0].mxu0
      %v9981 = vpop.f32.mrb[0].mxu0
      %v9982 = vadd.f32 0.0, %v9981
      %v9983 = vpop.f32.mrb[0].mxu0
      %9984 = vdwg.mxu0
      %v9985 = vadd.f32 %v9662, %v9851
      %v9986 = vadd.f32 %v9663, %v9854
      %v9987 = vadd.f32 %v9664, %v9859
      %v9988 = vadd.f32 %v9665, %v9862
      %v9989 = vadd.f32 %v9666, %v9867
      %v9990 = vadd.f32 %v9667, %v9870
      %v9991 = vadd.f32 %v9668, %v9875
      %v9992 = vadd.f32 %v9669, %v9878
      %v9993 = vadd.f32 %v9670, %v9883
      %v9994 = vadd.f32 %v9671, %v9886
      %v9995 = vadd.f32 %v9672, %v9891
      %v9996 = vadd.f32 %v9673, %v9894
      %v9997 = vadd.f32 %v9674, %v9899
      %v9998 = vadd.f32 %v9675, %v9902
      %v9999 = vadd.f32 %v9676, %v9907
      %v10000 = vadd.f32 %v9677, %v9910
      %v10001 = vadd.f32 %v9678, %v9915
      %v10002 = vadd.f32 %v9679, %v9918
      %v10003 = vadd.f32 %v9680, %v9923
      %v10004 = vadd.f32 %v9681, %v9926
      %v10005 = vadd.f32 %v9682, %v9931
      %v10006 = vadd.f32 %v9683, %v9934
      %v10007 = vadd.f32 %v9684, %v9939
      %v10008 = vadd.f32 %v9685, %v9942
      %v10009 = vadd.f32 %v9686, %v9947
      %v10010 = vadd.f32 %v9687, %v9950
      %v10011 = vadd.f32 %v9688, %v9955
      %v10012 = vadd.f32 %v9689, %v9958
      %v10013 = vadd.f32 %v9690, %v9963
      %v10014 = vadd.f32 %v9691, %v9966
      %v10015 = vadd.f32 %v9692, %v9971
      %v10016 = vadd.f32 %v9693, %v9974
      %v10017 = vadd.f32 %v9694, %v9979
      %v10018 = vadd.f32 %v9695, %v9982
      %v10019 = vld [vmem:[#allocation2 + $0x8] sm:$0xf8]
      %v10020 = vld [vmem:[#allocation2 + $0x10] sm:$0xff]
      %v10021 = vld [vmem:[#allocation2 + $0x18] sm:$0xff]
      %v10022 = vld [vmem:[#allocation2 + $0x20] sm:$0xff]
      %v10023 = vld [vmem:[#allocation2 + $0x28] sm:$0xff]
      %v10024 = vld [vmem:[#allocation2 + $0x30] sm:$0xff]
      %v10025 = vld [vmem:[#allocation2 + $0x38] sm:$0xff]
      %v10026 = vld [vmem:[#allocation2 + $0x40] sm:$0xff]
      %v10027 = vld [vmem:[#allocation2 + $0x48] sm:$0xff]
      %v10028 = vld [vmem:[#allocation2 + $0x50] sm:$0xff]
      %v10029 = vld [vmem:[#allocation2 + $0x58] sm:$0xff]
      %v10030 = vld [vmem:[#allocation2 + $0x60] sm:$0xff]
      %v10031 = vld [vmem:[#allocation2 + $0x68] sm:$0xff]
      %v10032 = vld [vmem:[#allocation2 + $0x70] sm:$0xff]
      %v10033 = vld [vmem:[#allocation2 + $0x78] sm:$0xff]
      %v10034 = vld [vmem:[#allocation2 + $0x80] sm:$0xff]
      %v10035 = vld [vmem:[#allocation2 + $0x88] sm:$0xff]
      %v10036 = vld [vmem:[#allocation2 + $0x90] sm:$0xf]
      %s10037 = scalar_lea.vmem %s7, 192
      %v10038 = vld [vmem:[%s10037] sm:$0xf]
      %v10039 = vld [vmem:[%s10037 + $0x4] sm:$0xf]
      %v10040 = vld [vmem:[%s10037 + $0x8] sm:$0xf]
      %v10041 = vld [vmem:[%s10037 + $0xc] sm:$0xf]
      %v10042 = vld [vmem:[%s10037 + $0x10] sm:$0xf]
      %v10043 = vld [vmem:[%s10037 + $0x14] sm:$0xf]
      %v10044 = vld [vmem:[%s10037 + $0x18] sm:$0xf]
      %v10045 = vld [vmem:[%s10037 + $0x1c] sm:$0xf]
      %v10046 = vld [vmem:[%s10037 + $0x20] sm:$0xf]
      %v10047 = vld [vmem:[%s10037 + $0x24] sm:$0xf]
      %v10048 = vld [vmem:[%s10037 + $0x28] sm:$0xf]
      %v10049 = vld [vmem:[%s10037 + $0x2c] sm:$0xf]
      %v10050 = vld [vmem:[%s10037 + $0x30] sm:$0xf]
      %v10051 = vld [vmem:[%s10037 + $0x34] sm:$0xf]
      %v10052 = vld [vmem:[%s10037 + $0x38] sm:$0xf]
      %v10053 = vld [vmem:[%s10037 + $0x3c] sm:$0xf]
      %v10055 = vshrl.u32 %v10019, 16
      %v10057 = vrot.slane %v10055, 3
      %v10058 = vshll.u32 %v10019, 16
      %v10060 = vrot.slane %v10058, 4
      %v10061 = vor.u32 %v10057, %v10060
      %v10063 = vshrl.u32 %v10020, 16
      %v10065 = vrot.slane %v10063, 3
      %v10066 = vshll.u32 %v10020, 16
      %v10068 = vrot.slane %v10066, 4
      %v10069 = vor.u32 %v10065, %v10068
      %v10070 = vsel %vm2066, %v10061, %v10069
      %v10072 = vshrl.u32 %v10021, 16
      %v10074 = vrot.slane %v10072, 3
      %v10075 = vshll.u32 %v10021, 16
      %v10077 = vrot.slane %v10075, 4
      %v10078 = vor.u32 %v10074, %v10077
      %v10079 = vsel %vm2066, %v10069, %v10078
      %v10081 = vshrl.u32 %v10022, 16
      %v10083 = vrot.slane %v10081, 3
      %v10084 = vshll.u32 %v10022, 16
      %v10086 = vrot.slane %v10084, 4
      %v10087 = vor.u32 %v10083, %v10086
      %v10088 = vsel %vm2066, %v10078, %v10087
      %v10090 = vshrl.u32 %v10023, 16
      %v10092 = vrot.slane %v10090, 3
      %v10093 = vshll.u32 %v10023, 16
      %v10095 = vrot.slane %v10093, 4
      %v10096 = vor.u32 %v10092, %v10095
      %v10097 = vsel %vm2066, %v10087, %v10096
      %v10099 = vshrl.u32 %v10024, 16
      %v10101 = vrot.slane %v10099, 3
      %v10102 = vshll.u32 %v10024, 16
      %v10104 = vrot.slane %v10102, 4
      %v10105 = vor.u32 %v10101, %v10104
      %v10106 = vsel %vm2066, %v10096, %v10105
      %v10108 = vshrl.u32 %v10025, 16
      %v10110 = vrot.slane %v10108, 3
      %v10111 = vshll.u32 %v10025, 16
      %v10113 = vrot.slane %v10111, 4
      %v10114 = vor.u32 %v10110, %v10113
      %v10115 = vsel %vm2066, %v10105, %v10114
      %v10117 = vshrl.u32 %v10026, 16
      %v10119 = vrot.slane %v10117, 3
      %v10120 = vshll.u32 %v10026, 16
      %v10122 = vrot.slane %v10120, 4
      %v10123 = vor.u32 %v10119, %v10122
      %v10124 = vsel %vm2066, %v10114, %v10123
      %v10126 = vshrl.u32 %v10027, 16
      %v10128 = vrot.slane %v10126, 3
      %v10129 = vshll.u32 %v10027, 16
      %v10131 = vrot.slane %v10129, 4
      %v10132 = vor.u32 %v10128, %v10131
      %v10133 = vsel %vm2066, %v10123, %v10132
      %v10135 = vshrl.u32 %v10028, 16
      %v10137 = vrot.slane %v10135, 3
      %v10138 = vshll.u32 %v10028, 16
      %v10140 = vrot.slane %v10138, 4
      %v10141 = vor.u32 %v10137, %v10140
      %v10142 = vsel %vm2066, %v10132, %v10141
      %v10144 = vshrl.u32 %v10029, 16
      %v10146 = vrot.slane %v10144, 3
      %v10147 = vshll.u32 %v10029, 16
      %v10149 = vrot.slane %v10147, 4
      %v10150 = vor.u32 %v10146, %v10149
      %v10151 = vsel %vm2066, %v10141, %v10150
      %v10153 = vshrl.u32 %v10030, 16
      %v10155 = vrot.slane %v10153, 3
      %v10156 = vshll.u32 %v10030, 16
      %v10158 = vrot.slane %v10156, 4
      %v10159 = vor.u32 %v10155, %v10158
      %v10160 = vsel %vm2066, %v10150, %v10159
      %v10162 = vshrl.u32 %v10031, 16
      %v10164 = vrot.slane %v10162, 3
      %v10165 = vshll.u32 %v10031, 16
      %v10167 = vrot.slane %v10165, 4
      %v10168 = vor.u32 %v10164, %v10167
      %v10169 = vsel %vm2066, %v10159, %v10168
      %v10171 = vshrl.u32 %v10032, 16
      %v10173 = vrot.slane %v10171, 3
      %v10174 = vshll.u32 %v10032, 16
      %v10176 = vrot.slane %v10174, 4
      %v10177 = vor.u32 %v10173, %v10176
      %v10178 = vsel %vm2066, %v10168, %v10177
      %v10180 = vshrl.u32 %v10033, 16
      %v10182 = vrot.slane %v10180, 3
      %v10183 = vshll.u32 %v10033, 16
      %v10185 = vrot.slane %v10183, 4
      %v10186 = vor.u32 %v10182, %v10185
      %v10187 = vsel %vm2066, %v10177, %v10186
      %v10189 = vshrl.u32 %v10034, 16
      %v10191 = vrot.slane %v10189, 3
      %v10192 = vshll.u32 %v10034, 16
      %v10194 = vrot.slane %v10192, 4
      %v10195 = vor.u32 %v10191, %v10194
      %v10196 = vsel %vm2066, %v10186, %v10195
      %v10198 = vshrl.u32 %v10035, 16
      %v10200 = vrot.slane %v10198, 3
      %v10201 = vshll.u32 %v10035, 16
      %v10203 = vrot.slane %v10201, 4
      %v10204 = vor.u32 %v10200, %v10203
      %v10205 = vsel %vm2066, %v10195, %v10204
      %v10207 = vshrl.u32 %v10036, 16
      %v10209 = vrot.slane %v10207, 3
      %v10210 = vshll.u32 %v10036, 16
      %v10212 = vrot.slane %v10210, 4
      %v10213 = vor.u32 %v10209, %v10212
      %v10214 = vsel %vm2066, %v10204, %v10213
      %v10248 = vunpack.c.l.b16 %v10038
      %v10249 = vunpack.c.l.b16 %v10039
      %v10250 = vunpack.c.l.b16 %v10040
      %v10251 = vunpack.c.l.b16 %v10041
      %v10252 = vunpack.c.l.b16 %v10042
      %v10253 = vunpack.c.l.b16 %v10043
      %v10254 = vunpack.c.l.b16 %v10044
      %v10255 = vunpack.c.l.b16 %v10045
      %v10256 = vunpack.c.l.b16 %v10046
      %v10257 = vunpack.c.l.b16 %v10047
      %v10258 = vunpack.c.l.b16 %v10048
      %v10259 = vunpack.c.l.b16 %v10049
      %v10260 = vunpack.c.l.b16 %v10050
      %v10261 = vunpack.c.l.b16 %v10051
      %v10262 = vunpack.c.l.b16 %v10052
      %v10263 = vunpack.c.l.b16 %v10053
      %v10264 = vpack.c.b16 %v10249, %v10248
      %v10265 = vpack.c.b16 %v10251, %v10250
      %v10266 = vpack.c.b16 %v10253, %v10252
      %v10267 = vpack.c.b16 %v10255, %v10254
      %v10268 = vpack.c.b16 %v10257, %v10256
      %v10269 = vpack.c.b16 %v10259, %v10258
      %v10270 = vpack.c.b16 %v10261, %v10260
      %v10271 = vpack.c.b16 %v10263, %v10262
      %10280 = vmatprep.subr.bf16.mxu0 0
      %10281 = vmatpush1.bf16.msra.mxu0 %v10264
      %10282 = vmatprep.subr.bf16.mxu0 0
      %10283 = vmatpush1.bf16.msra.mxu0 %v10265
      %10284 = vmatprep.subr.bf16.mxu0 0
      %10285 = vmatpush1.bf16.msra.mxu0 %v10266
      %10286 = vmatprep.subr.bf16.mxu0 0
      %10287 = vmatpush1.bf16.msra.mxu0 %v10267
      %10288 = vmatprep.subr.bf16.mxu0 0
      %10289 = vmatpush1.bf16.msra.mxu0 %v10268
      %10290 = vmatprep.subr.bf16.mxu0 0
      %10291 = vmatpush1.bf16.msra.mxu0 %v10269
      %10292 = vmatprep.subr.bf16.mxu0 0
      %10293 = vmatpush1.bf16.msra.mxu0 %v10270
      %10294 = vmatprep.subr.bf16.mxu0 0
      %10295 = vmatpush1.bf16.msra.mxu0 %v10271
      %10296 = vmatprep.subr.bf16.mxu0 0
      %10297 = vmatpush1.bf16.msra.mxu0 0
      %10298 = vmatprep.subr.bf16.mxu0 0
      %10299 = vmatpush1.bf16.msra.mxu0 0
      %10300 = vmatprep.subr.bf16.mxu0 0
      %10301 = vmatpush1.bf16.msra.mxu0 0
      %10302 = vmatprep.subr.bf16.mxu0 0
      %10303 = vmatpush1.bf16.msra.mxu0 0
      %10304 = vmatprep.subr.bf16.mxu0 0
      %10305 = vmatpush1.bf16.msra.mxu0 0
      %10306 = vmatprep.subr.bf16.mxu0 0
      %10307 = vmatpush1.bf16.msra.mxu0 0
      %10308 = vmatprep.subr.bf16.mxu0 0
      %10309 = vmatpush1.bf16.msra.mxu0 0
      %10310 = vmatprep.subr.bf16.mxu0 0
      %10311 = vmatpush1.bf16.msra.mxu0 0
      %10312 = vmatprep.mubr.bf16.mxu0 0
      %10313 = vmatmul.mubr.bf16.gmra.mrb[0].mxu0 %v10070
      %v10314 = vpop.f32.mrb[0].mxu0
      %v10315 = vadd.f32 0.0, %v10314
      %v10316 = vpop.f32.mrb[0].mxu0
      %v10317 = vpop.f32.mrb[0].mxu0
      %v10318 = vadd.f32 0.0, %v10317
      %v10319 = vpop.f32.mrb[0].mxu0
      %10320 = vmatprep.mubr.bf16.mxu0 0
      %10321 = vmatmul.mubr.bf16.gmra.mrb[0].mxu0 %v10079
      %v10322 = vpop.f32.mrb[0].mxu0
      %v10323 = vadd.f32 0.0, %v10322
      %v10324 = vpop.f32.mrb[0].mxu0
      %v10325 = vpop.f32.mrb[0].mxu0
      %v10326 = vadd.f32 0.0, %v10325
      %v10327 = vpop.f32.mrb[0].mxu0
      %10328 = vmatprep.mubr.bf16.mxu0 0
      %10329 = vmatmul.mubr.bf16.gmra.mrb[0].mxu0 %v10088
      %v10330 = vpop.f32.mrb[0].mxu0
      %v10331 = vadd.f32 0.0, %v10330
      %v10332 = vpop.f32.mrb[0].mxu0
      %v10333 = vpop.f32.mrb[0].mxu0
      %v10334 = vadd.f32 0.0, %v10333
      %v10335 = vpop.f32.mrb[0].mxu0
      %10336 = vmatprep.mubr.bf16.mxu0 0
      %10337 = vmatmul.mubr.bf16.gmra.mrb[0].mxu0 %v10097
      %v10338 = vpop.f32.mrb[0].mxu0
      %v10339 = vadd.f32 0.0, %v10338
      %v10340 = vpop.f32.mrb[0].mxu0
      %v10341 = vpop.f32.mrb[0].mxu0
      %v10342 = vadd.f32 0.0, %v10341
      %v10343 = vpop.f32.mrb[0].mxu0
      %10344 = vmatprep.mubr.bf16.mxu0 0
      %10345 = vmatmul.mubr.bf16.gmra.mrb[0].mxu0 %v10106
      %v10346 = vpop.f32.mrb[0].mxu0
      %v10347 = vadd.f32 0.0, %v10346
      %v10348 = vpop.f32.mrb[0].mxu0
      %v10349 = vpop.f32.mrb[0].mxu0
      %v10350 = vadd.f32 0.0, %v10349
      %v10351 = vpop.f32.mrb[0].mxu0
      %10352 = vmatprep.mubr.bf16.mxu0 0
      %10353 = vmatmul.mubr.bf16.gmra.mrb[0].mxu0 %v10115
      %v10354 = vpop.f32.mrb[0].mxu0
      %v10355 = vadd.f32 0.0, %v10354
      %v10356 = vpop.f32.mrb[0].mxu0
      %v10357 = vpop.f32.mrb[0].mxu0
      %v10358 = vadd.f32 0.0, %v10357
      %v10359 = vpop.f32.mrb[0].mxu0
      %10360 = vmatprep.mubr.bf16.mxu0 0
      %10361 = vmatmul.mubr.bf16.gmra.mrb[0].mxu0 %v10124
      %v10362 = vpop.f32.mrb[0].mxu0
      %v10363 = vadd.f32 0.0, %v10362
      %v10364 = vpop.f32.mrb[0].mxu0
      %v10365 = vpop.f32.mrb[0].mxu0
      %v10366 = vadd.f32 0.0, %v10365
      %v10367 = vpop.f32.mrb[0].mxu0
      %10368 = vmatprep.mubr.bf16.mxu0 0
      %10369 = vmatmul.mubr.bf16.gmra.mrb[0].mxu0 %v10133
      %v10370 = vpop.f32.mrb[0].mxu0
      %v10371 = vadd.f32 0.0, %v10370
      %v10372 = vpop.f32.mrb[0].mxu0
      %v10373 = vpop.f32.mrb[0].mxu0
      %v10374 = vadd.f32 0.0, %v10373
      %v10375 = vpop.f32.mrb[0].mxu0
      %10376 = vmatprep.mubr.bf16.mxu0 0
      %10377 = vmatmul.mubr.bf16.gmra.mrb[0].mxu0 %v10142
      %v10378 = vpop.f32.mrb[0].mxu0
      %v10379 = vadd.f32 0.0, %v10378
      %v10380 = vpop.f32.mrb[0].mxu0
      %v10381 = vpop.f32.mrb[0].mxu0
      %v10382 = vadd.f32 0.0, %v10381
      %v10383 = vpop.f32.mrb[0].mxu0
      %10384 = vmatprep.mubr.bf16.mxu0 0
      %10385 = vmatmul.mubr.bf16.gmra.mrb[0].mxu0 %v10151
      %v10386 = vpop.f32.mrb[0].mxu0
      %v10387 = vadd.f32 0.0, %v10386
      %v10388 = vpop.f32.mrb[0].mxu0
      %v10389 = vpop.f32.mrb[0].mxu0
      %v10390 = vadd.f32 0.0, %v10389
      %v10391 = vpop.f32.mrb[0].mxu0
      %10392 = vmatprep.mubr.bf16.mxu0 0
      %10393 = vmatmul.mubr.bf16.gmra.mrb[0].mxu0 %v10160
      %v10394 = vpop.f32.mrb[0].mxu0
      %v10395 = vadd.f32 0.0, %v10394
      %v10396 = vpop.f32.mrb[0].mxu0
      %v10397 = vpop.f32.mrb[0].mxu0
      %v10398 = vadd.f32 0.0, %v10397
      %v10399 = vpop.f32.mrb[0].mxu0
      %10400 = vmatprep.mubr.bf16.mxu0 0
      %10401 = vmatmul.mubr.bf16.gmra.mrb[0].mxu0 %v10169
      %v10402 = vpop.f32.mrb[0].mxu0
      %v10403 = vadd.f32 0.0, %v10402
      %v10404 = vpop.f32.mrb[0].mxu0
      %v10405 = vpop.f32.mrb[0].mxu0
      %v10406 = vadd.f32 0.0, %v10405
      %v10407 = vpop.f32.mrb[0].mxu0
      %10408 = vmatprep.mubr.bf16.mxu0 0
      %10409 = vmatmul.mubr.bf16.gmra.mrb[0].mxu0 %v10178
      %v10410 = vpop.f32.mrb[0].mxu0
      %v10411 = vadd.f32 0.0, %v10410
      %v10412 = vpop.f32.mrb[0].mxu0
      %v10413 = vpop.f32.mrb[0].mxu0
      %v10414 = vadd.f32 0.0, %v10413
      %v10415 = vpop.f32.mrb[0].mxu0
      %10416 = vmatprep.mubr.bf16.mxu0 0
      %10417 = vmatmul.mubr.bf16.gmra.mrb[0].mxu0 %v10187
      %v10418 = vpop.f32.mrb[0].mxu0
      %v10419 = vadd.f32 0.0, %v10418
      %v10420 = vpop.f32.mrb[0].mxu0
      %v10421 = vpop.f32.mrb[0].mxu0
      %v10422 = vadd.f32 0.0, %v10421
      %v10423 = vpop.f32.mrb[0].mxu0
      %10424 = vmatprep.mubr.bf16.mxu0 0
      %10425 = vmatmul.mubr.bf16.gmra.mrb[0].mxu0 %v10196
      %v10426 = vpop.f32.mrb[0].mxu0
      %v10427 = vadd.f32 0.0, %v10426
      %v10428 = vpop.f32.mrb[0].mxu0
      %v10429 = vpop.f32.mrb[0].mxu0
      %v10430 = vadd.f32 0.0, %v10429
      %v10431 = vpop.f32.mrb[0].mxu0
      %10432 = vmatprep.mubr.bf16.mxu0 0
      %10433 = vmatmul.mubr.bf16.gmra.mrb[0].mxu0 %v10205
      %v10434 = vpop.f32.mrb[0].mxu0
      %v10435 = vadd.f32 0.0, %v10434
      %v10436 = vpop.f32.mrb[0].mxu0
      %v10437 = vpop.f32.mrb[0].mxu0
      %v10438 = vadd.f32 0.0, %v10437
      %v10439 = vpop.f32.mrb[0].mxu0
      %10440 = vmatprep.mubr.bf16.mxu0 0
      %10441 = vmatmul.mubr.bf16.gmra.mrb[0].mxu0 %v10214
      %v10442 = vpop.f32.mrb[0].mxu0
      %v10443 = vadd.f32 0.0, %v10442
      %v10444 = vpop.f32.mrb[0].mxu0
      %v10445 = vpop.f32.mrb[0].mxu0
      %v10446 = vadd.f32 0.0, %v10445
      %v10447 = vpop.f32.mrb[0].mxu0
      %10448 = vdwg.mxu0
      %v10449 = vadd.f32 %v9985, %v10315
      %v10450 = vadd.f32 %v9986, %v10318
      %v10451 = vadd.f32 %v9987, %v10323
      %v10452 = vadd.f32 %v9988, %v10326
      %v10453 = vadd.f32 %v9989, %v10331
      %v10454 = vadd.f32 %v9990, %v10334
      %v10455 = vadd.f32 %v9991, %v10339
      %v10456 = vadd.f32 %v9992, %v10342
      %v10457 = vadd.f32 %v9993, %v10347
      %v10458 = vadd.f32 %v9994, %v10350
      %v10459 = vadd.f32 %v9995, %v10355
      %v10460 = vadd.f32 %v9996, %v10358
      %v10461 = vadd.f32 %v9997, %v10363
      %v10462 = vadd.f32 %v9998, %v10366
      %v10463 = vadd.f32 %v9999, %v10371
      %v10464 = vadd.f32 %v10000, %v10374
      %v10465 = vadd.f32 %v10001, %v10379
      %v10466 = vadd.f32 %v10002, %v10382
      %v10467 = vadd.f32 %v10003, %v10387
      %v10468 = vadd.f32 %v10004, %v10390
      %v10469 = vadd.f32 %v10005, %v10395
      %v10470 = vadd.f32 %v10006, %v10398
      %v10471 = vadd.f32 %v10007, %v10403
      %v10472 = vadd.f32 %v10008, %v10406
      %v10473 = vadd.f32 %v10009, %v10411
      %v10474 = vadd.f32 %v10010, %v10414
      %v10475 = vadd.f32 %v10011, %v10419
      %v10476 = vadd.f32 %v10012, %v10422
      %v10477 = vadd.f32 %v10013, %v10427
      %v10478 = vadd.f32 %v10014, %v10430
      %v10479 = vadd.f32 %v10015, %v10435
      %v10480 = vadd.f32 %v10016, %v10438
      %v10481 = vadd.f32 %v10017, %v10443
      %v10482 = vadd.f32 %v10018, %v10446
      %v10483 = vld [vmem:[#allocation2 + $0x8] sm:$0xf0]
      %s10484 = scalar_lea.vmem %s7, 256
      %v10485 = vld [vmem:[%s10484] sm:$0xf]
      %v10486 = vld [vmem:[%s10484 + $0x4] sm:$0xf]
      %v10487 = vld [vmem:[%s10484 + $0x8] sm:$0xf]
      %v10488 = vld [vmem:[%s10484 + $0xc] sm:$0xf]
      %v10489 = vld [vmem:[%s10484 + $0x10] sm:$0xf]
      %v10490 = vld [vmem:[%s10484 + $0x14] sm:$0xf]
      %v10491 = vld [vmem:[%s10484 + $0x18] sm:$0xf]
      %v10492 = vld [vmem:[%s10484 + $0x1c] sm:$0xf]
      %v10493 = vld [vmem:[%s10484 + $0x20] sm:$0xf]
      %v10494 = vld [vmem:[%s10484 + $0x24] sm:$0xf]
      %v10495 = vld [vmem:[%s10484 + $0x28] sm:$0xf]
      %v10496 = vld [vmem:[%s10484 + $0x2c] sm:$0xf]
      %v10497 = vld [vmem:[%s10484 + $0x30] sm:$0xf]
      %v10498 = vld [vmem:[%s10484 + $0x34] sm:$0xf]
      %v10499 = vld [vmem:[%s10484 + $0x38] sm:$0xf]
      %v10500 = vld [vmem:[%s10484 + $0x3c] sm:$0xf]
      %v10519 = vrot.slane %v10483, 4
      %v10520 = vrot.slane %v10020, 4
      %v10521 = vsel %vm1615, %v10519, %v10520
      %v10522 = vrot.slane %v10021, 4
      %v10523 = vsel %vm1615, %v10520, %v10522
      %v10524 = vrot.slane %v10022, 4
      %v10525 = vsel %vm1615, %v10522, %v10524
      %v10526 = vrot.slane %v10023, 4
      %v10527 = vsel %vm1615, %v10524, %v10526
      %v10528 = vrot.slane %v10024, 4
      %v10529 = vsel %vm1615, %v10526, %v10528
      %v10530 = vrot.slane %v10025, 4
      %v10531 = vsel %vm1615, %v10528, %v10530
      %v10532 = vrot.slane %v10026, 4
      %v10533 = vsel %vm1615, %v10530, %v10532
      %v10534 = vrot.slane %v10027, 4
      %v10535 = vsel %vm1615, %v10532, %v10534
      %v10536 = vrot.slane %v10028, 4
      %v10537 = vsel %vm1615, %v10534, %v10536
      %v10538 = vrot.slane %v10029, 4
      %v10539 = vsel %vm1615, %v10536, %v10538
      %v10540 = vrot.slane %v10030, 4
      %v10541 = vsel %vm1615, %v10538, %v10540
      %v10542 = vrot.slane %v10031, 4
      %v10543 = vsel %vm1615, %v10540, %v10542
      %v10544 = vrot.slane %v10032, 4
      %v10545 = vsel %vm1615, %v10542, %v10544
      %v10546 = vrot.slane %v10033, 4
      %v10547 = vsel %vm1615, %v10544, %v10546
      %v10548 = vrot.slane %v10034, 4
      %v10549 = vsel %vm1615, %v10546, %v10548
      %v10550 = vrot.slane %v10035, 4
      %v10551 = vsel %vm1615, %v10548, %v10550
      %v10552 = vrot.slane %v10036, 4
      %v10553 = vsel %vm1615, %v10550, %v10552
      %v10587 = vunpack.c.l.b16 %v10485
      %v10588 = vunpack.c.l.b16 %v10486
      %v10589 = vunpack.c.l.b16 %v10487
      %v10590 = vunpack.c.l.b16 %v10488
      %v10591 = vunpack.c.l.b16 %v10489
      %v10592 = vunpack.c.l.b16 %v10490
      %v10593 = vunpack.c.l.b16 %v10491
      %v10594 = vunpack.c.l.b16 %v10492
      %v10595 = vunpack.c.l.b16 %v10493
      %v10596 = vunpack.c.l.b16 %v10494
      %v10597 = vunpack.c.l.b16 %v10495
      %v10598 = vunpack.c.l.b16 %v10496
      %v10599 = vunpack.c.l.b16 %v10497
      %v10600 = vunpack.c.l.b16 %v10498
      %v10601 = vunpack.c.l.b16 %v10499
      %v10602 = vunpack.c.l.b16 %v10500
      %v10603 = vpack.c.b16 %v10588, %v10587
      %v10604 = vpack.c.b16 %v10590, %v10589
      %v10605 = vpack.c.b16 %v10592, %v10591
      %v10606 = vpack.c.b16 %v10594, %v10593
      %v10607 = vpack.c.b16 %v10596, %v10595
      %v10608 = vpack.c.b16 %v10598, %v10597
      %v10609 = vpack.c.b16 %v10600, %v10599
      %v10610 = vpack.c.b16 %v10602, %v10601
      %10619 = vmatprep.subr.bf16.mxu0 0
      %10620 = vmatpush1.bf16.msra.mxu0 %v10603
      %10621 = vmatprep.subr.bf16.mxu0 0
      %10622 = vmatpush1.bf16.msra.mxu0 %v10604
      %10623 = vmatprep.subr.bf16.mxu0 0
      %10624 = vmatpush1.bf16.msra.mxu0 %v10605
      %10625 = vmatprep.subr.bf16.mxu0 0
      %10626 = vmatpush1.bf16.msra.mxu0 %v10606
      %10627 = vmatprep.subr.bf16.mxu0 0
      %10628 = vmatpush1.bf16.msra.mxu0 %v10607
      %10629 = vmatprep.subr.bf16.mxu0 0
      %10630 = vmatpush1.bf16.msra.mxu0 %v10608
      %10631 = vmatprep.subr.bf16.mxu0 0
      %10632 = vmatpush1.bf16.msra.mxu0 %v10609
      %10633 = vmatprep.subr.bf16.mxu0 0
      %10634 = vmatpush1.bf16.msra.mxu0 %v10610
      %10635 = vmatprep.subr.bf16.mxu0 0
      %10636 = vmatpush1.bf16.msra.mxu0 0
      %10637 = vmatprep.subr.bf16.mxu0 0
      %10638 = vmatpush1.bf16.msra.mxu0 0
      %10639 = vmatprep.subr.bf16.mxu0 0
      %10640 = vmatpush1.bf16.msra.mxu0 0
      %10641 = vmatprep.subr.bf16.mxu0 0
      %10642 = vmatpush1.bf16.msra.mxu0 0
      %10643 = vmatprep.subr.bf16.mxu0 0
      %10644 = vmatpush1.bf16.msra.mxu0 0
      %10645 = vmatprep.subr.bf16.mxu0 0
      %10646 = vmatpush1.bf16.msra.mxu0 0
      %10647 = vmatprep.subr.bf16.mxu0 0
      %10648 = vmatpush1.bf16.msra.mxu0 0
      %10649 = vmatprep.subr.bf16.mxu0 0
      %10650 = vmatpush1.bf16.msra.mxu0 0
      %10651 = vmatprep.mubr.bf16.mxu0 0
      %10652 = vmatmul.mubr.bf16.gmra.mrb[0].mxu0 %v10521
      %v10653 = vpop.f32.mrb[0].mxu0
      %v10654 = vadd.f32 0.0, %v10653
      %v10655 = vpop.f32.mrb[0].mxu0
      %v10656 = vpop.f32.mrb[0].mxu0
      %v10657 = vadd.f32 0.0, %v10656
      %v10658 = vpop.f32.mrb[0].mxu0
      %10659 = vmatprep.mubr.bf16.mxu0 0
      %10660 = vmatmul.mubr.bf16.gmra.mrb[0].mxu0 %v10523
      %v10661 = vpop.f32.mrb[0].mxu0
      %v10662 = vadd.f32 0.0, %v10661
      %v10663 = vpop.f32.mrb[0].mxu0
      %v10664 = vpop.f32.mrb[0].mxu0
      %v10665 = vadd.f32 0.0, %v10664
      %v10666 = vpop.f32.mrb[0].mxu0
      %10667 = vmatprep.mubr.bf16.mxu0 0
      %10668 = vmatmul.mubr.bf16.gmra.mrb[0].mxu0 %v10525
      %v10669 = vpop.f32.mrb[0].mxu0
      %v10670 = vadd.f32 0.0, %v10669
      %v10671 = vpop.f32.mrb[0].mxu0
      %v10672 = vpop.f32.mrb[0].mxu0
      %v10673 = vadd.f32 0.0, %v10672
      %v10674 = vpop.f32.mrb[0].mxu0
      %10675 = vmatprep.mubr.bf16.mxu0 0
      %10676 = vmatmul.mubr.bf16.gmra.mrb[0].mxu0 %v10527
      %v10677 = vpop.f32.mrb[0].mxu0
      %v10678 = vadd.f32 0.0, %v10677
      %v10679 = vpop.f32.mrb[0].mxu0
      %v10680 = vpop.f32.mrb[0].mxu0
      %v10681 = vadd.f32 0.0, %v10680
      %v10682 = vpop.f32.mrb[0].mxu0
      %10683 = vmatprep.mubr.bf16.mxu0 0
      %10684 = vmatmul.mubr.bf16.gmra.mrb[0].mxu0 %v10529
      %v10685 = vpop.f32.mrb[0].mxu0
      %v10686 = vadd.f32 0.0, %v10685
      %v10687 = vpop.f32.mrb[0].mxu0
      %v10688 = vpop.f32.mrb[0].mxu0
      %v10689 = vadd.f32 0.0, %v10688
      %v10690 = vpop.f32.mrb[0].mxu0
      %10691 = vmatprep.mubr.bf16.mxu0 0
      %10692 = vmatmul.mubr.bf16.gmra.mrb[0].mxu0 %v10531
      %v10693 = vpop.f32.mrb[0].mxu0
      %v10694 = vadd.f32 0.0, %v10693
      %v10695 = vpop.f32.mrb[0].mxu0
      %v10696 = vpop.f32.mrb[0].mxu0
      %v10697 = vadd.f32 0.0, %v10696
      %v10698 = vpop.f32.mrb[0].mxu0
      %10699 = vmatprep.mubr.bf16.mxu0 0
      %10700 = vmatmul.mubr.bf16.gmra.mrb[0].mxu0 %v10533
      %v10701 = vpop.f32.mrb[0].mxu0
      %v10702 = vadd.f32 0.0, %v10701
      %v10703 = vpop.f32.mrb[0].mxu0
      %v10704 = vpop.f32.mrb[0].mxu0
      %v10705 = vadd.f32 0.0, %v10704
      %v10706 = vpop.f32.mrb[0].mxu0
      %10707 = vmatprep.mubr.bf16.mxu0 0
      %10708 = vmatmul.mubr.bf16.gmra.mrb[0].mxu0 %v10535
      %v10709 = vpop.f32.mrb[0].mxu0
      %v10710 = vadd.f32 0.0, %v10709
      %v10711 = vpop.f32.mrb[0].mxu0
      %v10712 = vpop.f32.mrb[0].mxu0
      %v10713 = vadd.f32 0.0, %v10712
      %v10714 = vpop.f32.mrb[0].mxu0
      %10715 = vmatprep.mubr.bf16.mxu0 0
      %10716 = vmatmul.mubr.bf16.gmra.mrb[0].mxu0 %v10537
      %v10717 = vpop.f32.mrb[0].mxu0
      %v10718 = vadd.f32 0.0, %v10717
      %v10719 = vpop.f32.mrb[0].mxu0
      %v10720 = vpop.f32.mrb[0].mxu0
      %v10721 = vadd.f32 0.0, %v10720
      %v10722 = vpop.f32.mrb[0].mxu0
      %10723 = vmatprep.mubr.bf16.mxu0 0
      %10724 = vmatmul.mubr.bf16.gmra.mrb[0].mxu0 %v10539
      %v10725 = vpop.f32.mrb[0].mxu0
      %v10726 = vadd.f32 0.0, %v10725
      %v10727 = vpop.f32.mrb[0].mxu0
      %v10728 = vpop.f32.mrb[0].mxu0
      %v10729 = vadd.f32 0.0, %v10728
      %v10730 = vpop.f32.mrb[0].mxu0
      %10731 = vmatprep.mubr.bf16.mxu0 0
      %10732 = vmatmul.mubr.bf16.gmra.mrb[0].mxu0 %v10541
      %v10733 = vpop.f32.mrb[0].mxu0
      %v10734 = vadd.f32 0.0, %v10733
      %v10735 = vpop.f32.mrb[0].mxu0
      %v10736 = vpop.f32.mrb[0].mxu0
      %v10737 = vadd.f32 0.0, %v10736
      %v10738 = vpop.f32.mrb[0].mxu0
      %10739 = vmatprep.mubr.bf16.mxu0 0
      %10740 = vmatmul.mubr.bf16.gmra.mrb[0].mxu0 %v10543
      %v10741 = vpop.f32.mrb[0].mxu0
      %v10742 = vadd.f32 0.0, %v10741
      %v10743 = vpop.f32.mrb[0].mxu0
      %v10744 = vpop.f32.mrb[0].mxu0
      %v10745 = vadd.f32 0.0, %v10744
      %v10746 = vpop.f32.mrb[0].mxu0
      %10747 = vmatprep.mubr.bf16.mxu0 0
      %10748 = vmatmul.mubr.bf16.gmra.mrb[0].mxu0 %v10545
      %v10749 = vpop.f32.mrb[0].mxu0
      %v10750 = vadd.f32 0.0, %v10749
      %v10751 = vpop.f32.mrb[0].mxu0
      %v10752 = vpop.f32.mrb[0].mxu0
      %v10753 = vadd.f32 0.0, %v10752
      %v10754 = vpop.f32.mrb[0].mxu0
      %10755 = vmatprep.mubr.bf16.mxu0 0
      %10756 = vmatmul.mubr.bf16.gmra.mrb[0].mxu0 %v10547
      %v10757 = vpop.f32.mrb[0].mxu0
      %v10758 = vadd.f32 0.0, %v10757
      %v10759 = vpop.f32.mrb[0].mxu0
      %v10760 = vpop.f32.mrb[0].mxu0
      %v10761 = vadd.f32 0.0, %v10760
      %v10762 = vpop.f32.mrb[0].mxu0
      %10763 = vmatprep.mubr.bf16.mxu0 0
      %10764 = vmatmul.mubr.bf16.gmra.mrb[0].mxu0 %v10549
      %v10765 = vpop.f32.mrb[0].mxu0
      %v10766 = vadd.f32 0.0, %v10765
      %v10767 = vpop.f32.mrb[0].mxu0
      %v10768 = vpop.f32.mrb[0].mxu0
      %v10769 = vadd.f32 0.0, %v10768
      %v10770 = vpop.f32.mrb[0].mxu0
      %10771 = vmatprep.mubr.bf16.mxu0 0
      %10772 = vmatmul.mubr.bf16.gmra.mrb[0].mxu0 %v10551
      %v10773 = vpop.f32.mrb[0].mxu0
      %v10774 = vadd.f32 0.0, %v10773
      %v10775 = vpop.f32.mrb[0].mxu0
      %v10776 = vpop.f32.mrb[0].mxu0
      %v10777 = vadd.f32 0.0, %v10776
      %v10778 = vpop.f32.mrb[0].mxu0
      %10779 = vmatprep.mubr.bf16.mxu0 0
      %10780 = vmatmul.mubr.bf16.gmra.mrb[0].mxu0 %v10553
      %v10781 = vpop.f32.mrb[0].mxu0
      %v10782 = vadd.f32 0.0, %v10781
      %v10783 = vpop.f32.mrb[0].mxu0
      %v10784 = vpop.f32.mrb[0].mxu0
      %v10785 = vadd.f32 0.0, %v10784
      %v10786 = vpop.f32.mrb[0].mxu0
      %10787 = vdwg.mxu0
      %v10788 = vadd.f32 %v10449, %v10654
      %v10789 = vadd.f32 %v10450, %v10657
      %v10790 = vadd.f32 %v10451, %v10662
      %v10791 = vadd.f32 %v10452, %v10665
      %v10792 = vadd.f32 %v10453, %v10670
      %v10793 = vadd.f32 %v10454, %v10673
      %v10794 = vadd.f32 %v10455, %v10678
      %v10795 = vadd.f32 %v10456, %v10681
      %v10796 = vadd.f32 %v10457, %v10686
      %v10797 = vadd.f32 %v10458, %v10689
      %v10798 = vadd.f32 %v10459, %v10694
      %v10799 = vadd.f32 %v10460, %v10697
      %v10800 = vadd.f32 %v10461, %v10702
      %v10801 = vadd.f32 %v10462, %v10705
      %v10802 = vadd.f32 %v10463, %v10710
      %v10803 = vadd.f32 %v10464, %v10713
      %v10804 = vadd.f32 %v10465, %v10718
      %v10805 = vadd.f32 %v10466, %v10721
      %v10806 = vadd.f32 %v10467, %v10726
      %v10807 = vadd.f32 %v10468, %v10729
      %v10808 = vadd.f32 %v10469, %v10734
      %v10809 = vadd.f32 %v10470, %v10737
      %v10810 = vadd.f32 %v10471, %v10742
      %v10811 = vadd.f32 %v10472, %v10745
      %v10812 = vadd.f32 %v10473, %v10750
      %v10813 = vadd.f32 %v10474, %v10753
      %v10814 = vadd.f32 %v10475, %v10758
      %v10815 = vadd.f32 %v10476, %v10761
      %v10816 = vadd.f32 %v10477, %v10766
      %v10817 = vadd.f32 %v10478, %v10769
      %v10818 = vadd.f32 %v10479, %v10774
      %v10819 = vadd.f32 %v10480, %v10777
      %v10820 = vadd.f32 %v10481, %v10782
      %v10821 = vadd.f32 %v10482, %v10785
      %v10822 = vld [vmem:[#allocation2 + $0x90] sm:$0x1f]
      %s10823 = scalar_lea.vmem %s7, 320
      %v10824 = vld [vmem:[%s10823] sm:$0xf]
      %v10825 = vld [vmem:[%s10823 + $0x4] sm:$0xf]
      %v10826 = vld [vmem:[%s10823 + $0x8] sm:$0xf]
      %v10827 = vld [vmem:[%s10823 + $0xc] sm:$0xf]
      %v10828 = vld [vmem:[%s10823 + $0x10] sm:$0xf]
      %v10829 = vld [vmem:[%s10823 + $0x14] sm:$0xf]
      %v10830 = vld [vmem:[%s10823 + $0x18] sm:$0xf]
      %v10831 = vld [vmem:[%s10823 + $0x1c] sm:$0xf]
      %v10832 = vld [vmem:[%s10823 + $0x20] sm:$0xf]
      %v10833 = vld [vmem:[%s10823 + $0x24] sm:$0xf]
      %v10834 = vld [vmem:[%s10823 + $0x28] sm:$0xf]
      %v10835 = vld [vmem:[%s10823 + $0x2c] sm:$0xf]
      %v10836 = vld [vmem:[%s10823 + $0x30] sm:$0xf]
      %v10837 = vld [vmem:[%s10823 + $0x34] sm:$0xf]
      %v10838 = vld [vmem:[%s10823 + $0x38] sm:$0xf]
      %v10839 = vld [vmem:[%s10823 + $0x3c] sm:$0xf]
      %v10841 = vshrl.u32 %v10483, 16
      %v10843 = vrot.slane %v10841, 4
      %v10844 = vshll.u32 %v10483, 16
      %v10846 = vrot.slane %v10844, 5
      %v10847 = vor.u32 %v10843, %v10846
      %v10848 = vrot.slane %v10063, 4
      %v10849 = vrot.slane %v10066, 5
      %v10850 = vor.u32 %v10848, %v10849
      %v10851 = vsel %vm3640, %v10847, %v10850
      %v10852 = vrot.slane %v10072, 4
      %v10853 = vrot.slane %v10075, 5
      %v10854 = vor.u32 %v10852, %v10853
      %v10855 = vsel %vm3640, %v10850, %v10854
      %v10856 = vrot.slane %v10081, 4
      %v10857 = vrot.slane %v10084, 5
      %v10858 = vor.u32 %v10856, %v10857
      %v10859 = vsel %vm3640, %v10854, %v10858
      %v10860 = vrot.slane %v10090, 4
      %v10861 = vrot.slane %v10093, 5
      %v10862 = vor.u32 %v10860, %v10861
      %v10863 = vsel %vm3640, %v10858, %v10862
      %v10864 = vrot.slane %v10099, 4
      %v10865 = vrot.slane %v10102, 5
      %v10866 = vor.u32 %v10864, %v10865
      %v10867 = vsel %vm3640, %v10862, %v10866
      %v10868 = vrot.slane %v10108, 4
      %v10869 = vrot.slane %v10111, 5
      %v10870 = vor.u32 %v10868, %v10869
      %v10871 = vsel %vm3640, %v10866, %v10870
      %v10872 = vrot.slane %v10117, 4
      %v10873 = vrot.slane %v10120, 5
      %v10874 = vor.u32 %v10872, %v10873
      %v10875 = vsel %vm3640, %v10870, %v10874
      %v10876 = vrot.slane %v10126, 4
      %v10877 = vrot.slane %v10129, 5
      %v10878 = vor.u32 %v10876, %v10877
      %v10879 = vsel %vm3640, %v10874, %v10878
      %v10880 = vrot.slane %v10135, 4
      %v10881 = vrot.slane %v10138, 5
      %v10882 = vor.u32 %v10880, %v10881
      %v10883 = vsel %vm3640, %v10878, %v10882
      %v10884 = vrot.slane %v10144, 4
      %v10885 = vrot.slane %v10147, 5
      %v10886 = vor.u32 %v10884, %v10885
      %v10887 = vsel %vm3640, %v10882, %v10886
      %v10888 = vrot.slane %v10153, 4
      %v10889 = vrot.slane %v10156, 5
      %v10890 = vor.u32 %v10888, %v10889
      %v10891 = vsel %vm3640, %v10886, %v10890
      %v10892 = vrot.slane %v10162, 4
      %v10893 = vrot.slane %v10165, 5
      %v10894 = vor.u32 %v10892, %v10893
      %v10895 = vsel %vm3640, %v10890, %v10894
      %v10896 = vrot.slane %v10171, 4
      %v10897 = vrot.slane %v10174, 5
      %v10898 = vor.u32 %v10896, %v10897
      %v10899 = vsel %vm3640, %v10894, %v10898
      %v10900 = vrot.slane %v10180, 4
      %v10901 = vrot.slane %v10183, 5
      %v10902 = vor.u32 %v10900, %v10901
      %v10903 = vsel %vm3640, %v10898, %v10902
      %v10904 = vrot.slane %v10189, 4
      %v10905 = vrot.slane %v10192, 5
      %v10906 = vor.u32 %v10904, %v10905
      %v10907 = vsel %vm3640, %v10902, %v10906
      %v10908 = vrot.slane %v10198, 4
      %v10909 = vrot.slane %v10201, 5
      %v10910 = vor.u32 %v10908, %v10909
      %v10911 = vsel %vm3640, %v10906, %v10910
      %v10913 = vshrl.u32 %v10822, 16
      %v10915 = vrot.slane %v10913, 4
      %v10916 = vshll.u32 %v10822, 16
      %v10918 = vrot.slane %v10916, 5
      %v10919 = vor.u32 %v10915, %v10918
      %v10920 = vsel %vm3640, %v10910, %v10919
      %v10954 = vunpack.c.l.b16 %v10824
      %v10955 = vunpack.c.l.b16 %v10825
      %v10956 = vunpack.c.l.b16 %v10826
      %v10957 = vunpack.c.l.b16 %v10827
      %v10958 = vunpack.c.l.b16 %v10828
      %v10959 = vunpack.c.l.b16 %v10829
      %v10960 = vunpack.c.l.b16 %v10830
      %v10961 = vunpack.c.l.b16 %v10831
      %v10962 = vunpack.c.l.b16 %v10832
      %v10963 = vunpack.c.l.b16 %v10833
      %v10964 = vunpack.c.l.b16 %v10834
      %v10965 = vunpack.c.l.b16 %v10835
      %v10966 = vunpack.c.l.b16 %v10836
      %v10967 = vunpack.c.l.b16 %v10837
      %v10968 = vunpack.c.l.b16 %v10838
      %v10969 = vunpack.c.l.b16 %v10839
      %v10970 = vpack.c.b16 %v10955, %v10954
      %v10971 = vpack.c.b16 %v10957, %v10956
      %v10972 = vpack.c.b16 %v10959, %v10958
      %v10973 = vpack.c.b16 %v10961, %v10960
      %v10974 = vpack.c.b16 %v10963, %v10962
      %v10975 = vpack.c.b16 %v10965, %v10964
      %v10976 = vpack.c.b16 %v10967, %v10966
      %v10977 = vpack.c.b16 %v10969, %v10968
      %10986 = vmatprep.subr.bf16.mxu0 0
      %10987 = vmatpush1.bf16.msra.mxu0 %v10970
      %10988 = vmatprep.subr.bf16.mxu0 0
      %10989 = vmatpush1.bf16.msra.mxu0 %v10971
      %10990 = vmatprep.subr.bf16.mxu0 0
      %10991 = vmatpush1.bf16.msra.mxu0 %v10972
      %10992 = vmatprep.subr.bf16.mxu0 0
      %10993 = vmatpush1.bf16.msra.mxu0 %v10973
      %10994 = vmatprep.subr.bf16.mxu0 0
      %10995 = vmatpush1.bf16.msra.mxu0 %v10974
      %10996 = vmatprep.subr.bf16.mxu0 0
      %10997 = vmatpush1.bf16.msra.mxu0 %v10975
      %10998 = vmatprep.subr.bf16.mxu0 0
      %10999 = vmatpush1.bf16.msra.mxu0 %v10976
      %11000 = vmatprep.subr.bf16.mxu0 0
      %11001 = vmatpush1.bf16.msra.mxu0 %v10977
      %11002 = vmatprep.subr.bf16.mxu0 0
      %11003 = vmatpush1.bf16.msra.mxu0 0
      %11004 = vmatprep.subr.bf16.mxu0 0
      %11005 = vmatpush1.bf16.msra.mxu0 0
      %11006 = vmatprep.subr.bf16.mxu0 0
      %11007 = vmatpush1.bf16.msra.mxu0 0
      %11008 = vmatprep.subr.bf16.mxu0 0
      %11009 = vmatpush1.bf16.msra.mxu0 0
      %11010 = vmatprep.subr.bf16.mxu0 0
      %11011 = vmatpush1.bf16.msra.mxu0 0
      %11012 = vmatprep.subr.bf16.mxu0 0
      %11013 = vmatpush1.bf16.msra.mxu0 0
      %11014 = vmatprep.subr.bf16.mxu0 0
      %11015 = vmatpush1.bf16.msra.mxu0 0
      %11016 = vmatprep.subr.bf16.mxu0 0
      %11017 = vmatpush1.bf16.msra.mxu0 0
      %11018 = vmatprep.mubr.bf16.mxu0 0
      %11019 = vmatmul.mubr.bf16.gmra.mrb[0].mxu0 %v10851
      %v11020 = vpop.f32.mrb[0].mxu0
      %v11021 = vadd.f32 0.0, %v11020
      %v11022 = vpop.f32.mrb[0].mxu0
      %v11023 = vpop.f32.mrb[0].mxu0
      %v11024 = vadd.f32 0.0, %v11023
      %v11025 = vpop.f32.mrb[0].mxu0
      %11026 = vmatprep.mubr.bf16.mxu0 0
      %11027 = vmatmul.mubr.bf16.gmra.mrb[0].mxu0 %v10855
      %v11028 = vpop.f32.mrb[0].mxu0
      %v11029 = vadd.f32 0.0, %v11028
      %v11030 = vpop.f32.mrb[0].mxu0
      %v11031 = vpop.f32.mrb[0].mxu0
      %v11032 = vadd.f32 0.0, %v11031
      %v11033 = vpop.f32.mrb[0].mxu0
      %11034 = vmatprep.mubr.bf16.mxu0 0
      %11035 = vmatmul.mubr.bf16.gmra.mrb[0].mxu0 %v10859
      %v11036 = vpop.f32.mrb[0].mxu0
      %v11037 = vadd.f32 0.0, %v11036
      %v11038 = vpop.f32.mrb[0].mxu0
      %v11039 = vpop.f32.mrb[0].mxu0
      %v11040 = vadd.f32 0.0, %v11039
      %v11041 = vpop.f32.mrb[0].mxu0
      %11042 = vmatprep.mubr.bf16.mxu0 0
      %11043 = vmatmul.mubr.bf16.gmra.mrb[0].mxu0 %v10863
      %v11044 = vpop.f32.mrb[0].mxu0
      %v11045 = vadd.f32 0.0, %v11044
      %v11046 = vpop.f32.mrb[0].mxu0
      %v11047 = vpop.f32.mrb[0].mxu0
      %v11048 = vadd.f32 0.0, %v11047
      %v11049 = vpop.f32.mrb[0].mxu0
      %11050 = vmatprep.mubr.bf16.mxu0 0
      %11051 = vmatmul.mubr.bf16.gmra.mrb[0].mxu0 %v10867
      %v11052 = vpop.f32.mrb[0].mxu0
      %v11053 = vadd.f32 0.0, %v11052
      %v11054 = vpop.f32.mrb[0].mxu0
      %v11055 = vpop.f32.mrb[0].mxu0
      %v11056 = vadd.f32 0.0, %v11055
      %v11057 = vpop.f32.mrb[0].mxu0
      %11058 = vmatprep.mubr.bf16.mxu0 0
      %11059 = vmatmul.mubr.bf16.gmra.mrb[0].mxu0 %v10871
      %v11060 = vpop.f32.mrb[0].mxu0
      %v11061 = vadd.f32 0.0, %v11060
      %v11062 = vpop.f32.mrb[0].mxu0
      %v11063 = vpop.f32.mrb[0].mxu0
      %v11064 = vadd.f32 0.0, %v11063
      %v11065 = vpop.f32.mrb[0].mxu0
      %11066 = vmatprep.mubr.bf16.mxu0 0
      %11067 = vmatmul.mubr.bf16.gmra.mrb[0].mxu0 %v10875
      %v11068 = vpop.f32.mrb[0].mxu0
      %v11069 = vadd.f32 0.0, %v11068
      %v11070 = vpop.f32.mrb[0].mxu0
      %v11071 = vpop.f32.mrb[0].mxu0
      %v11072 = vadd.f32 0.0, %v11071
      %v11073 = vpop.f32.mrb[0].mxu0
      %11074 = vmatprep.mubr.bf16.mxu0 0
      %11075 = vmatmul.mubr.bf16.gmra.mrb[0].mxu0 %v10879
      %v11076 = vpop.f32.mrb[0].mxu0
      %v11077 = vadd.f32 0.0, %v11076
      %v11078 = vpop.f32.mrb[0].mxu0
      %v11079 = vpop.f32.mrb[0].mxu0
      %v11080 = vadd.f32 0.0, %v11079
      %v11081 = vpop.f32.mrb[0].mxu0
      %11082 = vmatprep.mubr.bf16.mxu0 0
      %11083 = vmatmul.mubr.bf16.gmra.mrb[0].mxu0 %v10883
      %v11084 = vpop.f32.mrb[0].mxu0
      %v11085 = vadd.f32 0.0, %v11084
      %v11086 = vpop.f32.mrb[0].mxu0
      %v11087 = vpop.f32.mrb[0].mxu0
      %v11088 = vadd.f32 0.0, %v11087
      %v11089 = vpop.f32.mrb[0].mxu0
      %11090 = vmatprep.mubr.bf16.mxu0 0
      %11091 = vmatmul.mubr.bf16.gmra.mrb[0].mxu0 %v10887
      %v11092 = vpop.f32.mrb[0].mxu0
      %v11093 = vadd.f32 0.0, %v11092
      %v11094 = vpop.f32.mrb[0].mxu0
      %v11095 = vpop.f32.mrb[0].mxu0
      %v11096 = vadd.f32 0.0, %v11095
      %v11097 = vpop.f32.mrb[0].mxu0
      %11098 = vmatprep.mubr.bf16.mxu0 0
      %11099 = vmatmul.mubr.bf16.gmra.mrb[0].mxu0 %v10891
      %v11100 = vpop.f32.mrb[0].mxu0
      %v11101 = vadd.f32 0.0, %v11100
      %v11102 = vpop.f32.mrb[0].mxu0
      %v11103 = vpop.f32.mrb[0].mxu0
      %v11104 = vadd.f32 0.0, %v11103
      %v11105 = vpop.f32.mrb[0].mxu0
      %11106 = vmatprep.mubr.bf16.mxu0 0
      %11107 = vmatmul.mubr.bf16.gmra.mrb[0].mxu0 %v10895
      %v11108 = vpop.f32.mrb[0].mxu0
      %v11109 = vadd.f32 0.0, %v11108
      %v11110 = vpop.f32.mrb[0].mxu0
      %v11111 = vpop.f32.mrb[0].mxu0
      %v11112 = vadd.f32 0.0, %v11111
      %v11113 = vpop.f32.mrb[0].mxu0
      %11114 = vmatprep.mubr.bf16.mxu0 0
      %11115 = vmatmul.mubr.bf16.gmra.mrb[0].mxu0 %v10899
      %v11116 = vpop.f32.mrb[0].mxu0
      %v11117 = vadd.f32 0.0, %v11116
      %v11118 = vpop.f32.mrb[0].mxu0
      %v11119 = vpop.f32.mrb[0].mxu0
      %v11120 = vadd.f32 0.0, %v11119
      %v11121 = vpop.f32.mrb[0].mxu0
      %11122 = vmatprep.mubr.bf16.mxu0 0
      %11123 = vmatmul.mubr.bf16.gmra.mrb[0].mxu0 %v10903
      %v11124 = vpop.f32.mrb[0].mxu0
      %v11125 = vadd.f32 0.0, %v11124
      %v11126 = vpop.f32.mrb[0].mxu0
      %v11127 = vpop.f32.mrb[0].mxu0
      %v11128 = vadd.f32 0.0, %v11127
      %v11129 = vpop.f32.mrb[0].mxu0
      %11130 = vmatprep.mubr.bf16.mxu0 0
      %11131 = vmatmul.mubr.bf16.gmra.mrb[0].mxu0 %v10907
      %v11132 = vpop.f32.mrb[0].mxu0
      %v11133 = vadd.f32 0.0, %v11132
      %v11134 = vpop.f32.mrb[0].mxu0
      %v11135 = vpop.f32.mrb[0].mxu0
      %v11136 = vadd.f32 0.0, %v11135
      %v11137 = vpop.f32.mrb[0].mxu0
      %11138 = vmatprep.mubr.bf16.mxu0 0
      %11139 = vmatmul.mubr.bf16.gmra.mrb[0].mxu0 %v10911
      %v11140 = vpop.f32.mrb[0].mxu0
      %v11141 = vadd.f32 0.0, %v11140
      %v11142 = vpop.f32.mrb[0].mxu0
      %v11143 = vpop.f32.mrb[0].mxu0
      %v11144 = vadd.f32 0.0, %v11143
      %v11145 = vpop.f32.mrb[0].mxu0
      %11146 = vmatprep.mubr.bf16.mxu0 0
      %11147 = vmatmul.mubr.bf16.gmra.mrb[0].mxu0 %v10920
      %v11148 = vpop.f32.mrb[0].mxu0
      %v11149 = vadd.f32 0.0, %v11148
      %v11150 = vpop.f32.mrb[0].mxu0
      %v11151 = vpop.f32.mrb[0].mxu0
      %v11152 = vadd.f32 0.0, %v11151
      %v11153 = vpop.f32.mrb[0].mxu0
      %11154 = vdwg.mxu0
      %v11155 = vadd.f32 %v10788, %v11021
      %v11156 = vadd.f32 %v10789, %v11024
      %v11157 = vadd.f32 %v10790, %v11029
      %v11158 = vadd.f32 %v10791, %v11032
      %v11159 = vadd.f32 %v10792, %v11037
      %v11160 = vadd.f32 %v10793, %v11040
      %v11161 = vadd.f32 %v10794, %v11045
      %v11162 = vadd.f32 %v10795, %v11048
      %v11163 = vadd.f32 %v10796, %v11053
      %v11164 = vadd.f32 %v10797, %v11056
      %v11165 = vadd.f32 %v10798, %v11061
      %v11166 = vadd.f32 %v10799, %v11064
      %v11167 = vadd.f32 %v10800, %v11069
      %v11168 = vadd.f32 %v10801, %v11072
      %v11169 = vadd.f32 %v10802, %v11077
      %v11170 = vadd.f32 %v10803, %v11080
      %v11171 = vadd.f32 %v10804, %v11085
      %v11172 = vadd.f32 %v10805, %v11088
      %v11173 = vadd.f32 %v10806, %v11093
      %v11174 = vadd.f32 %v10807, %v11096
      %v11175 = vadd.f32 %v10808, %v11101
      %v11176 = vadd.f32 %v10809, %v11104
      %v11177 = vadd.f32 %v10810, %v11109
      %v11178 = vadd.f32 %v10811, %v11112
      %v11179 = vadd.f32 %v10812, %v11117
      %v11180 = vadd.f32 %v10813, %v11120
      %v11181 = vadd.f32 %v10814, %v11125
      %v11182 = vadd.f32 %v10815, %v11128
      %v11183 = vadd.f32 %v10816, %v11133
      %v11184 = vadd.f32 %v10817, %v11136
      %v11185 = vadd.f32 %v10818, %v11141
      %v11186 = vadd.f32 %v10819, %v11144
      %v11187 = vadd.f32 %v10820, %v11149
      %v11188 = vadd.f32 %v10821, %v11152
      %v11189 = vld [vmem:[#allocation2 + $0x10] sm:$0xf0]
      %v11190 = vld [vmem:[#allocation2 + $0x18] sm:$0xff]
      %v11191 = vld [vmem:[#allocation2 + $0x20] sm:$0xff]
      %v11192 = vld [vmem:[#allocation2 + $0x28] sm:$0xff]
      %v11193 = vld [vmem:[#allocation2 + $0x30] sm:$0xff]
      %v11194 = vld [vmem:[#allocation2 + $0x38] sm:$0xff]
      %v11195 = vld [vmem:[#allocation2 + $0x40] sm:$0xff]
      %v11196 = vld [vmem:[#allocation2 + $0x48] sm:$0xff]
      %v11197 = vld [vmem:[#allocation2 + $0x50] sm:$0xff]
      %v11198 = vld [vmem:[#allocation2 + $0x58] sm:$0xff]
      %v11199 = vld [vmem:[#allocation2 + $0x60] sm:$0xff]
      %v11200 = vld [vmem:[#allocation2 + $0x68] sm:$0xff]
      %v11201 = vld [vmem:[#allocation2 + $0x70] sm:$0xff]
      %v11202 = vld [vmem:[#allocation2 + $0x78] sm:$0xff]
      %v11203 = vld [vmem:[#allocation2 + $0x80] sm:$0xff]
      %v11204 = vld [vmem:[#allocation2 + $0x88] sm:$0xff]
      %v11205 = vld [vmem:[#allocation2 + $0x90] sm:$0xff]
      %v11206 = vld [vmem:[#allocation2 + $0x98] sm:$0xf]
      %s11207 = scalar_lea.vmem %s7, 384
      %v11208 = vld [vmem:[%s11207] sm:$0xf]
      %v11209 = vld [vmem:[%s11207 + $0x4] sm:$0xf]
      %v11210 = vld [vmem:[%s11207 + $0x8] sm:$0xf]
      %v11211 = vld [vmem:[%s11207 + $0xc] sm:$0xf]
      %v11212 = vld [vmem:[%s11207 + $0x10] sm:$0xf]
      %v11213 = vld [vmem:[%s11207 + $0x14] sm:$0xf]
      %v11214 = vld [vmem:[%s11207 + $0x18] sm:$0xf]
      %v11215 = vld [vmem:[%s11207 + $0x1c] sm:$0xf]
      %v11216 = vld [vmem:[%s11207 + $0x20] sm:$0xf]
      %v11217 = vld [vmem:[%s11207 + $0x24] sm:$0xf]
      %v11218 = vld [vmem:[%s11207 + $0x28] sm:$0xf]
      %v11219 = vld [vmem:[%s11207 + $0x2c] sm:$0xf]
      %v11220 = vld [vmem:[%s11207 + $0x30] sm:$0xf]
      %v11221 = vld [vmem:[%s11207 + $0x34] sm:$0xf]
      %v11222 = vld [vmem:[%s11207 + $0x38] sm:$0xf]
      %v11223 = vld [vmem:[%s11207 + $0x3c] sm:$0xf]
      %v11242 = vrot.slane %v11189, 4
      %v11243 = vrot.slane %v11190, 4
      %v11244 = vsel %vm1615, %v11242, %v11243
      %v11245 = vrot.slane %v11191, 4
      %v11246 = vsel %vm1615, %v11243, %v11245
      %v11247 = vrot.slane %v11192, 4
      %v11248 = vsel %vm1615, %v11245, %v11247
      %v11249 = vrot.slane %v11193, 4
      %v11250 = vsel %vm1615, %v11247, %v11249
      %v11251 = vrot.slane %v11194, 4
      %v11252 = vsel %vm1615, %v11249, %v11251
      %v11253 = vrot.slane %v11195, 4
      %v11254 = vsel %vm1615, %v11251, %v11253
      %v11255 = vrot.slane %v11196, 4
      %v11256 = vsel %vm1615, %v11253, %v11255
      %v11257 = vrot.slane %v11197, 4
      %v11258 = vsel %vm1615, %v11255, %v11257
      %v11259 = vrot.slane %v11198, 4
      %v11260 = vsel %vm1615, %v11257, %v11259
      %v11261 = vrot.slane %v11199, 4
      %v11262 = vsel %vm1615, %v11259, %v11261
      %v11263 = vrot.slane %v11200, 4
      %v11264 = vsel %vm1615, %v11261, %v11263
      %v11265 = vrot.slane %v11201, 4
      %v11266 = vsel %vm1615, %v11263, %v11265
      %v11267 = vrot.slane %v11202, 4
      %v11268 = vsel %vm1615, %v11265, %v11267
      %v11269 = vrot.slane %v11203, 4
      %v11270 = vsel %vm1615, %v11267, %v11269
      %v11271 = vrot.slane %v11204, 4
      %v11272 = vsel %vm1615, %v11269, %v11271
      %v11273 = vrot.slane %v11205, 4
      %v11274 = vsel %vm1615, %v11271, %v11273
      %v11275 = vrot.slane %v11206, 4
      %v11276 = vsel %vm1615, %v11273, %v11275
      %v11310 = vunpack.c.l.b16 %v11208
      %v11311 = vunpack.c.l.b16 %v11209
      %v11312 = vunpack.c.l.b16 %v11210
      %v11313 = vunpack.c.l.b16 %v11211
      %v11314 = vunpack.c.l.b16 %v11212
      %v11315 = vunpack.c.l.b16 %v11213
      %v11316 = vunpack.c.l.b16 %v11214
      %v11317 = vunpack.c.l.b16 %v11215
      %v11318 = vunpack.c.l.b16 %v11216
      %v11319 = vunpack.c.l.b16 %v11217
      %v11320 = vunpack.c.l.b16 %v11218
      %v11321 = vunpack.c.l.b16 %v11219
      %v11322 = vunpack.c.l.b16 %v11220
      %v11323 = vunpack.c.l.b16 %v11221
      %v11324 = vunpack.c.l.b16 %v11222
      %v11325 = vunpack.c.l.b16 %v11223
      %v11326 = vpack.c.b16 %v11311, %v11310
      %v11327 = vpack.c.b16 %v11313, %v11312
      %v11328 = vpack.c.b16 %v11315, %v11314
      %v11329 = vpack.c.b16 %v11317, %v11316
      %v11330 = vpack.c.b16 %v11319, %v11318
      %v11331 = vpack.c.b16 %v11321, %v11320
      %v11332 = vpack.c.b16 %v11323, %v11322
      %v11333 = vpack.c.b16 %v11325, %v11324
      %11342 = vmatprep.subr.bf16.mxu0 0
      %11343 = vmatpush1.bf16.msra.mxu0 %v11326
      %11344 = vmatprep.subr.bf16.mxu0 0
      %11345 = vmatpush1.bf16.msra.mxu0 %v11327
      %11346 = vmatprep.subr.bf16.mxu0 0
      %11347 = vmatpush1.bf16.msra.mxu0 %v11328
      %11348 = vmatprep.subr.bf16.mxu0 0
      %11349 = vmatpush1.bf16.msra.mxu0 %v11329
      %11350 = vmatprep.subr.bf16.mxu0 0
      %11351 = vmatpush1.bf16.msra.mxu0 %v11330
      %11352 = vmatprep.subr.bf16.mxu0 0
      %11353 = vmatpush1.bf16.msra.mxu0 %v11331
      %11354 = vmatprep.subr.bf16.mxu0 0
      %11355 = vmatpush1.bf16.msra.mxu0 %v11332
      %11356 = vmatprep.subr.bf16.mxu0 0
      %11357 = vmatpush1.bf16.msra.mxu0 %v11333
      %11358 = vmatprep.subr.bf16.mxu0 0
      %11359 = vmatpush1.bf16.msra.mxu0 0
      %11360 = vmatprep.subr.bf16.mxu0 0
      %11361 = vmatpush1.bf16.msra.mxu0 0
      %11362 = vmatprep.subr.bf16.mxu0 0
      %11363 = vmatpush1.bf16.msra.mxu0 0
      %11364 = vmatprep.subr.bf16.mxu0 0
      %11365 = vmatpush1.bf16.msra.mxu0 0
      %11366 = vmatprep.subr.bf16.mxu0 0
      %11367 = vmatpush1.bf16.msra.mxu0 0
      %11368 = vmatprep.subr.bf16.mxu0 0
      %11369 = vmatpush1.bf16.msra.mxu0 0
      %11370 = vmatprep.subr.bf16.mxu0 0
      %11371 = vmatpush1.bf16.msra.mxu0 0
      %11372 = vmatprep.subr.bf16.mxu0 0
      %11373 = vmatpush1.bf16.msra.mxu0 0
      %11374 = vmatprep.mubr.bf16.mxu0 0
      %11375 = vmatmul.mubr.bf16.gmra.mrb[0].mxu0 %v11244
      %v11376 = vpop.f32.mrb[0].mxu0
      %v11377 = vadd.f32 0.0, %v11376
      %v11378 = vpop.f32.mrb[0].mxu0
      %v11379 = vpop.f32.mrb[0].mxu0
      %v11380 = vadd.f32 0.0, %v11379
      %v11381 = vpop.f32.mrb[0].mxu0
      %11382 = vmatprep.mubr.bf16.mxu0 0
      %11383 = vmatmul.mubr.bf16.gmra.mrb[0].mxu0 %v11246
      %v11384 = vpop.f32.mrb[0].mxu0
      %v11385 = vadd.f32 0.0, %v11384
      %v11386 = vpop.f32.mrb[0].mxu0
      %v11387 = vpop.f32.mrb[0].mxu0
      %v11388 = vadd.f32 0.0, %v11387
      %v11389 = vpop.f32.mrb[0].mxu0
      %11390 = vmatprep.mubr.bf16.mxu0 0
      %11391 = vmatmul.mubr.bf16.gmra.mrb[0].mxu0 %v11248
      %v11392 = vpop.f32.mrb[0].mxu0
      %v11393 = vadd.f32 0.0, %v11392
      %v11394 = vpop.f32.mrb[0].mxu0
      %v11395 = vpop.f32.mrb[0].mxu0
      %v11396 = vadd.f32 0.0, %v11395
      %v11397 = vpop.f32.mrb[0].mxu0
      %11398 = vmatprep.mubr.bf16.mxu0 0
      %11399 = vmatmul.mubr.bf16.gmra.mrb[0].mxu0 %v11250
      %v11400 = vpop.f32.mrb[0].mxu0
      %v11401 = vadd.f32 0.0, %v11400
      %v11402 = vpop.f32.mrb[0].mxu0
      %v11403 = vpop.f32.mrb[0].mxu0
      %v11404 = vadd.f32 0.0, %v11403
      %v11405 = vpop.f32.mrb[0].mxu0
      %11406 = vmatprep.mubr.bf16.mxu0 0
      %11407 = vmatmul.mubr.bf16.gmra.mrb[0].mxu0 %v11252
      %v11408 = vpop.f32.mrb[0].mxu0
      %v11409 = vadd.f32 0.0, %v11408
      %v11410 = vpop.f32.mrb[0].mxu0
      %v11411 = vpop.f32.mrb[0].mxu0
      %v11412 = vadd.f32 0.0, %v11411
      %v11413 = vpop.f32.mrb[0].mxu0
      %11414 = vmatprep.mubr.bf16.mxu0 0
      %11415 = vmatmul.mubr.bf16.gmra.mrb[0].mxu0 %v11254
      %v11416 = vpop.f32.mrb[0].mxu0
      %v11417 = vadd.f32 0.0, %v11416
      %v11418 = vpop.f32.mrb[0].mxu0
      %v11419 = vpop.f32.mrb[0].mxu0
      %v11420 = vadd.f32 0.0, %v11419
      %v11421 = vpop.f32.mrb[0].mxu0
      %11422 = vmatprep.mubr.bf16.mxu0 0
      %11423 = vmatmul.mubr.bf16.gmra.mrb[0].mxu0 %v11256
      %v11424 = vpop.f32.mrb[0].mxu0
      %v11425 = vadd.f32 0.0, %v11424
      %v11426 = vpop.f32.mrb[0].mxu0
      %v11427 = vpop.f32.mrb[0].mxu0
      %v11428 = vadd.f32 0.0, %v11427
      %v11429 = vpop.f32.mrb[0].mxu0
      %11430 = vmatprep.mubr.bf16.mxu0 0
      %11431 = vmatmul.mubr.bf16.gmra.mrb[0].mxu0 %v11258
      %v11432 = vpop.f32.mrb[0].mxu0
      %v11433 = vadd.f32 0.0, %v11432
      %v11434 = vpop.f32.mrb[0].mxu0
      %v11435 = vpop.f32.mrb[0].mxu0
      %v11436 = vadd.f32 0.0, %v11435
      %v11437 = vpop.f32.mrb[0].mxu0
      %11438 = vmatprep.mubr.bf16.mxu0 0
      %11439 = vmatmul.mubr.bf16.gmra.mrb[0].mxu0 %v11260
      %v11440 = vpop.f32.mrb[0].mxu0
      %v11441 = vadd.f32 0.0, %v11440
      %v11442 = vpop.f32.mrb[0].mxu0
      %v11443 = vpop.f32.mrb[0].mxu0
      %v11444 = vadd.f32 0.0, %v11443
      %v11445 = vpop.f32.mrb[0].mxu0
      %11446 = vmatprep.mubr.bf16.mxu0 0
      %11447 = vmatmul.mubr.bf16.gmra.mrb[0].mxu0 %v11262
      %v11448 = vpop.f32.mrb[0].mxu0
      %v11449 = vadd.f32 0.0, %v11448
      %v11450 = vpop.f32.mrb[0].mxu0
      %v11451 = vpop.f32.mrb[0].mxu0
      %v11452 = vadd.f32 0.0, %v11451
      %v11453 = vpop.f32.mrb[0].mxu0
      %11454 = vmatprep.mubr.bf16.mxu0 0
      %11455 = vmatmul.mubr.bf16.gmra.mrb[0].mxu0 %v11264
      %v11456 = vpop.f32.mrb[0].mxu0
      %v11457 = vadd.f32 0.0, %v11456
      %v11458 = vpop.f32.mrb[0].mxu0
      %v11459 = vpop.f32.mrb[0].mxu0
      %v11460 = vadd.f32 0.0, %v11459
      %v11461 = vpop.f32.mrb[0].mxu0
      %11462 = vmatprep.mubr.bf16.mxu0 0
      %11463 = vmatmul.mubr.bf16.gmra.mrb[0].mxu0 %v11266
      %v11464 = vpop.f32.mrb[0].mxu0
      %v11465 = vadd.f32 0.0, %v11464
      %v11466 = vpop.f32.mrb[0].mxu0
      %v11467 = vpop.f32.mrb[0].mxu0
      %v11468 = vadd.f32 0.0, %v11467
      %v11469 = vpop.f32.mrb[0].mxu0
      %11470 = vmatprep.mubr.bf16.mxu0 0
      %11471 = vmatmul.mubr.bf16.gmra.mrb[0].mxu0 %v11268
      %v11472 = vpop.f32.mrb[0].mxu0
      %v11473 = vadd.f32 0.0, %v11472
      %v11474 = vpop.f32.mrb[0].mxu0
      %v11475 = vpop.f32.mrb[0].mxu0
      %v11476 = vadd.f32 0.0, %v11475
      %v11477 = vpop.f32.mrb[0].mxu0
      %11478 = vmatprep.mubr.bf16.mxu0 0
      %11479 = vmatmul.mubr.bf16.gmra.mrb[0].mxu0 %v11270
      %v11480 = vpop.f32.mrb[0].mxu0
      %v11481 = vadd.f32 0.0, %v11480
      %v11482 = vpop.f32.mrb[0].mxu0
      %v11483 = vpop.f32.mrb[0].mxu0
      %v11484 = vadd.f32 0.0, %v11483
      %v11485 = vpop.f32.mrb[0].mxu0
      %11486 = vmatprep.mubr.bf16.mxu0 0
      %11487 = vmatmul.mubr.bf16.gmra.mrb[0].mxu0 %v11272
      %v11488 = vpop.f32.mrb[0].mxu0
      %v11489 = vadd.f32 0.0, %v11488
      %v11490 = vpop.f32.mrb[0].mxu0
      %v11491 = vpop.f32.mrb[0].mxu0
      %v11492 = vadd.f32 0.0, %v11491
      %v11493 = vpop.f32.mrb[0].mxu0
      %11494 = vmatprep.mubr.bf16.mxu0 0
      %11495 = vmatmul.mubr.bf16.gmra.mrb[0].mxu0 %v11274
      %v11496 = vpop.f32.mrb[0].mxu0
      %v11497 = vadd.f32 0.0, %v11496
      %v11498 = vpop.f32.mrb[0].mxu0
      %v11499 = vpop.f32.mrb[0].mxu0
      %v11500 = vadd.f32 0.0, %v11499
      %v11501 = vpop.f32.mrb[0].mxu0
      %11502 = vmatprep.mubr.bf16.mxu0 0
      %11503 = vmatmul.mubr.bf16.gmra.mrb[0].mxu0 %v11276
      %v11504 = vpop.f32.mrb[0].mxu0
      %v11505 = vadd.f32 0.0, %v11504
      %v11506 = vpop.f32.mrb[0].mxu0
      %v11507 = vpop.f32.mrb[0].mxu0
      %v11508 = vadd.f32 0.0, %v11507
      %v11509 = vpop.f32.mrb[0].mxu0
      %11510 = vdwg.mxu0
      %v11511 = vadd.f32 %v11155, %v11377
      %v11512 = vadd.f32 %v11156, %v11380
      %v11513 = vadd.f32 %v11157, %v11385
      %v11514 = vadd.f32 %v11158, %v11388
      %v11515 = vadd.f32 %v11159, %v11393
      %v11516 = vadd.f32 %v11160, %v11396
      %v11517 = vadd.f32 %v11161, %v11401
      %v11518 = vadd.f32 %v11162, %v11404
      %v11519 = vadd.f32 %v11163, %v11409
      %v11520 = vadd.f32 %v11164, %v11412
      %v11521 = vadd.f32 %v11165, %v11417
      %v11522 = vadd.f32 %v11166, %v11420
      %v11523 = vadd.f32 %v11167, %v11425
      %v11524 = vadd.f32 %v11168, %v11428
      %v11525 = vadd.f32 %v11169, %v11433
      %v11526 = vadd.f32 %v11170, %v11436
      %v11527 = vadd.f32 %v11171, %v11441
      %v11528 = vadd.f32 %v11172, %v11444
      %v11529 = vadd.f32 %v11173, %v11449
      %v11530 = vadd.f32 %v11174, %v11452
      %v11531 = vadd.f32 %v11175, %v11457
      %v11532 = vadd.f32 %v11176, %v11460
      %v11533 = vadd.f32 %v11177, %v11465
      %v11534 = vadd.f32 %v11178, %v11468
      %v11535 = vadd.f32 %v11179, %v11473
      %v11536 = vadd.f32 %v11180, %v11476
      %v11537 = vadd.f32 %v11181, %v11481
      %v11538 = vadd.f32 %v11182, %v11484
      %v11539 = vadd.f32 %v11183, %v11489
      %v11540 = vadd.f32 %v11184, %v11492
      %v11541 = vadd.f32 %v11185, %v11497
      %v11542 = vadd.f32 %v11186, %v11500
      %v11543 = vadd.f32 %v11187, %v11505
      %v11544 = vadd.f32 %v11188, %v11508
      %v11545 = vld [vmem:[#allocation2 + $0x98] sm:$0x1f]
      %s11546 = scalar_lea.vmem %s7, 448
      %v11547 = vld [vmem:[%s11546] sm:$0xf]
      %v11548 = vld [vmem:[%s11546 + $0x4] sm:$0xf]
      %v11549 = vld [vmem:[%s11546 + $0x8] sm:$0xf]
      %v11550 = vld [vmem:[%s11546 + $0xc] sm:$0xf]
      %v11551 = vld [vmem:[%s11546 + $0x10] sm:$0xf]
      %v11552 = vld [vmem:[%s11546 + $0x14] sm:$0xf]
      %v11553 = vld [vmem:[%s11546 + $0x18] sm:$0xf]
      %v11554 = vld [vmem:[%s11546 + $0x1c] sm:$0xf]
      %v11555 = vld [vmem:[%s11546 + $0x20] sm:$0xf]
      %v11556 = vld [vmem:[%s11546 + $0x24] sm:$0xf]
      %v11557 = vld [vmem:[%s11546 + $0x28] sm:$0xf]
      %v11558 = vld [vmem:[%s11546 + $0x2c] sm:$0xf]
      %v11559 = vld [vmem:[%s11546 + $0x30] sm:$0xf]
      %v11560 = vld [vmem:[%s11546 + $0x34] sm:$0xf]
      %v11561 = vld [vmem:[%s11546 + $0x38] sm:$0xf]
      %v11562 = vld [vmem:[%s11546 + $0x3c] sm:$0xf]
      %v11564 = vshrl.u32 %v11189, 16
      %v11566 = vrot.slane %v11564, 4
      %v11567 = vshll.u32 %v11189, 16
      %v11569 = vrot.slane %v11567, 5
      %v11570 = vor.u32 %v11566, %v11569
      %v11572 = vshrl.u32 %v11190, 16
      %v11574 = vrot.slane %v11572, 4
      %v11575 = vshll.u32 %v11190, 16
      %v11577 = vrot.slane %v11575, 5
      %v11578 = vor.u32 %v11574, %v11577
      %v11579 = vsel %vm3640, %v11570, %v11578
      %v11581 = vshrl.u32 %v11191, 16
      %v11583 = vrot.slane %v11581, 4
      %v11584 = vshll.u32 %v11191, 16
      %v11586 = vrot.slane %v11584, 5
      %v11587 = vor.u32 %v11583, %v11586
      %v11588 = vsel %vm3640, %v11578, %v11587
      %v11590 = vshrl.u32 %v11192, 16
      %v11592 = vrot.slane %v11590, 4
      %v11593 = vshll.u32 %v11192, 16
      %v11595 = vrot.slane %v11593, 5
      %v11596 = vor.u32 %v11592, %v11595
      %v11597 = vsel %vm3640, %v11587, %v11596
      %v11599 = vshrl.u32 %v11193, 16
      %v11601 = vrot.slane %v11599, 4
      %v11602 = vshll.u32 %v11193, 16
      %v11604 = vrot.slane %v11602, 5
      %v11605 = vor.u32 %v11601, %v11604
      %v11606 = vsel %vm3640, %v11596, %v11605
      %v11608 = vshrl.u32 %v11194, 16
      %v11610 = vrot.slane %v11608, 4
      %v11611 = vshll.u32 %v11194, 16
      %v11613 = vrot.slane %v11611, 5
      %v11614 = vor.u32 %v11610, %v11613
      %v11615 = vsel %vm3640, %v11605, %v11614
      %v11617 = vshrl.u32 %v11195, 16
      %v11619 = vrot.slane %v11617, 4
      %v11620 = vshll.u32 %v11195, 16
      %v11622 = vrot.slane %v11620, 5
      %v11623 = vor.u32 %v11619, %v11622
      %v11624 = vsel %vm3640, %v11614, %v11623
      %v11626 = vshrl.u32 %v11196, 16
      %v11628 = vrot.slane %v11626, 4
      %v11629 = vshll.u32 %v11196, 16
      %v11631 = vrot.slane %v11629, 5
      %v11632 = vor.u32 %v11628, %v11631
      %v11633 = vsel %vm3640, %v11623, %v11632
      %v11635 = vshrl.u32 %v11197, 16
      %v11637 = vrot.slane %v11635, 4
      %v11638 = vshll.u32 %v11197, 16
      %v11640 = vrot.slane %v11638, 5
      %v11641 = vor.u32 %v11637, %v11640
      %v11642 = vsel %vm3640, %v11632, %v11641
      %v11644 = vshrl.u32 %v11198, 16
      %v11646 = vrot.slane %v11644, 4
      %v11647 = vshll.u32 %v11198, 16
      %v11649 = vrot.slane %v11647, 5
      %v11650 = vor.u32 %v11646, %v11649
      %v11651 = vsel %vm3640, %v11641, %v11650
      %v11653 = vshrl.u32 %v11199, 16
      %v11655 = vrot.slane %v11653, 4
      %v11656 = vshll.u32 %v11199, 16
      %v11658 = vrot.slane %v11656, 5
      %v11659 = vor.u32 %v11655, %v11658
      %v11660 = vsel %vm3640, %v11650, %v11659
      %v11662 = vshrl.u32 %v11200, 16
      %v11664 = vrot.slane %v11662, 4
      %v11665 = vshll.u32 %v11200, 16
      %v11667 = vrot.slane %v11665, 5
      %v11668 = vor.u32 %v11664, %v11667
      %v11669 = vsel %vm3640, %v11659, %v11668
      %v11671 = vshrl.u32 %v11201, 16
      %v11673 = vrot.slane %v11671, 4
      %v11674 = vshll.u32 %v11201, 16
      %v11676 = vrot.slane %v11674, 5
      %v11677 = vor.u32 %v11673, %v11676
      %v11678 = vsel %vm3640, %v11668, %v11677
      %v11680 = vshrl.u32 %v11202, 16
      %v11682 = vrot.slane %v11680, 4
      %v11683 = vshll.u32 %v11202, 16
      %v11685 = vrot.slane %v11683, 5
      %v11686 = vor.u32 %v11682, %v11685
      %v11687 = vsel %vm3640, %v11677, %v11686
      %v11689 = vshrl.u32 %v11203, 16
      %v11691 = vrot.slane %v11689, 4
      %v11692 = vshll.u32 %v11203, 16
      %v11694 = vrot.slane %v11692, 5
      %v11695 = vor.u32 %v11691, %v11694
      %v11696 = vsel %vm3640, %v11686, %v11695
      %v11698 = vshrl.u32 %v11204, 16
      %v11700 = vrot.slane %v11698, 4
      %v11701 = vshll.u32 %v11204, 16
      %v11703 = vrot.slane %v11701, 5
      %v11704 = vor.u32 %v11700, %v11703
      %v11705 = vsel %vm3640, %v11695, %v11704
      %v11707 = vshrl.u32 %v11205, 16
      %v11709 = vrot.slane %v11707, 4
      %v11710 = vshll.u32 %v11205, 16
      %v11712 = vrot.slane %v11710, 5
      %v11713 = vor.u32 %v11709, %v11712
      %v11714 = vsel %vm3640, %v11704, %v11713
      %v11716 = vshrl.u32 %v11545, 16
      %v11718 = vrot.slane %v11716, 4
      %v11719 = vshll.u32 %v11545, 16
      %v11721 = vrot.slane %v11719, 5
      %v11722 = vor.u32 %v11718, %v11721
      %v11723 = vsel %vm3640, %v11713, %v11722
      %v11757 = vunpack.c.l.b16 %v11547
      %v11758 = vunpack.c.l.b16 %v11548
      %v11759 = vunpack.c.l.b16 %v11549
      %v11760 = vunpack.c.l.b16 %v11550
      %v11761 = vunpack.c.l.b16 %v11551
      %v11762 = vunpack.c.l.b16 %v11552
      %v11763 = vunpack.c.l.b16 %v11553
      %v11764 = vunpack.c.l.b16 %v11554
      %v11765 = vunpack.c.l.b16 %v11555
      %v11766 = vunpack.c.l.b16 %v11556
      %v11767 = vunpack.c.l.b16 %v11557
      %v11768 = vunpack.c.l.b16 %v11558
      %v11769 = vunpack.c.l.b16 %v11559
      %v11770 = vunpack.c.l.b16 %v11560
      %v11771 = vunpack.c.l.b16 %v11561
      %v11772 = vunpack.c.l.b16 %v11562
      %v11773 = vpack.c.b16 %v11758, %v11757
      %v11774 = vpack.c.b16 %v11760, %v11759
      %v11775 = vpack.c.b16 %v11762, %v11761
      %v11776 = vpack.c.b16 %v11764, %v11763
      %v11777 = vpack.c.b16 %v11766, %v11765
      %v11778 = vpack.c.b16 %v11768, %v11767
      %v11779 = vpack.c.b16 %v11770, %v11769
      %v11780 = vpack.c.b16 %v11772, %v11771
      %11789 = vmatprep.subr.bf16.mxu0 0
      %11790 = vmatpush1.bf16.msra.mxu0 %v11773
      %11791 = vmatprep.subr.bf16.mxu0 0
      %11792 = vmatpush1.bf16.msra.mxu0 %v11774
      %11793 = vmatprep.subr.bf16.mxu0 0
      %11794 = vmatpush1.bf16.msra.mxu0 %v11775
      %11795 = vmatprep.subr.bf16.mxu0 0
      %11796 = vmatpush1.bf16.msra.mxu0 %v11776
      %11797 = vmatprep.subr.bf16.mxu0 0
      %11798 = vmatpush1.bf16.msra.mxu0 %v11777
      %11799 = vmatprep.subr.bf16.mxu0 0
      %11800 = vmatpush1.bf16.msra.mxu0 %v11778
      %11801 = vmatprep.subr.bf16.mxu0 0
      %11802 = vmatpush1.bf16.msra.mxu0 %v11779
      %11803 = vmatprep.subr.bf16.mxu0 0
      %11804 = vmatpush1.bf16.msra.mxu0 %v11780
      %11805 = vmatprep.subr.bf16.mxu0 0
      %11806 = vmatpush1.bf16.msra.mxu0 0
      %11807 = vmatprep.subr.bf16.mxu0 0
      %11808 = vmatpush1.bf16.msra.mxu0 0
      %11809 = vmatprep.subr.bf16.mxu0 0
      %11810 = vmatpush1.bf16.msra.mxu0 0
      %11811 = vmatprep.subr.bf16.mxu0 0
      %11812 = vmatpush1.bf16.msra.mxu0 0
      %11813 = vmatprep.subr.bf16.mxu0 0
      %11814 = vmatpush1.bf16.msra.mxu0 0
      %11815 = vmatprep.subr.bf16.mxu0 0
      %11816 = vmatpush1.bf16.msra.mxu0 0
      %11817 = vmatprep.subr.bf16.mxu0 0
      %11818 = vmatpush1.bf16.msra.mxu0 0
      %11819 = vmatprep.subr.bf16.mxu0 0
      %11820 = vmatpush1.bf16.msra.mxu0 0
      %11821 = vmatprep.mubr.bf16.mxu0 0
      %11822 = vmatmul.mubr.bf16.gmra.mrb[0].mxu0 %v11579
      %v11823 = vpop.f32.mrb[0].mxu0
      %v11824 = vadd.f32 0.0, %v11823
      %v11825 = vpop.f32.mrb[0].mxu0
      %v11826 = vpop.f32.mrb[0].mxu0
      %v11827 = vadd.f32 0.0, %v11826
      %v11828 = vpop.f32.mrb[0].mxu0
      %11829 = vmatprep.mubr.bf16.mxu0 0
      %11830 = vmatmul.mubr.bf16.gmra.mrb[0].mxu0 %v11588
      %v11831 = vpop.f32.mrb[0].mxu0
      %v11832 = vadd.f32 0.0, %v11831
      %v11833 = vpop.f32.mrb[0].mxu0
      %v11834 = vpop.f32.mrb[0].mxu0
      %v11835 = vadd.f32 0.0, %v11834
      %v11836 = vpop.f32.mrb[0].mxu0
      %11837 = vmatprep.mubr.bf16.mxu0 0
      %11838 = vmatmul.mubr.bf16.gmra.mrb[0].mxu0 %v11597
      %v11839 = vpop.f32.mrb[0].mxu0
      %v11840 = vadd.f32 0.0, %v11839
      %v11841 = vpop.f32.mrb[0].mxu0
      %v11842 = vpop.f32.mrb[0].mxu0
      %v11843 = vadd.f32 0.0, %v11842
      %v11844 = vpop.f32.mrb[0].mxu0
      %11845 = vmatprep.mubr.bf16.mxu0 0
      %11846 = vmatmul.mubr.bf16.gmra.mrb[0].mxu0 %v11606
      %v11847 = vpop.f32.mrb[0].mxu0
      %v11848 = vadd.f32 0.0, %v11847
      %v11849 = vpop.f32.mrb[0].mxu0
      %v11850 = vpop.f32.mrb[0].mxu0
      %v11851 = vadd.f32 0.0, %v11850
      %v11852 = vpop.f32.mrb[0].mxu0
      %11853 = vmatprep.mubr.bf16.mxu0 0
      %11854 = vmatmul.mubr.bf16.gmra.mrb[0].mxu0 %v11615
      %v11855 = vpop.f32.mrb[0].mxu0
      %v11856 = vadd.f32 0.0, %v11855
      %v11857 = vpop.f32.mrb[0].mxu0
      %v11858 = vpop.f32.mrb[0].mxu0
      %v11859 = vadd.f32 0.0, %v11858
      %v11860 = vpop.f32.mrb[0].mxu0
      %11861 = vmatprep.mubr.bf16.mxu0 0
      %11862 = vmatmul.mubr.bf16.gmra.mrb[0].mxu0 %v11624
      %v11863 = vpop.f32.mrb[0].mxu0
      %v11864 = vadd.f32 0.0, %v11863
      %v11865 = vpop.f32.mrb[0].mxu0
      %v11866 = vpop.f32.mrb[0].mxu0
      %v11867 = vadd.f32 0.0, %v11866
      %v11868 = vpop.f32.mrb[0].mxu0
      %11869 = vmatprep.mubr.bf16.mxu0 0
      %11870 = vmatmul.mubr.bf16.gmra.mrb[0].mxu0 %v11633
      %v11871 = vpop.f32.mrb[0].mxu0
      %v11872 = vadd.f32 0.0, %v11871
      %v11873 = vpop.f32.mrb[0].mxu0
      %v11874 = vpop.f32.mrb[0].mxu0
      %v11875 = vadd.f32 0.0, %v11874
      %v11876 = vpop.f32.mrb[0].mxu0
      %11877 = vmatprep.mubr.bf16.mxu0 0
      %11878 = vmatmul.mubr.bf16.gmra.mrb[0].mxu0 %v11642
      %v11879 = vpop.f32.mrb[0].mxu0
      %v11880 = vadd.f32 0.0, %v11879
      %v11881 = vpop.f32.mrb[0].mxu0
      %v11882 = vpop.f32.mrb[0].mxu0
      %v11883 = vadd.f32 0.0, %v11882
      %v11884 = vpop.f32.mrb[0].mxu0
      %11885 = vmatprep.mubr.bf16.mxu0 0
      %11886 = vmatmul.mubr.bf16.gmra.mrb[0].mxu0 %v11651
      %v11887 = vpop.f32.mrb[0].mxu0
      %v11888 = vadd.f32 0.0, %v11887
      %v11889 = vpop.f32.mrb[0].mxu0
      %v11890 = vpop.f32.mrb[0].mxu0
      %v11891 = vadd.f32 0.0, %v11890
      %v11892 = vpop.f32.mrb[0].mxu0
      %11893 = vmatprep.mubr.bf16.mxu0 0
      %11894 = vmatmul.mubr.bf16.gmra.mrb[0].mxu0 %v11660
      %v11895 = vpop.f32.mrb[0].mxu0
      %v11896 = vadd.f32 0.0, %v11895
      %v11897 = vpop.f32.mrb[0].mxu0
      %v11898 = vpop.f32.mrb[0].mxu0
      %v11899 = vadd.f32 0.0, %v11898
      %v11900 = vpop.f32.mrb[0].mxu0
      %11901 = vmatprep.mubr.bf16.mxu0 0
      %11902 = vmatmul.mubr.bf16.gmra.mrb[0].mxu0 %v11669
      %v11903 = vpop.f32.mrb[0].mxu0
      %v11904 = vadd.f32 0.0, %v11903
      %v11905 = vpop.f32.mrb[0].mxu0
      %v11906 = vpop.f32.mrb[0].mxu0
      %v11907 = vadd.f32 0.0, %v11906
      %v11908 = vpop.f32.mrb[0].mxu0
      %11909 = vmatprep.mubr.bf16.mxu0 0
      %11910 = vmatmul.mubr.bf16.gmra.mrb[0].mxu0 %v11678
      %v11911 = vpop.f32.mrb[0].mxu0
      %v11912 = vadd.f32 0.0, %v11911
      %v11913 = vpop.f32.mrb[0].mxu0
      %v11914 = vpop.f32.mrb[0].mxu0
      %v11915 = vadd.f32 0.0, %v11914
      %v11916 = vpop.f32.mrb[0].mxu0
      %11917 = vmatprep.mubr.bf16.mxu0 0
      %11918 = vmatmul.mubr.bf16.gmra.mrb[0].mxu0 %v11687
      %v11919 = vpop.f32.mrb[0].mxu0
      %v11920 = vadd.f32 0.0, %v11919
      %v11921 = vpop.f32.mrb[0].mxu0
      %v11922 = vpop.f32.mrb[0].mxu0
      %v11923 = vadd.f32 0.0, %v11922
      %v11924 = vpop.f32.mrb[0].mxu0
      %11925 = vmatprep.mubr.bf16.mxu0 0
      %11926 = vmatmul.mubr.bf16.gmra.mrb[0].mxu0 %v11696
      %v11927 = vpop.f32.mrb[0].mxu0
      %v11928 = vadd.f32 0.0, %v11927
      %v11929 = vpop.f32.mrb[0].mxu0
      %v11930 = vpop.f32.mrb[0].mxu0
      %v11931 = vadd.f32 0.0, %v11930
      %v11932 = vpop.f32.mrb[0].mxu0
      %11933 = vmatprep.mubr.bf16.mxu0 0
      %11934 = vmatmul.mubr.bf16.gmra.mrb[0].mxu0 %v11705
      %v11935 = vpop.f32.mrb[0].mxu0
      %v11936 = vadd.f32 0.0, %v11935
      %v11937 = vpop.f32.mrb[0].mxu0
      %v11938 = vpop.f32.mrb[0].mxu0
      %v11939 = vadd.f32 0.0, %v11938
      %v11940 = vpop.f32.mrb[0].mxu0
      %11941 = vmatprep.mubr.bf16.mxu0 0
      %11942 = vmatmul.mubr.bf16.gmra.mrb[0].mxu0 %v11714
      %v11943 = vpop.f32.mrb[0].mxu0
      %v11944 = vadd.f32 0.0, %v11943
      %v11945 = vpop.f32.mrb[0].mxu0
      %v11946 = vpop.f32.mrb[0].mxu0
      %v11947 = vadd.f32 0.0, %v11946
      %v11948 = vpop.f32.mrb[0].mxu0
      %11949 = vmatprep.mubr.bf16.mxu0 0
      %11950 = vmatmul.mubr.bf16.gmra.mrb[0].mxu0 %v11723
      %v11951 = vpop.f32.mrb[0].mxu0
      %v11952 = vadd.f32 0.0, %v11951
      %v11953 = vpop.f32.mrb[0].mxu0
      %v11954 = vpop.f32.mrb[0].mxu0
      %v11955 = vadd.f32 0.0, %v11954
      %v11956 = vpop.f32.mrb[0].mxu0
      %11957 = vdwg.mxu0
      %v11958 = vadd.f32 %v11511, %v11824
      %v11959 = vadd.f32 %v11512, %v11827
      %v11960 = vadd.f32 %v11513, %v11832
      %v11961 = vadd.f32 %v11514, %v11835
      %v11962 = vadd.f32 %v11515, %v11840
      %v11963 = vadd.f32 %v11516, %v11843
      %v11964 = vadd.f32 %v11517, %v11848
      %v11965 = vadd.f32 %v11518, %v11851
      %v11966 = vadd.f32 %v11519, %v11856
      %v11967 = vadd.f32 %v11520, %v11859
      %v11968 = vadd.f32 %v11521, %v11864
      %v11969 = vadd.f32 %v11522, %v11867
      %v11970 = vadd.f32 %v11523, %v11872
      %v11971 = vadd.f32 %v11524, %v11875
      %v11972 = vadd.f32 %v11525, %v11880
      %v11973 = vadd.f32 %v11526, %v11883
      %v11974 = vadd.f32 %v11527, %v11888
      %v11975 = vadd.f32 %v11528, %v11891
      %v11976 = vadd.f32 %v11529, %v11896
      %v11977 = vadd.f32 %v11530, %v11899
      %v11978 = vadd.f32 %v11531, %v11904
      %v11979 = vadd.f32 %v11532, %v11907
      %v11980 = vadd.f32 %v11533, %v11912
      %v11981 = vadd.f32 %v11534, %v11915
      %v11982 = vadd.f32 %v11535, %v11920
      %v11983 = vadd.f32 %v11536, %v11923
      %v11984 = vadd.f32 %v11537, %v11928
      %v11985 = vadd.f32 %v11538, %v11931
      %v11986 = vadd.f32 %v11539, %v11936
      %v11987 = vadd.f32 %v11540, %v11939
      %v11988 = vadd.f32 %v11541, %v11944
      %v11989 = vadd.f32 %v11542, %v11947
      %v11990 = vadd.f32 %v11543, %v11952
      %v11991 = vadd.f32 %v11544, %v11955
      %v11992 = vld [vmem:[#allocation2 + $0x10] sm:$0xe0]
      %s11993 = scalar_lea.vmem %s7, 512
      %v11994 = vld [vmem:[%s11993] sm:$0xf]
      %v11995 = vld [vmem:[%s11993 + $0x4] sm:$0xf]
      %v11996 = vld [vmem:[%s11993 + $0x8] sm:$0xf]
      %v11997 = vld [vmem:[%s11993 + $0xc] sm:$0xf]
      %v11998 = vld [vmem:[%s11993 + $0x10] sm:$0xf]
      %v11999 = vld [vmem:[%s11993 + $0x14] sm:$0xf]
      %v12000 = vld [vmem:[%s11993 + $0x18] sm:$0xf]
      %v12001 = vld [vmem:[%s11993 + $0x1c] sm:$0xf]
      %v12002 = vld [vmem:[%s11993 + $0x20] sm:$0xf]
      %v12003 = vld [vmem:[%s11993 + $0x24] sm:$0xf]
      %v12004 = vld [vmem:[%s11993 + $0x28] sm:$0xf]
      %v12005 = vld [vmem:[%s11993 + $0x2c] sm:$0xf]
      %v12006 = vld [vmem:[%s11993 + $0x30] sm:$0xf]
      %v12007 = vld [vmem:[%s11993 + $0x34] sm:$0xf]
      %v12008 = vld [vmem:[%s11993 + $0x38] sm:$0xf]
      %v12009 = vld [vmem:[%s11993 + $0x3c] sm:$0xf]
      %v12012 = vrot.slane %v11992, 5
      %v12013 = vrot.slane %v11190, 5
      %v12014 = vsel %vm4813, %v12012, %v12013
      %v12015 = vrot.slane %v11191, 5
      %v12016 = vsel %vm4813, %v12013, %v12015
      %v12017 = vrot.slane %v11192, 5
      %v12018 = vsel %vm4813, %v12015, %v12017
      %v12019 = vrot.slane %v11193, 5
      %v12020 = vsel %vm4813, %v12017, %v12019
      %v12021 = vrot.slane %v11194, 5
      %v12022 = vsel %vm4813, %v12019, %v12021
      %v12023 = vrot.slane %v11195, 5
      %v12024 = vsel %vm4813, %v12021, %v12023
      %v12025 = vrot.slane %v11196, 5
      %v12026 = vsel %vm4813, %v12023, %v12025
      %v12027 = vrot.slane %v11197, 5
      %v12028 = vsel %vm4813, %v12025, %v12027
      %v12029 = vrot.slane %v11198, 5
      %v12030 = vsel %vm4813, %v12027, %v12029
      %v12031 = vrot.slane %v11199, 5
      %v12032 = vsel %vm4813, %v12029, %v12031
      %v12033 = vrot.slane %v11200, 5
      %v12034 = vsel %vm4813, %v12031, %v12033
      %v12035 = vrot.slane %v11201, 5
      %v12036 = vsel %vm4813, %v12033, %v12035
      %v12037 = vrot.slane %v11202, 5
      %v12038 = vsel %vm4813, %v12035, %v12037
      %v12039 = vrot.slane %v11203, 5
      %v12040 = vsel %vm4813, %v12037, %v12039
      %v12041 = vrot.slane %v11204, 5
      %v12042 = vsel %vm4813, %v12039, %v12041
      %v12043 = vrot.slane %v11205, 5
      %v12044 = vsel %vm4813, %v12041, %v12043
      %v12045 = vrot.slane %v11545, 5
      %v12046 = vsel %vm4813, %v12043, %v12045
      %v12080 = vunpack.c.l.b16 %v11994
      %v12081 = vunpack.c.l.b16 %v11995
      %v12082 = vunpack.c.l.b16 %v11996
      %v12083 = vunpack.c.l.b16 %v11997
      %v12084 = vunpack.c.l.b16 %v11998
      %v12085 = vunpack.c.l.b16 %v11999
      %v12086 = vunpack.c.l.b16 %v12000
      %v12087 = vunpack.c.l.b16 %v12001
      %v12088 = vunpack.c.l.b16 %v12002
      %v12089 = vunpack.c.l.b16 %v12003
      %v12090 = vunpack.c.l.b16 %v12004
      %v12091 = vunpack.c.l.b16 %v12005
      %v12092 = vunpack.c.l.b16 %v12006
      %v12093 = vunpack.c.l.b16 %v12007
      %v12094 = vunpack.c.l.b16 %v12008
      %v12095 = vunpack.c.l.b16 %v12009
      %v12096 = vpack.c.b16 %v12081, %v12080
      %v12097 = vpack.c.b16 %v12083, %v12082
      %v12098 = vpack.c.b16 %v12085, %v12084
      %v12099 = vpack.c.b16 %v12087, %v12086
      %v12100 = vpack.c.b16 %v12089, %v12088
      %v12101 = vpack.c.b16 %v12091, %v12090
      %v12102 = vpack.c.b16 %v12093, %v12092
      %v12103 = vpack.c.b16 %v12095, %v12094
      %12112 = vmatprep.subr.bf16.mxu0 0
      %12113 = vmatpush1.bf16.msra.mxu0 %v12096
      %12114 = vmatprep.subr.bf16.mxu0 0
      %12115 = vmatpush1.bf16.msra.mxu0 %v12097
      %12116 = vmatprep.subr.bf16.mxu0 0
      %12117 = vmatpush1.bf16.msra.mxu0 %v12098
      %12118 = vmatprep.subr.bf16.mxu0 0
      %12119 = vmatpush1.bf16.msra.mxu0 %v12099
      %12120 = vmatprep.subr.bf16.mxu0 0
      %12121 = vmatpush1.bf16.msra.mxu0 %v12100
      %12122 = vmatprep.subr.bf16.mxu0 0
      %12123 = vmatpush1.bf16.msra.mxu0 %v12101
      %12124 = vmatprep.subr.bf16.mxu0 0
      %12125 = vmatpush1.bf16.msra.mxu0 %v12102
      %12126 = vmatprep.subr.bf16.mxu0 0
      %12127 = vmatpush1.bf16.msra.mxu0 %v12103
      %12128 = vmatprep.subr.bf16.mxu0 0
      %12129 = vmatpush1.bf16.msra.mxu0 0
      %12130 = vmatprep.subr.bf16.mxu0 0
      %12131 = vmatpush1.bf16.msra.mxu0 0
      %12132 = vmatprep.subr.bf16.mxu0 0
      %12133 = vmatpush1.bf16.msra.mxu0 0
      %12134 = vmatprep.subr.bf16.mxu0 0
      %12135 = vmatpush1.bf16.msra.mxu0 0
      %12136 = vmatprep.subr.bf16.mxu0 0
      %12137 = vmatpush1.bf16.msra.mxu0 0
      %12138 = vmatprep.subr.bf16.mxu0 0
      %12139 = vmatpush1.bf16.msra.mxu0 0
      %12140 = vmatprep.subr.bf16.mxu0 0
      %12141 = vmatpush1.bf16.msra.mxu0 0
      %12142 = vmatprep.subr.bf16.mxu0 0
      %12143 = vmatpush1.bf16.msra.mxu0 0
      %12144 = vmatprep.mubr.bf16.mxu0 0
      %12145 = vmatmul.mubr.bf16.gmra.mrb[0].mxu0 %v12014
      %v12146 = vpop.f32.mrb[0].mxu0
      %v12147 = vadd.f32 0.0, %v12146
      %v12148 = vpop.f32.mrb[0].mxu0
      %v12149 = vpop.f32.mrb[0].mxu0
      %v12150 = vadd.f32 0.0, %v12149
      %v12151 = vpop.f32.mrb[0].mxu0
      %12152 = vmatprep.mubr.bf16.mxu0 0
      %12153 = vmatmul.mubr.bf16.gmra.mrb[0].mxu0 %v12016
      %v12154 = vpop.f32.mrb[0].mxu0
      %v12155 = vadd.f32 0.0, %v12154
      %v12156 = vpop.f32.mrb[0].mxu0
      %v12157 = vpop.f32.mrb[0].mxu0
      %v12158 = vadd.f32 0.0, %v12157
      %v12159 = vpop.f32.mrb[0].mxu0
      %12160 = vmatprep.mubr.bf16.mxu0 0
      %12161 = vmatmul.mubr.bf16.gmra.mrb[0].mxu0 %v12018
      %v12162 = vpop.f32.mrb[0].mxu0
      %v12163 = vadd.f32 0.0, %v12162
      %v12164 = vpop.f32.mrb[0].mxu0
      %v12165 = vpop.f32.mrb[0].mxu0
      %v12166 = vadd.f32 0.0, %v12165
      %v12167 = vpop.f32.mrb[0].mxu0
      %12168 = vmatprep.mubr.bf16.mxu0 0
      %12169 = vmatmul.mubr.bf16.gmra.mrb[0].mxu0 %v12020
      %v12170 = vpop.f32.mrb[0].mxu0
      %v12171 = vadd.f32 0.0, %v12170
      %v12172 = vpop.f32.mrb[0].mxu0
      %v12173 = vpop.f32.mrb[0].mxu0
      %v12174 = vadd.f32 0.0, %v12173
      %v12175 = vpop.f32.mrb[0].mxu0
      %12176 = vmatprep.mubr.bf16.mxu0 0
      %12177 = vmatmul.mubr.bf16.gmra.mrb[0].mxu0 %v12022
      %v12178 = vpop.f32.mrb[0].mxu0
      %v12179 = vadd.f32 0.0, %v12178
      %v12180 = vpop.f32.mrb[0].mxu0
      %v12181 = vpop.f32.mrb[0].mxu0
      %v12182 = vadd.f32 0.0, %v12181
      %v12183 = vpop.f32.mrb[0].mxu0
      %12184 = vmatprep.mubr.bf16.mxu0 0
      %12185 = vmatmul.mubr.bf16.gmra.mrb[0].mxu0 %v12024
      %v12186 = vpop.f32.mrb[0].mxu0
      %v12187 = vadd.f32 0.0, %v12186
      %v12188 = vpop.f32.mrb[0].mxu0
      %v12189 = vpop.f32.mrb[0].mxu0
      %v12190 = vadd.f32 0.0, %v12189
      %v12191 = vpop.f32.mrb[0].mxu0
      %12192 = vmatprep.mubr.bf16.mxu0 0
      %12193 = vmatmul.mubr.bf16.gmra.mrb[0].mxu0 %v12026
      %v12194 = vpop.f32.mrb[0].mxu0
      %v12195 = vadd.f32 0.0, %v12194
      %v12196 = vpop.f32.mrb[0].mxu0
      %v12197 = vpop.f32.mrb[0].mxu0
      %v12198 = vadd.f32 0.0, %v12197
      %v12199 = vpop.f32.mrb[0].mxu0
      %12200 = vmatprep.mubr.bf16.mxu0 0
      %12201 = vmatmul.mubr.bf16.gmra.mrb[0].mxu0 %v12028
      %v12202 = vpop.f32.mrb[0].mxu0
      %v12203 = vadd.f32 0.0, %v12202
      %v12204 = vpop.f32.mrb[0].mxu0
      %v12205 = vpop.f32.mrb[0].mxu0
      %v12206 = vadd.f32 0.0, %v12205
      %v12207 = vpop.f32.mrb[0].mxu0
      %12208 = vmatprep.mubr.bf16.mxu0 0
      %12209 = vmatmul.mubr.bf16.gmra.mrb[0].mxu0 %v12030
      %v12210 = vpop.f32.mrb[0].mxu0
      %v12211 = vadd.f32 0.0, %v12210
      %v12212 = vpop.f32.mrb[0].mxu0
      %v12213 = vpop.f32.mrb[0].mxu0
      %v12214 = vadd.f32 0.0, %v12213
      %v12215 = vpop.f32.mrb[0].mxu0
      %12216 = vmatprep.mubr.bf16.mxu0 0
      %12217 = vmatmul.mubr.bf16.gmra.mrb[0].mxu0 %v12032
      %v12218 = vpop.f32.mrb[0].mxu0
      %v12219 = vadd.f32 0.0, %v12218
      %v12220 = vpop.f32.mrb[0].mxu0
      %v12221 = vpop.f32.mrb[0].mxu0
      %v12222 = vadd.f32 0.0, %v12221
      %v12223 = vpop.f32.mrb[0].mxu0
      %12224 = vmatprep.mubr.bf16.mxu0 0
      %12225 = vmatmul.mubr.bf16.gmra.mrb[0].mxu0 %v12034
      %v12226 = vpop.f32.mrb[0].mxu0
      %v12227 = vadd.f32 0.0, %v12226
      %v12228 = vpop.f32.mrb[0].mxu0
      %v12229 = vpop.f32.mrb[0].mxu0
      %v12230 = vadd.f32 0.0, %v12229
      %v12231 = vpop.f32.mrb[0].mxu0
      %12232 = vmatprep.mubr.bf16.mxu0 0
      %12233 = vmatmul.mubr.bf16.gmra.mrb[0].mxu0 %v12036
      %v12234 = vpop.f32.mrb[0].mxu0
      %v12235 = vadd.f32 0.0, %v12234
      %v12236 = vpop.f32.mrb[0].mxu0
      %v12237 = vpop.f32.mrb[0].mxu0
      %v12238 = vadd.f32 0.0, %v12237
      %v12239 = vpop.f32.mrb[0].mxu0
      %12240 = vmatprep.mubr.bf16.mxu0 0
      %12241 = vmatmul.mubr.bf16.gmra.mrb[0].mxu0 %v12038
      %v12242 = vpop.f32.mrb[0].mxu0
      %v12243 = vadd.f32 0.0, %v12242
      %v12244 = vpop.f32.mrb[0].mxu0
      %v12245 = vpop.f32.mrb[0].mxu0
      %v12246 = vadd.f32 0.0, %v12245
      %v12247 = vpop.f32.mrb[0].mxu0
      %12248 = vmatprep.mubr.bf16.mxu0 0
      %12249 = vmatmul.mubr.bf16.gmra.mrb[0].mxu0 %v12040
      %v12250 = vpop.f32.mrb[0].mxu0
      %v12251 = vadd.f32 0.0, %v12250
      %v12252 = vpop.f32.mrb[0].mxu0
      %v12253 = vpop.f32.mrb[0].mxu0
      %v12254 = vadd.f32 0.0, %v12253
      %v12255 = vpop.f32.mrb[0].mxu0
      %12256 = vmatprep.mubr.bf16.mxu0 0
      %12257 = vmatmul.mubr.bf16.gmra.mrb[0].mxu0 %v12042
      %v12258 = vpop.f32.mrb[0].mxu0
      %v12259 = vadd.f32 0.0, %v12258
      %v12260 = vpop.f32.mrb[0].mxu0
      %v12261 = vpop.f32.mrb[0].mxu0
      %v12262 = vadd.f32 0.0, %v12261
      %v12263 = vpop.f32.mrb[0].mxu0
      %12264 = vmatprep.mubr.bf16.mxu0 0
      %12265 = vmatmul.mubr.bf16.gmra.mrb[0].mxu0 %v12044
      %v12266 = vpop.f32.mrb[0].mxu0
      %v12267 = vadd.f32 0.0, %v12266
      %v12268 = vpop.f32.mrb[0].mxu0
      %v12269 = vpop.f32.mrb[0].mxu0
      %v12270 = vadd.f32 0.0, %v12269
      %v12271 = vpop.f32.mrb[0].mxu0
      %12272 = vmatprep.mubr.bf16.mxu0 0
      %12273 = vmatmul.mubr.bf16.gmra.mrb[0].mxu0 %v12046
      %v12274 = vpop.f32.mrb[0].mxu0
      %v12275 = vadd.f32 0.0, %v12274
      %v12276 = vpop.f32.mrb[0].mxu0
      %v12277 = vpop.f32.mrb[0].mxu0
      %v12278 = vadd.f32 0.0, %v12277
      %v12279 = vpop.f32.mrb[0].mxu0
      %12280 = vdwg.mxu0
      %v12281 = vadd.f32 %v11958, %v12147
      %v12282 = vadd.f32 %v11959, %v12150
      %v12283 = vadd.f32 %v11960, %v12155
      %v12284 = vadd.f32 %v11961, %v12158
      %v12285 = vadd.f32 %v11962, %v12163
      %v12286 = vadd.f32 %v11963, %v12166
      %v12287 = vadd.f32 %v11964, %v12171
      %v12288 = vadd.f32 %v11965, %v12174
      %v12289 = vadd.f32 %v11966, %v12179
      %v12290 = vadd.f32 %v11967, %v12182
      %v12291 = vadd.f32 %v11968, %v12187
      %v12292 = vadd.f32 %v11969, %v12190
      %v12293 = vadd.f32 %v11970, %v12195
      %v12294 = vadd.f32 %v11971, %v12198
      %v12295 = vadd.f32 %v11972, %v12203
      %v12296 = vadd.f32 %v11973, %v12206
      %v12297 = vadd.f32 %v11974, %v12211
      %v12298 = vadd.f32 %v11975, %v12214
      %v12299 = vadd.f32 %v11976, %v12219
      %v12300 = vadd.f32 %v11977, %v12222
      %v12301 = vadd.f32 %v11978, %v12227
      %v12302 = vadd.f32 %v11979, %v12230
      %v12303 = vadd.f32 %v11980, %v12235
      %v12304 = vadd.f32 %v11981, %v12238
      %v12305 = vadd.f32 %v11982, %v12243
      %v12306 = vadd.f32 %v11983, %v12246
      %v12307 = vadd.f32 %v11984, %v12251
      %v12308 = vadd.f32 %v11985, %v12254
      %v12309 = vadd.f32 %v11986, %v12259
      %v12310 = vadd.f32 %v11987, %v12262
      %v12311 = vadd.f32 %v11988, %v12267
      %v12312 = vadd.f32 %v11989, %v12270
      %v12313 = vadd.f32 %v11990, %v12275
      %v12314 = vadd.f32 %v11991, %v12278
      %v12315 = vmax.f32 %v12281, 0.0
      %v12316 = vmax.f32 %v12282, 0.0
      %v12317 = vmax.f32 %v12283, 0.0
      %v12318 = vmax.f32 %v12284, 0.0
      %v12319 = vmax.f32 %v12285, 0.0
      %v12320 = vmax.f32 %v12286, 0.0
      %v12321 = vmax.f32 %v12287, 0.0
      %v12322 = vmax.f32 %v12288, 0.0
      %v12323 = vmax.f32 %v12289, 0.0
      %v12324 = vmax.f32 %v12290, 0.0
      %v12325 = vmax.f32 %v12291, 0.0
      %v12326 = vmax.f32 %v12292, 0.0
      %v12327 = vmax.f32 %v12293, 0.0
      %v12328 = vmax.f32 %v12294, 0.0
      %v12329 = vmax.f32 %v12295, 0.0
      %v12330 = vmax.f32 %v12296, 0.0
      %v12331 = vmax.f32 %v12297, 0.0
      %v12332 = vmax.f32 %v12298, 0.0
      %v12333 = vmax.f32 %v12299, 0.0
      %v12334 = vmax.f32 %v12300, 0.0
      %v12335 = vmax.f32 %v12301, 0.0
      %v12336 = vmax.f32 %v12302, 0.0
      %v12337 = vmax.f32 %v12303, 0.0
      %v12338 = vmax.f32 %v12304, 0.0
      %v12339 = vmax.f32 %v12305, 0.0
      %v12340 = vmax.f32 %v12306, 0.0
      %v12341 = vmax.f32 %v12307, 0.0
      %v12342 = vmax.f32 %v12308, 0.0
      %v12343 = vmax.f32 %v12309, 0.0
      %v12344 = vmax.f32 %v12310, 0.0
      %v12345 = vmax.f32 %v12311, 0.0
      %v12346 = vmax.f32 %v12312, 0.0
      %v12347 = vmax.f32 %v12313, 0.0
      %v12348 = vmax.f32 %v12314, 0.0
      %v12349 = vpack.c.bf16 %v12316, %v12315
      %v12350 = vpack.c.bf16 %v12318, %v12317
      %v12351 = vpack.c.bf16 %v12320, %v12319
      %v12352 = vpack.c.bf16 %v12322, %v12321
      %v12353 = vpack.c.bf16 %v12324, %v12323
      %v12354 = vpack.c.bf16 %v12326, %v12325
      %v12355 = vpack.c.bf16 %v12328, %v12327
      %v12356 = vpack.c.bf16 %v12330, %v12329
      %v12357 = vpack.c.bf16 %v12332, %v12331
      %v12358 = vpack.c.bf16 %v12334, %v12333
      %v12359 = vpack.c.bf16 %v12336, %v12335
      %v12360 = vpack.c.bf16 %v12338, %v12337
      %v12361 = vpack.c.bf16 %v12340, %v12339
      %v12362 = vpack.c.bf16 %v12342, %v12341
      %v12363 = vpack.c.bf16 %v12344, %v12343
      %v12364 = vpack.c.bf16 %v12346, %v12345
      %v12365 = vpack.c.bf16 %v12348, %v12347
      %v12366 = vld [vmem:[%s9] sm:$0xf]
      %v12367 = vld [vmem:[%s9 + $0x4] sm:$0xf]
      %v12368 = vld [vmem:[%s9 + $0x8] sm:$0xf]
      %v12369 = vld [vmem:[%s9 + $0xc] sm:$0xf]
      %v12370 = vld [vmem:[%s9 + $0x10] sm:$0xf]
      %v12371 = vld [vmem:[%s9 + $0x14] sm:$0xf]
      %v12372 = vld [vmem:[%s9 + $0x18] sm:$0xf]
      %v12373 = vld [vmem:[%s9 + $0x1c] sm:$0xf]
      %v12374 = vld [vmem:[%s9 + $0x20] sm:$0xf]
      %v12375 = vld [vmem:[%s9 + $0x24] sm:$0xf]
      %v12376 = vld [vmem:[%s9 + $0x28] sm:$0xf]
      %v12377 = vld [vmem:[%s9 + $0x2c] sm:$0xf]
      %v12378 = vld [vmem:[%s9 + $0x30] sm:$0xf]
      %v12379 = vld [vmem:[%s9 + $0x34] sm:$0xf]
      %v12380 = vld [vmem:[%s9 + $0x38] sm:$0xf]
      %v12381 = vld [vmem:[%s9 + $0x3c] sm:$0xf]
      %v12382 = vld [vmem:[%s10] sm:$0x1]
      %v12384 = vlaneseq
      %v12385 = vshrl.u32 %v12384, 7
      %v12386 = vsub.s32 0, %v12385
      %v12387 = vrot.slane %v12382, %v12386
      %v12405 = vunpack.c.l.b16 %v12366
      %v12406 = vunpack.c.l.b16 %v12367
      %v12407 = vunpack.c.l.b16 %v12368
      %v12408 = vunpack.c.l.b16 %v12369
      %v12409 = vunpack.c.l.b16 %v12370
      %v12410 = vunpack.c.l.b16 %v12371
      %v12411 = vunpack.c.l.b16 %v12372
      %v12412 = vunpack.c.l.b16 %v12373
      %v12413 = vunpack.c.l.b16 %v12374
      %v12414 = vunpack.c.l.b16 %v12375
      %v12415 = vunpack.c.l.b16 %v12376
      %v12416 = vunpack.c.l.b16 %v12377
      %v12417 = vunpack.c.l.b16 %v12378
      %v12418 = vunpack.c.l.b16 %v12379
      %v12419 = vunpack.c.l.b16 %v12380
      %v12420 = vunpack.c.l.b16 %v12381
      %v12421 = vpack.c.b16 %v12406, %v12405
      %v12422 = vpack.c.b16 %v12408, %v12407
      %v12423 = vpack.c.b16 %v12410, %v12409
      %v12424 = vpack.c.b16 %v12412, %v12411
      %v12425 = vpack.c.b16 %v12414, %v12413
      %v12426 = vpack.c.b16 %v12416, %v12415
      %v12427 = vpack.c.b16 %v12418, %v12417
      %v12428 = vpack.c.b16 %v12420, %v12419
      %12437 = vmatprep.subr.bf16.mxu0 0
      %12438 = vmatpush1.bf16.msra.mxu0 %v12421
      %12439 = vmatprep.subr.bf16.mxu0 0
      %12440 = vmatpush1.bf16.msra.mxu0 %v12422
      %12441 = vmatprep.subr.bf16.mxu0 0
      %12442 = vmatpush1.bf16.msra.mxu0 %v12423
      %12443 = vmatprep.subr.bf16.mxu0 0
      %12444 = vmatpush1.bf16.msra.mxu0 %v12424
      %12445 = vmatprep.subr.bf16.mxu0 0
      %12446 = vmatpush1.bf16.msra.mxu0 %v12425
      %12447 = vmatprep.subr.bf16.mxu0 0
      %12448 = vmatpush1.bf16.msra.mxu0 %v12426
      %12449 = vmatprep.subr.bf16.mxu0 0
      %12450 = vmatpush1.bf16.msra.mxu0 %v12427
      %12451 = vmatprep.subr.bf16.mxu0 0
      %12452 = vmatpush1.bf16.msra.mxu0 %v12428
      %12453 = vmatprep.subr.bf16.mxu0 0
      %12454 = vmatpush1.bf16.msra.mxu0 0
      %12455 = vmatprep.subr.bf16.mxu0 0
      %12456 = vmatpush1.bf16.msra.mxu0 0
      %12457 = vmatprep.subr.bf16.mxu0 0
      %12458 = vmatpush1.bf16.msra.mxu0 0
      %12459 = vmatprep.subr.bf16.mxu0 0
      %12460 = vmatpush1.bf16.msra.mxu0 0
      %12461 = vmatprep.subr.bf16.mxu0 0
      %12462 = vmatpush1.bf16.msra.mxu0 0
      %12463 = vmatprep.subr.bf16.mxu0 0
      %12464 = vmatpush1.bf16.msra.mxu0 0
      %12465 = vmatprep.subr.bf16.mxu0 0
      %12466 = vmatpush1.bf16.msra.mxu0 0
      %12467 = vmatprep.subr.bf16.mxu0 0
      %12468 = vmatpush1.bf16.msra.mxu0 0
      %12469 = vmatprep.mubr.bf16.mxu0 0
      %12470 = vmatmul.mubr.bf16.gmra.mrb[0].mxu0 %v12349
      %v12471 = vpop.f32.mrb[0].mxu0
      %v12472 = vadd.f32 %v12387, %v12471
      %v12473 = vpop.f32.mrb[0].mxu0
      %v12474 = vpop.f32.mrb[0].mxu0
      %v12475 = vadd.f32 %v12387, %v12474
      %v12476 = vpop.f32.mrb[0].mxu0
      %12477 = vmatprep.mubr.bf16.mxu0 0
      %12478 = vmatmul.mubr.bf16.gmra.mrb[0].mxu0 %v12350
      %v12479 = vpop.f32.mrb[0].mxu0
      %v12480 = vadd.f32 %v12387, %v12479
      %v12481 = vpop.f32.mrb[0].mxu0
      %v12482 = vpop.f32.mrb[0].mxu0
      %v12483 = vadd.f32 %v12387, %v12482
      %v12484 = vpop.f32.mrb[0].mxu0
      %12485 = vmatprep.mubr.bf16.mxu0 0
      %12486 = vmatmul.mubr.bf16.gmra.mrb[0].mxu0 %v12351
      %v12487 = vpop.f32.mrb[0].mxu0
      %v12488 = vadd.f32 %v12387, %v12487
      %v12489 = vpop.f32.mrb[0].mxu0
      %v12490 = vpop.f32.mrb[0].mxu0
      %v12491 = vadd.f32 %v12387, %v12490
      %v12492 = vpop.f32.mrb[0].mxu0
      %12493 = vmatprep.mubr.bf16.mxu0 0
      %12494 = vmatmul.mubr.bf16.gmra.mrb[0].mxu0 %v12352
      %v12495 = vpop.f32.mrb[0].mxu0
      %v12496 = vadd.f32 %v12387, %v12495
      %v12497 = vpop.f32.mrb[0].mxu0
      %v12498 = vpop.f32.mrb[0].mxu0
      %v12499 = vadd.f32 %v12387, %v12498
      %v12500 = vpop.f32.mrb[0].mxu0
      %12501 = vmatprep.mubr.bf16.mxu0 0
      %12502 = vmatmul.mubr.bf16.gmra.mrb[0].mxu0 %v12353
      %v12503 = vpop.f32.mrb[0].mxu0
      %v12504 = vadd.f32 %v12387, %v12503
      %v12505 = vpop.f32.mrb[0].mxu0
      %v12506 = vpop.f32.mrb[0].mxu0
      %v12507 = vadd.f32 %v12387, %v12506
      %v12508 = vpop.f32.mrb[0].mxu0
      %12509 = vmatprep.mubr.bf16.mxu0 0
      %12510 = vmatmul.mubr.bf16.gmra.mrb[0].mxu0 %v12354
      %v12511 = vpop.f32.mrb[0].mxu0
      %v12512 = vadd.f32 %v12387, %v12511
      %v12513 = vpop.f32.mrb[0].mxu0
      %v12514 = vpop.f32.mrb[0].mxu0
      %v12515 = vadd.f32 %v12387, %v12514
      %v12516 = vpop.f32.mrb[0].mxu0
      %12517 = vmatprep.mubr.bf16.mxu0 0
      %12518 = vmatmul.mubr.bf16.gmra.mrb[0].mxu0 %v12355
      %v12519 = vpop.f32.mrb[0].mxu0
      %v12520 = vadd.f32 %v12387, %v12519
      %v12521 = vpop.f32.mrb[0].mxu0
      %v12522 = vpop.f32.mrb[0].mxu0
      %v12523 = vadd.f32 %v12387, %v12522
      %v12524 = vpop.f32.mrb[0].mxu0
      %12525 = vmatprep.mubr.bf16.mxu0 0
      %12526 = vmatmul.mubr.bf16.gmra.mrb[0].mxu0 %v12356
      %v12527 = vpop.f32.mrb[0].mxu0
      %v12528 = vadd.f32 %v12387, %v12527
      %v12529 = vpop.f32.mrb[0].mxu0
      %v12530 = vpop.f32.mrb[0].mxu0
      %v12531 = vadd.f32 %v12387, %v12530
      %v12532 = vpop.f32.mrb[0].mxu0
      %12533 = vmatprep.mubr.bf16.mxu0 0
      %12534 = vmatmul.mubr.bf16.gmra.mrb[0].mxu0 %v12357
      %v12535 = vpop.f32.mrb[0].mxu0
      %v12536 = vadd.f32 %v12387, %v12535
      %v12537 = vpop.f32.mrb[0].mxu0
      %v12538 = vpop.f32.mrb[0].mxu0
      %v12539 = vadd.f32 %v12387, %v12538
      %v12540 = vpop.f32.mrb[0].mxu0
      %12541 = vmatprep.mubr.bf16.mxu0 0
      %12542 = vmatmul.mubr.bf16.gmra.mrb[0].mxu0 %v12358
      %v12543 = vpop.f32.mrb[0].mxu0
      %v12544 = vadd.f32 %v12387, %v12543
      %v12545 = vpop.f32.mrb[0].mxu0
      %v12546 = vpop.f32.mrb[0].mxu0
      %v12547 = vadd.f32 %v12387, %v12546
      %v12548 = vpop.f32.mrb[0].mxu0
      %12549 = vmatprep.mubr.bf16.mxu0 0
      %12550 = vmatmul.mubr.bf16.gmra.mrb[0].mxu0 %v12359
      %v12551 = vpop.f32.mrb[0].mxu0
      %v12552 = vadd.f32 %v12387, %v12551
      %v12553 = vpop.f32.mrb[0].mxu0
      %v12554 = vpop.f32.mrb[0].mxu0
      %v12555 = vadd.f32 %v12387, %v12554
      %v12556 = vpop.f32.mrb[0].mxu0
      %12557 = vmatprep.mubr.bf16.mxu0 0
      %12558 = vmatmul.mubr.bf16.gmra.mrb[0].mxu0 %v12360
      %v12559 = vpop.f32.mrb[0].mxu0
      %v12560 = vadd.f32 %v12387, %v12559
      %v12561 = vpop.f32.mrb[0].mxu0
      %v12562 = vpop.f32.mrb[0].mxu0
      %v12563 = vadd.f32 %v12387, %v12562
      %v12564 = vpop.f32.mrb[0].mxu0
      %12565 = vmatprep.mubr.bf16.mxu0 0
      %12566 = vmatmul.mubr.bf16.gmra.mrb[0].mxu0 %v12361
      %v12567 = vpop.f32.mrb[0].mxu0
      %v12568 = vadd.f32 %v12387, %v12567
      %v12569 = vpop.f32.mrb[0].mxu0
      %v12570 = vpop.f32.mrb[0].mxu0
      %v12571 = vadd.f32 %v12387, %v12570
      %v12572 = vpop.f32.mrb[0].mxu0
      %12573 = vmatprep.mubr.bf16.mxu0 0
      %12574 = vmatmul.mubr.bf16.gmra.mrb[0].mxu0 %v12362
      %v12575 = vpop.f32.mrb[0].mxu0
      %v12576 = vadd.f32 %v12387, %v12575
      %v12577 = vpop.f32.mrb[0].mxu0
      %v12578 = vpop.f32.mrb[0].mxu0
      %v12579 = vadd.f32 %v12387, %v12578
      %v12580 = vpop.f32.mrb[0].mxu0
      %12581 = vmatprep.mubr.bf16.mxu0 0
      %12582 = vmatmul.mubr.bf16.gmra.mrb[0].mxu0 %v12363
      %v12583 = vpop.f32.mrb[0].mxu0
      %v12584 = vadd.f32 %v12387, %v12583
      %v12585 = vpop.f32.mrb[0].mxu0
      %v12586 = vpop.f32.mrb[0].mxu0
      %v12587 = vadd.f32 %v12387, %v12586
      %v12588 = vpop.f32.mrb[0].mxu0
      %12589 = vmatprep.mubr.bf16.mxu0 0
      %12590 = vmatmul.mubr.bf16.gmra.mrb[0].mxu0 %v12364
      %v12591 = vpop.f32.mrb[0].mxu0
      %v12592 = vadd.f32 %v12387, %v12591
      %v12593 = vpop.f32.mrb[0].mxu0
      %v12594 = vpop.f32.mrb[0].mxu0
      %v12595 = vadd.f32 %v12387, %v12594
      %v12596 = vpop.f32.mrb[0].mxu0
      %12597 = vmatprep.mubr.bf16.mxu0 0
      %12598 = vmatmul.mubr.bf16.gmra.mrb[0].mxu0 %v12365
      %v12599 = vpop.f32.mrb[0].mxu0
      %v12600 = vadd.f32 %v12387, %v12599
      %v12601 = vpop.f32.mrb[0].mxu0
      %v12602 = vpop.f32.mrb[0].mxu0
      %v12603 = vadd.f32 %v12387, %v12602
      %v12604 = vpop.f32.mrb[0].mxu0
      %12605 = vdwg.mxu0
      %v12606 = vpack.c.bf16 %v12475, %v12472
      %v12607 = vpack.c.bf16 %v12483, %v12480
      %v12608 = vpack.c.bf16 %v12491, %v12488
      %v12609 = vpack.c.bf16 %v12499, %v12496
      %v12610 = vpack.c.bf16 %v12507, %v12504
      %v12611 = vpack.c.bf16 %v12515, %v12512
      %v12612 = vpack.c.bf16 %v12523, %v12520
      %v12613 = vpack.c.bf16 %v12531, %v12528
      %v12614 = vpack.c.bf16 %v12539, %v12536
      %v12615 = vpack.c.bf16 %v12547, %v12544
      %v12616 = vpack.c.bf16 %v12555, %v12552
      %v12617 = vpack.c.bf16 %v12563, %v12560
      %v12618 = vpack.c.bf16 %v12571, %v12568
      %v12619 = vpack.c.bf16 %v12579, %v12576
      %v12620 = vpack.c.bf16 %v12587, %v12584
      %v12621 = vpack.c.bf16 %v12595, %v12592
      %v12622 = vpack.c.bf16 %v12603, %v12600
      %v12640 = vunpack.c.l.b16 %v12606
      %v12641 = vunpack.c.h.b16 %v12606
      %v12642 = vunpack.c.l.b16 %v12607
      %v12643 = vunpack.c.h.b16 %v12607
      %v12644 = vunpack.c.l.b16 %v12608
      %v12645 = vunpack.c.h.b16 %v12608
      %v12646 = vunpack.c.l.b16 %v12609
      %v12647 = vunpack.c.h.b16 %v12609
      %v12648 = vunpack.c.l.b16 %v12610
      %v12649 = vunpack.c.h.b16 %v12610
      %v12650 = vunpack.c.l.b16 %v12611
      %v12651 = vunpack.c.h.b16 %v12611
      %v12652 = vunpack.c.l.b16 %v12612
      %v12653 = vunpack.c.h.b16 %v12612
      %v12654 = vunpack.c.l.b16 %v12613
      %v12655 = vunpack.c.h.b16 %v12613
      %v12656 = vunpack.c.l.b16 %v12614
      %v12657 = vunpack.c.h.b16 %v12614
      %v12658 = vunpack.c.l.b16 %v12615
      %v12659 = vunpack.c.h.b16 %v12615
      %v12660 = vunpack.c.l.b16 %v12616
      %v12661 = vunpack.c.h.b16 %v12616
      %v12662 = vunpack.c.l.b16 %v12617
      %v12663 = vunpack.c.h.b16 %v12617
      %v12664 = vunpack.c.l.b16 %v12618
      %v12665 = vunpack.c.h.b16 %v12618
      %v12666 = vunpack.c.l.b16 %v12619
      %v12667 = vunpack.c.h.b16 %v12619
      %v12668 = vunpack.c.l.b16 %v12620
      %v12669 = vunpack.c.h.b16 %v12620
      %v12670 = vunpack.c.l.b16 %v12621
      %v12671 = vunpack.c.h.b16 %v12621
      %v12672 = vunpack.c.l.b16 %v12622
      %v12673 = vunpack.c.h.b16 %v12622
      %v12674 = vpack.c.b16 %v12640, %v12640
      %v12675 = vpack.c.b16 %v12641, %v12641
      %v12676 = vpack.c.b16 %v12642, %v12642
      %v12677 = vpack.c.b16 %v12643, %v12643
      %v12678 = vpack.c.b16 %v12644, %v12644
      %v12679 = vpack.c.b16 %v12645, %v12645
      %v12680 = vpack.c.b16 %v12646, %v12646
      %v12681 = vpack.c.b16 %v12647, %v12647
      %v12682 = vpack.c.b16 %v12648, %v12648
      %v12683 = vpack.c.b16 %v12649, %v12649
      %v12684 = vpack.c.b16 %v12650, %v12650
      %v12685 = vpack.c.b16 %v12651, %v12651
      %v12686 = vpack.c.b16 %v12652, %v12652
      %v12687 = vpack.c.b16 %v12653, %v12653
      %v12688 = vpack.c.b16 %v12654, %v12654
      %v12689 = vpack.c.b16 %v12655, %v12655
      %v12690 = vpack.c.b16 %v12656, %v12656
      %v12691 = vpack.c.b16 %v12657, %v12657
      %v12692 = vpack.c.b16 %v12658, %v12658
      %v12693 = vpack.c.b16 %v12659, %v12659
      %v12694 = vpack.c.b16 %v12660, %v12660
      %v12695 = vpack.c.b16 %v12661, %v12661
      %v12696 = vpack.c.b16 %v12662, %v12662
      %v12697 = vpack.c.b16 %v12663, %v12663
      %v12698 = vpack.c.b16 %v12664, %v12664
      %v12699 = vpack.c.b16 %v12665, %v12665
      %v12700 = vpack.c.b16 %v12666, %v12666
      %v12701 = vpack.c.b16 %v12667, %v12667
      %v12702 = vpack.c.b16 %v12668, %v12668
      %v12703 = vpack.c.b16 %v12669, %v12669
      %v12704 = vpack.c.b16 %v12670, %v12670
      %v12705 = vpack.c.b16 %v12671, %v12671
      %v12706 = vpack.c.b16 %v12672, %v12672
      %v12707 = vpack.c.b16 %v12673, %v12673
      %12742 = vst [vmem:[%s386] sm:$0xf] %v12674
      %12743 = vst [vmem:[%s386 + $0x4] sm:$0xf] %v12675
      %12744 = vst [vmem:[%s386 + $0x8] sm:$0xf] %v12676
      %12745 = vst [vmem:[%s386 + $0xc] sm:$0xf] %v12677
      %12746 = vst [vmem:[%s386 + $0x10] sm:$0xf] %v12678
      %12747 = vst [vmem:[%s386 + $0x14] sm:$0xf] %v12679
      %12748 = vst [vmem:[%s386 + $0x18] sm:$0xf] %v12680
      %12749 = vst [vmem:[%s386 + $0x1c] sm:$0xf] %v12681
      %12750 = vst [vmem:[%s386 + $0x20] sm:$0xf] %v12682
      %12751 = vst [vmem:[%s386 + $0x24] sm:$0xf] %v12683
      %12752 = vst [vmem:[%s386 + $0x28] sm:$0xf] %v12684
      %12753 = vst [vmem:[%s386 + $0x2c] sm:$0xf] %v12685
      %12754 = vst [vmem:[%s386 + $0x30] sm:$0xf] %v12686
      %12755 = vst [vmem:[%s386 + $0x34] sm:$0xf] %v12687
      %12756 = vst [vmem:[%s386 + $0x38] sm:$0xf] %v12688
      %12757 = vst [vmem:[%s386 + $0x3c] sm:$0xf] %v12689
      %12758 = vst [vmem:[%s386 + $0x40] sm:$0xf] %v12690
      %12759 = vst [vmem:[%s386 + $0x44] sm:$0xf] %v12691
      %12760 = vst [vmem:[%s386 + $0x48] sm:$0xf] %v12692
      %12761 = vst [vmem:[%s386 + $0x4c] sm:$0xf] %v12693
      %12762 = vst [vmem:[%s386 + $0x50] sm:$0xf] %v12694
      %12763 = vst [vmem:[%s386 + $0x54] sm:$0xf] %v12695
      %12764 = vst [vmem:[%s386 + $0x58] sm:$0xf] %v12696
      %12765 = vst [vmem:[%s386 + $0x5c] sm:$0xf] %v12697
      %12766 = vst [vmem:[%s386 + $0x60] sm:$0xf] %v12698
      %12767 = vst [vmem:[%s386 + $0x64] sm:$0xf] %v12699
      %12768 = vst [vmem:[%s386 + $0x68] sm:$0xf] %v12700
      %12769 = vst [vmem:[%s386 + $0x6c] sm:$0xf] %v12701
      %12770 = vst [vmem:[%s386 + $0x70] sm:$0xf] %v12702
      %12771 = vst [vmem:[%s386 + $0x74] sm:$0xf] %v12703
      %12772 = vst [vmem:[%s386 + $0x78] sm:$0xf] %v12704
      %12773 = vst [vmem:[%s386 + $0x7c] sm:$0xf] %v12705
      %12774 = vst [vmem:[%s386 + $0x80] sm:$0xf] %v12706
      %12775 = vst [vmem:[%s386 + $0x84] sm:$0xf] %v12707
      %p12776 = scmp.lt.s32.totalorder %s22, 1
      %s12777 = scalar_select %p12776, %s22, 1
      %s12778 = smul.addr %s12777, 34
      %s12779 = smul.addr %s12778, 4
      %s12780 = scalar_lea.vmem %s11, %s12779
      // Predicated region
      $region65: #{_lambda_.1} parent=63 // pred_check
        %p12781 = pneg %p276
      $region66: #{_lambda_.1} parent=63 // pred_check_branch
        %12783 = sbr.rel (%p12781) target = $region68
      $region67: #{_lambda_.1} parent=63 // pred_region
        _
      $region68: #{_lambda_.1} parent=63 // pred_fallthru
        _
    $region64: #{_lambda_.1} parent=5 // pred_fallthru
      _
    %p12784 = scmp.le.s32.totalorder 2, %s17
    // Predicated region
    $region69: #{_lambda_.1} parent=5 // pred_check
      %p12785 = pneg %p12784
    $region70: #{_lambda_.1} parent=5 // pred_check_branch
      %12787 = sbr.rel (%p12785) target = $region72
    $region71: #{_lambda_.1} parent=5 // pred_region
      %s12788 = ssub.s32 %s17, 2
      // Predicated region
      $region73: #{_lambda_.1} parent=71 // pred_check
        %p12789 = pneg %p282
      $region74: #{_lambda_.1} parent=71 // pred_check_branch
        %12791 = sbr.rel (%p12789) target = $region76
      $region75: #{_lambda_.1} parent=71 // pred_region
        %p12792 = scmp.lt.s32.totalorder %s23, 1
        %s12793 = scalar_select %p12792, %s23, 1
        %s12794 = smul.addr %s12793, 34
        %s12795 = smul.addr %s12794, 4
        %s12796 = scalar_lea.vmem %s11, %s12795
      $region76: #{_lambda_.1} parent=71 // pred_fallthru
        _
    $region72: #{_lambda_.1} parent=5 // pred_fallthru
      _
  $region6: #{_lambda_.1} parent=0 // loop_footer
    %s21 = sadd.s32 1, %s17
  $region7: #{_lambda_.1} parent=0 // loop_footer_branch
    %16 = sbr.rel target = $region3
  $region8: #{_lambda_.1} parent=0 // loop_exit
    _

</llo_original>
